<compile_context>
chip_gen: v7x
topology: tpu7x:2x2x1
jax: 0.10.0
libtpu: 0.0.40
codegen_flags: <defaults>
</compile_context>

<pallas_src>
import jax
import jax.numpy as jnp
from jax.experimental import pallas as pl
from jax.experimental.pallas import tpu as pltpu

EPS = 1e-5
NEG_SLOPE = 0.2
_HI = jax.lax.Precision.HIGHEST


def residual_block_pallas(x_nhwc, params):
    """x_nhwc: (N, H, W, Cin) float32. Returns (N, H, W, Cout) float32."""
    (w1, b1, g1, be1, w2, b2, g2, be2, w3, b3, g3, be3) = params
    del b1, b2, b3  # conv biases cancel exactly under batch-stat BatchNorm
    N, H, W, Cin = x_nhwc.shape
    Cout = w1.shape[-1]
    WC_in, WC_out = W * Cin, W * Cout
    inv_m = 1.0 / (N * H * W)

    # ------------- wrapper-side weight lowering (one-time, exact, no matmuls) -------------
    def band3x3(w_hwio):
        # (3,3,Ci,Co) -> (3, W*Ci, W*Co); T[ky, xi*Ci+ci, xo*Co+co] = w[ky, xi-xo+1, ci, co]
        ci, co = w_hwio.shape[2], w_hwio.shape[3]
        xi = jnp.arange(W)[:, None]
        xo = jnp.arange(W)[None, :]
        kx = xi - xo + 1                                              # (W, W)
        valid = ((kx >= 0) & (kx <= 2)).astype(jnp.float32)
        t = w_hwio.astype(jnp.float32)[:, jnp.clip(kx, 0, 2), :, :]   # (3, W, W, Ci, Co)
        t = t * valid[None, :, :, None, None]
        return jnp.transpose(t, (0, 1, 3, 2, 4)).reshape(3, W * ci, W * co)

    def band1x1(w_io):
        # (Ci, Co) -> (W*Ci, W*Co), diagonal in x (1x1 conv, no padding)
        ci, co = w_io.shape
        eye = jnp.eye(W, dtype=jnp.float32)
        t = eye[:, None, :, None] * w_io.astype(jnp.float32)[None, :, None, :]
        return t.reshape(W * ci, W * co)

    t1 = band3x3(w1)                                                  # (3, W*Cin,  W*Cout)
    t3 = band1x1(w3)                                                  # (W*Cin, W*Cout)
    z3 = jnp.zeros_like(t3)
    t13 = jnp.stack([jnp.concatenate([t1[0], z3], axis=-1),           # skip only at ky=1
                     jnp.concatenate([t1[1], t3], axis=-1),
                     jnp.concatenate([t1[2], z3], axis=-1)])          # (3, W*Cin, 2*W*Cout)
    t2 = band3x3(w2)                                                  # (3, W*Cout, W*Cout)

    # 0/1 channel selector for the fused bn1|bn3 slab: lane = branch*W*Cout + x*Cout + c
    lane = jnp.arange(2 * WC_out)
    ch_of_lane = (lane // WC_out) * Cout + lane % Cout
    sel = (ch_of_lane[:, None] == jnp.arange(2 * Cout)[None, :]).astype(jnp.float32)

    # packed BN affine params: rows = [g1|g3, be1|be3, g2|0, be2|0]   (one tiny input)
    rowv = lambda v: v.reshape(-1).astype(jnp.float32)
    pad0 = jnp.zeros((Cout,), jnp.float32)
    bnp = jnp.stack([jnp.concatenate([rowv(g1), rowv(g3)]),
                     jnp.concatenate([rowv(be1), rowv(be3)]),
                     jnp.concatenate([rowv(g2), pad0]),
                     jnp.concatenate([rowv(be2), pad0])])             # (4, 2*Cout)

    x3d = x_nhwc.astype(jnp.float32).reshape(N, H, WC_in)             # lane-dense rows

    # --------------------------------- the kernel ---------------------------------
    def kernel(x_ref, t13_ref, t2_ref, bnp_ref, sel_ref, out_ref):
        def lrelu(v):
            return jnp.maximum(v, NEG_SLOPE * v)          # one mul + one max

        def band_conv(v3d, t_ref):
            # v3d: (N, H, Lin); t_ref: (3, Lin, Lout).  3x3 conv with pad=1:
            # W boundary folded into t_ref, H boundary via zero-filled row shifts.
            lin = v3d.shape[-1]
            acc = jnp.dot(v3d.reshape(N * H, lin), t_ref[1],
                          precision=_HI, preferred_element_type=jnp.float32)
            zrow = jnp.zeros((N, 1, lin), jnp.float32)
            up = jnp.concatenate([zrow, v3d[:, :H - 1, :]], axis=1)   # holds row y-1
            dn = jnp.concatenate([v3d[:, 1:, :], zrow], axis=1)       # holds row y+1
            acc = acc + jnp.dot(up.reshape(N * H, lin), t_ref[0],
                                precision=_HI, preferred_element_type=jnp.float32)
            acc = acc + jnp.dot(dn.reshape(N * H, lin), t_ref[2],
                                precision=_HI, preferred_element_type=jnp.float32)
            return acc

        def batchnorm(y, g, be, sel_mat, n_branch):
            # y: (N*H, n_branch*W*Cout) lane-dense.  Per-channel batch stats via a
            # 0/1 selector matmul (no lane->sublane relayout), biased variance,
            # gamma folded into the rsqrt; applied as one FMA over full vregs.
            s1 = jnp.sum(jnp.dot(y, sel_mat, precision=_HI,
                                 preferred_element_type=jnp.float32),
                         axis=0, keepdims=True)                       # (1, n_branch*Cout)
            s2 = jnp.sum(jnp.dot(y * y, sel_mat, precision=_HI,
                                 preferred_element_type=jnp.float32),
                         axis=0, keepdims=True)
            mean = s1 * inv_m
            var = s2 * inv_m - mean * mean                            # single-pass (ok at this scale)
            scale = g * jax.lax.rsqrt(var + EPS)
            shift = be - mean * scale
            tile = lambda r: jnp.concatenate(
                [jnp.tile(r[:, b * Cout:(b + 1) * Cout], (1, W))
                 for b in range(n_branch)], axis=-1)                  # (1, n_branch*W*Cout)
            return y * tile(scale) + tile(shift)

        bnp_v = bnp_ref[...]
        sel_v = sel_ref[...]

        # conv1 (3x3) + conv3 (1x1 skip) fused in one banded accumulator; shared stats pass.
        y13 = band_conv(x_ref[...], t13_ref)                          # (N*H, 2*W*Cout)
        y13 = batchnorm(y13, bnp_v[0:1, :], bnp_v[1:2, :], sel_v, 2)
        y1 = lrelu(y13[:, :WC_out])                                   # branch 1 activation
        y3 = y13[:, WC_out:]                                          # skip branch (post-bn3)

        # conv2 (3x3) -> bn2, all on the (N*H, W*Cout) slab.
        y2 = band_conv(y1.reshape(N, H, WC_out), t2_ref)
        y2 = batchnorm(y2, bnp_v[2:3, :Cout], bnp_v[3:4, :Cout],
                       sel_v[:WC_out, :Cout], 1)

        out_ref[...] = lrelu(y2 + y3)                                 # lane-dense (32,128) store

    # NOTE(tiling): grid-less, whole-problem-in-VMEM is right at these toy shapes
    # (total VMEM ~0.5 MiB).  For realistic shapes, tile the (N*H) row axis with a
    # grid + BlockSpecs, dimension_semantics=("parallel",) so v7x's 2 TensorCores
    # both work, keep the band weights on a constant index_map so they stay
    # resident, and size tiles against 64 MiB/TC (v7x) vs 128 MiB (v5e/v6e); at
    # large W switch the band weights to per-tap im2col built by direct writes.
    out_flat = pl.pallas_call(
        kernel,
        out_shape=jax.ShapeDtypeStruct((N * H, WC_out), jnp.float32),
        in_specs=[pl.BlockSpec(memory_space=pltpu.MemorySpace.VMEM)] * 5,
        out_specs=pl.BlockSpec(memory_space=pltpu.MemorySpace.VMEM),
    )(x3d, t13, t2, bnp, sel)
    return out_flat.reshape(N, H, W, Cout)


# ---------------- pure-JAX reference (mirrors the PyTorch module) ----------------
def _ref_forward(x_nhwc, params):
    (w1, b1, g1, be1, w2, b2, g2, be2, w3, b3, g3, be3) = params

    def conv(x, w_hwio, b, pad):
        y = jax.lax.conv_general_dilated(
            x, w_hwio, window_strides=(1, 1),
            padding=((pad, pad), (pad, pad)),
            dimension_numbers=("NHWC", "HWIO", "NHWC"),
            precision=jax.lax.Precision.HIGHEST,
        )
        return y + b.reshape(1, 1, 1, -1)

    def bn(x, g, be):
        mean = jnp.mean(x, axis=(0, 1, 2), keepdims=True)
        var = jnp.mean((x - mean) ** 2, axis=(0, 1, 2), keepdims=True)
        return (x - mean) * jax.lax.rsqrt(var + EPS) * g.reshape(1, 1, 1, -1) \
            + be.reshape(1, 1, 1, -1)

    def lrelu(x):
        return jnp.where(x >= 0, x, NEG_SLOPE * x)

    x1 = lrelu(bn(conv(x_nhwc, w1, b1, 1), g1, be1))
    x2 = bn(conv(x1, w2, b2, 1), g2, be2)
    w3_hwio = w3.reshape(1, 1, w3.shape[0], w3.shape[1])
    x3 = bn(conv(x_nhwc, w3_hwio, b3, 0), g3, be3)
    return lrelu(x2 + x3)


def _make_params(key, in_c, out_c):
    ks = jax.random.split(key, 12)
    # PyTorch conv weights are OIHW; convert to HWIO for the NHWC kernel.
    w1 = 0.2 * jax.random.normal(ks[0], (out_c, in_c, 3, 3), jnp.float32)
    w2 = 0.2 * jax.random.normal(ks[1], (out_c, out_c, 3, 3), jnp.float32)
    w3 = 0.2 * jax.random.normal(ks[2], (out_c, in_c, 1, 1), jnp.float32)
    b1 = 0.1 * jax.random.normal(ks[3], (out_c,), jnp.float32)
    b2 = 0.1 * jax.random.normal(ks[4], (out_c,), jnp.float32)
    b3 = 0.1 * jax.random.normal(ks[5], (out_c,), jnp.float32)
    g1 = 1.0 + 0.1 * jax.random.normal(ks[6], (out_c,), jnp.float32)
    g2 = 1.0 + 0.1 * jax.random.normal(ks[7], (out_c,), jnp.float32)
    g3 = 1.0 + 0.1 * jax.random.normal(ks[8], (out_c,), jnp.float32)
    be1 = 0.1 * jax.random.normal(ks[9], (out_c,), jnp.float32)
    be2 = 0.1 * jax.random.normal(ks[10], (out_c,), jnp.float32)
    be3 = 0.1 * jax.random.normal(ks[11], (out_c,), jnp.float32)
    to_hwio = lambda w: jnp.transpose(w, (2, 3, 1, 0))      # OIHW -> HWIO
    return (
        to_hwio(w1), b1, g1, be1,
        to_hwio(w2), b2, g2, be2,
        to_hwio(w3).reshape(in_c, out_c), b3, g3, be3,
    )


if __name__ == "__main__":
    N, IN_C, OUT_C, H, W = 2, 4, 8, 16, 16

    key = jax.random.PRNGKey(0)
    k_x, k_p = jax.random.split(key)

    # PyTorch-style NCHW input, deterministic.
    x_nchw = jax.random.normal(k_x, (N, IN_C, H, W), jnp.float32)
    params = _make_params(k_p, IN_C, OUT_C)

    # NCHW -> NHWC for the kernel.
    x_nhwc = jnp.transpose(x_nchw, (0, 2, 3, 1))

    out_nhwc = residual_block_pallas(x_nhwc, params)
    out_nhwc = jax.block_until_ready(out_nhwc)
    out_nchw = jnp.transpose(out_nhwc, (0, 3, 1, 2))  # back to PyTorch NCHW

    ref_nhwc = _ref_forward(x_nhwc, params)
    assert out_nchw.shape == (N, OUT_C, H, W)
    assert jnp.allclose(out_nhwc, ref_nhwc, rtol=2e-3, atol=2e-3), (
        float(jnp.max(jnp.abs(out_nhwc - ref_nhwc)))
    )

    print("KERNEL_OK")
</pallas_src>

<mosaic_0001>
module attributes {stable_mosaic.version = 11 : i64} {
  func.func @kernel(%arg0: memref<2x16x64xf32, #tpu.memory_space<vmem>>, %arg1: memref<3x64x256xf32, #tpu.memory_space<vmem>>, %arg2: memref<3x128x128xf32, #tpu.memory_space<vmem>>, %arg3: memref<4x16xf32, #tpu.memory_space<vmem>>, %arg4: memref<256x16xf32, #tpu.memory_space<vmem>>, %arg5: memref<32x128xf32, #tpu.memory_space<vmem>>) attributes {dimension_semantics = [], scalar_prefetch = 0 : i64, scratch_operands = 0 : i64, tpu.core_type = #tpu.core_type<tc>} {
    %c0 = arith.constant 0 : index
    %c0_0 = arith.constant 0 : index
    %0 = vector.load %arg3[%c0, %c0_0] : memref<4x16xf32, #tpu.memory_space<vmem>>, vector<4x16xf32>
    %c0_1 = arith.constant 0 : index
    %c0_2 = arith.constant 0 : index
    %1 = vector.load %arg4[%c0_1, %c0_2] : memref<256x16xf32, #tpu.memory_space<vmem>>, vector<256x16xf32>
    %c0_3 = arith.constant 0 : index
    %c0_4 = arith.constant 0 : index
    %c0_5 = arith.constant 0 : index
    %2 = vector.load %arg0[%c0_3, %c0_4, %c0_5] : memref<2x16x64xf32, #tpu.memory_space<vmem>>, vector<2x16x64xf32>
    %3 = vector.shape_cast %2 : vector<2x16x64xf32> to vector<32x64xf32>
    %c1 = arith.constant 1 : index
    %c0_6 = arith.constant 0 : index
    %c0_7 = arith.constant 0 : index
    %4 = vector.load %arg1[%c1, %c0_6, %c0_7] : memref<3x64x256xf32, #tpu.memory_space<vmem>>, vector<1x64x256xf32>
    %5 = vector.shape_cast %4 : vector<1x64x256xf32> to vector<64x256xf32>
    %cst = arith.constant dense<0.000000e+00> : vector<32x256xf32>
    %6 = tpu.matmul %3, %5, %cst {dimension_numbers = #tpu.dot_dimension_numbers<[1], [0], [0], [1], [0, 0, 1, 1], [], []>, precision = #tpu.contract_precision<fp32>} : vector<32x64xf32>, vector<64x256xf32>, vector<32x256xf32> -> vector<32x256xf32>
    %cst_8 = arith.constant 0.000000e+00 : f32
    %7 = vector.broadcast %cst_8 : f32 to vector<2x1x64xf32>
    %8 = vector.extract_strided_slice %2 {offsets = [0, 0, 0], sizes = [2, 15, 64], strides = [1, 1, 1]} : vector<2x16x64xf32> to vector<2x15x64xf32>
    %9 = tpu.concatenate %7, %8 in 1 : vector<2x1x64xf32>, vector<2x15x64xf32> -> vector<2x16x64xf32>
    %10 = vector.extract_strided_slice %2 {offsets = [0, 1, 0], sizes = [2, 15, 64], strides = [1, 1, 1]} : vector<2x16x64xf32> to vector<2x15x64xf32>
    %11 = tpu.concatenate %10, %7 in 1 : vector<2x15x64xf32>, vector<2x1x64xf32> -> vector<2x16x64xf32>
    %12 = vector.shape_cast %9 : vector<2x16x64xf32> to vector<32x64xf32>
    %c0_9 = arith.constant 0 : index
    %c0_10 = arith.constant 0 : index
    %c0_11 = arith.constant 0 : index
    %13 = vector.load %arg1[%c0_9, %c0_10, %c0_11] : memref<3x64x256xf32, #tpu.memory_space<vmem>>, vector<1x64x256xf32>
    %14 = vector.shape_cast %13 : vector<1x64x256xf32> to vector<64x256xf32>
    %cst_12 = arith.constant dense<0.000000e+00> : vector<32x256xf32>
    %15 = tpu.matmul %12, %14, %cst_12 {dimension_numbers = #tpu.dot_dimension_numbers<[1], [0], [0], [1], [0, 0, 1, 1], [], []>, precision = #tpu.contract_precision<fp32>} : vector<32x64xf32>, vector<64x256xf32>, vector<32x256xf32> -> vector<32x256xf32>
    %16 = arith.addf %6, %15 : vector<32x256xf32>
    %17 = vector.shape_cast %11 : vector<2x16x64xf32> to vector<32x64xf32>
    %c2 = arith.constant 2 : index
    %c0_13 = arith.constant 0 : index
    %c0_14 = arith.constant 0 : index
    %18 = vector.load %arg1[%c2, %c0_13, %c0_14] : memref<3x64x256xf32, #tpu.memory_space<vmem>>, vector<1x64x256xf32>
    %19 = vector.shape_cast %18 : vector<1x64x256xf32> to vector<64x256xf32>
    %cst_15 = arith.constant dense<0.000000e+00> : vector<32x256xf32>
    %20 = tpu.matmul %17, %19, %cst_15 {dimension_numbers = #tpu.dot_dimension_numbers<[1], [0], [0], [1], [0, 0, 1, 1], [], []>, precision = #tpu.contract_precision<fp32>} : vector<32x64xf32>, vector<64x256xf32>, vector<32x256xf32> -> vector<32x256xf32>
    %21 = arith.addf %16, %20 : vector<32x256xf32>
    %22 = vector.extract_strided_slice %0 {offsets = [0, 0], sizes = [1, 16], strides = [1, 1]} : vector<4x16xf32> to vector<1x16xf32>
    %23 = vector.extract_strided_slice %0 {offsets = [1, 0], sizes = [1, 16], strides = [1, 1]} : vector<4x16xf32> to vector<1x16xf32>
    %cst_16 = arith.constant dense<0.000000e+00> : vector<32x16xf32>
    %24 = tpu.matmul %21, %1, %cst_16 {dimension_numbers = #tpu.dot_dimension_numbers<[1], [0], [0], [1], [0, 0, 1, 1], [], []>, precision = #tpu.contract_precision<fp32>} : vector<32x256xf32>, vector<256x16xf32>, vector<32x16xf32> -> vector<32x16xf32>
    %cst_17 = arith.constant dense<0.000000e+00> : vector<16xf32>
    %25 = vector.multi_reduction <add>, %24, %cst_17 [0] : vector<32x16xf32> to vector<16xf32>
    %26 = vector.shape_cast %25 : vector<16xf32> to vector<1x16xf32>
    %27 = arith.mulf %21, %21 : vector<32x256xf32>
    %cst_18 = arith.constant dense<0.000000e+00> : vector<32x16xf32>
    %28 = tpu.matmul %27, %1, %cst_18 {dimension_numbers = #tpu.dot_dimension_numbers<[1], [0], [0], [1], [0, 0, 1, 1], [], []>, precision = #tpu.contract_precision<fp32>} : vector<32x256xf32>, vector<256x16xf32>, vector<32x16xf32> -> vector<32x16xf32>
    %cst_19 = arith.constant dense<0.000000e+00> : vector<16xf32>
    %29 = vector.multi_reduction <add>, %28, %cst_19 [0] : vector<32x16xf32> to vector<16xf32>
    %30 = vector.shape_cast %29 : vector<16xf32> to vector<1x16xf32>
    %cst_20 = arith.constant 0.001953125 : f32
    %31 = vector.broadcast %cst_20 : f32 to vector<1x16xf32>
    %32 = arith.mulf %26, %31 : vector<1x16xf32>
    %cst_21 = arith.constant 0.001953125 : f32
    %33 = vector.broadcast %cst_21 : f32 to vector<1x16xf32>
    %34 = arith.mulf %30, %33 : vector<1x16xf32>
    %35 = arith.mulf %32, %32 : vector<1x16xf32>
    %36 = arith.subf %34, %35 : vector<1x16xf32>
    %cst_22 = arith.constant 9.99999974E-6 : f32
    %37 = vector.broadcast %cst_22 : f32 to vector<1x16xf32>
    %38 = arith.addf %36, %37 : vector<1x16xf32>
    %39 = math.rsqrt %38 : vector<1x16xf32>
    %40 = arith.mulf %22, %39 : vector<1x16xf32>
    %41 = arith.mulf %32, %40 : vector<1x16xf32>
    %42 = arith.subf %23, %41 : vector<1x16xf32>
    %43 = vector.extract_strided_slice %40 {offsets = [0, 0], sizes = [1, 8], strides = [1, 1]} : vector<1x16xf32> to vector<1x8xf32>
    %44 = tpu.concatenate %43, %43, %43, %43, %43, %43, %43, %43, %43, %43, %43, %43, %43, %43, %43, %43 in 1 : vector<1x8xf32>, vector<1x8xf32>, vector<1x8xf32>, vector<1x8xf32>, vector<1x8xf32>, vector<1x8xf32>, vector<1x8xf32>, vector<1x8xf32>, vector<1x8xf32>, vector<1x8xf32>, vector<1x8xf32>, vector<1x8xf32>, vector<1x8xf32>, vector<1x8xf32>, vector<1x8xf32>, vector<1x8xf32> -> vector<1x128xf32>
    %45 = vector.extract_strided_slice %40 {offsets = [0, 8], sizes = [1, 8], strides = [1, 1]} : vector<1x16xf32> to vector<1x8xf32>
    %46 = tpu.concatenate %45, %45, %45, %45, %45, %45, %45, %45, %45, %45, %45, %45, %45, %45, %45, %45 in 1 : vector<1x8xf32>, vector<1x8xf32>, vector<1x8xf32>, vector<1x8xf32>, vector<1x8xf32>, vector<1x8xf32>, vector<1x8xf32>, vector<1x8xf32>, vector<1x8xf32>, vector<1x8xf32>, vector<1x8xf32>, vector<1x8xf32>, vector<1x8xf32>, vector<1x8xf32>, vector<1x8xf32>, vector<1x8xf32> -> vector<1x128xf32>
    %47 = tpu.concatenate %44, %46 in 1 : vector<1x128xf32>, vector<1x128xf32> -> vector<1x256xf32>
    %48 = vector.broadcast %47 : vector<1x256xf32> to vector<32x256xf32>
    %49 = arith.mulf %21, %48 : vector<32x256xf32>
    %50 = vector.extract_strided_slice %42 {offsets = [0, 0], sizes = [1, 8], strides = [1, 1]} : vector<1x16xf32> to vector<1x8xf32>
    %51 = tpu.concatenate %50, %50, %50, %50, %50, %50, %50, %50, %50, %50, %50, %50, %50, %50, %50, %50 in 1 : vector<1x8xf32>, vector<1x8xf32>, vector<1x8xf32>, vector<1x8xf32>, vector<1x8xf32>, vector<1x8xf32>, vector<1x8xf32>, vector<1x8xf32>, vector<1x8xf32>, vector<1x8xf32>, vector<1x8xf32>, vector<1x8xf32>, vector<1x8xf32>, vector<1x8xf32>, vector<1x8xf32>, vector<1x8xf32> -> vector<1x128xf32>
    %52 = vector.extract_strided_slice %42 {offsets = [0, 8], sizes = [1, 8], strides = [1, 1]} : vector<1x16xf32> to vector<1x8xf32>
    %53 = tpu.concatenate %52, %52, %52, %52, %52, %52, %52, %52, %52, %52, %52, %52, %52, %52, %52, %52 in 1 : vector<1x8xf32>, vector<1x8xf32>, vector<1x8xf32>, vector<1x8xf32>, vector<1x8xf32>, vector<1x8xf32>, vector<1x8xf32>, vector<1x8xf32>, vector<1x8xf32>, vector<1x8xf32>, vector<1x8xf32>, vector<1x8xf32>, vector<1x8xf32>, vector<1x8xf32>, vector<1x8xf32>, vector<1x8xf32> -> vector<1x128xf32>
    %54 = tpu.concatenate %51, %53 in 1 : vector<1x128xf32>, vector<1x128xf32> -> vector<1x256xf32>
    %55 = vector.broadcast %54 : vector<1x256xf32> to vector<32x256xf32>
    %56 = arith.addf %49, %55 : vector<32x256xf32>
    %57 = vector.extract_strided_slice %56 {offsets = [0, 0], sizes = [32, 128], strides = [1, 1]} : vector<32x256xf32> to vector<32x128xf32>
    %cst_23 = arith.constant 2.000000e-01 : f32
    %58 = vector.broadcast %cst_23 : f32 to vector<32x128xf32>
    %59 = arith.mulf %58, %57 : vector<32x128xf32>
    %60 = arith.maximumf %57, %59 : vector<32x128xf32>
    %61 = vector.extract_strided_slice %56 {offsets = [0, 128], sizes = [32, 128], strides = [1, 1]} : vector<32x256xf32> to vector<32x128xf32>
    %62 = vector.shape_cast %60 : vector<32x128xf32> to vector<2x16x128xf32>
    %63 = vector.shape_cast %62 : vector<2x16x128xf32> to vector<32x128xf32>
    %c1_24 = arith.constant 1 : index
    %c0_25 = arith.constant 0 : index
    %c0_26 = arith.constant 0 : index
    %64 = vector.load %arg2[%c1_24, %c0_25, %c0_26] : memref<3x128x128xf32, #tpu.memory_space<vmem>>, vector<1x128x128xf32>
    %65 = vector.shape_cast %64 : vector<1x128x128xf32> to vector<128x128xf32>
    %cst_27 = arith.constant dense<0.000000e+00> : vector<32x128xf32>
    %66 = tpu.matmul %63, %65, %cst_27 {dimension_numbers = #tpu.dot_dimension_numbers<[1], [0], [0], [1], [0, 0, 1, 1], [], []>, precision = #tpu.contract_precision<fp32>} : vector<32x128xf32>, vector<128x128xf32>, vector<32x128xf32> -> vector<32x128xf32>
    %cst_28 = arith.constant 0.000000e+00 : f32
    %67 = vector.broadcast %cst_28 : f32 to vector<2x1x128xf32>
    %68 = vector.extract_strided_slice %62 {offsets = [0, 0, 0], sizes = [2, 15, 128], strides = [1, 1, 1]} : vector<2x16x128xf32> to vector<2x15x128xf32>
    %69 = tpu.concatenate %67, %68 in 1 : vector<2x1x128xf32>, vector<2x15x128xf32> -> vector<2x16x128xf32>
    %70 = vector.extract_strided_slice %62 {offsets = [0, 1, 0], sizes = [2, 15, 128], strides = [1, 1, 1]} : vector<2x16x128xf32> to vector<2x15x128xf32>
    %71 = tpu.concatenate %70, %67 in 1 : vector<2x15x128xf32>, vector<2x1x128xf32> -> vector<2x16x128xf32>
    %72 = vector.shape_cast %69 : vector<2x16x128xf32> to vector<32x128xf32>
    %c0_29 = arith.constant 0 : index
    %c0_30 = arith.constant 0 : index
    %c0_31 = arith.constant 0 : index
    %73 = vector.load %arg2[%c0_29, %c0_30, %c0_31] : memref<3x128x128xf32, #tpu.memory_space<vmem>>, vector<1x128x128xf32>
    %74 = vector.shape_cast %73 : vector<1x128x128xf32> to vector<128x128xf32>
    %cst_32 = arith.constant dense<0.000000e+00> : vector<32x128xf32>
    %75 = tpu.matmul %72, %74, %cst_32 {dimension_numbers = #tpu.dot_dimension_numbers<[1], [0], [0], [1], [0, 0, 1, 1], [], []>, precision = #tpu.contract_precision<fp32>} : vector<32x128xf32>, vector<128x128xf32>, vector<32x128xf32> -> vector<32x128xf32>
    %76 = arith.addf %66, %75 : vector<32x128xf32>
    %77 = vector.shape_cast %71 : vector<2x16x128xf32> to vector<32x128xf32>
    %c2_33 = arith.constant 2 : index
    %c0_34 = arith.constant 0 : index
    %c0_35 = arith.constant 0 : index
    %78 = vector.load %arg2[%c2_33, %c0_34, %c0_35] : memref<3x128x128xf32, #tpu.memory_space<vmem>>, vector<1x128x128xf32>
    %79 = vector.shape_cast %78 : vector<1x128x128xf32> to vector<128x128xf32>
    %cst_36 = arith.constant dense<0.000000e+00> : vector<32x128xf32>
    %80 = tpu.matmul %77, %79, %cst_36 {dimension_numbers = #tpu.dot_dimension_numbers<[1], [0], [0], [1], [0, 0, 1, 1], [], []>, precision = #tpu.contract_precision<fp32>} : vector<32x128xf32>, vector<128x128xf32>, vector<32x128xf32> -> vector<32x128xf32>
    %81 = arith.addf %76, %80 : vector<32x128xf32>
    %82 = vector.extract_strided_slice %0 {offsets = [2, 0], sizes = [1, 8], strides = [1, 1]} : vector<4x16xf32> to vector<1x8xf32>
    %83 = vector.extract_strided_slice %0 {offsets = [3, 0], sizes = [1, 8], strides = [1, 1]} : vector<4x16xf32> to vector<1x8xf32>
    %84 = vector.extract_strided_slice %1 {offsets = [0, 0], sizes = [128, 8], strides = [1, 1]} : vector<256x16xf32> to vector<128x8xf32>
    %cst_37 = arith.constant dense<0.000000e+00> : vector<32x8xf32>
    %85 = tpu.matmul %81, %84, %cst_37 {dimension_numbers = #tpu.dot_dimension_numbers<[1], [0], [0], [1], [0, 0, 1, 1], [], []>, precision = #tpu.contract_precision<fp32>} : vector<32x128xf32>, vector<128x8xf32>, vector<32x8xf32> -> vector<32x8xf32>
    %cst_38 = arith.constant dense<0.000000e+00> : vector<8xf32>
    %86 = vector.multi_reduction <add>, %85, %cst_38 [0] : vector<32x8xf32> to vector<8xf32>
    %87 = vector.shape_cast %86 : vector<8xf32> to vector<1x8xf32>
    %88 = arith.mulf %81, %81 : vector<32x128xf32>
    %cst_39 = arith.constant dense<0.000000e+00> : vector<32x8xf32>
    %89 = tpu.matmul %88, %84, %cst_39 {dimension_numbers = #tpu.dot_dimension_numbers<[1], [0], [0], [1], [0, 0, 1, 1], [], []>, precision = #tpu.contract_precision<fp32>} : vector<32x128xf32>, vector<128x8xf32>, vector<32x8xf32> -> vector<32x8xf32>
    %cst_40 = arith.constant dense<0.000000e+00> : vector<8xf32>
    %90 = vector.multi_reduction <add>, %89, %cst_40 [0] : vector<32x8xf32> to vector<8xf32>
    %91 = vector.shape_cast %90 : vector<8xf32> to vector<1x8xf32>
    %cst_41 = arith.constant 0.001953125 : f32
    %92 = vector.broadcast %cst_41 : f32 to vector<1x8xf32>
    %93 = arith.mulf %87, %92 : vector<1x8xf32>
    %cst_42 = arith.constant 0.001953125 : f32
    %94 = vector.broadcast %cst_42 : f32 to vector<1x8xf32>
    %95 = arith.mulf %91, %94 : vector<1x8xf32>
    %96 = arith.mulf %93, %93 : vector<1x8xf32>
    %97 = arith.subf %95, %96 : vector<1x8xf32>
    %cst_43 = arith.constant 9.99999974E-6 : f32
    %98 = vector.broadcast %cst_43 : f32 to vector<1x8xf32>
    %99 = arith.addf %97, %98 : vector<1x8xf32>
    %100 = math.rsqrt %99 : vector<1x8xf32>
    %101 = arith.mulf %82, %100 : vector<1x8xf32>
    %102 = arith.mulf %93, %101 : vector<1x8xf32>
    %103 = arith.subf %83, %102 : vector<1x8xf32>
    %104 = tpu.concatenate %101, %101, %101, %101, %101, %101, %101, %101, %101, %101, %101, %101, %101, %101, %101, %101 in 1 : vector<1x8xf32>, vector<1x8xf32>, vector<1x8xf32>, vector<1x8xf32>, vector<1x8xf32>, vector<1x8xf32>, vector<1x8xf32>, vector<1x8xf32>, vector<1x8xf32>, vector<1x8xf32>, vector<1x8xf32>, vector<1x8xf32>, vector<1x8xf32>, vector<1x8xf32>, vector<1x8xf32>, vector<1x8xf32> -> vector<1x128xf32>
    %105 = vector.broadcast %104 : vector<1x128xf32> to vector<32x128xf32>
    %106 = arith.mulf %81, %105 : vector<32x128xf32>
    %107 = tpu.concatenate %103, %103, %103, %103, %103, %103, %103, %103, %103, %103, %103, %103, %103, %103, %103, %103 in 1 : vector<1x8xf32>, vector<1x8xf32>, vector<1x8xf32>, vector<1x8xf32>, vector<1x8xf32>, vector<1x8xf32>, vector<1x8xf32>, vector<1x8xf32>, vector<1x8xf32>, vector<1x8xf32>, vector<1x8xf32>, vector<1x8xf32>, vector<1x8xf32>, vector<1x8xf32>, vector<1x8xf32>, vector<1x8xf32> -> vector<1x128xf32>
    %108 = vector.broadcast %107 : vector<1x128xf32> to vector<32x128xf32>
    %109 = arith.addf %106, %108 : vector<32x128xf32>
    %110 = arith.addf %109, %61 : vector<32x128xf32>
    %cst_44 = arith.constant 2.000000e-01 : f32
    %111 = vector.broadcast %cst_44 : f32 to vector<32x128xf32>
    %112 = arith.mulf %111, %110 : vector<32x128xf32>
    %113 = arith.maximumf %110, %112 : vector<32x128xf32>
    %c0_45 = arith.constant 0 : index
    %c0_46 = arith.constant 0 : index
    %114 = vector.load %arg5[%c0_45, %c0_46] : memref<32x128xf32, #tpu.memory_space<vmem>>, vector<32x128xf32>
    tpu.vector_store %arg5[%c0_45, %c0_46], %113 {strides = array<i32>} : memref<32x128xf32, #tpu.memory_space<vmem>>, vector<32x128xf32>,
    return
  }
}

</mosaic_0001>

<llo_original>
// kernel: tpu_custom_call.1
$region0: #{tpu_custom_call.1}
  #allocation0 [shape = 'u32[]', space=smem, size = 0x4, offset = 0x4, fixed_abs, tag = 'smem constant byte address 0x4 - core index']
  #allocation1 [shape = 'u32[144,128]{1,0:T(1,128)}', space=vmem, size = 0x12000, scoped, tag = 'internal scratch']
  %s0 = inlined_call_operand.vmem [shape: f32[2,16,64], index: 0, kind: input, shape index: {}]
  %s1 = inlined_call_operand.hbm [shape: f32[3,64,256], index: 1, kind: input, shape index: {}]
  %s2 = inlined_call_operand.hbm [shape: f32[3,128,128], index: 2, kind: input, shape index: {}]
  %s3 = inlined_call_operand.vmem [shape: f32[4,16], index: 3, kind: input, shape index: {}]
  %s4 = inlined_call_operand.vmem [shape: f32[256,16], index: 4, kind: input, shape index: {}]
  %s5 = inlined_call_operand.hbm [shape: f32[32,128], index: 5, kind: output, shape index: {}]
  %s6 = sld [smem:[#allocation0]]
  $region38: #{tpu_custom_call.1} parent=0
    _
  %s8 = ssub.s32 1, %s6
  %s9 = scalar_select 0, %s8, %s6
  $region1: #{tpu_custom_call.1} parent=0
    #allocation2 [shape = 'u8[196608]{0}', space=vmem, size = 0x30000, scoped, tag = 'input window, operand 1, single buffered']
    #allocation3 [shape = 's32[1]{0}', space=sflag, size = 0x4, scoped, tag = 'scoped memory for tpu_custom_call.1']
    #allocation4 [shape = 's32[1]{0}', space=sflag, size = 0x4, scoped, tag = 'scoped memory for tpu_custom_call.1']
    #allocation5 [shape = 'u8[196608]{0}', space=vmem, size = 0x30000, scoped, tag = 'input window, operand 2, single buffered']
    #allocation6 [shape = 's32[1]{0}', space=sflag, size = 0x4, scoped, tag = 'scoped memory for tpu_custom_call.1']
    #allocation7 [shape = 'u8[16384]{0}', space=vmem, size = 0x4000, scoped, tag = 'output window, operand 0, single buffered']
    %10 = vsyncpa [#allocation3], 0
    %11 = vsyncpa [#allocation6], 0
    %12 = vsyncpa [#allocation4], 0
    // Predicated region
    $region2: #{tpu_custom_call.1} parent=1 // pred_check
      _
    $region3: #{tpu_custom_call.1} parent=1 // pred_check_branch
      %14 = sbr.rel (0) target = $region5
    $region4: #{tpu_custom_call.1} parent=1 // pred_region
      _
    $region5: #{tpu_custom_call.1} parent=1 // pred_fallthru
      _
    // Predicated region
    $region6: #{tpu_custom_call.1} parent=1 // pred_check
      _
    $region7: #{tpu_custom_call.1} parent=1 // pred_check_branch
      %16 = sbr.rel (0) target = $region9
    $region8: #{tpu_custom_call.1} parent=1 // pred_region
      %s18 = ssub.s32 6144, 6144
      %19 = vsyncadd [#allocation3], %s18
      %s20 = sshll.u32 [#allocation2], 4
      %s21 = int_to_ptr.vmem [resolvable:$true] %s20
      %26 = dma.hbm_to_vmem [thread:$0]  %s1, 6144, %s21, [#allocation3], 256, 256, 16
    $region9: #{tpu_custom_call.1} parent=1 // pred_fallthru
      _
    // Predicated region
    $region10: #{tpu_custom_call.1} parent=1 // pred_check
      _
    $region11: #{tpu_custom_call.1} parent=1 // pred_check_branch
      %28 = sbr.rel (0) target = $region13
    $region12: #{tpu_custom_call.1} parent=1 // pred_region
      %s30 = ssub.s32 6144, 6144
      %31 = vsyncadd [#allocation6], %s30
      %s32 = sshll.u32 [#allocation5], 4
      %s33 = int_to_ptr.vmem [resolvable:$true] %s32
      %38 = dma.hbm_to_vmem [thread:$0]  %s2, 6144, %s33, [#allocation6], 128, 128, 8
    $region13: #{tpu_custom_call.1} parent=1 // pred_fallthru
      _
    // Predicated region
    $region14: #{tpu_custom_call.1} parent=1 // pred_check
      _
    $region15: #{tpu_custom_call.1} parent=1 // pred_check_branch
      %40 = sbr.rel (0) target = $region17
    $region16: #{tpu_custom_call.1} parent=1 // pred_region
      _
    $region17: #{tpu_custom_call.1} parent=1 // pred_fallthru
      _
    // Predicated region
    $region18: #{tpu_custom_call.1} parent=1 // pred_check
      _
    $region19: #{tpu_custom_call.1} parent=1 // pred_check_branch
      %42 = sbr.rel (0) target = $region21
    $region20: #{tpu_custom_call.1} parent=1 // pred_region
      _
    $region21: #{tpu_custom_call.1} parent=1 // pred_fallthru
      _
    // Predicated region
    $region22: #{tpu_custom_call.1} parent=1 // pred_check
      _
    $region23: #{tpu_custom_call.1} parent=1 // pred_check_branch
      %44 = sbr.rel (0) target = $region25
    $region24: #{tpu_custom_call.1} parent=1 // pred_region
      %45 = dma.done [#allocation3], 6144
    $region25: #{tpu_custom_call.1} parent=1 // pred_fallthru
      _
    // Predicated region
    $region26: #{tpu_custom_call.1} parent=1 // pred_check
      _
    $region27: #{tpu_custom_call.1} parent=1 // pred_check_branch
      %47 = sbr.rel (0) target = $region29
    $region28: #{tpu_custom_call.1} parent=1 // pred_region
      %48 = dma.done [#allocation6], 6144
    $region29: #{tpu_custom_call.1} parent=1 // pred_fallthru
      _
    %v49 = vld [vmem:[%s3] sm:$0xf]
    %v50 = vld [vmem:[%s4] sm:$0xff]
    %v51 = vld [vmem:[%s4 + $0x8] sm:$0xff]
    %v52 = vld [vmem:[%s4 + $0x10] sm:$0xff]
    %v53 = vld [vmem:[%s4 + $0x18] sm:$0xff]
    %v54 = vld [vmem:[%s4 + $0x20] sm:$0xff]
    %v55 = vld [vmem:[%s4 + $0x28] sm:$0xff]
    %v56 = vld [vmem:[%s4 + $0x30] sm:$0xff]
    %v57 = vld [vmem:[%s4 + $0x38] sm:$0xff]
    %v58 = vld [vmem:[%s4 + $0x40] sm:$0xff]
    %v59 = vld [vmem:[%s4 + $0x48] sm:$0xff]
    %v60 = vld [vmem:[%s4 + $0x50] sm:$0xff]
    %v61 = vld [vmem:[%s4 + $0x58] sm:$0xff]
    %v62 = vld [vmem:[%s4 + $0x60] sm:$0xff]
    %v63 = vld [vmem:[%s4 + $0x68] sm:$0xff]
    %v64 = vld [vmem:[%s4 + $0x70] sm:$0xff]
    %v65 = vld [vmem:[%s4 + $0x78] sm:$0xff]
    %v66 = vld [vmem:[%s4 + $0x80] sm:$0xff]
    %v67 = vld [vmem:[%s4 + $0x88] sm:$0xff]
    %v68 = vld [vmem:[%s4 + $0x90] sm:$0xff]
    %v69 = vld [vmem:[%s4 + $0x98] sm:$0xff]
    %v70 = vld [vmem:[%s4 + $0xa0] sm:$0xff]
    %v71 = vld [vmem:[%s4 + $0xa8] sm:$0xff]
    %v72 = vld [vmem:[%s4 + $0xb0] sm:$0xff]
    %v73 = vld [vmem:[%s4 + $0xb8] sm:$0xff]
    %v74 = vld [vmem:[%s4 + $0xc0] sm:$0xff]
    %v75 = vld [vmem:[%s4 + $0xc8] sm:$0xff]
    %v76 = vld [vmem:[%s4 + $0xd0] sm:$0xff]
    %v77 = vld [vmem:[%s4 + $0xd8] sm:$0xff]
    %v78 = vld [vmem:[%s4 + $0xe0] sm:$0xff]
    %v79 = vld [vmem:[%s4 + $0xe8] sm:$0xff]
    %v80 = vld [vmem:[%s4 + $0xf0] sm:$0xff]
    %v81 = vld [vmem:[%s4 + $0xf8] sm:$0xff]
    %v82 = vld [vmem:[%s0] sm:$0xff]
    %v83 = vld [vmem:[%s0 + $0x8] sm:$0xff]
    %v84 = vld [vmem:[%s0 + $0x10] sm:$0xff]
    %v85 = vld [vmem:[%s0 + $0x18] sm:$0xff]
    %s86 = scalar_lea.vmem [#allocation2], 128
    %v87 = vld [vmem:[%s86] sm:$0xff]
    %v88 = vld [vmem:[%s86 + $0x8] sm:$0xff]
    %v89 = vld [vmem:[%s86 + $0x10] sm:$0xff]
    %v90 = vld [vmem:[%s86 + $0x18] sm:$0xff]
    %v91 = vld [vmem:[%s86 + $0x20] sm:$0xff]
    %v92 = vld [vmem:[%s86 + $0x28] sm:$0xff]
    %v93 = vld [vmem:[%s86 + $0x30] sm:$0xff]
    %v94 = vld [vmem:[%s86 + $0x38] sm:$0xff]
    %v95 = vld [vmem:[%s86 + $0x40] sm:$0xff]
    %v96 = vld [vmem:[%s86 + $0x48] sm:$0xff]
    %v97 = vld [vmem:[%s86 + $0x50] sm:$0xff]
    %v98 = vld [vmem:[%s86 + $0x58] sm:$0xff]
    %v99 = vld [vmem:[%s86 + $0x60] sm:$0xff]
    %v100 = vld [vmem:[%s86 + $0x68] sm:$0xff]
    %v101 = vld [vmem:[%s86 + $0x70] sm:$0xff]
    %v102 = vld [vmem:[%s86 + $0x78] sm:$0xff]
    %vm107 = vcmask 1040384
    %v108 = vrot.slane %v82, 7
    %v109 = vrot.slane %v83, 7
    %v110 = vsel %vm107, %v108, %v109
    %v111 = vrot.slane %v84, 7
    %v112 = vrot.slane %v85, 7
    %v113 = vsel %vm107, %v111, %v112
    %v116 = vsel %vm107, 0.0, %v108
    %v117 = vsel %vm107, 0.0, %v111
    %vm118 = vcmask 1046528
    %v119 = vrot.slane %v82, 1
    %v120 = vrot.slane %v83, 1
    %v121 = vsel %vm118, %v119, %v120
    %v122 = vrot.slane %v84, 1
    %v123 = vrot.slane %v85, 1
    %v124 = vsel %vm118, %v122, %v123
    %v127 = vsel %vm118, %v120, 0.0
    %v128 = vsel %vm118, %v123, 0.0
    %v129 = vld [vmem:[#allocation2] sm:$0xff]
    %v130 = vld [vmem:[#allocation2 + $0x8] sm:$0xff]
    %v131 = vld [vmem:[#allocation2 + $0x10] sm:$0xff]
    %v132 = vld [vmem:[#allocation2 + $0x18] sm:$0xff]
    %v133 = vld [vmem:[#allocation2 + $0x20] sm:$0xff]
    %v134 = vld [vmem:[#allocation2 + $0x28] sm:$0xff]
    %v135 = vld [vmem:[#allocation2 + $0x30] sm:$0xff]
    %v136 = vld [vmem:[#allocation2 + $0x38] sm:$0xff]
    %v137 = vld [vmem:[#allocation2 + $0x40] sm:$0xff]
    %v138 = vld [vmem:[#allocation2 + $0x48] sm:$0xff]
    %v139 = vld [vmem:[#allocation2 + $0x50] sm:$0xff]
    %v140 = vld [vmem:[#allocation2 + $0x58] sm:$0xff]
    %v141 = vld [vmem:[#allocation2 + $0x60] sm:$0xff]
    %v142 = vld [vmem:[#allocation2 + $0x68] sm:$0xff]
    %v143 = vld [vmem:[#allocation2 + $0x70] sm:$0xff]
    %v144 = vld [vmem:[#allocation2 + $0x78] sm:$0xff]
    %vm145 = vcmask 523264
    %v147 = vsel %vm145, %v116, 0
    %v149 = vsel %vm145, %v110, 0
    %v152 = vsel %vm145, %v117, 0
    %v154 = vsel %vm145, %v113, 0
    %v156 = vand.u32 %v130, 4294901760
    %157 = vmatprep.subr.mxu0 %v156
    %v158 = vand.u32 %v129, 4294901760
    %159 = vmatpush1.msra.mxu0 %v158
    %v160 = vand.u32 %v132, 4294901760
    %161 = vmatprep.subr.mxu0 %v160
    %v162 = vand.u32 %v131, 4294901760
    %163 = vmatpush1.msra.mxu0 %v162
    %v164 = vand.u32 %v134, 4294901760
    %165 = vmatprep.subr.mxu0 %v164
    %v166 = vand.u32 %v133, 4294901760
    %167 = vmatpush1.msra.mxu0 %v166
    %v168 = vand.u32 %v136, 4294901760
    %169 = vmatprep.subr.mxu0 %v168
    %v170 = vand.u32 %v135, 4294901760
    %171 = vmatpush1.msra.mxu0 %v170
    %v172 = vand.u32 %v138, 4294901760
    %173 = vmatprep.subr.mxu0 %v172
    %v174 = vand.u32 %v137, 4294901760
    %175 = vmatpush1.msra.mxu0 %v174
    %v176 = vand.u32 %v140, 4294901760
    %177 = vmatprep.subr.mxu0 %v176
    %v178 = vand.u32 %v139, 4294901760
    %179 = vmatpush1.msra.mxu0 %v178
    %v180 = vand.u32 %v142, 4294901760
    %181 = vmatprep.subr.mxu0 %v180
    %v182 = vand.u32 %v141, 4294901760
    %183 = vmatpush1.msra.mxu0 %v182
    %v184 = vand.u32 %v144, 4294901760
    %185 = vmatprep.subr.mxu0 %v184
    %v186 = vand.u32 %v143, 4294901760
    %187 = vmatpush1.msra.mxu0 %v186
    %188 = vmatprep.subr.mxu0 0.0
    %189 = vmatpush1.msra.mxu0 0.0
    %190 = vmatprep.subr.mxu0 0.0
    %191 = vmatpush1.msra.mxu0 0.0
    %192 = vmatprep.subr.mxu0 0.0
    %193 = vmatpush1.msra.mxu0 0.0
    %194 = vmatprep.subr.mxu0 0.0
    %195 = vmatpush1.msra.mxu0 0.0
    %196 = vmatprep.subr.mxu0 0.0
    %197 = vmatpush1.msra.mxu0 0.0
    %198 = vmatprep.subr.mxu0 0.0
    %199 = vmatpush1.msra.mxu0 0.0
    %200 = vmatprep.subr.mxu0 0.0
    %201 = vmatpush1.msra.mxu0 0.0
    %202 = vmatprep.subr.mxu0 0.0
    %203 = vmatpush1.msra.mxu0 0.0
    %204 = vmatprep.subr.mxu0 0.0
    %205 = vmatpush1.msra.mxu0 0.0
    %206 = vmatprep.subr.mxu0 0.0
    %207 = vmatpush1.msra.mxu0 0.0
    %208 = vmatprep.subr.mxu0 0.0
    %209 = vmatpush1.msra.mxu0 0.0
    %210 = vmatprep.subr.mxu0 0.0
    %211 = vmatpush1.msra.mxu0 0.0
    %212 = vmatprep.subr.mxu0 0.0
    %213 = vmatpush1.msra.mxu0 0.0
    %214 = vmatprep.subr.mxu0 0.0
    %215 = vmatpush1.msra.mxu0 0.0
    %216 = vmatprep.subr.mxu0 0.0
    %217 = vmatpush1.msra.mxu0 0.0
    %218 = vmatprep.subr.mxu0 0.0
    %219 = vmatpush1.msra.mxu0 0.0
    %220 = vmatprep.subr.mxu0 0.0
    %221 = vmatpush1.msra.mxu0 0.0
    %222 = vmatprep.subr.mxu0 0.0
    %223 = vmatpush1.msra.mxu0 0.0
    %224 = vmatprep.subr.mxu0 0.0
    %225 = vmatpush1.msra.mxu0 0.0
    %226 = vmatprep.subr.mxu0 0.0
    %227 = vmatpush1.msra.mxu0 0.0
    %228 = vmatprep.subr.mxu0 0.0
    %229 = vmatpush1.msra.mxu0 0.0
    %230 = vmatprep.subr.mxu0 0.0
    %231 = vmatpush1.msra.mxu0 0.0
    %232 = vmatprep.subr.mxu0 0.0
    %233 = vmatpush1.msra.mxu0 0.0
    %234 = vmatprep.subr.mxu0 0.0
    %235 = vmatpush1.msra.mxu0 0.0
    %236 = vmatprep.mubr.f32.mxu0 0.0
    %v237 = vand.u32 %v147, 4294901760
    %v238 = vsub.f32 %v147, %v237
    %v239 = vand.u32 %v238, 4294901760
    %v240 = vsub.f32 %v238, %v239
    %v241 = vand.u32 %v240, 4294901760
    %242 = vmatmul.mubr.f32.gmra.mrb[0].mxu0 %v241
    %v243 = vpop.f32.mrb[0].mxu0
    %v244 = vadd.f32 0.0, %v243
    %v245 = vpop.f32.mrb[0].mxu0
    %v246 = vadd.f32 0.0, %v245
    %247 = vmatprep.mubr.f32.mxu0 0.0
    %v248 = vand.u32 %v149, 4294901760
    %v249 = vsub.f32 %v149, %v248
    %v250 = vand.u32 %v249, 4294901760
    %v251 = vsub.f32 %v249, %v250
    %v252 = vand.u32 %v251, 4294901760
    %253 = vmatmul.mubr.f32.gmra.mrb[0].mxu0 %v252
    %v254 = vpop.f32.mrb[0].mxu0
    %v255 = vadd.f32 0.0, %v254
    %v256 = vpop.f32.mrb[0].mxu0
    %v257 = vadd.f32 0.0, %v256
    %258 = vmatprep.mubr.f32.mxu0 0.0
    %v259 = vand.u32 %v152, 4294901760
    %v260 = vsub.f32 %v152, %v259
    %v261 = vand.u32 %v260, 4294901760
    %v262 = vsub.f32 %v260, %v261
    %v263 = vand.u32 %v262, 4294901760
    %264 = vmatmul.mubr.f32.gmra.mrb[0].mxu0 %v263
    %v265 = vpop.f32.mrb[0].mxu0
    %v266 = vadd.f32 0.0, %v265
    %v267 = vpop.f32.mrb[0].mxu0
    %v268 = vadd.f32 0.0, %v267
    %269 = vmatprep.mubr.f32.mxu0 0.0
    %v270 = vand.u32 %v154, 4294901760
    %v271 = vsub.f32 %v154, %v270
    %v272 = vand.u32 %v271, 4294901760
    %v273 = vsub.f32 %v271, %v272
    %v274 = vand.u32 %v273, 4294901760
    %275 = vmatmul.mubr.f32.gmra.mrb[0].mxu0 %v274
    %v276 = vpop.f32.mrb[0].mxu0
    %v277 = vadd.f32 0.0, %v276
    %v278 = vpop.f32.mrb[0].mxu0
    %v279 = vadd.f32 0.0, %v278
    %280 = vdwg.mxu0
    %v281 = vand.u32 %v130, 4294901760
    %v282 = vsub.f32 %v130, %v281
    %v283 = vand.u32 %v282, 4294901760
    %v284 = vsub.f32 %v282, %v283
    %v285 = vand.u32 %v284, 4294901760
    %286 = vmatprep.subr.mxu0 %v285
    %v287 = vand.u32 %v129, 4294901760
    %v288 = vsub.f32 %v129, %v287
    %v289 = vand.u32 %v288, 4294901760
    %v290 = vsub.f32 %v288, %v289
    %v291 = vand.u32 %v290, 4294901760
    %292 = vmatpush1.msra.mxu0 %v291
    %v293 = vand.u32 %v132, 4294901760
    %v294 = vsub.f32 %v132, %v293
    %v295 = vand.u32 %v294, 4294901760
    %v296 = vsub.f32 %v294, %v295
    %v297 = vand.u32 %v296, 4294901760
    %298 = vmatprep.subr.mxu0 %v297
    %v299 = vand.u32 %v131, 4294901760
    %v300 = vsub.f32 %v131, %v299
    %v301 = vand.u32 %v300, 4294901760
    %v302 = vsub.f32 %v300, %v301
    %v303 = vand.u32 %v302, 4294901760
    %304 = vmatpush1.msra.mxu0 %v303
    %v305 = vand.u32 %v134, 4294901760
    %v306 = vsub.f32 %v134, %v305
    %v307 = vand.u32 %v306, 4294901760
    %v308 = vsub.f32 %v306, %v307
    %v309 = vand.u32 %v308, 4294901760
    %310 = vmatprep.subr.mxu0 %v309
    %v311 = vand.u32 %v133, 4294901760
    %v312 = vsub.f32 %v133, %v311
    %v313 = vand.u32 %v312, 4294901760
    %v314 = vsub.f32 %v312, %v313
    %v315 = vand.u32 %v314, 4294901760
    %316 = vmatpush1.msra.mxu0 %v315
    %v317 = vand.u32 %v136, 4294901760
    %v318 = vsub.f32 %v136, %v317
    %v319 = vand.u32 %v318, 4294901760
    %v320 = vsub.f32 %v318, %v319
    %v321 = vand.u32 %v320, 4294901760
    %322 = vmatprep.subr.mxu0 %v321
    %v323 = vand.u32 %v135, 4294901760
    %v324 = vsub.f32 %v135, %v323
    %v325 = vand.u32 %v324, 4294901760
    %v326 = vsub.f32 %v324, %v325
    %v327 = vand.u32 %v326, 4294901760
    %328 = vmatpush1.msra.mxu0 %v327
    %v329 = vand.u32 %v138, 4294901760
    %v330 = vsub.f32 %v138, %v329
    %v331 = vand.u32 %v330, 4294901760
    %v332 = vsub.f32 %v330, %v331
    %v333 = vand.u32 %v332, 4294901760
    %334 = vmatprep.subr.mxu0 %v333
    %v335 = vand.u32 %v137, 4294901760
    %v336 = vsub.f32 %v137, %v335
    %v337 = vand.u32 %v336, 4294901760
    %v338 = vsub.f32 %v336, %v337
    %v339 = vand.u32 %v338, 4294901760
    %340 = vmatpush1.msra.mxu0 %v339
    %v341 = vand.u32 %v140, 4294901760
    %v342 = vsub.f32 %v140, %v341
    %v343 = vand.u32 %v342, 4294901760
    %v344 = vsub.f32 %v342, %v343
    %v345 = vand.u32 %v344, 4294901760
    %346 = vmatprep.subr.mxu0 %v345
    %v347 = vand.u32 %v139, 4294901760
    %v348 = vsub.f32 %v139, %v347
    %v349 = vand.u32 %v348, 4294901760
    %v350 = vsub.f32 %v348, %v349
    %v351 = vand.u32 %v350, 4294901760
    %352 = vmatpush1.msra.mxu0 %v351
    %v353 = vand.u32 %v142, 4294901760
    %v354 = vsub.f32 %v142, %v353
    %v355 = vand.u32 %v354, 4294901760
    %v356 = vsub.f32 %v354, %v355
    %v357 = vand.u32 %v356, 4294901760
    %358 = vmatprep.subr.mxu0 %v357
    %v359 = vand.u32 %v141, 4294901760
    %v360 = vsub.f32 %v141, %v359
    %v361 = vand.u32 %v360, 4294901760
    %v362 = vsub.f32 %v360, %v361
    %v363 = vand.u32 %v362, 4294901760
    %364 = vmatpush1.msra.mxu0 %v363
    %v365 = vand.u32 %v144, 4294901760
    %v366 = vsub.f32 %v144, %v365
    %v367 = vand.u32 %v366, 4294901760
    %v368 = vsub.f32 %v366, %v367
    %v369 = vand.u32 %v368, 4294901760
    %370 = vmatprep.subr.mxu0 %v369
    %v371 = vand.u32 %v143, 4294901760
    %v372 = vsub.f32 %v143, %v371
    %v373 = vand.u32 %v372, 4294901760
    %v374 = vsub.f32 %v372, %v373
    %v375 = vand.u32 %v374, 4294901760
    %376 = vmatpush1.msra.mxu0 %v375
    %377 = vmatprep.subr.mxu0 0.0
    %378 = vmatpush1.msra.mxu0 0.0
    %379 = vmatprep.subr.mxu0 0.0
    %380 = vmatpush1.msra.mxu0 0.0
    %381 = vmatprep.subr.mxu0 0.0
    %382 = vmatpush1.msra.mxu0 0.0
    %383 = vmatprep.subr.mxu0 0.0
    %384 = vmatpush1.msra.mxu0 0.0
    %385 = vmatprep.subr.mxu0 0.0
    %386 = vmatpush1.msra.mxu0 0.0
    %387 = vmatprep.subr.mxu0 0.0
    %388 = vmatpush1.msra.mxu0 0.0
    %389 = vmatprep.subr.mxu0 0.0
    %390 = vmatpush1.msra.mxu0 0.0
    %391 = vmatprep.subr.mxu0 0.0
    %392 = vmatpush1.msra.mxu0 0.0
    %393 = vmatprep.subr.mxu0 0.0
    %394 = vmatpush1.msra.mxu0 0.0
    %395 = vmatprep.subr.mxu0 0.0
    %396 = vmatpush1.msra.mxu0 0.0
    %397 = vmatprep.subr.mxu0 0.0
    %398 = vmatpush1.msra.mxu0 0.0
    %399 = vmatprep.subr.mxu0 0.0
    %400 = vmatpush1.msra.mxu0 0.0
    %401 = vmatprep.subr.mxu0 0.0
    %402 = vmatpush1.msra.mxu0 0.0
    %403 = vmatprep.subr.mxu0 0.0
    %404 = vmatpush1.msra.mxu0 0.0
    %405 = vmatprep.subr.mxu0 0.0
    %406 = vmatpush1.msra.mxu0 0.0
    %407 = vmatprep.subr.mxu0 0.0
    %408 = vmatpush1.msra.mxu0 0.0
    %409 = vmatprep.subr.mxu0 0.0
    %410 = vmatpush1.msra.mxu0 0.0
    %411 = vmatprep.subr.mxu0 0.0
    %412 = vmatpush1.msra.mxu0 0.0
    %413 = vmatprep.subr.mxu0 0.0
    %414 = vmatpush1.msra.mxu0 0.0
    %415 = vmatprep.subr.mxu0 0.0
    %416 = vmatpush1.msra.mxu0 0.0
    %417 = vmatprep.subr.mxu0 0.0
    %418 = vmatpush1.msra.mxu0 0.0
    %419 = vmatprep.subr.mxu0 0.0
    %420 = vmatpush1.msra.mxu0 0.0
    %421 = vmatprep.subr.mxu0 0.0
    %422 = vmatpush1.msra.mxu0 0.0
    %423 = vmatprep.subr.mxu0 0.0
    %424 = vmatpush1.msra.mxu0 0.0
    %425 = vmatprep.mubr.f32.mxu0 0.0
    %v426 = vand.u32 %v147, 4294901760
    %427 = vmatmul.mubr.f32.gmra.mrb[0].mxu0 %v426
    %v428 = vpop.f32.mrb[0].mxu0
    %v429 = vadd.f32 %v244, %v428
    %v430 = vpop.f32.mrb[0].mxu0
    %v431 = vadd.f32 %v246, %v430
    %432 = vmatprep.mubr.f32.mxu0 0.0
    %v433 = vand.u32 %v149, 4294901760
    %434 = vmatmul.mubr.f32.gmra.mrb[0].mxu0 %v433
    %v435 = vpop.f32.mrb[0].mxu0
    %v436 = vadd.f32 %v255, %v435
    %v437 = vpop.f32.mrb[0].mxu0
    %v438 = vadd.f32 %v257, %v437
    %439 = vmatprep.mubr.f32.mxu0 0.0
    %v440 = vand.u32 %v152, 4294901760
    %441 = vmatmul.mubr.f32.gmra.mrb[0].mxu0 %v440
    %v442 = vpop.f32.mrb[0].mxu0
    %v443 = vadd.f32 %v266, %v442
    %v444 = vpop.f32.mrb[0].mxu0
    %v445 = vadd.f32 %v268, %v444
    %446 = vmatprep.mubr.f32.mxu0 0.0
    %v447 = vand.u32 %v154, 4294901760
    %448 = vmatmul.mubr.f32.gmra.mrb[0].mxu0 %v447
    %v449 = vpop.f32.mrb[0].mxu0
    %v450 = vadd.f32 %v277, %v449
    %v451 = vpop.f32.mrb[0].mxu0
    %v452 = vadd.f32 %v279, %v451
    %453 = vdwg.mxu0
    %v454 = vand.u32 %v130, 4294901760
    %v455 = vsub.f32 %v130, %v454
    %456 = vmatprep.subr.mxu0 %v455
    %v457 = vand.u32 %v129, 4294901760
    %v458 = vsub.f32 %v129, %v457
    %459 = vmatpush1.msra.mxu0 %v458
    %v460 = vand.u32 %v132, 4294901760
    %v461 = vsub.f32 %v132, %v460
    %462 = vmatprep.subr.mxu0 %v461
    %v463 = vand.u32 %v131, 4294901760
    %v464 = vsub.f32 %v131, %v463
    %465 = vmatpush1.msra.mxu0 %v464
    %v466 = vand.u32 %v134, 4294901760
    %v467 = vsub.f32 %v134, %v466
    %468 = vmatprep.subr.mxu0 %v467
    %v469 = vand.u32 %v133, 4294901760
    %v470 = vsub.f32 %v133, %v469
    %471 = vmatpush1.msra.mxu0 %v470
    %v472 = vand.u32 %v136, 4294901760
    %v473 = vsub.f32 %v136, %v472
    %474 = vmatprep.subr.mxu0 %v473
    %v475 = vand.u32 %v135, 4294901760
    %v476 = vsub.f32 %v135, %v475
    %477 = vmatpush1.msra.mxu0 %v476
    %v478 = vand.u32 %v138, 4294901760
    %v479 = vsub.f32 %v138, %v478
    %480 = vmatprep.subr.mxu0 %v479
    %v481 = vand.u32 %v137, 4294901760
    %v482 = vsub.f32 %v137, %v481
    %483 = vmatpush1.msra.mxu0 %v482
    %v484 = vand.u32 %v140, 4294901760
    %v485 = vsub.f32 %v140, %v484
    %486 = vmatprep.subr.mxu0 %v485
    %v487 = vand.u32 %v139, 4294901760
    %v488 = vsub.f32 %v139, %v487
    %489 = vmatpush1.msra.mxu0 %v488
    %v490 = vand.u32 %v142, 4294901760
    %v491 = vsub.f32 %v142, %v490
    %492 = vmatprep.subr.mxu0 %v491
    %v493 = vand.u32 %v141, 4294901760
    %v494 = vsub.f32 %v141, %v493
    %495 = vmatpush1.msra.mxu0 %v494
    %v496 = vand.u32 %v144, 4294901760
    %v497 = vsub.f32 %v144, %v496
    %498 = vmatprep.subr.mxu0 %v497
    %v499 = vand.u32 %v143, 4294901760
    %v500 = vsub.f32 %v143, %v499
    %501 = vmatpush1.msra.mxu0 %v500
    %502 = vmatprep.subr.mxu0 0.0
    %503 = vmatpush1.msra.mxu0 0.0
    %504 = vmatprep.subr.mxu0 0.0
    %505 = vmatpush1.msra.mxu0 0.0
    %506 = vmatprep.subr.mxu0 0.0
    %507 = vmatpush1.msra.mxu0 0.0
    %508 = vmatprep.subr.mxu0 0.0
    %509 = vmatpush1.msra.mxu0 0.0
    %510 = vmatprep.subr.mxu0 0.0
    %511 = vmatpush1.msra.mxu0 0.0
    %512 = vmatprep.subr.mxu0 0.0
    %513 = vmatpush1.msra.mxu0 0.0
    %514 = vmatprep.subr.mxu0 0.0
    %515 = vmatpush1.msra.mxu0 0.0
    %516 = vmatprep.subr.mxu0 0.0
    %517 = vmatpush1.msra.mxu0 0.0
    %518 = vmatprep.subr.mxu0 0.0
    %519 = vmatpush1.msra.mxu0 0.0
    %520 = vmatprep.subr.mxu0 0.0
    %521 = vmatpush1.msra.mxu0 0.0
    %522 = vmatprep.subr.mxu0 0.0
    %523 = vmatpush1.msra.mxu0 0.0
    %524 = vmatprep.subr.mxu0 0.0
    %525 = vmatpush1.msra.mxu0 0.0
    %526 = vmatprep.subr.mxu0 0.0
    %527 = vmatpush1.msra.mxu0 0.0
    %528 = vmatprep.subr.mxu0 0.0
    %529 = vmatpush1.msra.mxu0 0.0
    %530 = vmatprep.subr.mxu0 0.0
    %531 = vmatpush1.msra.mxu0 0.0
    %532 = vmatprep.subr.mxu0 0.0
    %533 = vmatpush1.msra.mxu0 0.0
    %534 = vmatprep.subr.mxu0 0.0
    %535 = vmatpush1.msra.mxu0 0.0
    %536 = vmatprep.subr.mxu0 0.0
    %537 = vmatpush1.msra.mxu0 0.0
    %538 = vmatprep.subr.mxu0 0.0
    %539 = vmatpush1.msra.mxu0 0.0
    %540 = vmatprep.subr.mxu0 0.0
    %541 = vmatpush1.msra.mxu0 0.0
    %542 = vmatprep.subr.mxu0 0.0
    %543 = vmatpush1.msra.mxu0 0.0
    %544 = vmatprep.subr.mxu0 0.0
    %545 = vmatpush1.msra.mxu0 0.0
    %546 = vmatprep.subr.mxu0 0.0
    %547 = vmatpush1.msra.mxu0 0.0
    %548 = vmatprep.subr.mxu0 0.0
    %549 = vmatpush1.msra.mxu0 0.0
    %550 = vmatprep.mubr.f32.mxu0 0.0
    %v551 = vand.u32 %v147, 4294901760
    %v552 = vsub.f32 %v147, %v551
    %553 = vmatmul.mubr.f32.gmra.mrb[0].mxu0 %v552
    %v554 = vpop.f32.mrb[0].mxu0
    %v555 = vadd.f32 %v429, %v554
    %v556 = vpop.f32.mrb[0].mxu0
    %v557 = vadd.f32 %v431, %v556
    %558 = vmatprep.mubr.f32.mxu0 0.0
    %v559 = vand.u32 %v149, 4294901760
    %v560 = vsub.f32 %v149, %v559
    %561 = vmatmul.mubr.f32.gmra.mrb[0].mxu0 %v560
    %v562 = vpop.f32.mrb[0].mxu0
    %v563 = vadd.f32 %v436, %v562
    %v564 = vpop.f32.mrb[0].mxu0
    %v565 = vadd.f32 %v438, %v564
    %566 = vmatprep.mubr.f32.mxu0 0.0
    %v567 = vand.u32 %v152, 4294901760
    %v568 = vsub.f32 %v152, %v567
    %569 = vmatmul.mubr.f32.gmra.mrb[0].mxu0 %v568
    %v570 = vpop.f32.mrb[0].mxu0
    %v571 = vadd.f32 %v443, %v570
    %v572 = vpop.f32.mrb[0].mxu0
    %v573 = vadd.f32 %v445, %v572
    %574 = vmatprep.mubr.f32.mxu0 0.0
    %v575 = vand.u32 %v154, 4294901760
    %v576 = vsub.f32 %v154, %v575
    %577 = vmatmul.mubr.f32.gmra.mrb[0].mxu0 %v576
    %v578 = vpop.f32.mrb[0].mxu0
    %v579 = vadd.f32 %v450, %v578
    %v580 = vpop.f32.mrb[0].mxu0
    %v581 = vadd.f32 %v452, %v580
    %582 = vdwg.mxu0
    %v583 = vand.u32 %v130, 4294901760
    %584 = vmatprep.subr.mxu0 %v583
    %v585 = vand.u32 %v129, 4294901760
    %586 = vmatpush1.msra.mxu0 %v585
    %v587 = vand.u32 %v132, 4294901760
    %588 = vmatprep.subr.mxu0 %v587
    %v589 = vand.u32 %v131, 4294901760
    %590 = vmatpush1.msra.mxu0 %v589
    %v591 = vand.u32 %v134, 4294901760
    %592 = vmatprep.subr.mxu0 %v591
    %v593 = vand.u32 %v133, 4294901760
    %594 = vmatpush1.msra.mxu0 %v593
    %v595 = vand.u32 %v136, 4294901760
    %596 = vmatprep.subr.mxu0 %v595
    %v597 = vand.u32 %v135, 4294901760
    %598 = vmatpush1.msra.mxu0 %v597
    %v599 = vand.u32 %v138, 4294901760
    %600 = vmatprep.subr.mxu0 %v599
    %v601 = vand.u32 %v137, 4294901760
    %602 = vmatpush1.msra.mxu0 %v601
    %v603 = vand.u32 %v140, 4294901760
    %604 = vmatprep.subr.mxu0 %v603
    %v605 = vand.u32 %v139, 4294901760
    %606 = vmatpush1.msra.mxu0 %v605
    %v607 = vand.u32 %v142, 4294901760
    %608 = vmatprep.subr.mxu0 %v607
    %v609 = vand.u32 %v141, 4294901760
    %610 = vmatpush1.msra.mxu0 %v609
    %v611 = vand.u32 %v144, 4294901760
    %612 = vmatprep.subr.mxu0 %v611
    %v613 = vand.u32 %v143, 4294901760
    %614 = vmatpush1.msra.mxu0 %v613
    %615 = vmatprep.subr.mxu0 0.0
    %616 = vmatpush1.msra.mxu0 0.0
    %617 = vmatprep.subr.mxu0 0.0
    %618 = vmatpush1.msra.mxu0 0.0
    %619 = vmatprep.subr.mxu0 0.0
    %620 = vmatpush1.msra.mxu0 0.0
    %621 = vmatprep.subr.mxu0 0.0
    %622 = vmatpush1.msra.mxu0 0.0
    %623 = vmatprep.subr.mxu0 0.0
    %624 = vmatpush1.msra.mxu0 0.0
    %625 = vmatprep.subr.mxu0 0.0
    %626 = vmatpush1.msra.mxu0 0.0
    %627 = vmatprep.subr.mxu0 0.0
    %628 = vmatpush1.msra.mxu0 0.0
    %629 = vmatprep.subr.mxu0 0.0
    %630 = vmatpush1.msra.mxu0 0.0
    %631 = vmatprep.subr.mxu0 0.0
    %632 = vmatpush1.msra.mxu0 0.0
    %633 = vmatprep.subr.mxu0 0.0
    %634 = vmatpush1.msra.mxu0 0.0
    %635 = vmatprep.subr.mxu0 0.0
    %636 = vmatpush1.msra.mxu0 0.0
    %637 = vmatprep.subr.mxu0 0.0
    %638 = vmatpush1.msra.mxu0 0.0
    %639 = vmatprep.subr.mxu0 0.0
    %640 = vmatpush1.msra.mxu0 0.0
    %641 = vmatprep.subr.mxu0 0.0
    %642 = vmatpush1.msra.mxu0 0.0
    %643 = vmatprep.subr.mxu0 0.0
    %644 = vmatpush1.msra.mxu0 0.0
    %645 = vmatprep.subr.mxu0 0.0
    %646 = vmatpush1.msra.mxu0 0.0
    %647 = vmatprep.subr.mxu0 0.0
    %648 = vmatpush1.msra.mxu0 0.0
    %649 = vmatprep.subr.mxu0 0.0
    %650 = vmatpush1.msra.mxu0 0.0
    %651 = vmatprep.subr.mxu0 0.0
    %652 = vmatpush1.msra.mxu0 0.0
    %653 = vmatprep.subr.mxu0 0.0
    %654 = vmatpush1.msra.mxu0 0.0
    %655 = vmatprep.subr.mxu0 0.0
    %656 = vmatpush1.msra.mxu0 0.0
    %657 = vmatprep.subr.mxu0 0.0
    %658 = vmatpush1.msra.mxu0 0.0
    %659 = vmatprep.subr.mxu0 0.0
    %660 = vmatpush1.msra.mxu0 0.0
    %661 = vmatprep.subr.mxu0 0.0
    %662 = vmatpush1.msra.mxu0 0.0
    %663 = vmatprep.mubr.f32.mxu0 0.0
    %v664 = vand.u32 %v147, 4294901760
    %v665 = vsub.f32 %v147, %v664
    %v666 = vand.u32 %v665, 4294901760
    %667 = vmatmul.mubr.f32.gmra.mrb[0].mxu0 %v666
    %v668 = vpop.f32.mrb[0].mxu0
    %v669 = vadd.f32 %v555, %v668
    %v670 = vpop.f32.mrb[0].mxu0
    %v671 = vadd.f32 %v557, %v670
    %672 = vmatprep.mubr.f32.mxu0 0.0
    %v673 = vand.u32 %v149, 4294901760
    %v674 = vsub.f32 %v149, %v673
    %v675 = vand.u32 %v674, 4294901760
    %676 = vmatmul.mubr.f32.gmra.mrb[0].mxu0 %v675
    %v677 = vpop.f32.mrb[0].mxu0
    %v678 = vadd.f32 %v563, %v677
    %v679 = vpop.f32.mrb[0].mxu0
    %v680 = vadd.f32 %v565, %v679
    %681 = vmatprep.mubr.f32.mxu0 0.0
    %v682 = vand.u32 %v152, 4294901760
    %v683 = vsub.f32 %v152, %v682
    %v684 = vand.u32 %v683, 4294901760
    %685 = vmatmul.mubr.f32.gmra.mrb[0].mxu0 %v684
    %v686 = vpop.f32.mrb[0].mxu0
    %v687 = vadd.f32 %v571, %v686
    %v688 = vpop.f32.mrb[0].mxu0
    %v689 = vadd.f32 %v573, %v688
    %690 = vmatprep.mubr.f32.mxu0 0.0
    %v691 = vand.u32 %v154, 4294901760
    %v692 = vsub.f32 %v154, %v691
    %v693 = vand.u32 %v692, 4294901760
    %694 = vmatmul.mubr.f32.gmra.mrb[0].mxu0 %v693
    %v695 = vpop.f32.mrb[0].mxu0
    %v696 = vadd.f32 %v579, %v695
    %v697 = vpop.f32.mrb[0].mxu0
    %v698 = vadd.f32 %v581, %v697
    %699 = vdwg.mxu0
    %v700 = vand.u32 %v130, 4294901760
    %v701 = vsub.f32 %v130, %v700
    %v702 = vand.u32 %v701, 4294901760
    %703 = vmatprep.subr.mxu0 %v702
    %v704 = vand.u32 %v129, 4294901760
    %v705 = vsub.f32 %v129, %v704
    %v706 = vand.u32 %v705, 4294901760
    %707 = vmatpush1.msra.mxu0 %v706
    %v708 = vand.u32 %v132, 4294901760
    %v709 = vsub.f32 %v132, %v708
    %v710 = vand.u32 %v709, 4294901760
    %711 = vmatprep.subr.mxu0 %v710
    %v712 = vand.u32 %v131, 4294901760
    %v713 = vsub.f32 %v131, %v712
    %v714 = vand.u32 %v713, 4294901760
    %715 = vmatpush1.msra.mxu0 %v714
    %v716 = vand.u32 %v134, 4294901760
    %v717 = vsub.f32 %v134, %v716
    %v718 = vand.u32 %v717, 4294901760
    %719 = vmatprep.subr.mxu0 %v718
    %v720 = vand.u32 %v133, 4294901760
    %v721 = vsub.f32 %v133, %v720
    %v722 = vand.u32 %v721, 4294901760
    %723 = vmatpush1.msra.mxu0 %v722
    %v724 = vand.u32 %v136, 4294901760
    %v725 = vsub.f32 %v136, %v724
    %v726 = vand.u32 %v725, 4294901760
    %727 = vmatprep.subr.mxu0 %v726
    %v728 = vand.u32 %v135, 4294901760
    %v729 = vsub.f32 %v135, %v728
    %v730 = vand.u32 %v729, 4294901760
    %731 = vmatpush1.msra.mxu0 %v730
    %v732 = vand.u32 %v138, 4294901760
    %v733 = vsub.f32 %v138, %v732
    %v734 = vand.u32 %v733, 4294901760
    %735 = vmatprep.subr.mxu0 %v734
    %v736 = vand.u32 %v137, 4294901760
    %v737 = vsub.f32 %v137, %v736
    %v738 = vand.u32 %v737, 4294901760
    %739 = vmatpush1.msra.mxu0 %v738
    %v740 = vand.u32 %v140, 4294901760
    %v741 = vsub.f32 %v140, %v740
    %v742 = vand.u32 %v741, 4294901760
    %743 = vmatprep.subr.mxu0 %v742
    %v744 = vand.u32 %v139, 4294901760
    %v745 = vsub.f32 %v139, %v744
    %v746 = vand.u32 %v745, 4294901760
    %747 = vmatpush1.msra.mxu0 %v746
    %v748 = vand.u32 %v142, 4294901760
    %v749 = vsub.f32 %v142, %v748
    %v750 = vand.u32 %v749, 4294901760
    %751 = vmatprep.subr.mxu0 %v750
    %v752 = vand.u32 %v141, 4294901760
    %v753 = vsub.f32 %v141, %v752
    %v754 = vand.u32 %v753, 4294901760
    %755 = vmatpush1.msra.mxu0 %v754
    %v756 = vand.u32 %v144, 4294901760
    %v757 = vsub.f32 %v144, %v756
    %v758 = vand.u32 %v757, 4294901760
    %759 = vmatprep.subr.mxu0 %v758
    %v760 = vand.u32 %v143, 4294901760
    %v761 = vsub.f32 %v143, %v760
    %v762 = vand.u32 %v761, 4294901760
    %763 = vmatpush1.msra.mxu0 %v762
    %764 = vmatprep.subr.mxu0 0.0
    %765 = vmatpush1.msra.mxu0 0.0
    %766 = vmatprep.subr.mxu0 0.0
    %767 = vmatpush1.msra.mxu0 0.0
    %768 = vmatprep.subr.mxu0 0.0
    %769 = vmatpush1.msra.mxu0 0.0
    %770 = vmatprep.subr.mxu0 0.0
    %771 = vmatpush1.msra.mxu0 0.0
    %772 = vmatprep.subr.mxu0 0.0
    %773 = vmatpush1.msra.mxu0 0.0
    %774 = vmatprep.subr.mxu0 0.0
    %775 = vmatpush1.msra.mxu0 0.0
    %776 = vmatprep.subr.mxu0 0.0
    %777 = vmatpush1.msra.mxu0 0.0
    %778 = vmatprep.subr.mxu0 0.0
    %779 = vmatpush1.msra.mxu0 0.0
    %780 = vmatprep.subr.mxu0 0.0
    %781 = vmatpush1.msra.mxu0 0.0
    %782 = vmatprep.subr.mxu0 0.0
    %783 = vmatpush1.msra.mxu0 0.0
    %784 = vmatprep.subr.mxu0 0.0
    %785 = vmatpush1.msra.mxu0 0.0
    %786 = vmatprep.subr.mxu0 0.0
    %787 = vmatpush1.msra.mxu0 0.0
    %788 = vmatprep.subr.mxu0 0.0
    %789 = vmatpush1.msra.mxu0 0.0
    %790 = vmatprep.subr.mxu0 0.0
    %791 = vmatpush1.msra.mxu0 0.0
    %792 = vmatprep.subr.mxu0 0.0
    %793 = vmatpush1.msra.mxu0 0.0
    %794 = vmatprep.subr.mxu0 0.0
    %795 = vmatpush1.msra.mxu0 0.0
    %796 = vmatprep.subr.mxu0 0.0
    %797 = vmatpush1.msra.mxu0 0.0
    %798 = vmatprep.subr.mxu0 0.0
    %799 = vmatpush1.msra.mxu0 0.0
    %800 = vmatprep.subr.mxu0 0.0
    %801 = vmatpush1.msra.mxu0 0.0
    %802 = vmatprep.subr.mxu0 0.0
    %803 = vmatpush1.msra.mxu0 0.0
    %804 = vmatprep.subr.mxu0 0.0
    %805 = vmatpush1.msra.mxu0 0.0
    %806 = vmatprep.subr.mxu0 0.0
    %807 = vmatpush1.msra.mxu0 0.0
    %808 = vmatprep.subr.mxu0 0.0
    %809 = vmatpush1.msra.mxu0 0.0
    %810 = vmatprep.subr.mxu0 0.0
    %811 = vmatpush1.msra.mxu0 0.0
    %812 = vmatprep.mubr.f32.mxu0 0.0
    %v813 = vand.u32 %v147, 4294901760
    %814 = vmatmul.mubr.f32.gmra.mrb[0].mxu0 %v813
    %v815 = vpop.f32.mrb[0].mxu0
    %v816 = vadd.f32 %v669, %v815
    %v817 = vpop.f32.mrb[0].mxu0
    %v818 = vadd.f32 %v671, %v817
    %819 = vmatprep.mubr.f32.mxu0 0.0
    %v820 = vand.u32 %v149, 4294901760
    %821 = vmatmul.mubr.f32.gmra.mrb[0].mxu0 %v820
    %v822 = vpop.f32.mrb[0].mxu0
    %v823 = vadd.f32 %v678, %v822
    %v824 = vpop.f32.mrb[0].mxu0
    %v825 = vadd.f32 %v680, %v824
    %826 = vmatprep.mubr.f32.mxu0 0.0
    %v827 = vand.u32 %v152, 4294901760
    %828 = vmatmul.mubr.f32.gmra.mrb[0].mxu0 %v827
    %v829 = vpop.f32.mrb[0].mxu0
    %v830 = vadd.f32 %v687, %v829
    %v831 = vpop.f32.mrb[0].mxu0
    %v832 = vadd.f32 %v689, %v831
    %833 = vmatprep.mubr.f32.mxu0 0.0
    %v834 = vand.u32 %v154, 4294901760
    %835 = vmatmul.mubr.f32.gmra.mrb[0].mxu0 %v834
    %v836 = vpop.f32.mrb[0].mxu0
    %v837 = vadd.f32 %v696, %v836
    %v838 = vpop.f32.mrb[0].mxu0
    %v839 = vadd.f32 %v698, %v838
    %840 = vdwg.mxu0
    %v841 = vand.u32 %v130, 4294901760
    %842 = vmatprep.subr.mxu0 %v841
    %v843 = vand.u32 %v129, 4294901760
    %844 = vmatpush1.msra.mxu0 %v843
    %v845 = vand.u32 %v132, 4294901760
    %846 = vmatprep.subr.mxu0 %v845
    %v847 = vand.u32 %v131, 4294901760
    %848 = vmatpush1.msra.mxu0 %v847
    %v849 = vand.u32 %v134, 4294901760
    %850 = vmatprep.subr.mxu0 %v849
    %v851 = vand.u32 %v133, 4294901760
    %852 = vmatpush1.msra.mxu0 %v851
    %v853 = vand.u32 %v136, 4294901760
    %854 = vmatprep.subr.mxu0 %v853
    %v855 = vand.u32 %v135, 4294901760
    %856 = vmatpush1.msra.mxu0 %v855
    %v857 = vand.u32 %v138, 4294901760
    %858 = vmatprep.subr.mxu0 %v857
    %v859 = vand.u32 %v137, 4294901760
    %860 = vmatpush1.msra.mxu0 %v859
    %v861 = vand.u32 %v140, 4294901760
    %862 = vmatprep.subr.mxu0 %v861
    %v863 = vand.u32 %v139, 4294901760
    %864 = vmatpush1.msra.mxu0 %v863
    %v865 = vand.u32 %v142, 4294901760
    %866 = vmatprep.subr.mxu0 %v865
    %v867 = vand.u32 %v141, 4294901760
    %868 = vmatpush1.msra.mxu0 %v867
    %v869 = vand.u32 %v144, 4294901760
    %870 = vmatprep.subr.mxu0 %v869
    %v871 = vand.u32 %v143, 4294901760
    %872 = vmatpush1.msra.mxu0 %v871
    %873 = vmatprep.subr.mxu0 0.0
    %874 = vmatpush1.msra.mxu0 0.0
    %875 = vmatprep.subr.mxu0 0.0
    %876 = vmatpush1.msra.mxu0 0.0
    %877 = vmatprep.subr.mxu0 0.0
    %878 = vmatpush1.msra.mxu0 0.0
    %879 = vmatprep.subr.mxu0 0.0
    %880 = vmatpush1.msra.mxu0 0.0
    %881 = vmatprep.subr.mxu0 0.0
    %882 = vmatpush1.msra.mxu0 0.0
    %883 = vmatprep.subr.mxu0 0.0
    %884 = vmatpush1.msra.mxu0 0.0
    %885 = vmatprep.subr.mxu0 0.0
    %886 = vmatpush1.msra.mxu0 0.0
    %887 = vmatprep.subr.mxu0 0.0
    %888 = vmatpush1.msra.mxu0 0.0
    %889 = vmatprep.subr.mxu0 0.0
    %890 = vmatpush1.msra.mxu0 0.0
    %891 = vmatprep.subr.mxu0 0.0
    %892 = vmatpush1.msra.mxu0 0.0
    %893 = vmatprep.subr.mxu0 0.0
    %894 = vmatpush1.msra.mxu0 0.0
    %895 = vmatprep.subr.mxu0 0.0
    %896 = vmatpush1.msra.mxu0 0.0
    %897 = vmatprep.subr.mxu0 0.0
    %898 = vmatpush1.msra.mxu0 0.0
    %899 = vmatprep.subr.mxu0 0.0
    %900 = vmatpush1.msra.mxu0 0.0
    %901 = vmatprep.subr.mxu0 0.0
    %902 = vmatpush1.msra.mxu0 0.0
    %903 = vmatprep.subr.mxu0 0.0
    %904 = vmatpush1.msra.mxu0 0.0
    %905 = vmatprep.subr.mxu0 0.0
    %906 = vmatpush1.msra.mxu0 0.0
    %907 = vmatprep.subr.mxu0 0.0
    %908 = vmatpush1.msra.mxu0 0.0
    %909 = vmatprep.subr.mxu0 0.0
    %910 = vmatpush1.msra.mxu0 0.0
    %911 = vmatprep.subr.mxu0 0.0
    %912 = vmatpush1.msra.mxu0 0.0
    %913 = vmatprep.subr.mxu0 0.0
    %914 = vmatpush1.msra.mxu0 0.0
    %915 = vmatprep.subr.mxu0 0.0
    %916 = vmatpush1.msra.mxu0 0.0
    %917 = vmatprep.subr.mxu0 0.0
    %918 = vmatpush1.msra.mxu0 0.0
    %919 = vmatprep.subr.mxu0 0.0
    %920 = vmatpush1.msra.mxu0 0.0
    %921 = vmatprep.mubr.f32.mxu0 0.0
    %v922 = vand.u32 %v147, 4294901760
    %923 = vmatmul.mubr.f32.gmra.mrb[0].mxu0 %v922
    %v924 = vpop.f32.mrb[0].mxu0
    %v925 = vadd.f32 %v816, %v924
    %v926 = vpop.f32.mrb[0].mxu0
    %v927 = vadd.f32 %v818, %v926
    %928 = vmatprep.mubr.f32.mxu0 0.0
    %v929 = vand.u32 %v149, 4294901760
    %930 = vmatmul.mubr.f32.gmra.mrb[0].mxu0 %v929
    %v931 = vpop.f32.mrb[0].mxu0
    %v932 = vadd.f32 %v823, %v931
    %v933 = vpop.f32.mrb[0].mxu0
    %v934 = vadd.f32 %v825, %v933
    %935 = vmatprep.mubr.f32.mxu0 0.0
    %v936 = vand.u32 %v152, 4294901760
    %937 = vmatmul.mubr.f32.gmra.mrb[0].mxu0 %v936
    %v938 = vpop.f32.mrb[0].mxu0
    %v939 = vadd.f32 %v830, %v938
    %v940 = vpop.f32.mrb[0].mxu0
    %v941 = vadd.f32 %v832, %v940
    %942 = vmatprep.mubr.f32.mxu0 0.0
    %v943 = vand.u32 %v154, 4294901760
    %944 = vmatmul.mubr.f32.gmra.mrb[0].mxu0 %v943
    %v945 = vpop.f32.mrb[0].mxu0
    %v946 = vadd.f32 %v837, %v945
    %v947 = vpop.f32.mrb[0].mxu0
    %v948 = vadd.f32 %v839, %v947
    %949 = vdwg.mxu0
    %v950 = vsel %vm145, %v82, 0
    %v952 = vsel %vm145, %v83, 0
    %v954 = vsel %vm145, %v84, 0
    %v956 = vsel %vm145, %v85, 0
    %v958 = vand.u32 %v88, 4294901760
    %959 = vmatprep.subr.mxu0 %v958
    %v960 = vand.u32 %v87, 4294901760
    %961 = vmatpush1.msra.mxu0 %v960
    %v962 = vand.u32 %v90, 4294901760
    %963 = vmatprep.subr.mxu0 %v962
    %v964 = vand.u32 %v89, 4294901760
    %965 = vmatpush1.msra.mxu0 %v964
    %v966 = vand.u32 %v92, 4294901760
    %967 = vmatprep.subr.mxu0 %v966
    %v968 = vand.u32 %v91, 4294901760
    %969 = vmatpush1.msra.mxu0 %v968
    %v970 = vand.u32 %v94, 4294901760
    %971 = vmatprep.subr.mxu0 %v970
    %v972 = vand.u32 %v93, 4294901760
    %973 = vmatpush1.msra.mxu0 %v972
    %v974 = vand.u32 %v96, 4294901760
    %975 = vmatprep.subr.mxu0 %v974
    %v976 = vand.u32 %v95, 4294901760
    %977 = vmatpush1.msra.mxu0 %v976
    %v978 = vand.u32 %v98, 4294901760
    %979 = vmatprep.subr.mxu0 %v978
    %v980 = vand.u32 %v97, 4294901760
    %981 = vmatpush1.msra.mxu0 %v980
    %v982 = vand.u32 %v100, 4294901760
    %983 = vmatprep.subr.mxu0 %v982
    %v984 = vand.u32 %v99, 4294901760
    %985 = vmatpush1.msra.mxu0 %v984
    %v986 = vand.u32 %v102, 4294901760
    %987 = vmatprep.subr.mxu0 %v986
    %v988 = vand.u32 %v101, 4294901760
    %989 = vmatpush1.msra.mxu0 %v988
    %990 = vmatprep.subr.mxu0 0.0
    %991 = vmatpush1.msra.mxu0 0.0
    %992 = vmatprep.subr.mxu0 0.0
    %993 = vmatpush1.msra.mxu0 0.0
    %994 = vmatprep.subr.mxu0 0.0
    %995 = vmatpush1.msra.mxu0 0.0
    %996 = vmatprep.subr.mxu0 0.0
    %997 = vmatpush1.msra.mxu0 0.0
    %998 = vmatprep.subr.mxu0 0.0
    %999 = vmatpush1.msra.mxu0 0.0
    %1000 = vmatprep.subr.mxu0 0.0
    %1001 = vmatpush1.msra.mxu0 0.0
    %1002 = vmatprep.subr.mxu0 0.0
    %1003 = vmatpush1.msra.mxu0 0.0
    %1004 = vmatprep.subr.mxu0 0.0
    %1005 = vmatpush1.msra.mxu0 0.0
    %1006 = vmatprep.subr.mxu0 0.0
    %1007 = vmatpush1.msra.mxu0 0.0
    %1008 = vmatprep.subr.mxu0 0.0
    %1009 = vmatpush1.msra.mxu0 0.0
    %1010 = vmatprep.subr.mxu0 0.0
    %1011 = vmatpush1.msra.mxu0 0.0
    %1012 = vmatprep.subr.mxu0 0.0
    %1013 = vmatpush1.msra.mxu0 0.0
    %1014 = vmatprep.subr.mxu0 0.0
    %1015 = vmatpush1.msra.mxu0 0.0
    %1016 = vmatprep.subr.mxu0 0.0
    %1017 = vmatpush1.msra.mxu0 0.0
    %1018 = vmatprep.subr.mxu0 0.0
    %1019 = vmatpush1.msra.mxu0 0.0
    %1020 = vmatprep.subr.mxu0 0.0
    %1021 = vmatpush1.msra.mxu0 0.0
    %1022 = vmatprep.subr.mxu0 0.0
    %1023 = vmatpush1.msra.mxu0 0.0
    %1024 = vmatprep.subr.mxu0 0.0
    %1025 = vmatpush1.msra.mxu0 0.0
    %1026 = vmatprep.subr.mxu0 0.0
    %1027 = vmatpush1.msra.mxu0 0.0
    %1028 = vmatprep.subr.mxu0 0.0
    %1029 = vmatpush1.msra.mxu0 0.0
    %1030 = vmatprep.subr.mxu0 0.0
    %1031 = vmatpush1.msra.mxu0 0.0
    %1032 = vmatprep.subr.mxu0 0.0
    %1033 = vmatpush1.msra.mxu0 0.0
    %1034 = vmatprep.subr.mxu0 0.0
    %1035 = vmatpush1.msra.mxu0 0.0
    %1036 = vmatprep.subr.mxu0 0.0
    %1037 = vmatpush1.msra.mxu0 0.0
    %1038 = vmatprep.mubr.f32.mxu0 0.0
    %v1039 = vand.u32 %v950, 4294901760
    %v1040 = vsub.f32 %v950, %v1039
    %v1041 = vand.u32 %v1040, 4294901760
    %v1042 = vsub.f32 %v1040, %v1041
    %v1043 = vand.u32 %v1042, 4294901760
    %1044 = vmatmul.mubr.f32.gmra.mrb[0].mxu0 %v1043
    %v1045 = vpop.f32.mrb[0].mxu0
    %v1046 = vadd.f32 %v925, %v1045
    %v1047 = vpop.f32.mrb[0].mxu0
    %v1048 = vadd.f32 %v927, %v1047
    %1049 = vmatprep.mubr.f32.mxu0 0.0
    %v1050 = vand.u32 %v952, 4294901760
    %v1051 = vsub.f32 %v952, %v1050
    %v1052 = vand.u32 %v1051, 4294901760
    %v1053 = vsub.f32 %v1051, %v1052
    %v1054 = vand.u32 %v1053, 4294901760
    %1055 = vmatmul.mubr.f32.gmra.mrb[0].mxu0 %v1054
    %v1056 = vpop.f32.mrb[0].mxu0
    %v1057 = vadd.f32 %v932, %v1056
    %v1058 = vpop.f32.mrb[0].mxu0
    %v1059 = vadd.f32 %v934, %v1058
    %1060 = vmatprep.mubr.f32.mxu0 0.0
    %v1061 = vand.u32 %v954, 4294901760
    %v1062 = vsub.f32 %v954, %v1061
    %v1063 = vand.u32 %v1062, 4294901760
    %v1064 = vsub.f32 %v1062, %v1063
    %v1065 = vand.u32 %v1064, 4294901760
    %1066 = vmatmul.mubr.f32.gmra.mrb[0].mxu0 %v1065
    %v1067 = vpop.f32.mrb[0].mxu0
    %v1068 = vadd.f32 %v939, %v1067
    %v1069 = vpop.f32.mrb[0].mxu0
    %v1070 = vadd.f32 %v941, %v1069
    %1071 = vmatprep.mubr.f32.mxu0 0.0
    %v1072 = vand.u32 %v956, 4294901760
    %v1073 = vsub.f32 %v956, %v1072
    %v1074 = vand.u32 %v1073, 4294901760
    %v1075 = vsub.f32 %v1073, %v1074
    %v1076 = vand.u32 %v1075, 4294901760
    %1077 = vmatmul.mubr.f32.gmra.mrb[0].mxu0 %v1076
    %v1078 = vpop.f32.mrb[0].mxu0
    %v1079 = vadd.f32 %v946, %v1078
    %v1080 = vpop.f32.mrb[0].mxu0
    %v1081 = vadd.f32 %v948, %v1080
    %1082 = vdwg.mxu0
    %v1083 = vand.u32 %v88, 4294901760
    %v1084 = vsub.f32 %v88, %v1083
    %v1085 = vand.u32 %v1084, 4294901760
    %v1086 = vsub.f32 %v1084, %v1085
    %v1087 = vand.u32 %v1086, 4294901760
    %1088 = vmatprep.subr.mxu0 %v1087
    %v1089 = vand.u32 %v87, 4294901760
    %v1090 = vsub.f32 %v87, %v1089
    %v1091 = vand.u32 %v1090, 4294901760
    %v1092 = vsub.f32 %v1090, %v1091
    %v1093 = vand.u32 %v1092, 4294901760
    %1094 = vmatpush1.msra.mxu0 %v1093
    %v1095 = vand.u32 %v90, 4294901760
    %v1096 = vsub.f32 %v90, %v1095
    %v1097 = vand.u32 %v1096, 4294901760
    %v1098 = vsub.f32 %v1096, %v1097
    %v1099 = vand.u32 %v1098, 4294901760
    %1100 = vmatprep.subr.mxu0 %v1099
    %v1101 = vand.u32 %v89, 4294901760
    %v1102 = vsub.f32 %v89, %v1101
    %v1103 = vand.u32 %v1102, 4294901760
    %v1104 = vsub.f32 %v1102, %v1103
    %v1105 = vand.u32 %v1104, 4294901760
    %1106 = vmatpush1.msra.mxu0 %v1105
    %v1107 = vand.u32 %v92, 4294901760
    %v1108 = vsub.f32 %v92, %v1107
    %v1109 = vand.u32 %v1108, 4294901760
    %v1110 = vsub.f32 %v1108, %v1109
    %v1111 = vand.u32 %v1110, 4294901760
    %1112 = vmatprep.subr.mxu0 %v1111
    %v1113 = vand.u32 %v91, 4294901760
    %v1114 = vsub.f32 %v91, %v1113
    %v1115 = vand.u32 %v1114, 4294901760
    %v1116 = vsub.f32 %v1114, %v1115
    %v1117 = vand.u32 %v1116, 4294901760
    %1118 = vmatpush1.msra.mxu0 %v1117
    %v1119 = vand.u32 %v94, 4294901760
    %v1120 = vsub.f32 %v94, %v1119
    %v1121 = vand.u32 %v1120, 4294901760
    %v1122 = vsub.f32 %v1120, %v1121
    %v1123 = vand.u32 %v1122, 4294901760
    %1124 = vmatprep.subr.mxu0 %v1123
    %v1125 = vand.u32 %v93, 4294901760
    %v1126 = vsub.f32 %v93, %v1125
    %v1127 = vand.u32 %v1126, 4294901760
    %v1128 = vsub.f32 %v1126, %v1127
    %v1129 = vand.u32 %v1128, 4294901760
    %1130 = vmatpush1.msra.mxu0 %v1129
    %v1131 = vand.u32 %v96, 4294901760
    %v1132 = vsub.f32 %v96, %v1131
    %v1133 = vand.u32 %v1132, 4294901760
    %v1134 = vsub.f32 %v1132, %v1133
    %v1135 = vand.u32 %v1134, 4294901760
    %1136 = vmatprep.subr.mxu0 %v1135
    %v1137 = vand.u32 %v95, 4294901760
    %v1138 = vsub.f32 %v95, %v1137
    %v1139 = vand.u32 %v1138, 4294901760
    %v1140 = vsub.f32 %v1138, %v1139
    %v1141 = vand.u32 %v1140, 4294901760
    %1142 = vmatpush1.msra.mxu0 %v1141
    %v1143 = vand.u32 %v98, 4294901760
    %v1144 = vsub.f32 %v98, %v1143
    %v1145 = vand.u32 %v1144, 4294901760
    %v1146 = vsub.f32 %v1144, %v1145
    %v1147 = vand.u32 %v1146, 4294901760
    %1148 = vmatprep.subr.mxu0 %v1147
    %v1149 = vand.u32 %v97, 4294901760
    %v1150 = vsub.f32 %v97, %v1149
    %v1151 = vand.u32 %v1150, 4294901760
    %v1152 = vsub.f32 %v1150, %v1151
    %v1153 = vand.u32 %v1152, 4294901760
    %1154 = vmatpush1.msra.mxu0 %v1153
    %v1155 = vand.u32 %v100, 4294901760
    %v1156 = vsub.f32 %v100, %v1155
    %v1157 = vand.u32 %v1156, 4294901760
    %v1158 = vsub.f32 %v1156, %v1157
    %v1159 = vand.u32 %v1158, 4294901760
    %1160 = vmatprep.subr.mxu0 %v1159
    %v1161 = vand.u32 %v99, 4294901760
    %v1162 = vsub.f32 %v99, %v1161
    %v1163 = vand.u32 %v1162, 4294901760
    %v1164 = vsub.f32 %v1162, %v1163
    %v1165 = vand.u32 %v1164, 4294901760
    %1166 = vmatpush1.msra.mxu0 %v1165
    %v1167 = vand.u32 %v102, 4294901760
    %v1168 = vsub.f32 %v102, %v1167
    %v1169 = vand.u32 %v1168, 4294901760
    %v1170 = vsub.f32 %v1168, %v1169
    %v1171 = vand.u32 %v1170, 4294901760
    %1172 = vmatprep.subr.mxu0 %v1171
    %v1173 = vand.u32 %v101, 4294901760
    %v1174 = vsub.f32 %v101, %v1173
    %v1175 = vand.u32 %v1174, 4294901760
    %v1176 = vsub.f32 %v1174, %v1175
    %v1177 = vand.u32 %v1176, 4294901760
    %1178 = vmatpush1.msra.mxu0 %v1177
    %1179 = vmatprep.subr.mxu0 0.0
    %1180 = vmatpush1.msra.mxu0 0.0
    %1181 = vmatprep.subr.mxu0 0.0
    %1182 = vmatpush1.msra.mxu0 0.0
    %1183 = vmatprep.subr.mxu0 0.0
    %1184 = vmatpush1.msra.mxu0 0.0
    %1185 = vmatprep.subr.mxu0 0.0
    %1186 = vmatpush1.msra.mxu0 0.0
    %1187 = vmatprep.subr.mxu0 0.0
    %1188 = vmatpush1.msra.mxu0 0.0
    %1189 = vmatprep.subr.mxu0 0.0
    %1190 = vmatpush1.msra.mxu0 0.0
    %1191 = vmatprep.subr.mxu0 0.0
    %1192 = vmatpush1.msra.mxu0 0.0
    %1193 = vmatprep.subr.mxu0 0.0
    %1194 = vmatpush1.msra.mxu0 0.0
    %1195 = vmatprep.subr.mxu0 0.0
    %1196 = vmatpush1.msra.mxu0 0.0
    %1197 = vmatprep.subr.mxu0 0.0
    %1198 = vmatpush1.msra.mxu0 0.0
    %1199 = vmatprep.subr.mxu0 0.0
    %1200 = vmatpush1.msra.mxu0 0.0
    %1201 = vmatprep.subr.mxu0 0.0
    %1202 = vmatpush1.msra.mxu0 0.0
    %1203 = vmatprep.subr.mxu0 0.0
    %1204 = vmatpush1.msra.mxu0 0.0
    %1205 = vmatprep.subr.mxu0 0.0
    %1206 = vmatpush1.msra.mxu0 0.0
    %1207 = vmatprep.subr.mxu0 0.0
    %1208 = vmatpush1.msra.mxu0 0.0
    %1209 = vmatprep.subr.mxu0 0.0
    %1210 = vmatpush1.msra.mxu0 0.0
    %1211 = vmatprep.subr.mxu0 0.0
    %1212 = vmatpush1.msra.mxu0 0.0
    %1213 = vmatprep.subr.mxu0 0.0
    %1214 = vmatpush1.msra.mxu0 0.0
    %1215 = vmatprep.subr.mxu0 0.0
    %1216 = vmatpush1.msra.mxu0 0.0
    %1217 = vmatprep.subr.mxu0 0.0
    %1218 = vmatpush1.msra.mxu0 0.0
    %1219 = vmatprep.subr.mxu0 0.0
    %1220 = vmatpush1.msra.mxu0 0.0
    %1221 = vmatprep.subr.mxu0 0.0
    %1222 = vmatpush1.msra.mxu0 0.0
    %1223 = vmatprep.subr.mxu0 0.0
    %1224 = vmatpush1.msra.mxu0 0.0
    %1225 = vmatprep.subr.mxu0 0.0
    %1226 = vmatpush1.msra.mxu0 0.0
    %1227 = vmatprep.mubr.f32.mxu0 0.0
    %v1228 = vand.u32 %v950, 4294901760
    %1229 = vmatmul.mubr.f32.gmra.mrb[0].mxu0 %v1228
    %v1230 = vpop.f32.mrb[0].mxu0
    %v1231 = vadd.f32 %v1046, %v1230
    %v1232 = vpop.f32.mrb[0].mxu0
    %v1233 = vadd.f32 %v1048, %v1232
    %1234 = vmatprep.mubr.f32.mxu0 0.0
    %v1235 = vand.u32 %v952, 4294901760
    %1236 = vmatmul.mubr.f32.gmra.mrb[0].mxu0 %v1235
    %v1237 = vpop.f32.mrb[0].mxu0
    %v1238 = vadd.f32 %v1057, %v1237
    %v1239 = vpop.f32.mrb[0].mxu0
    %v1240 = vadd.f32 %v1059, %v1239
    %1241 = vmatprep.mubr.f32.mxu0 0.0
    %v1242 = vand.u32 %v954, 4294901760
    %1243 = vmatmul.mubr.f32.gmra.mrb[0].mxu0 %v1242
    %v1244 = vpop.f32.mrb[0].mxu0
    %v1245 = vadd.f32 %v1068, %v1244
    %v1246 = vpop.f32.mrb[0].mxu0
    %v1247 = vadd.f32 %v1070, %v1246
    %1248 = vmatprep.mubr.f32.mxu0 0.0
    %v1249 = vand.u32 %v956, 4294901760
    %1250 = vmatmul.mubr.f32.gmra.mrb[0].mxu0 %v1249
    %v1251 = vpop.f32.mrb[0].mxu0
    %v1252 = vadd.f32 %v1079, %v1251
    %v1253 = vpop.f32.mrb[0].mxu0
    %v1254 = vadd.f32 %v1081, %v1253
    %1255 = vdwg.mxu0
    %v1256 = vand.u32 %v88, 4294901760
    %v1257 = vsub.f32 %v88, %v1256
    %1258 = vmatprep.subr.mxu0 %v1257
    %v1259 = vand.u32 %v87, 4294901760
    %v1260 = vsub.f32 %v87, %v1259
    %1261 = vmatpush1.msra.mxu0 %v1260
    %v1262 = vand.u32 %v90, 4294901760
    %v1263 = vsub.f32 %v90, %v1262
    %1264 = vmatprep.subr.mxu0 %v1263
    %v1265 = vand.u32 %v89, 4294901760
    %v1266 = vsub.f32 %v89, %v1265
    %1267 = vmatpush1.msra.mxu0 %v1266
    %v1268 = vand.u32 %v92, 4294901760
    %v1269 = vsub.f32 %v92, %v1268
    %1270 = vmatprep.subr.mxu0 %v1269
    %v1271 = vand.u32 %v91, 4294901760
    %v1272 = vsub.f32 %v91, %v1271
    %1273 = vmatpush1.msra.mxu0 %v1272
    %v1274 = vand.u32 %v94, 4294901760
    %v1275 = vsub.f32 %v94, %v1274
    %1276 = vmatprep.subr.mxu0 %v1275
    %v1277 = vand.u32 %v93, 4294901760
    %v1278 = vsub.f32 %v93, %v1277
    %1279 = vmatpush1.msra.mxu0 %v1278
    %v1280 = vand.u32 %v96, 4294901760
    %v1281 = vsub.f32 %v96, %v1280
    %1282 = vmatprep.subr.mxu0 %v1281
    %v1283 = vand.u32 %v95, 4294901760
    %v1284 = vsub.f32 %v95, %v1283
    %1285 = vmatpush1.msra.mxu0 %v1284
    %v1286 = vand.u32 %v98, 4294901760
    %v1287 = vsub.f32 %v98, %v1286
    %1288 = vmatprep.subr.mxu0 %v1287
    %v1289 = vand.u32 %v97, 4294901760
    %v1290 = vsub.f32 %v97, %v1289
    %1291 = vmatpush1.msra.mxu0 %v1290
    %v1292 = vand.u32 %v100, 4294901760
    %v1293 = vsub.f32 %v100, %v1292
    %1294 = vmatprep.subr.mxu0 %v1293
    %v1295 = vand.u32 %v99, 4294901760
    %v1296 = vsub.f32 %v99, %v1295
    %1297 = vmatpush1.msra.mxu0 %v1296
    %v1298 = vand.u32 %v102, 4294901760
    %v1299 = vsub.f32 %v102, %v1298
    %1300 = vmatprep.subr.mxu0 %v1299
    %v1301 = vand.u32 %v101, 4294901760
    %v1302 = vsub.f32 %v101, %v1301
    %1303 = vmatpush1.msra.mxu0 %v1302
    %1304 = vmatprep.subr.mxu0 0.0
    %1305 = vmatpush1.msra.mxu0 0.0
    %1306 = vmatprep.subr.mxu0 0.0
    %1307 = vmatpush1.msra.mxu0 0.0
    %1308 = vmatprep.subr.mxu0 0.0
    %1309 = vmatpush1.msra.mxu0 0.0
    %1310 = vmatprep.subr.mxu0 0.0
    %1311 = vmatpush1.msra.mxu0 0.0
    %1312 = vmatprep.subr.mxu0 0.0
    %1313 = vmatpush1.msra.mxu0 0.0
    %1314 = vmatprep.subr.mxu0 0.0
    %1315 = vmatpush1.msra.mxu0 0.0
    %1316 = vmatprep.subr.mxu0 0.0
    %1317 = vmatpush1.msra.mxu0 0.0
    %1318 = vmatprep.subr.mxu0 0.0
    %1319 = vmatpush1.msra.mxu0 0.0
    %1320 = vmatprep.subr.mxu0 0.0
    %1321 = vmatpush1.msra.mxu0 0.0
    %1322 = vmatprep.subr.mxu0 0.0
    %1323 = vmatpush1.msra.mxu0 0.0
    %1324 = vmatprep.subr.mxu0 0.0
    %1325 = vmatpush1.msra.mxu0 0.0
    %1326 = vmatprep.subr.mxu0 0.0
    %1327 = vmatpush1.msra.mxu0 0.0
    %1328 = vmatprep.subr.mxu0 0.0
    %1329 = vmatpush1.msra.mxu0 0.0
    %1330 = vmatprep.subr.mxu0 0.0
    %1331 = vmatpush1.msra.mxu0 0.0
    %1332 = vmatprep.subr.mxu0 0.0
    %1333 = vmatpush1.msra.mxu0 0.0
    %1334 = vmatprep.subr.mxu0 0.0
    %1335 = vmatpush1.msra.mxu0 0.0
    %1336 = vmatprep.subr.mxu0 0.0
    %1337 = vmatpush1.msra.mxu0 0.0
    %1338 = vmatprep.subr.mxu0 0.0
    %1339 = vmatpush1.msra.mxu0 0.0
    %1340 = vmatprep.subr.mxu0 0.0
    %1341 = vmatpush1.msra.mxu0 0.0
    %1342 = vmatprep.subr.mxu0 0.0
    %1343 = vmatpush1.msra.mxu0 0.0
    %1344 = vmatprep.subr.mxu0 0.0
    %1345 = vmatpush1.msra.mxu0 0.0
    %1346 = vmatprep.subr.mxu0 0.0
    %1347 = vmatpush1.msra.mxu0 0.0
    %1348 = vmatprep.subr.mxu0 0.0
    %1349 = vmatpush1.msra.mxu0 0.0
    %1350 = vmatprep.subr.mxu0 0.0
    %1351 = vmatpush1.msra.mxu0 0.0
    %1352 = vmatprep.mubr.f32.mxu0 0.0
    %v1353 = vand.u32 %v950, 4294901760
    %v1354 = vsub.f32 %v950, %v1353
    %1355 = vmatmul.mubr.f32.gmra.mrb[0].mxu0 %v1354
    %v1356 = vpop.f32.mrb[0].mxu0
    %v1357 = vadd.f32 %v1231, %v1356
    %v1358 = vpop.f32.mrb[0].mxu0
    %v1359 = vadd.f32 %v1233, %v1358
    %1360 = vmatprep.mubr.f32.mxu0 0.0
    %v1361 = vand.u32 %v952, 4294901760
    %v1362 = vsub.f32 %v952, %v1361
    %1363 = vmatmul.mubr.f32.gmra.mrb[0].mxu0 %v1362
    %v1364 = vpop.f32.mrb[0].mxu0
    %v1365 = vadd.f32 %v1238, %v1364
    %v1366 = vpop.f32.mrb[0].mxu0
    %v1367 = vadd.f32 %v1240, %v1366
    %1368 = vmatprep.mubr.f32.mxu0 0.0
    %v1369 = vand.u32 %v954, 4294901760
    %v1370 = vsub.f32 %v954, %v1369
    %1371 = vmatmul.mubr.f32.gmra.mrb[0].mxu0 %v1370
    %v1372 = vpop.f32.mrb[0].mxu0
    %v1373 = vadd.f32 %v1245, %v1372
    %v1374 = vpop.f32.mrb[0].mxu0
    %v1375 = vadd.f32 %v1247, %v1374
    %1376 = vmatprep.mubr.f32.mxu0 0.0
    %v1377 = vand.u32 %v956, 4294901760
    %v1378 = vsub.f32 %v956, %v1377
    %1379 = vmatmul.mubr.f32.gmra.mrb[0].mxu0 %v1378
    %v1380 = vpop.f32.mrb[0].mxu0
    %v1381 = vadd.f32 %v1252, %v1380
    %v1382 = vpop.f32.mrb[0].mxu0
    %v1383 = vadd.f32 %v1254, %v1382
    %1384 = vdwg.mxu0
    %v1385 = vand.u32 %v88, 4294901760
    %1386 = vmatprep.subr.mxu0 %v1385
    %v1387 = vand.u32 %v87, 4294901760
    %1388 = vmatpush1.msra.mxu0 %v1387
    %v1389 = vand.u32 %v90, 4294901760
    %1390 = vmatprep.subr.mxu0 %v1389
    %v1391 = vand.u32 %v89, 4294901760
    %1392 = vmatpush1.msra.mxu0 %v1391
    %v1393 = vand.u32 %v92, 4294901760
    %1394 = vmatprep.subr.mxu0 %v1393
    %v1395 = vand.u32 %v91, 4294901760
    %1396 = vmatpush1.msra.mxu0 %v1395
    %v1397 = vand.u32 %v94, 4294901760
    %1398 = vmatprep.subr.mxu0 %v1397
    %v1399 = vand.u32 %v93, 4294901760
    %1400 = vmatpush1.msra.mxu0 %v1399
    %v1401 = vand.u32 %v96, 4294901760
    %1402 = vmatprep.subr.mxu0 %v1401
    %v1403 = vand.u32 %v95, 4294901760
    %1404 = vmatpush1.msra.mxu0 %v1403
    %v1405 = vand.u32 %v98, 4294901760
    %1406 = vmatprep.subr.mxu0 %v1405
    %v1407 = vand.u32 %v97, 4294901760
    %1408 = vmatpush1.msra.mxu0 %v1407
    %v1409 = vand.u32 %v100, 4294901760
    %1410 = vmatprep.subr.mxu0 %v1409
    %v1411 = vand.u32 %v99, 4294901760
    %1412 = vmatpush1.msra.mxu0 %v1411
    %v1413 = vand.u32 %v102, 4294901760
    %1414 = vmatprep.subr.mxu0 %v1413
    %v1415 = vand.u32 %v101, 4294901760
    %1416 = vmatpush1.msra.mxu0 %v1415
    %1417 = vmatprep.subr.mxu0 0.0
    %1418 = vmatpush1.msra.mxu0 0.0
    %1419 = vmatprep.subr.mxu0 0.0
    %1420 = vmatpush1.msra.mxu0 0.0
    %1421 = vmatprep.subr.mxu0 0.0
    %1422 = vmatpush1.msra.mxu0 0.0
    %1423 = vmatprep.subr.mxu0 0.0
    %1424 = vmatpush1.msra.mxu0 0.0
    %1425 = vmatprep.subr.mxu0 0.0
    %1426 = vmatpush1.msra.mxu0 0.0
    %1427 = vmatprep.subr.mxu0 0.0
    %1428 = vmatpush1.msra.mxu0 0.0
    %1429 = vmatprep.subr.mxu0 0.0
    %1430 = vmatpush1.msra.mxu0 0.0
    %1431 = vmatprep.subr.mxu0 0.0
    %1432 = vmatpush1.msra.mxu0 0.0
    %1433 = vmatprep.subr.mxu0 0.0
    %1434 = vmatpush1.msra.mxu0 0.0
    %1435 = vmatprep.subr.mxu0 0.0
    %1436 = vmatpush1.msra.mxu0 0.0
    %1437 = vmatprep.subr.mxu0 0.0
    %1438 = vmatpush1.msra.mxu0 0.0
    %1439 = vmatprep.subr.mxu0 0.0
    %1440 = vmatpush1.msra.mxu0 0.0
    %1441 = vmatprep.subr.mxu0 0.0
    %1442 = vmatpush1.msra.mxu0 0.0
    %1443 = vmatprep.subr.mxu0 0.0
    %1444 = vmatpush1.msra.mxu0 0.0
    %1445 = vmatprep.subr.mxu0 0.0
    %1446 = vmatpush1.msra.mxu0 0.0
    %1447 = vmatprep.subr.mxu0 0.0
    %1448 = vmatpush1.msra.mxu0 0.0
    %1449 = vmatprep.subr.mxu0 0.0
    %1450 = vmatpush1.msra.mxu0 0.0
    %1451 = vmatprep.subr.mxu0 0.0
    %1452 = vmatpush1.msra.mxu0 0.0
    %1453 = vmatprep.subr.mxu0 0.0
    %1454 = vmatpush1.msra.mxu0 0.0
    %1455 = vmatprep.subr.mxu0 0.0
    %1456 = vmatpush1.msra.mxu0 0.0
    %1457 = vmatprep.subr.mxu0 0.0
    %1458 = vmatpush1.msra.mxu0 0.0
    %1459 = vmatprep.subr.mxu0 0.0
    %1460 = vmatpush1.msra.mxu0 0.0
    %1461 = vmatprep.subr.mxu0 0.0
    %1462 = vmatpush1.msra.mxu0 0.0
    %1463 = vmatprep.subr.mxu0 0.0
    %1464 = vmatpush1.msra.mxu0 0.0
    %1465 = vmatprep.mubr.f32.mxu0 0.0
    %v1466 = vand.u32 %v950, 4294901760
    %v1467 = vsub.f32 %v950, %v1466
    %v1468 = vand.u32 %v1467, 4294901760
    %1469 = vmatmul.mubr.f32.gmra.mrb[0].mxu0 %v1468
    %v1470 = vpop.f32.mrb[0].mxu0
    %v1471 = vadd.f32 %v1357, %v1470
    %v1472 = vpop.f32.mrb[0].mxu0
    %v1473 = vadd.f32 %v1359, %v1472
    %1474 = vmatprep.mubr.f32.mxu0 0.0
    %v1475 = vand.u32 %v952, 4294901760
    %v1476 = vsub.f32 %v952, %v1475
    %v1477 = vand.u32 %v1476, 4294901760
    %1478 = vmatmul.mubr.f32.gmra.mrb[0].mxu0 %v1477
    %v1479 = vpop.f32.mrb[0].mxu0
    %v1480 = vadd.f32 %v1365, %v1479
    %v1481 = vpop.f32.mrb[0].mxu0
    %v1482 = vadd.f32 %v1367, %v1481
    %1483 = vmatprep.mubr.f32.mxu0 0.0
    %v1484 = vand.u32 %v954, 4294901760
    %v1485 = vsub.f32 %v954, %v1484
    %v1486 = vand.u32 %v1485, 4294901760
    %1487 = vmatmul.mubr.f32.gmra.mrb[0].mxu0 %v1486
    %v1488 = vpop.f32.mrb[0].mxu0
    %v1489 = vadd.f32 %v1373, %v1488
    %v1490 = vpop.f32.mrb[0].mxu0
    %v1491 = vadd.f32 %v1375, %v1490
    %1492 = vmatprep.mubr.f32.mxu0 0.0
    %v1493 = vand.u32 %v956, 4294901760
    %v1494 = vsub.f32 %v956, %v1493
    %v1495 = vand.u32 %v1494, 4294901760
    %1496 = vmatmul.mubr.f32.gmra.mrb[0].mxu0 %v1495
    %v1497 = vpop.f32.mrb[0].mxu0
    %v1498 = vadd.f32 %v1381, %v1497
    %v1499 = vpop.f32.mrb[0].mxu0
    %v1500 = vadd.f32 %v1383, %v1499
    %1501 = vdwg.mxu0
    %v1502 = vand.u32 %v88, 4294901760
    %v1503 = vsub.f32 %v88, %v1502
    %v1504 = vand.u32 %v1503, 4294901760
    %1505 = vmatprep.subr.mxu0 %v1504
    %v1506 = vand.u32 %v87, 4294901760
    %v1507 = vsub.f32 %v87, %v1506
    %v1508 = vand.u32 %v1507, 4294901760
    %1509 = vmatpush1.msra.mxu0 %v1508
    %v1510 = vand.u32 %v90, 4294901760
    %v1511 = vsub.f32 %v90, %v1510
    %v1512 = vand.u32 %v1511, 4294901760
    %1513 = vmatprep.subr.mxu0 %v1512
    %v1514 = vand.u32 %v89, 4294901760
    %v1515 = vsub.f32 %v89, %v1514
    %v1516 = vand.u32 %v1515, 4294901760
    %1517 = vmatpush1.msra.mxu0 %v1516
    %v1518 = vand.u32 %v92, 4294901760
    %v1519 = vsub.f32 %v92, %v1518
    %v1520 = vand.u32 %v1519, 4294901760
    %1521 = vmatprep.subr.mxu0 %v1520
    %v1522 = vand.u32 %v91, 4294901760
    %v1523 = vsub.f32 %v91, %v1522
    %v1524 = vand.u32 %v1523, 4294901760
    %1525 = vmatpush1.msra.mxu0 %v1524
    %v1526 = vand.u32 %v94, 4294901760
    %v1527 = vsub.f32 %v94, %v1526
    %v1528 = vand.u32 %v1527, 4294901760
    %1529 = vmatprep.subr.mxu0 %v1528
    %v1530 = vand.u32 %v93, 4294901760
    %v1531 = vsub.f32 %v93, %v1530
    %v1532 = vand.u32 %v1531, 4294901760
    %1533 = vmatpush1.msra.mxu0 %v1532
    %v1534 = vand.u32 %v96, 4294901760
    %v1535 = vsub.f32 %v96, %v1534
    %v1536 = vand.u32 %v1535, 4294901760
    %1537 = vmatprep.subr.mxu0 %v1536
    %v1538 = vand.u32 %v95, 4294901760
    %v1539 = vsub.f32 %v95, %v1538
    %v1540 = vand.u32 %v1539, 4294901760
    %1541 = vmatpush1.msra.mxu0 %v1540
    %v1542 = vand.u32 %v98, 4294901760
    %v1543 = vsub.f32 %v98, %v1542
    %v1544 = vand.u32 %v1543, 4294901760
    %1545 = vmatprep.subr.mxu0 %v1544
    %v1546 = vand.u32 %v97, 4294901760
    %v1547 = vsub.f32 %v97, %v1546
    %v1548 = vand.u32 %v1547, 4294901760
    %1549 = vmatpush1.msra.mxu0 %v1548
    %v1550 = vand.u32 %v100, 4294901760
    %v1551 = vsub.f32 %v100, %v1550
    %v1552 = vand.u32 %v1551, 4294901760
    %1553 = vmatprep.subr.mxu0 %v1552
    %v1554 = vand.u32 %v99, 4294901760
    %v1555 = vsub.f32 %v99, %v1554
    %v1556 = vand.u32 %v1555, 4294901760
    %1557 = vmatpush1.msra.mxu0 %v1556
    %v1558 = vand.u32 %v102, 4294901760
    %v1559 = vsub.f32 %v102, %v1558
    %v1560 = vand.u32 %v1559, 4294901760
    %1561 = vmatprep.subr.mxu0 %v1560
    %v1562 = vand.u32 %v101, 4294901760
    %v1563 = vsub.f32 %v101, %v1562
    %v1564 = vand.u32 %v1563, 4294901760
    %1565 = vmatpush1.msra.mxu0 %v1564
    %1566 = vmatprep.subr.mxu0 0.0
    %1567 = vmatpush1.msra.mxu0 0.0
    %1568 = vmatprep.subr.mxu0 0.0
    %1569 = vmatpush1.msra.mxu0 0.0
    %1570 = vmatprep.subr.mxu0 0.0
    %1571 = vmatpush1.msra.mxu0 0.0
    %1572 = vmatprep.subr.mxu0 0.0
    %1573 = vmatpush1.msra.mxu0 0.0
    %1574 = vmatprep.subr.mxu0 0.0
    %1575 = vmatpush1.msra.mxu0 0.0
    %1576 = vmatprep.subr.mxu0 0.0
    %1577 = vmatpush1.msra.mxu0 0.0
    %1578 = vmatprep.subr.mxu0 0.0
    %1579 = vmatpush1.msra.mxu0 0.0
    %1580 = vmatprep.subr.mxu0 0.0
    %1581 = vmatpush1.msra.mxu0 0.0
    %1582 = vmatprep.subr.mxu0 0.0
    %1583 = vmatpush1.msra.mxu0 0.0
    %1584 = vmatprep.subr.mxu0 0.0
    %1585 = vmatpush1.msra.mxu0 0.0
    %1586 = vmatprep.subr.mxu0 0.0
    %1587 = vmatpush1.msra.mxu0 0.0
    %1588 = vmatprep.subr.mxu0 0.0
    %1589 = vmatpush1.msra.mxu0 0.0
    %1590 = vmatprep.subr.mxu0 0.0
    %1591 = vmatpush1.msra.mxu0 0.0
    %1592 = vmatprep.subr.mxu0 0.0
    %1593 = vmatpush1.msra.mxu0 0.0
    %1594 = vmatprep.subr.mxu0 0.0
    %1595 = vmatpush1.msra.mxu0 0.0
    %1596 = vmatprep.subr.mxu0 0.0
    %1597 = vmatpush1.msra.mxu0 0.0
    %1598 = vmatprep.subr.mxu0 0.0
    %1599 = vmatpush1.msra.mxu0 0.0
    %1600 = vmatprep.subr.mxu0 0.0
    %1601 = vmatpush1.msra.mxu0 0.0
    %1602 = vmatprep.subr.mxu0 0.0
    %1603 = vmatpush1.msra.mxu0 0.0
    %1604 = vmatprep.subr.mxu0 0.0
    %1605 = vmatpush1.msra.mxu0 0.0
    %1606 = vmatprep.subr.mxu0 0.0
    %1607 = vmatpush1.msra.mxu0 0.0
    %1608 = vmatprep.subr.mxu0 0.0
    %1609 = vmatpush1.msra.mxu0 0.0
    %1610 = vmatprep.subr.mxu0 0.0
    %1611 = vmatpush1.msra.mxu0 0.0
    %1612 = vmatprep.subr.mxu0 0.0
    %1613 = vmatpush1.msra.mxu0 0.0
    %1614 = vmatprep.mubr.f32.mxu0 0.0
    %v1615 = vand.u32 %v950, 4294901760
    %1616 = vmatmul.mubr.f32.gmra.mrb[0].mxu0 %v1615
    %v1617 = vpop.f32.mrb[0].mxu0
    %v1618 = vadd.f32 %v1471, %v1617
    %v1619 = vpop.f32.mrb[0].mxu0
    %v1620 = vadd.f32 %v1473, %v1619
    %1621 = vmatprep.mubr.f32.mxu0 0.0
    %v1622 = vand.u32 %v952, 4294901760
    %1623 = vmatmul.mubr.f32.gmra.mrb[0].mxu0 %v1622
    %v1624 = vpop.f32.mrb[0].mxu0
    %v1625 = vadd.f32 %v1480, %v1624
    %v1626 = vpop.f32.mrb[0].mxu0
    %v1627 = vadd.f32 %v1482, %v1626
    %1628 = vmatprep.mubr.f32.mxu0 0.0
    %v1629 = vand.u32 %v954, 4294901760
    %1630 = vmatmul.mubr.f32.gmra.mrb[0].mxu0 %v1629
    %v1631 = vpop.f32.mrb[0].mxu0
    %v1632 = vadd.f32 %v1489, %v1631
    %v1633 = vpop.f32.mrb[0].mxu0
    %v1634 = vadd.f32 %v1491, %v1633
    %1635 = vmatprep.mubr.f32.mxu0 0.0
    %v1636 = vand.u32 %v956, 4294901760
    %1637 = vmatmul.mubr.f32.gmra.mrb[0].mxu0 %v1636
    %v1638 = vpop.f32.mrb[0].mxu0
    %v1639 = vadd.f32 %v1498, %v1638
    %v1640 = vpop.f32.mrb[0].mxu0
    %v1641 = vadd.f32 %v1500, %v1640
    %1642 = vdwg.mxu0
    %v1643 = vand.u32 %v88, 4294901760
    %1644 = vmatprep.subr.mxu0 %v1643
    %v1645 = vand.u32 %v87, 4294901760
    %1646 = vmatpush1.msra.mxu0 %v1645
    %v1647 = vand.u32 %v90, 4294901760
    %1648 = vmatprep.subr.mxu0 %v1647
    %v1649 = vand.u32 %v89, 4294901760
    %1650 = vmatpush1.msra.mxu0 %v1649
    %v1651 = vand.u32 %v92, 4294901760
    %1652 = vmatprep.subr.mxu0 %v1651
    %v1653 = vand.u32 %v91, 4294901760
    %1654 = vmatpush1.msra.mxu0 %v1653
    %v1655 = vand.u32 %v94, 4294901760
    %1656 = vmatprep.subr.mxu0 %v1655
    %v1657 = vand.u32 %v93, 4294901760
    %1658 = vmatpush1.msra.mxu0 %v1657
    %v1659 = vand.u32 %v96, 4294901760
    %1660 = vmatprep.subr.mxu0 %v1659
    %v1661 = vand.u32 %v95, 4294901760
    %1662 = vmatpush1.msra.mxu0 %v1661
    %v1663 = vand.u32 %v98, 4294901760
    %1664 = vmatprep.subr.mxu0 %v1663
    %v1665 = vand.u32 %v97, 4294901760
    %1666 = vmatpush1.msra.mxu0 %v1665
    %v1667 = vand.u32 %v100, 4294901760
    %1668 = vmatprep.subr.mxu0 %v1667
    %v1669 = vand.u32 %v99, 4294901760
    %1670 = vmatpush1.msra.mxu0 %v1669
    %v1671 = vand.u32 %v102, 4294901760
    %1672 = vmatprep.subr.mxu0 %v1671
    %v1673 = vand.u32 %v101, 4294901760
    %1674 = vmatpush1.msra.mxu0 %v1673
    %1675 = vmatprep.subr.mxu0 0.0
    %1676 = vmatpush1.msra.mxu0 0.0
    %1677 = vmatprep.subr.mxu0 0.0
    %1678 = vmatpush1.msra.mxu0 0.0
    %1679 = vmatprep.subr.mxu0 0.0
    %1680 = vmatpush1.msra.mxu0 0.0
    %1681 = vmatprep.subr.mxu0 0.0
    %1682 = vmatpush1.msra.mxu0 0.0
    %1683 = vmatprep.subr.mxu0 0.0
    %1684 = vmatpush1.msra.mxu0 0.0
    %1685 = vmatprep.subr.mxu0 0.0
    %1686 = vmatpush1.msra.mxu0 0.0
    %1687 = vmatprep.subr.mxu0 0.0
    %1688 = vmatpush1.msra.mxu0 0.0
    %1689 = vmatprep.subr.mxu0 0.0
    %1690 = vmatpush1.msra.mxu0 0.0
    %1691 = vmatprep.subr.mxu0 0.0
    %1692 = vmatpush1.msra.mxu0 0.0
    %1693 = vmatprep.subr.mxu0 0.0
    %1694 = vmatpush1.msra.mxu0 0.0
    %1695 = vmatprep.subr.mxu0 0.0
    %1696 = vmatpush1.msra.mxu0 0.0
    %1697 = vmatprep.subr.mxu0 0.0
    %1698 = vmatpush1.msra.mxu0 0.0
    %1699 = vmatprep.subr.mxu0 0.0
    %1700 = vmatpush1.msra.mxu0 0.0
    %1701 = vmatprep.subr.mxu0 0.0
    %1702 = vmatpush1.msra.mxu0 0.0
    %1703 = vmatprep.subr.mxu0 0.0
    %1704 = vmatpush1.msra.mxu0 0.0
    %1705 = vmatprep.subr.mxu0 0.0
    %1706 = vmatpush1.msra.mxu0 0.0
    %1707 = vmatprep.subr.mxu0 0.0
    %1708 = vmatpush1.msra.mxu0 0.0
    %1709 = vmatprep.subr.mxu0 0.0
    %1710 = vmatpush1.msra.mxu0 0.0
    %1711 = vmatprep.subr.mxu0 0.0
    %1712 = vmatpush1.msra.mxu0 0.0
    %1713 = vmatprep.subr.mxu0 0.0
    %1714 = vmatpush1.msra.mxu0 0.0
    %1715 = vmatprep.subr.mxu0 0.0
    %1716 = vmatpush1.msra.mxu0 0.0
    %1717 = vmatprep.subr.mxu0 0.0
    %1718 = vmatpush1.msra.mxu0 0.0
    %1719 = vmatprep.subr.mxu0 0.0
    %1720 = vmatpush1.msra.mxu0 0.0
    %1721 = vmatprep.subr.mxu0 0.0
    %1722 = vmatpush1.msra.mxu0 0.0
    %1723 = vmatprep.mubr.f32.mxu0 0.0
    %v1724 = vand.u32 %v950, 4294901760
    %1725 = vmatmul.mubr.f32.gmra.mrb[0].mxu0 %v1724
    %v1726 = vpop.f32.mrb[0].mxu0
    %v1727 = vadd.f32 %v1618, %v1726
    %v1728 = vpop.f32.mrb[0].mxu0
    %v1729 = vadd.f32 %v1620, %v1728
    %1730 = vmatprep.mubr.f32.mxu0 0.0
    %v1731 = vand.u32 %v952, 4294901760
    %1732 = vmatmul.mubr.f32.gmra.mrb[0].mxu0 %v1731
    %v1733 = vpop.f32.mrb[0].mxu0
    %v1734 = vadd.f32 %v1625, %v1733
    %v1735 = vpop.f32.mrb[0].mxu0
    %v1736 = vadd.f32 %v1627, %v1735
    %1737 = vmatprep.mubr.f32.mxu0 0.0
    %v1738 = vand.u32 %v954, 4294901760
    %1739 = vmatmul.mubr.f32.gmra.mrb[0].mxu0 %v1738
    %v1740 = vpop.f32.mrb[0].mxu0
    %v1741 = vadd.f32 %v1632, %v1740
    %v1742 = vpop.f32.mrb[0].mxu0
    %v1743 = vadd.f32 %v1634, %v1742
    %1744 = vmatprep.mubr.f32.mxu0 0.0
    %v1745 = vand.u32 %v956, 4294901760
    %1746 = vmatmul.mubr.f32.gmra.mrb[0].mxu0 %v1745
    %v1747 = vpop.f32.mrb[0].mxu0
    %v1748 = vadd.f32 %v1639, %v1747
    %v1749 = vpop.f32.mrb[0].mxu0
    %v1750 = vadd.f32 %v1641, %v1749
    %1751 = vdwg.mxu0
    %s1752 = scalar_lea.vmem [#allocation2], 256
    %v1753 = vld [vmem:[%s1752] sm:$0xff]
    %v1754 = vld [vmem:[%s1752 + $0x8] sm:$0xff]
    %v1755 = vld [vmem:[%s1752 + $0x10] sm:$0xff]
    %v1756 = vld [vmem:[%s1752 + $0x18] sm:$0xff]
    %v1757 = vld [vmem:[%s1752 + $0x20] sm:$0xff]
    %v1758 = vld [vmem:[%s1752 + $0x28] sm:$0xff]
    %v1759 = vld [vmem:[%s1752 + $0x30] sm:$0xff]
    %v1760 = vld [vmem:[%s1752 + $0x38] sm:$0xff]
    %v1761 = vld [vmem:[%s1752 + $0x40] sm:$0xff]
    %v1762 = vld [vmem:[%s1752 + $0x48] sm:$0xff]
    %v1763 = vld [vmem:[%s1752 + $0x50] sm:$0xff]
    %v1764 = vld [vmem:[%s1752 + $0x58] sm:$0xff]
    %v1765 = vld [vmem:[%s1752 + $0x60] sm:$0xff]
    %v1766 = vld [vmem:[%s1752 + $0x68] sm:$0xff]
    %v1767 = vld [vmem:[%s1752 + $0x70] sm:$0xff]
    %v1768 = vld [vmem:[%s1752 + $0x78] sm:$0xff]
    %v1769 = vsel %vm145, %v121, 0
    %v1772 = vsel %vm145, %v127, 0
    %v1774 = vsel %vm145, %v124, 0
    %v1777 = vsel %vm145, %v128, 0
    %v1779 = vand.u32 %v1754, 4294901760
    %1780 = vmatprep.subr.mxu0 %v1779
    %v1781 = vand.u32 %v1753, 4294901760
    %1782 = vmatpush1.msra.mxu0 %v1781
    %v1783 = vand.u32 %v1756, 4294901760
    %1784 = vmatprep.subr.mxu0 %v1783
    %v1785 = vand.u32 %v1755, 4294901760
    %1786 = vmatpush1.msra.mxu0 %v1785
    %v1787 = vand.u32 %v1758, 4294901760
    %1788 = vmatprep.subr.mxu0 %v1787
    %v1789 = vand.u32 %v1757, 4294901760
    %1790 = vmatpush1.msra.mxu0 %v1789
    %v1791 = vand.u32 %v1760, 4294901760
    %1792 = vmatprep.subr.mxu0 %v1791
    %v1793 = vand.u32 %v1759, 4294901760
    %1794 = vmatpush1.msra.mxu0 %v1793
    %v1795 = vand.u32 %v1762, 4294901760
    %1796 = vmatprep.subr.mxu0 %v1795
    %v1797 = vand.u32 %v1761, 4294901760
    %1798 = vmatpush1.msra.mxu0 %v1797
    %v1799 = vand.u32 %v1764, 4294901760
    %1800 = vmatprep.subr.mxu0 %v1799
    %v1801 = vand.u32 %v1763, 4294901760
    %1802 = vmatpush1.msra.mxu0 %v1801
    %v1803 = vand.u32 %v1766, 4294901760
    %1804 = vmatprep.subr.mxu0 %v1803
    %v1805 = vand.u32 %v1765, 4294901760
    %1806 = vmatpush1.msra.mxu0 %v1805
    %v1807 = vand.u32 %v1768, 4294901760
    %1808 = vmatprep.subr.mxu0 %v1807
    %v1809 = vand.u32 %v1767, 4294901760
    %1810 = vmatpush1.msra.mxu0 %v1809
    %1811 = vmatprep.subr.mxu0 0.0
    %1812 = vmatpush1.msra.mxu0 0.0
    %1813 = vmatprep.subr.mxu0 0.0
    %1814 = vmatpush1.msra.mxu0 0.0
    %1815 = vmatprep.subr.mxu0 0.0
    %1816 = vmatpush1.msra.mxu0 0.0
    %1817 = vmatprep.subr.mxu0 0.0
    %1818 = vmatpush1.msra.mxu0 0.0
    %1819 = vmatprep.subr.mxu0 0.0
    %1820 = vmatpush1.msra.mxu0 0.0
    %1821 = vmatprep.subr.mxu0 0.0
    %1822 = vmatpush1.msra.mxu0 0.0
    %1823 = vmatprep.subr.mxu0 0.0
    %1824 = vmatpush1.msra.mxu0 0.0
    %1825 = vmatprep.subr.mxu0 0.0
    %1826 = vmatpush1.msra.mxu0 0.0
    %1827 = vmatprep.subr.mxu0 0.0
    %1828 = vmatpush1.msra.mxu0 0.0
    %1829 = vmatprep.subr.mxu0 0.0
    %1830 = vmatpush1.msra.mxu0 0.0
    %1831 = vmatprep.subr.mxu0 0.0
    %1832 = vmatpush1.msra.mxu0 0.0
    %1833 = vmatprep.subr.mxu0 0.0
    %1834 = vmatpush1.msra.mxu0 0.0
    %1835 = vmatprep.subr.mxu0 0.0
    %1836 = vmatpush1.msra.mxu0 0.0
    %1837 = vmatprep.subr.mxu0 0.0
    %1838 = vmatpush1.msra.mxu0 0.0
    %1839 = vmatprep.subr.mxu0 0.0
    %1840 = vmatpush1.msra.mxu0 0.0
    %1841 = vmatprep.subr.mxu0 0.0
    %1842 = vmatpush1.msra.mxu0 0.0
    %1843 = vmatprep.subr.mxu0 0.0
    %1844 = vmatpush1.msra.mxu0 0.0
    %1845 = vmatprep.subr.mxu0 0.0
    %1846 = vmatpush1.msra.mxu0 0.0
    %1847 = vmatprep.subr.mxu0 0.0
    %1848 = vmatpush1.msra.mxu0 0.0
    %1849 = vmatprep.subr.mxu0 0.0
    %1850 = vmatpush1.msra.mxu0 0.0
    %1851 = vmatprep.subr.mxu0 0.0
    %1852 = vmatpush1.msra.mxu0 0.0
    %1853 = vmatprep.subr.mxu0 0.0
    %1854 = vmatpush1.msra.mxu0 0.0
    %1855 = vmatprep.subr.mxu0 0.0
    %1856 = vmatpush1.msra.mxu0 0.0
    %1857 = vmatprep.subr.mxu0 0.0
    %1858 = vmatpush1.msra.mxu0 0.0
    %1859 = vmatprep.mubr.f32.mxu0 0.0
    %v1860 = vand.u32 %v1769, 4294901760
    %v1861 = vsub.f32 %v1769, %v1860
    %v1862 = vand.u32 %v1861, 4294901760
    %v1863 = vsub.f32 %v1861, %v1862
    %v1864 = vand.u32 %v1863, 4294901760
    %1865 = vmatmul.mubr.f32.gmra.mrb[0].mxu0 %v1864
    %v1866 = vpop.f32.mrb[0].mxu0
    %v1867 = vadd.f32 0.0, %v1866
    %v1868 = vpop.f32.mrb[0].mxu0
    %v1869 = vadd.f32 0.0, %v1868
    %1870 = vmatprep.mubr.f32.mxu0 0.0
    %v1871 = vand.u32 %v1772, 4294901760
    %v1872 = vsub.f32 %v1772, %v1871
    %v1873 = vand.u32 %v1872, 4294901760
    %v1874 = vsub.f32 %v1872, %v1873
    %v1875 = vand.u32 %v1874, 4294901760
    %1876 = vmatmul.mubr.f32.gmra.mrb[0].mxu0 %v1875
    %v1877 = vpop.f32.mrb[0].mxu0
    %v1878 = vadd.f32 0.0, %v1877
    %v1879 = vpop.f32.mrb[0].mxu0
    %v1880 = vadd.f32 0.0, %v1879
    %1881 = vmatprep.mubr.f32.mxu0 0.0
    %v1882 = vand.u32 %v1774, 4294901760
    %v1883 = vsub.f32 %v1774, %v1882
    %v1884 = vand.u32 %v1883, 4294901760
    %v1885 = vsub.f32 %v1883, %v1884
    %v1886 = vand.u32 %v1885, 4294901760
    %1887 = vmatmul.mubr.f32.gmra.mrb[0].mxu0 %v1886
    %v1888 = vpop.f32.mrb[0].mxu0
    %v1889 = vadd.f32 0.0, %v1888
    %v1890 = vpop.f32.mrb[0].mxu0
    %v1891 = vadd.f32 0.0, %v1890
    %1892 = vmatprep.mubr.f32.mxu0 0.0
    %v1893 = vand.u32 %v1777, 4294901760
    %v1894 = vsub.f32 %v1777, %v1893
    %v1895 = vand.u32 %v1894, 4294901760
    %v1896 = vsub.f32 %v1894, %v1895
    %v1897 = vand.u32 %v1896, 4294901760
    %1898 = vmatmul.mubr.f32.gmra.mrb[0].mxu0 %v1897
    %v1899 = vpop.f32.mrb[0].mxu0
    %v1900 = vadd.f32 0.0, %v1899
    %v1901 = vpop.f32.mrb[0].mxu0
    %v1902 = vadd.f32 0.0, %v1901
    %1903 = vdwg.mxu0
    %v1904 = vand.u32 %v1754, 4294901760
    %v1905 = vsub.f32 %v1754, %v1904
    %v1906 = vand.u32 %v1905, 4294901760
    %v1907 = vsub.f32 %v1905, %v1906
    %v1908 = vand.u32 %v1907, 4294901760
    %1909 = vmatprep.subr.mxu0 %v1908
    %v1910 = vand.u32 %v1753, 4294901760
    %v1911 = vsub.f32 %v1753, %v1910
    %v1912 = vand.u32 %v1911, 4294901760
    %v1913 = vsub.f32 %v1911, %v1912
    %v1914 = vand.u32 %v1913, 4294901760
    %1915 = vmatpush1.msra.mxu0 %v1914
    %v1916 = vand.u32 %v1756, 4294901760
    %v1917 = vsub.f32 %v1756, %v1916
    %v1918 = vand.u32 %v1917, 4294901760
    %v1919 = vsub.f32 %v1917, %v1918
    %v1920 = vand.u32 %v1919, 4294901760
    %1921 = vmatprep.subr.mxu0 %v1920
    %v1922 = vand.u32 %v1755, 4294901760
    %v1923 = vsub.f32 %v1755, %v1922
    %v1924 = vand.u32 %v1923, 4294901760
    %v1925 = vsub.f32 %v1923, %v1924
    %v1926 = vand.u32 %v1925, 4294901760
    %1927 = vmatpush1.msra.mxu0 %v1926
    %v1928 = vand.u32 %v1758, 4294901760
    %v1929 = vsub.f32 %v1758, %v1928
    %v1930 = vand.u32 %v1929, 4294901760
    %v1931 = vsub.f32 %v1929, %v1930
    %v1932 = vand.u32 %v1931, 4294901760
    %1933 = vmatprep.subr.mxu0 %v1932
    %v1934 = vand.u32 %v1757, 4294901760
    %v1935 = vsub.f32 %v1757, %v1934
    %v1936 = vand.u32 %v1935, 4294901760
    %v1937 = vsub.f32 %v1935, %v1936
    %v1938 = vand.u32 %v1937, 4294901760
    %1939 = vmatpush1.msra.mxu0 %v1938
    %v1940 = vand.u32 %v1760, 4294901760
    %v1941 = vsub.f32 %v1760, %v1940
    %v1942 = vand.u32 %v1941, 4294901760
    %v1943 = vsub.f32 %v1941, %v1942
    %v1944 = vand.u32 %v1943, 4294901760
    %1945 = vmatprep.subr.mxu0 %v1944
    %v1946 = vand.u32 %v1759, 4294901760
    %v1947 = vsub.f32 %v1759, %v1946
    %v1948 = vand.u32 %v1947, 4294901760
    %v1949 = vsub.f32 %v1947, %v1948
    %v1950 = vand.u32 %v1949, 4294901760
    %1951 = vmatpush1.msra.mxu0 %v1950
    %v1952 = vand.u32 %v1762, 4294901760
    %v1953 = vsub.f32 %v1762, %v1952
    %v1954 = vand.u32 %v1953, 4294901760
    %v1955 = vsub.f32 %v1953, %v1954
    %v1956 = vand.u32 %v1955, 4294901760
    %1957 = vmatprep.subr.mxu0 %v1956
    %v1958 = vand.u32 %v1761, 4294901760
    %v1959 = vsub.f32 %v1761, %v1958
    %v1960 = vand.u32 %v1959, 4294901760
    %v1961 = vsub.f32 %v1959, %v1960
    %v1962 = vand.u32 %v1961, 4294901760
    %1963 = vmatpush1.msra.mxu0 %v1962
    %v1964 = vand.u32 %v1764, 4294901760
    %v1965 = vsub.f32 %v1764, %v1964
    %v1966 = vand.u32 %v1965, 4294901760
    %v1967 = vsub.f32 %v1965, %v1966
    %v1968 = vand.u32 %v1967, 4294901760
    %1969 = vmatprep.subr.mxu0 %v1968
    %v1970 = vand.u32 %v1763, 4294901760
    %v1971 = vsub.f32 %v1763, %v1970
    %v1972 = vand.u32 %v1971, 4294901760
    %v1973 = vsub.f32 %v1971, %v1972
    %v1974 = vand.u32 %v1973, 4294901760
    %1975 = vmatpush1.msra.mxu0 %v1974
    %v1976 = vand.u32 %v1766, 4294901760
    %v1977 = vsub.f32 %v1766, %v1976
    %v1978 = vand.u32 %v1977, 4294901760
    %v1979 = vsub.f32 %v1977, %v1978
    %v1980 = vand.u32 %v1979, 4294901760
    %1981 = vmatprep.subr.mxu0 %v1980
    %v1982 = vand.u32 %v1765, 4294901760
    %v1983 = vsub.f32 %v1765, %v1982
    %v1984 = vand.u32 %v1983, 4294901760
    %v1985 = vsub.f32 %v1983, %v1984
    %v1986 = vand.u32 %v1985, 4294901760
    %1987 = vmatpush1.msra.mxu0 %v1986
    %v1988 = vand.u32 %v1768, 4294901760
    %v1989 = vsub.f32 %v1768, %v1988
    %v1990 = vand.u32 %v1989, 4294901760
    %v1991 = vsub.f32 %v1989, %v1990
    %v1992 = vand.u32 %v1991, 4294901760
    %1993 = vmatprep.subr.mxu0 %v1992
    %v1994 = vand.u32 %v1767, 4294901760
    %v1995 = vsub.f32 %v1767, %v1994
    %v1996 = vand.u32 %v1995, 4294901760
    %v1997 = vsub.f32 %v1995, %v1996
    %v1998 = vand.u32 %v1997, 4294901760
    %1999 = vmatpush1.msra.mxu0 %v1998
    %2000 = vmatprep.subr.mxu0 0.0
    %2001 = vmatpush1.msra.mxu0 0.0
    %2002 = vmatprep.subr.mxu0 0.0
    %2003 = vmatpush1.msra.mxu0 0.0
    %2004 = vmatprep.subr.mxu0 0.0
    %2005 = vmatpush1.msra.mxu0 0.0
    %2006 = vmatprep.subr.mxu0 0.0
    %2007 = vmatpush1.msra.mxu0 0.0
    %2008 = vmatprep.subr.mxu0 0.0
    %2009 = vmatpush1.msra.mxu0 0.0
    %2010 = vmatprep.subr.mxu0 0.0
    %2011 = vmatpush1.msra.mxu0 0.0
    %2012 = vmatprep.subr.mxu0 0.0
    %2013 = vmatpush1.msra.mxu0 0.0
    %2014 = vmatprep.subr.mxu0 0.0
    %2015 = vmatpush1.msra.mxu0 0.0
    %2016 = vmatprep.subr.mxu0 0.0
    %2017 = vmatpush1.msra.mxu0 0.0
    %2018 = vmatprep.subr.mxu0 0.0
    %2019 = vmatpush1.msra.mxu0 0.0
    %2020 = vmatprep.subr.mxu0 0.0
    %2021 = vmatpush1.msra.mxu0 0.0
    %2022 = vmatprep.subr.mxu0 0.0
    %2023 = vmatpush1.msra.mxu0 0.0
    %2024 = vmatprep.subr.mxu0 0.0
    %2025 = vmatpush1.msra.mxu0 0.0
    %2026 = vmatprep.subr.mxu0 0.0
    %2027 = vmatpush1.msra.mxu0 0.0
    %2028 = vmatprep.subr.mxu0 0.0
    %2029 = vmatpush1.msra.mxu0 0.0
    %2030 = vmatprep.subr.mxu0 0.0
    %2031 = vmatpush1.msra.mxu0 0.0
    %2032 = vmatprep.subr.mxu0 0.0
    %2033 = vmatpush1.msra.mxu0 0.0
    %2034 = vmatprep.subr.mxu0 0.0
    %2035 = vmatpush1.msra.mxu0 0.0
    %2036 = vmatprep.subr.mxu0 0.0
    %2037 = vmatpush1.msra.mxu0 0.0
    %2038 = vmatprep.subr.mxu0 0.0
    %2039 = vmatpush1.msra.mxu0 0.0
    %2040 = vmatprep.subr.mxu0 0.0
    %2041 = vmatpush1.msra.mxu0 0.0
    %2042 = vmatprep.subr.mxu0 0.0
    %2043 = vmatpush1.msra.mxu0 0.0
    %2044 = vmatprep.subr.mxu0 0.0
    %2045 = vmatpush1.msra.mxu0 0.0
    %2046 = vmatprep.subr.mxu0 0.0
    %2047 = vmatpush1.msra.mxu0 0.0
    %2048 = vmatprep.mubr.f32.mxu0 0.0
    %v2049 = vand.u32 %v1769, 4294901760
    %2050 = vmatmul.mubr.f32.gmra.mrb[0].mxu0 %v2049
    %v2051 = vpop.f32.mrb[0].mxu0
    %v2052 = vadd.f32 %v1867, %v2051
    %v2053 = vpop.f32.mrb[0].mxu0
    %v2054 = vadd.f32 %v1869, %v2053
    %2055 = vmatprep.mubr.f32.mxu0 0.0
    %v2056 = vand.u32 %v1772, 4294901760
    %2057 = vmatmul.mubr.f32.gmra.mrb[0].mxu0 %v2056
    %v2058 = vpop.f32.mrb[0].mxu0
    %v2059 = vadd.f32 %v1878, %v2058
    %v2060 = vpop.f32.mrb[0].mxu0
    %v2061 = vadd.f32 %v1880, %v2060
    %2062 = vmatprep.mubr.f32.mxu0 0.0
    %v2063 = vand.u32 %v1774, 4294901760
    %2064 = vmatmul.mubr.f32.gmra.mrb[0].mxu0 %v2063
    %v2065 = vpop.f32.mrb[0].mxu0
    %v2066 = vadd.f32 %v1889, %v2065
    %v2067 = vpop.f32.mrb[0].mxu0
    %v2068 = vadd.f32 %v1891, %v2067
    %2069 = vmatprep.mubr.f32.mxu0 0.0
    %v2070 = vand.u32 %v1777, 4294901760
    %2071 = vmatmul.mubr.f32.gmra.mrb[0].mxu0 %v2070
    %v2072 = vpop.f32.mrb[0].mxu0
    %v2073 = vadd.f32 %v1900, %v2072
    %v2074 = vpop.f32.mrb[0].mxu0
    %v2075 = vadd.f32 %v1902, %v2074
    %2076 = vdwg.mxu0
    %v2077 = vand.u32 %v1754, 4294901760
    %v2078 = vsub.f32 %v1754, %v2077
    %2079 = vmatprep.subr.mxu0 %v2078
    %v2080 = vand.u32 %v1753, 4294901760
    %v2081 = vsub.f32 %v1753, %v2080
    %2082 = vmatpush1.msra.mxu0 %v2081
    %v2083 = vand.u32 %v1756, 4294901760
    %v2084 = vsub.f32 %v1756, %v2083
    %2085 = vmatprep.subr.mxu0 %v2084
    %v2086 = vand.u32 %v1755, 4294901760
    %v2087 = vsub.f32 %v1755, %v2086
    %2088 = vmatpush1.msra.mxu0 %v2087
    %v2089 = vand.u32 %v1758, 4294901760
    %v2090 = vsub.f32 %v1758, %v2089
    %2091 = vmatprep.subr.mxu0 %v2090
    %v2092 = vand.u32 %v1757, 4294901760
    %v2093 = vsub.f32 %v1757, %v2092
    %2094 = vmatpush1.msra.mxu0 %v2093
    %v2095 = vand.u32 %v1760, 4294901760
    %v2096 = vsub.f32 %v1760, %v2095
    %2097 = vmatprep.subr.mxu0 %v2096
    %v2098 = vand.u32 %v1759, 4294901760
    %v2099 = vsub.f32 %v1759, %v2098
    %2100 = vmatpush1.msra.mxu0 %v2099
    %v2101 = vand.u32 %v1762, 4294901760
    %v2102 = vsub.f32 %v1762, %v2101
    %2103 = vmatprep.subr.mxu0 %v2102
    %v2104 = vand.u32 %v1761, 4294901760
    %v2105 = vsub.f32 %v1761, %v2104
    %2106 = vmatpush1.msra.mxu0 %v2105
    %v2107 = vand.u32 %v1764, 4294901760
    %v2108 = vsub.f32 %v1764, %v2107
    %2109 = vmatprep.subr.mxu0 %v2108
    %v2110 = vand.u32 %v1763, 4294901760
    %v2111 = vsub.f32 %v1763, %v2110
    %2112 = vmatpush1.msra.mxu0 %v2111
    %v2113 = vand.u32 %v1766, 4294901760
    %v2114 = vsub.f32 %v1766, %v2113
    %2115 = vmatprep.subr.mxu0 %v2114
    %v2116 = vand.u32 %v1765, 4294901760
    %v2117 = vsub.f32 %v1765, %v2116
    %2118 = vmatpush1.msra.mxu0 %v2117
    %v2119 = vand.u32 %v1768, 4294901760
    %v2120 = vsub.f32 %v1768, %v2119
    %2121 = vmatprep.subr.mxu0 %v2120
    %v2122 = vand.u32 %v1767, 4294901760
    %v2123 = vsub.f32 %v1767, %v2122
    %2124 = vmatpush1.msra.mxu0 %v2123
    %2125 = vmatprep.subr.mxu0 0.0
    %2126 = vmatpush1.msra.mxu0 0.0
    %2127 = vmatprep.subr.mxu0 0.0
    %2128 = vmatpush1.msra.mxu0 0.0
    %2129 = vmatprep.subr.mxu0 0.0
    %2130 = vmatpush1.msra.mxu0 0.0
    %2131 = vmatprep.subr.mxu0 0.0
    %2132 = vmatpush1.msra.mxu0 0.0
    %2133 = vmatprep.subr.mxu0 0.0
    %2134 = vmatpush1.msra.mxu0 0.0
    %2135 = vmatprep.subr.mxu0 0.0
    %2136 = vmatpush1.msra.mxu0 0.0
    %2137 = vmatprep.subr.mxu0 0.0
    %2138 = vmatpush1.msra.mxu0 0.0
    %2139 = vmatprep.subr.mxu0 0.0
    %2140 = vmatpush1.msra.mxu0 0.0
    %2141 = vmatprep.subr.mxu0 0.0
    %2142 = vmatpush1.msra.mxu0 0.0
    %2143 = vmatprep.subr.mxu0 0.0
    %2144 = vmatpush1.msra.mxu0 0.0
    %2145 = vmatprep.subr.mxu0 0.0
    %2146 = vmatpush1.msra.mxu0 0.0
    %2147 = vmatprep.subr.mxu0 0.0
    %2148 = vmatpush1.msra.mxu0 0.0
    %2149 = vmatprep.subr.mxu0 0.0
    %2150 = vmatpush1.msra.mxu0 0.0
    %2151 = vmatprep.subr.mxu0 0.0
    %2152 = vmatpush1.msra.mxu0 0.0
    %2153 = vmatprep.subr.mxu0 0.0
    %2154 = vmatpush1.msra.mxu0 0.0
    %2155 = vmatprep.subr.mxu0 0.0
    %2156 = vmatpush1.msra.mxu0 0.0
    %2157 = vmatprep.subr.mxu0 0.0
    %2158 = vmatpush1.msra.mxu0 0.0
    %2159 = vmatprep.subr.mxu0 0.0
    %2160 = vmatpush1.msra.mxu0 0.0
    %2161 = vmatprep.subr.mxu0 0.0
    %2162 = vmatpush1.msra.mxu0 0.0
    %2163 = vmatprep.subr.mxu0 0.0
    %2164 = vmatpush1.msra.mxu0 0.0
    %2165 = vmatprep.subr.mxu0 0.0
    %2166 = vmatpush1.msra.mxu0 0.0
    %2167 = vmatprep.subr.mxu0 0.0
    %2168 = vmatpush1.msra.mxu0 0.0
    %2169 = vmatprep.subr.mxu0 0.0
    %2170 = vmatpush1.msra.mxu0 0.0
    %2171 = vmatprep.subr.mxu0 0.0
    %2172 = vmatpush1.msra.mxu0 0.0
    %2173 = vmatprep.mubr.f32.mxu0 0.0
    %v2174 = vand.u32 %v1769, 4294901760
    %v2175 = vsub.f32 %v1769, %v2174
    %2176 = vmatmul.mubr.f32.gmra.mrb[0].mxu0 %v2175
    %v2177 = vpop.f32.mrb[0].mxu0
    %v2178 = vadd.f32 %v2052, %v2177
    %v2179 = vpop.f32.mrb[0].mxu0
    %v2180 = vadd.f32 %v2054, %v2179
    %2181 = vmatprep.mubr.f32.mxu0 0.0
    %v2182 = vand.u32 %v1772, 4294901760
    %v2183 = vsub.f32 %v1772, %v2182
    %2184 = vmatmul.mubr.f32.gmra.mrb[0].mxu0 %v2183
    %v2185 = vpop.f32.mrb[0].mxu0
    %v2186 = vadd.f32 %v2059, %v2185
    %v2187 = vpop.f32.mrb[0].mxu0
    %v2188 = vadd.f32 %v2061, %v2187
    %2189 = vmatprep.mubr.f32.mxu0 0.0
    %v2190 = vand.u32 %v1774, 4294901760
    %v2191 = vsub.f32 %v1774, %v2190
    %2192 = vmatmul.mubr.f32.gmra.mrb[0].mxu0 %v2191
    %v2193 = vpop.f32.mrb[0].mxu0
    %v2194 = vadd.f32 %v2066, %v2193
    %v2195 = vpop.f32.mrb[0].mxu0
    %v2196 = vadd.f32 %v2068, %v2195
    %2197 = vmatprep.mubr.f32.mxu0 0.0
    %v2198 = vand.u32 %v1777, 4294901760
    %v2199 = vsub.f32 %v1777, %v2198
    %2200 = vmatmul.mubr.f32.gmra.mrb[0].mxu0 %v2199
    %v2201 = vpop.f32.mrb[0].mxu0
    %v2202 = vadd.f32 %v2073, %v2201
    %v2203 = vpop.f32.mrb[0].mxu0
    %v2204 = vadd.f32 %v2075, %v2203
    %2205 = vdwg.mxu0
    %v2206 = vand.u32 %v1754, 4294901760
    %2207 = vmatprep.subr.mxu0 %v2206
    %v2208 = vand.u32 %v1753, 4294901760
    %2209 = vmatpush1.msra.mxu0 %v2208
    %v2210 = vand.u32 %v1756, 4294901760
    %2211 = vmatprep.subr.mxu0 %v2210
    %v2212 = vand.u32 %v1755, 4294901760
    %2213 = vmatpush1.msra.mxu0 %v2212
    %v2214 = vand.u32 %v1758, 4294901760
    %2215 = vmatprep.subr.mxu0 %v2214
    %v2216 = vand.u32 %v1757, 4294901760
    %2217 = vmatpush1.msra.mxu0 %v2216
    %v2218 = vand.u32 %v1760, 4294901760
    %2219 = vmatprep.subr.mxu0 %v2218
    %v2220 = vand.u32 %v1759, 4294901760
    %2221 = vmatpush1.msra.mxu0 %v2220
    %v2222 = vand.u32 %v1762, 4294901760
    %2223 = vmatprep.subr.mxu0 %v2222
    %v2224 = vand.u32 %v1761, 4294901760
    %2225 = vmatpush1.msra.mxu0 %v2224
    %v2226 = vand.u32 %v1764, 4294901760
    %2227 = vmatprep.subr.mxu0 %v2226
    %v2228 = vand.u32 %v1763, 4294901760
    %2229 = vmatpush1.msra.mxu0 %v2228
    %v2230 = vand.u32 %v1766, 4294901760
    %2231 = vmatprep.subr.mxu0 %v2230
    %v2232 = vand.u32 %v1765, 4294901760
    %2233 = vmatpush1.msra.mxu0 %v2232
    %v2234 = vand.u32 %v1768, 4294901760
    %2235 = vmatprep.subr.mxu0 %v2234
    %v2236 = vand.u32 %v1767, 4294901760
    %2237 = vmatpush1.msra.mxu0 %v2236
    %2238 = vmatprep.subr.mxu0 0.0
    %2239 = vmatpush1.msra.mxu0 0.0
    %2240 = vmatprep.subr.mxu0 0.0
    %2241 = vmatpush1.msra.mxu0 0.0
    %2242 = vmatprep.subr.mxu0 0.0
    %2243 = vmatpush1.msra.mxu0 0.0
    %2244 = vmatprep.subr.mxu0 0.0
    %2245 = vmatpush1.msra.mxu0 0.0
    %2246 = vmatprep.subr.mxu0 0.0
    %2247 = vmatpush1.msra.mxu0 0.0
    %2248 = vmatprep.subr.mxu0 0.0
    %2249 = vmatpush1.msra.mxu0 0.0
    %2250 = vmatprep.subr.mxu0 0.0
    %2251 = vmatpush1.msra.mxu0 0.0
    %2252 = vmatprep.subr.mxu0 0.0
    %2253 = vmatpush1.msra.mxu0 0.0
    %2254 = vmatprep.subr.mxu0 0.0
    %2255 = vmatpush1.msra.mxu0 0.0
    %2256 = vmatprep.subr.mxu0 0.0
    %2257 = vmatpush1.msra.mxu0 0.0
    %2258 = vmatprep.subr.mxu0 0.0
    %2259 = vmatpush1.msra.mxu0 0.0
    %2260 = vmatprep.subr.mxu0 0.0
    %2261 = vmatpush1.msra.mxu0 0.0
    %2262 = vmatprep.subr.mxu0 0.0
    %2263 = vmatpush1.msra.mxu0 0.0
    %2264 = vmatprep.subr.mxu0 0.0
    %2265 = vmatpush1.msra.mxu0 0.0
    %2266 = vmatprep.subr.mxu0 0.0
    %2267 = vmatpush1.msra.mxu0 0.0
    %2268 = vmatprep.subr.mxu0 0.0
    %2269 = vmatpush1.msra.mxu0 0.0
    %2270 = vmatprep.subr.mxu0 0.0
    %2271 = vmatpush1.msra.mxu0 0.0
    %2272 = vmatprep.subr.mxu0 0.0
    %2273 = vmatpush1.msra.mxu0 0.0
    %2274 = vmatprep.subr.mxu0 0.0
    %2275 = vmatpush1.msra.mxu0 0.0
    %2276 = vmatprep.subr.mxu0 0.0
    %2277 = vmatpush1.msra.mxu0 0.0
    %2278 = vmatprep.subr.mxu0 0.0
    %2279 = vmatpush1.msra.mxu0 0.0
    %2280 = vmatprep.subr.mxu0 0.0
    %2281 = vmatpush1.msra.mxu0 0.0
    %2282 = vmatprep.subr.mxu0 0.0
    %2283 = vmatpush1.msra.mxu0 0.0
    %2284 = vmatprep.subr.mxu0 0.0
    %2285 = vmatpush1.msra.mxu0 0.0
    %2286 = vmatprep.mubr.f32.mxu0 0.0
    %v2287 = vand.u32 %v1769, 4294901760
    %v2288 = vsub.f32 %v1769, %v2287
    %v2289 = vand.u32 %v2288, 4294901760
    %2290 = vmatmul.mubr.f32.gmra.mrb[0].mxu0 %v2289
    %v2291 = vpop.f32.mrb[0].mxu0
    %v2292 = vadd.f32 %v2178, %v2291
    %v2293 = vpop.f32.mrb[0].mxu0
    %v2294 = vadd.f32 %v2180, %v2293
    %2295 = vmatprep.mubr.f32.mxu0 0.0
    %v2296 = vand.u32 %v1772, 4294901760
    %v2297 = vsub.f32 %v1772, %v2296
    %v2298 = vand.u32 %v2297, 4294901760
    %2299 = vmatmul.mubr.f32.gmra.mrb[0].mxu0 %v2298
    %v2300 = vpop.f32.mrb[0].mxu0
    %v2301 = vadd.f32 %v2186, %v2300
    %v2302 = vpop.f32.mrb[0].mxu0
    %v2303 = vadd.f32 %v2188, %v2302
    %2304 = vmatprep.mubr.f32.mxu0 0.0
    %v2305 = vand.u32 %v1774, 4294901760
    %v2306 = vsub.f32 %v1774, %v2305
    %v2307 = vand.u32 %v2306, 4294901760
    %2308 = vmatmul.mubr.f32.gmra.mrb[0].mxu0 %v2307
    %v2309 = vpop.f32.mrb[0].mxu0
    %v2310 = vadd.f32 %v2194, %v2309
    %v2311 = vpop.f32.mrb[0].mxu0
    %v2312 = vadd.f32 %v2196, %v2311
    %2313 = vmatprep.mubr.f32.mxu0 0.0
    %v2314 = vand.u32 %v1777, 4294901760
    %v2315 = vsub.f32 %v1777, %v2314
    %v2316 = vand.u32 %v2315, 4294901760
    %2317 = vmatmul.mubr.f32.gmra.mrb[0].mxu0 %v2316
    %v2318 = vpop.f32.mrb[0].mxu0
    %v2319 = vadd.f32 %v2202, %v2318
    %v2320 = vpop.f32.mrb[0].mxu0
    %v2321 = vadd.f32 %v2204, %v2320
    %2322 = vdwg.mxu0
    %v2323 = vand.u32 %v1754, 4294901760
    %v2324 = vsub.f32 %v1754, %v2323
    %v2325 = vand.u32 %v2324, 4294901760
    %2326 = vmatprep.subr.mxu0 %v2325
    %v2327 = vand.u32 %v1753, 4294901760
    %v2328 = vsub.f32 %v1753, %v2327
    %v2329 = vand.u32 %v2328, 4294901760
    %2330 = vmatpush1.msra.mxu0 %v2329
    %v2331 = vand.u32 %v1756, 4294901760
    %v2332 = vsub.f32 %v1756, %v2331
    %v2333 = vand.u32 %v2332, 4294901760
    %2334 = vmatprep.subr.mxu0 %v2333
    %v2335 = vand.u32 %v1755, 4294901760
    %v2336 = vsub.f32 %v1755, %v2335
    %v2337 = vand.u32 %v2336, 4294901760
    %2338 = vmatpush1.msra.mxu0 %v2337
    %v2339 = vand.u32 %v1758, 4294901760
    %v2340 = vsub.f32 %v1758, %v2339
    %v2341 = vand.u32 %v2340, 4294901760
    %2342 = vmatprep.subr.mxu0 %v2341
    %v2343 = vand.u32 %v1757, 4294901760
    %v2344 = vsub.f32 %v1757, %v2343
    %v2345 = vand.u32 %v2344, 4294901760
    %2346 = vmatpush1.msra.mxu0 %v2345
    %v2347 = vand.u32 %v1760, 4294901760
    %v2348 = vsub.f32 %v1760, %v2347
    %v2349 = vand.u32 %v2348, 4294901760
    %2350 = vmatprep.subr.mxu0 %v2349
    %v2351 = vand.u32 %v1759, 4294901760
    %v2352 = vsub.f32 %v1759, %v2351
    %v2353 = vand.u32 %v2352, 4294901760
    %2354 = vmatpush1.msra.mxu0 %v2353
    %v2355 = vand.u32 %v1762, 4294901760
    %v2356 = vsub.f32 %v1762, %v2355
    %v2357 = vand.u32 %v2356, 4294901760
    %2358 = vmatprep.subr.mxu0 %v2357
    %v2359 = vand.u32 %v1761, 4294901760
    %v2360 = vsub.f32 %v1761, %v2359
    %v2361 = vand.u32 %v2360, 4294901760
    %2362 = vmatpush1.msra.mxu0 %v2361
    %v2363 = vand.u32 %v1764, 4294901760
    %v2364 = vsub.f32 %v1764, %v2363
    %v2365 = vand.u32 %v2364, 4294901760
    %2366 = vmatprep.subr.mxu0 %v2365
    %v2367 = vand.u32 %v1763, 4294901760
    %v2368 = vsub.f32 %v1763, %v2367
    %v2369 = vand.u32 %v2368, 4294901760
    %2370 = vmatpush1.msra.mxu0 %v2369
    %v2371 = vand.u32 %v1766, 4294901760
    %v2372 = vsub.f32 %v1766, %v2371
    %v2373 = vand.u32 %v2372, 4294901760
    %2374 = vmatprep.subr.mxu0 %v2373
    %v2375 = vand.u32 %v1765, 4294901760
    %v2376 = vsub.f32 %v1765, %v2375
    %v2377 = vand.u32 %v2376, 4294901760
    %2378 = vmatpush1.msra.mxu0 %v2377
    %v2379 = vand.u32 %v1768, 4294901760
    %v2380 = vsub.f32 %v1768, %v2379
    %v2381 = vand.u32 %v2380, 4294901760
    %2382 = vmatprep.subr.mxu0 %v2381
    %v2383 = vand.u32 %v1767, 4294901760
    %v2384 = vsub.f32 %v1767, %v2383
    %v2385 = vand.u32 %v2384, 4294901760
    %2386 = vmatpush1.msra.mxu0 %v2385
    %2387 = vmatprep.subr.mxu0 0.0
    %2388 = vmatpush1.msra.mxu0 0.0
    %2389 = vmatprep.subr.mxu0 0.0
    %2390 = vmatpush1.msra.mxu0 0.0
    %2391 = vmatprep.subr.mxu0 0.0
    %2392 = vmatpush1.msra.mxu0 0.0
    %2393 = vmatprep.subr.mxu0 0.0
    %2394 = vmatpush1.msra.mxu0 0.0
    %2395 = vmatprep.subr.mxu0 0.0
    %2396 = vmatpush1.msra.mxu0 0.0
    %2397 = vmatprep.subr.mxu0 0.0
    %2398 = vmatpush1.msra.mxu0 0.0
    %2399 = vmatprep.subr.mxu0 0.0
    %2400 = vmatpush1.msra.mxu0 0.0
    %2401 = vmatprep.subr.mxu0 0.0
    %2402 = vmatpush1.msra.mxu0 0.0
    %2403 = vmatprep.subr.mxu0 0.0
    %2404 = vmatpush1.msra.mxu0 0.0
    %2405 = vmatprep.subr.mxu0 0.0
    %2406 = vmatpush1.msra.mxu0 0.0
    %2407 = vmatprep.subr.mxu0 0.0
    %2408 = vmatpush1.msra.mxu0 0.0
    %2409 = vmatprep.subr.mxu0 0.0
    %2410 = vmatpush1.msra.mxu0 0.0
    %2411 = vmatprep.subr.mxu0 0.0
    %2412 = vmatpush1.msra.mxu0 0.0
    %2413 = vmatprep.subr.mxu0 0.0
    %2414 = vmatpush1.msra.mxu0 0.0
    %2415 = vmatprep.subr.mxu0 0.0
    %2416 = vmatpush1.msra.mxu0 0.0
    %2417 = vmatprep.subr.mxu0 0.0
    %2418 = vmatpush1.msra.mxu0 0.0
    %2419 = vmatprep.subr.mxu0 0.0
    %2420 = vmatpush1.msra.mxu0 0.0
    %2421 = vmatprep.subr.mxu0 0.0
    %2422 = vmatpush1.msra.mxu0 0.0
    %2423 = vmatprep.subr.mxu0 0.0
    %2424 = vmatpush1.msra.mxu0 0.0
    %2425 = vmatprep.subr.mxu0 0.0
    %2426 = vmatpush1.msra.mxu0 0.0
    %2427 = vmatprep.subr.mxu0 0.0
    %2428 = vmatpush1.msra.mxu0 0.0
    %2429 = vmatprep.subr.mxu0 0.0
    %2430 = vmatpush1.msra.mxu0 0.0
    %2431 = vmatprep.subr.mxu0 0.0
    %2432 = vmatpush1.msra.mxu0 0.0
    %2433 = vmatprep.subr.mxu0 0.0
    %2434 = vmatpush1.msra.mxu0 0.0
    %2435 = vmatprep.mubr.f32.mxu0 0.0
    %v2436 = vand.u32 %v1769, 4294901760
    %2437 = vmatmul.mubr.f32.gmra.mrb[0].mxu0 %v2436
    %v2438 = vpop.f32.mrb[0].mxu0
    %v2439 = vadd.f32 %v2292, %v2438
    %v2440 = vpop.f32.mrb[0].mxu0
    %v2441 = vadd.f32 %v2294, %v2440
    %2442 = vmatprep.mubr.f32.mxu0 0.0
    %v2443 = vand.u32 %v1772, 4294901760
    %2444 = vmatmul.mubr.f32.gmra.mrb[0].mxu0 %v2443
    %v2445 = vpop.f32.mrb[0].mxu0
    %v2446 = vadd.f32 %v2301, %v2445
    %v2447 = vpop.f32.mrb[0].mxu0
    %v2448 = vadd.f32 %v2303, %v2447
    %2449 = vmatprep.mubr.f32.mxu0 0.0
    %v2450 = vand.u32 %v1774, 4294901760
    %2451 = vmatmul.mubr.f32.gmra.mrb[0].mxu0 %v2450
    %v2452 = vpop.f32.mrb[0].mxu0
    %v2453 = vadd.f32 %v2310, %v2452
    %v2454 = vpop.f32.mrb[0].mxu0
    %v2455 = vadd.f32 %v2312, %v2454
    %2456 = vmatprep.mubr.f32.mxu0 0.0
    %v2457 = vand.u32 %v1777, 4294901760
    %2458 = vmatmul.mubr.f32.gmra.mrb[0].mxu0 %v2457
    %v2459 = vpop.f32.mrb[0].mxu0
    %v2460 = vadd.f32 %v2319, %v2459
    %v2461 = vpop.f32.mrb[0].mxu0
    %v2462 = vadd.f32 %v2321, %v2461
    %2463 = vdwg.mxu0
    %v2464 = vand.u32 %v1754, 4294901760
    %2465 = vmatprep.subr.mxu0 %v2464
    %v2466 = vand.u32 %v1753, 4294901760
    %2467 = vmatpush1.msra.mxu0 %v2466
    %v2468 = vand.u32 %v1756, 4294901760
    %2469 = vmatprep.subr.mxu0 %v2468
    %v2470 = vand.u32 %v1755, 4294901760
    %2471 = vmatpush1.msra.mxu0 %v2470
    %v2472 = vand.u32 %v1758, 4294901760
    %2473 = vmatprep.subr.mxu0 %v2472
    %v2474 = vand.u32 %v1757, 4294901760
    %2475 = vmatpush1.msra.mxu0 %v2474
    %v2476 = vand.u32 %v1760, 4294901760
    %2477 = vmatprep.subr.mxu0 %v2476
    %v2478 = vand.u32 %v1759, 4294901760
    %2479 = vmatpush1.msra.mxu0 %v2478
    %v2480 = vand.u32 %v1762, 4294901760
    %2481 = vmatprep.subr.mxu0 %v2480
    %v2482 = vand.u32 %v1761, 4294901760
    %2483 = vmatpush1.msra.mxu0 %v2482
    %v2484 = vand.u32 %v1764, 4294901760
    %2485 = vmatprep.subr.mxu0 %v2484
    %v2486 = vand.u32 %v1763, 4294901760
    %2487 = vmatpush1.msra.mxu0 %v2486
    %v2488 = vand.u32 %v1766, 4294901760
    %2489 = vmatprep.subr.mxu0 %v2488
    %v2490 = vand.u32 %v1765, 4294901760
    %2491 = vmatpush1.msra.mxu0 %v2490
    %v2492 = vand.u32 %v1768, 4294901760
    %2493 = vmatprep.subr.mxu0 %v2492
    %v2494 = vand.u32 %v1767, 4294901760
    %2495 = vmatpush1.msra.mxu0 %v2494
    %2496 = vmatprep.subr.mxu0 0.0
    %2497 = vmatpush1.msra.mxu0 0.0
    %2498 = vmatprep.subr.mxu0 0.0
    %2499 = vmatpush1.msra.mxu0 0.0
    %2500 = vmatprep.subr.mxu0 0.0
    %2501 = vmatpush1.msra.mxu0 0.0
    %2502 = vmatprep.subr.mxu0 0.0
    %2503 = vmatpush1.msra.mxu0 0.0
    %2504 = vmatprep.subr.mxu0 0.0
    %2505 = vmatpush1.msra.mxu0 0.0
    %2506 = vmatprep.subr.mxu0 0.0
    %2507 = vmatpush1.msra.mxu0 0.0
    %2508 = vmatprep.subr.mxu0 0.0
    %2509 = vmatpush1.msra.mxu0 0.0
    %2510 = vmatprep.subr.mxu0 0.0
    %2511 = vmatpush1.msra.mxu0 0.0
    %2512 = vmatprep.subr.mxu0 0.0
    %2513 = vmatpush1.msra.mxu0 0.0
    %2514 = vmatprep.subr.mxu0 0.0
    %2515 = vmatpush1.msra.mxu0 0.0
    %2516 = vmatprep.subr.mxu0 0.0
    %2517 = vmatpush1.msra.mxu0 0.0
    %2518 = vmatprep.subr.mxu0 0.0
    %2519 = vmatpush1.msra.mxu0 0.0
    %2520 = vmatprep.subr.mxu0 0.0
    %2521 = vmatpush1.msra.mxu0 0.0
    %2522 = vmatprep.subr.mxu0 0.0
    %2523 = vmatpush1.msra.mxu0 0.0
    %2524 = vmatprep.subr.mxu0 0.0
    %2525 = vmatpush1.msra.mxu0 0.0
    %2526 = vmatprep.subr.mxu0 0.0
    %2527 = vmatpush1.msra.mxu0 0.0
    %2528 = vmatprep.subr.mxu0 0.0
    %2529 = vmatpush1.msra.mxu0 0.0
    %2530 = vmatprep.subr.mxu0 0.0
    %2531 = vmatpush1.msra.mxu0 0.0
    %2532 = vmatprep.subr.mxu0 0.0
    %2533 = vmatpush1.msra.mxu0 0.0
    %2534 = vmatprep.subr.mxu0 0.0
    %2535 = vmatpush1.msra.mxu0 0.0
    %2536 = vmatprep.subr.mxu0 0.0
    %2537 = vmatpush1.msra.mxu0 0.0
    %2538 = vmatprep.subr.mxu0 0.0
    %2539 = vmatpush1.msra.mxu0 0.0
    %2540 = vmatprep.subr.mxu0 0.0
    %2541 = vmatpush1.msra.mxu0 0.0
    %2542 = vmatprep.subr.mxu0 0.0
    %2543 = vmatpush1.msra.mxu0 0.0
    %2544 = vmatprep.mubr.f32.mxu0 0.0
    %v2545 = vand.u32 %v1769, 4294901760
    %2546 = vmatmul.mubr.f32.gmra.mrb[0].mxu0 %v2545
    %v2547 = vpop.f32.mrb[0].mxu0
    %v2548 = vadd.f32 %v2439, %v2547
    %v2549 = vpop.f32.mrb[0].mxu0
    %v2550 = vadd.f32 %v2441, %v2549
    %2551 = vmatprep.mubr.f32.mxu0 0.0
    %v2552 = vand.u32 %v1772, 4294901760
    %2553 = vmatmul.mubr.f32.gmra.mrb[0].mxu0 %v2552
    %v2554 = vpop.f32.mrb[0].mxu0
    %v2555 = vadd.f32 %v2446, %v2554
    %v2556 = vpop.f32.mrb[0].mxu0
    %v2557 = vadd.f32 %v2448, %v2556
    %2558 = vmatprep.mubr.f32.mxu0 0.0
    %v2559 = vand.u32 %v1774, 4294901760
    %2560 = vmatmul.mubr.f32.gmra.mrb[0].mxu0 %v2559
    %v2561 = vpop.f32.mrb[0].mxu0
    %v2562 = vadd.f32 %v2453, %v2561
    %v2563 = vpop.f32.mrb[0].mxu0
    %v2564 = vadd.f32 %v2455, %v2563
    %2565 = vmatprep.mubr.f32.mxu0 0.0
    %v2566 = vand.u32 %v1777, 4294901760
    %2567 = vmatmul.mubr.f32.gmra.mrb[0].mxu0 %v2566
    %v2568 = vpop.f32.mrb[0].mxu0
    %v2569 = vadd.f32 %v2460, %v2568
    %v2570 = vpop.f32.mrb[0].mxu0
    %v2571 = vadd.f32 %v2462, %v2570
    %2572 = vdwg.mxu0
    %v2573 = vadd.f32 %v1727, %v2548
    %v2574 = vadd.f32 %v1729, %v2550
    %v2575 = vadd.f32 %v1734, %v2555
    %v2576 = vadd.f32 %v1736, %v2557
    %v2577 = vadd.f32 %v1741, %v2562
    %v2578 = vadd.f32 %v1743, %v2564
    %v2579 = vadd.f32 %v1748, %v2569
    %v2580 = vadd.f32 %v1750, %v2571
    %2581 = vmatprep.subr.mxu0 0.0
    %v2582 = vand.u32 %v50, 4294901760
    %2583 = vmatpush1.msra.mxu0 %v2582
    %2584 = vmatprep.subr.mxu0 0.0
    %v2585 = vand.u32 %v51, 4294901760
    %2586 = vmatpush1.msra.mxu0 %v2585
    %2587 = vmatprep.subr.mxu0 0.0
    %v2588 = vand.u32 %v52, 4294901760
    %2589 = vmatpush1.msra.mxu0 %v2588
    %2590 = vmatprep.subr.mxu0 0.0
    %v2591 = vand.u32 %v53, 4294901760
    %2592 = vmatpush1.msra.mxu0 %v2591
    %2593 = vmatprep.subr.mxu0 0.0
    %v2594 = vand.u32 %v54, 4294901760
    %2595 = vmatpush1.msra.mxu0 %v2594
    %2596 = vmatprep.subr.mxu0 0.0
    %v2597 = vand.u32 %v55, 4294901760
    %2598 = vmatpush1.msra.mxu0 %v2597
    %2599 = vmatprep.subr.mxu0 0.0
    %v2600 = vand.u32 %v56, 4294901760
    %2601 = vmatpush1.msra.mxu0 %v2600
    %2602 = vmatprep.subr.mxu0 0.0
    %v2603 = vand.u32 %v57, 4294901760
    %2604 = vmatpush1.msra.mxu0 %v2603
    %2605 = vmatprep.subr.mxu0 0.0
    %v2606 = vand.u32 %v58, 4294901760
    %2607 = vmatpush1.msra.mxu0 %v2606
    %2608 = vmatprep.subr.mxu0 0.0
    %v2609 = vand.u32 %v59, 4294901760
    %2610 = vmatpush1.msra.mxu0 %v2609
    %2611 = vmatprep.subr.mxu0 0.0
    %v2612 = vand.u32 %v60, 4294901760
    %2613 = vmatpush1.msra.mxu0 %v2612
    %2614 = vmatprep.subr.mxu0 0.0
    %v2615 = vand.u32 %v61, 4294901760
    %2616 = vmatpush1.msra.mxu0 %v2615
    %2617 = vmatprep.subr.mxu0 0.0
    %v2618 = vand.u32 %v62, 4294901760
    %2619 = vmatpush1.msra.mxu0 %v2618
    %2620 = vmatprep.subr.mxu0 0.0
    %v2621 = vand.u32 %v63, 4294901760
    %2622 = vmatpush1.msra.mxu0 %v2621
    %2623 = vmatprep.subr.mxu0 0.0
    %v2624 = vand.u32 %v64, 4294901760
    %2625 = vmatpush1.msra.mxu0 %v2624
    %2626 = vmatprep.subr.mxu0 0.0
    %v2627 = vand.u32 %v65, 4294901760
    %2628 = vmatpush1.msra.mxu0 %v2627
    %2629 = vmatprep.subr.mxu0 0.0
    %v2630 = vand.u32 %v66, 4294901760
    %2631 = vmatpush1.msra.mxu0 %v2630
    %2632 = vmatprep.subr.mxu0 0.0
    %v2633 = vand.u32 %v67, 4294901760
    %2634 = vmatpush1.msra.mxu0 %v2633
    %2635 = vmatprep.subr.mxu0 0.0
    %v2636 = vand.u32 %v68, 4294901760
    %2637 = vmatpush1.msra.mxu0 %v2636
    %2638 = vmatprep.subr.mxu0 0.0
    %v2639 = vand.u32 %v69, 4294901760
    %2640 = vmatpush1.msra.mxu0 %v2639
    %2641 = vmatprep.subr.mxu0 0.0
    %v2642 = vand.u32 %v70, 4294901760
    %2643 = vmatpush1.msra.mxu0 %v2642
    %2644 = vmatprep.subr.mxu0 0.0
    %v2645 = vand.u32 %v71, 4294901760
    %2646 = vmatpush1.msra.mxu0 %v2645
    %2647 = vmatprep.subr.mxu0 0.0
    %v2648 = vand.u32 %v72, 4294901760
    %2649 = vmatpush1.msra.mxu0 %v2648
    %2650 = vmatprep.subr.mxu0 0.0
    %v2651 = vand.u32 %v73, 4294901760
    %2652 = vmatpush1.msra.mxu0 %v2651
    %2653 = vmatprep.subr.mxu0 0.0
    %v2654 = vand.u32 %v74, 4294901760
    %2655 = vmatpush1.msra.mxu0 %v2654
    %2656 = vmatprep.subr.mxu0 0.0
    %v2657 = vand.u32 %v75, 4294901760
    %2658 = vmatpush1.msra.mxu0 %v2657
    %2659 = vmatprep.subr.mxu0 0.0
    %v2660 = vand.u32 %v76, 4294901760
    %2661 = vmatpush1.msra.mxu0 %v2660
    %2662 = vmatprep.subr.mxu0 0.0
    %v2663 = vand.u32 %v77, 4294901760
    %2664 = vmatpush1.msra.mxu0 %v2663
    %2665 = vmatprep.subr.mxu0 0.0
    %v2666 = vand.u32 %v78, 4294901760
    %2667 = vmatpush1.msra.mxu0 %v2666
    %2668 = vmatprep.subr.mxu0 0.0
    %v2669 = vand.u32 %v79, 4294901760
    %2670 = vmatpush1.msra.mxu0 %v2669
    %2671 = vmatprep.subr.mxu0 0.0
    %v2672 = vand.u32 %v80, 4294901760
    %2673 = vmatpush1.msra.mxu0 %v2672
    %2674 = vmatprep.subr.mxu0 0.0
    %v2675 = vand.u32 %v81, 4294901760
    %2676 = vmatpush1.msra.mxu0 %v2675
    %v2677 = vand.u32 %v2574, 4294901760
    %v2678 = vsub.f32 %v2574, %v2677
    %v2679 = vand.u32 %v2678, 4294901760
    %v2680 = vsub.f32 %v2678, %v2679
    %v2681 = vand.u32 %v2680, 4294901760
    %2682 = vmatprep.mubr.f32.mxu0 %v2681
    %v2683 = vand.u32 %v2573, 4294901760
    %v2684 = vsub.f32 %v2573, %v2683
    %v2685 = vand.u32 %v2684, 4294901760
    %v2686 = vsub.f32 %v2684, %v2685
    %v2687 = vand.u32 %v2686, 4294901760
    %2688 = vmatmul.mubr.f32.gmra.mrb[0].mxu0 %v2687
    %v2689 = vpop.f32.mrb[0].mxu0
    %v2690 = vadd.f32 0.0, %v2689
    %v2691 = vpop.f32.mrb[0].mxu0
    %v2692 = vand.u32 %v2576, 4294901760
    %v2693 = vsub.f32 %v2576, %v2692
    %v2694 = vand.u32 %v2693, 4294901760
    %v2695 = vsub.f32 %v2693, %v2694
    %v2696 = vand.u32 %v2695, 4294901760
    %2697 = vmatprep.mubr.f32.mxu0 %v2696
    %v2698 = vand.u32 %v2575, 4294901760
    %v2699 = vsub.f32 %v2575, %v2698
    %v2700 = vand.u32 %v2699, 4294901760
    %v2701 = vsub.f32 %v2699, %v2700
    %v2702 = vand.u32 %v2701, 4294901760
    %2703 = vmatmul.mubr.f32.gmra.mrb[0].mxu0 %v2702
    %v2704 = vpop.f32.mrb[0].mxu0
    %v2705 = vadd.f32 0.0, %v2704
    %v2706 = vpop.f32.mrb[0].mxu0
    %v2707 = vand.u32 %v2578, 4294901760
    %v2708 = vsub.f32 %v2578, %v2707
    %v2709 = vand.u32 %v2708, 4294901760
    %v2710 = vsub.f32 %v2708, %v2709
    %v2711 = vand.u32 %v2710, 4294901760
    %2712 = vmatprep.mubr.f32.mxu0 %v2711
    %v2713 = vand.u32 %v2577, 4294901760
    %v2714 = vsub.f32 %v2577, %v2713
    %v2715 = vand.u32 %v2714, 4294901760
    %v2716 = vsub.f32 %v2714, %v2715
    %v2717 = vand.u32 %v2716, 4294901760
    %2718 = vmatmul.mubr.f32.gmra.mrb[0].mxu0 %v2717
    %v2719 = vpop.f32.mrb[0].mxu0
    %v2720 = vadd.f32 0.0, %v2719
    %v2721 = vpop.f32.mrb[0].mxu0
    %v2722 = vand.u32 %v2580, 4294901760
    %v2723 = vsub.f32 %v2580, %v2722
    %v2724 = vand.u32 %v2723, 4294901760
    %v2725 = vsub.f32 %v2723, %v2724
    %v2726 = vand.u32 %v2725, 4294901760
    %2727 = vmatprep.mubr.f32.mxu0 %v2726
    %v2728 = vand.u32 %v2579, 4294901760
    %v2729 = vsub.f32 %v2579, %v2728
    %v2730 = vand.u32 %v2729, 4294901760
    %v2731 = vsub.f32 %v2729, %v2730
    %v2732 = vand.u32 %v2731, 4294901760
    %2733 = vmatmul.mubr.f32.gmra.mrb[0].mxu0 %v2732
    %v2734 = vpop.f32.mrb[0].mxu0
    %v2735 = vadd.f32 0.0, %v2734
    %v2736 = vpop.f32.mrb[0].mxu0
    %2737 = vdwg.mxu0
    %2738 = vmatprep.subr.mxu0 0.0
    %v2739 = vand.u32 %v50, 4294901760
    %v2740 = vsub.f32 %v50, %v2739
    %v2741 = vand.u32 %v2740, 4294901760
    %v2742 = vsub.f32 %v2740, %v2741
    %v2743 = vand.u32 %v2742, 4294901760
    %2744 = vmatpush1.msra.mxu0 %v2743
    %2745 = vmatprep.subr.mxu0 0.0
    %v2746 = vand.u32 %v51, 4294901760
    %v2747 = vsub.f32 %v51, %v2746
    %v2748 = vand.u32 %v2747, 4294901760
    %v2749 = vsub.f32 %v2747, %v2748
    %v2750 = vand.u32 %v2749, 4294901760
    %2751 = vmatpush1.msra.mxu0 %v2750
    %2752 = vmatprep.subr.mxu0 0.0
    %v2753 = vand.u32 %v52, 4294901760
    %v2754 = vsub.f32 %v52, %v2753
    %v2755 = vand.u32 %v2754, 4294901760
    %v2756 = vsub.f32 %v2754, %v2755
    %v2757 = vand.u32 %v2756, 4294901760
    %2758 = vmatpush1.msra.mxu0 %v2757
    %2759 = vmatprep.subr.mxu0 0.0
    %v2760 = vand.u32 %v53, 4294901760
    %v2761 = vsub.f32 %v53, %v2760
    %v2762 = vand.u32 %v2761, 4294901760
    %v2763 = vsub.f32 %v2761, %v2762
    %v2764 = vand.u32 %v2763, 4294901760
    %2765 = vmatpush1.msra.mxu0 %v2764
    %2766 = vmatprep.subr.mxu0 0.0
    %v2767 = vand.u32 %v54, 4294901760
    %v2768 = vsub.f32 %v54, %v2767
    %v2769 = vand.u32 %v2768, 4294901760
    %v2770 = vsub.f32 %v2768, %v2769
    %v2771 = vand.u32 %v2770, 4294901760
    %2772 = vmatpush1.msra.mxu0 %v2771
    %2773 = vmatprep.subr.mxu0 0.0
    %v2774 = vand.u32 %v55, 4294901760
    %v2775 = vsub.f32 %v55, %v2774
    %v2776 = vand.u32 %v2775, 4294901760
    %v2777 = vsub.f32 %v2775, %v2776
    %v2778 = vand.u32 %v2777, 4294901760
    %2779 = vmatpush1.msra.mxu0 %v2778
    %2780 = vmatprep.subr.mxu0 0.0
    %v2781 = vand.u32 %v56, 4294901760
    %v2782 = vsub.f32 %v56, %v2781
    %v2783 = vand.u32 %v2782, 4294901760
    %v2784 = vsub.f32 %v2782, %v2783
    %v2785 = vand.u32 %v2784, 4294901760
    %2786 = vmatpush1.msra.mxu0 %v2785
    %2787 = vmatprep.subr.mxu0 0.0
    %v2788 = vand.u32 %v57, 4294901760
    %v2789 = vsub.f32 %v57, %v2788
    %v2790 = vand.u32 %v2789, 4294901760
    %v2791 = vsub.f32 %v2789, %v2790
    %v2792 = vand.u32 %v2791, 4294901760
    %2793 = vmatpush1.msra.mxu0 %v2792
    %2794 = vmatprep.subr.mxu0 0.0
    %v2795 = vand.u32 %v58, 4294901760
    %v2796 = vsub.f32 %v58, %v2795
    %v2797 = vand.u32 %v2796, 4294901760
    %v2798 = vsub.f32 %v2796, %v2797
    %v2799 = vand.u32 %v2798, 4294901760
    %2800 = vmatpush1.msra.mxu0 %v2799
    %2801 = vmatprep.subr.mxu0 0.0
    %v2802 = vand.u32 %v59, 4294901760
    %v2803 = vsub.f32 %v59, %v2802
    %v2804 = vand.u32 %v2803, 4294901760
    %v2805 = vsub.f32 %v2803, %v2804
    %v2806 = vand.u32 %v2805, 4294901760
    %2807 = vmatpush1.msra.mxu0 %v2806
    %2808 = vmatprep.subr.mxu0 0.0
    %v2809 = vand.u32 %v60, 4294901760
    %v2810 = vsub.f32 %v60, %v2809
    %v2811 = vand.u32 %v2810, 4294901760
    %v2812 = vsub.f32 %v2810, %v2811
    %v2813 = vand.u32 %v2812, 4294901760
    %2814 = vmatpush1.msra.mxu0 %v2813
    %2815 = vmatprep.subr.mxu0 0.0
    %v2816 = vand.u32 %v61, 4294901760
    %v2817 = vsub.f32 %v61, %v2816
    %v2818 = vand.u32 %v2817, 4294901760
    %v2819 = vsub.f32 %v2817, %v2818
    %v2820 = vand.u32 %v2819, 4294901760
    %2821 = vmatpush1.msra.mxu0 %v2820
    %2822 = vmatprep.subr.mxu0 0.0
    %v2823 = vand.u32 %v62, 4294901760
    %v2824 = vsub.f32 %v62, %v2823
    %v2825 = vand.u32 %v2824, 4294901760
    %v2826 = vsub.f32 %v2824, %v2825
    %v2827 = vand.u32 %v2826, 4294901760
    %2828 = vmatpush1.msra.mxu0 %v2827
    %2829 = vmatprep.subr.mxu0 0.0
    %v2830 = vand.u32 %v63, 4294901760
    %v2831 = vsub.f32 %v63, %v2830
    %v2832 = vand.u32 %v2831, 4294901760
    %v2833 = vsub.f32 %v2831, %v2832
    %v2834 = vand.u32 %v2833, 4294901760
    %2835 = vmatpush1.msra.mxu0 %v2834
    %2836 = vmatprep.subr.mxu0 0.0
    %v2837 = vand.u32 %v64, 4294901760
    %v2838 = vsub.f32 %v64, %v2837
    %v2839 = vand.u32 %v2838, 4294901760
    %v2840 = vsub.f32 %v2838, %v2839
    %v2841 = vand.u32 %v2840, 4294901760
    %2842 = vmatpush1.msra.mxu0 %v2841
    %2843 = vmatprep.subr.mxu0 0.0
    %v2844 = vand.u32 %v65, 4294901760
    %v2845 = vsub.f32 %v65, %v2844
    %v2846 = vand.u32 %v2845, 4294901760
    %v2847 = vsub.f32 %v2845, %v2846
    %v2848 = vand.u32 %v2847, 4294901760
    %2849 = vmatpush1.msra.mxu0 %v2848
    %2850 = vmatprep.subr.mxu0 0.0
    %v2851 = vand.u32 %v66, 4294901760
    %v2852 = vsub.f32 %v66, %v2851
    %v2853 = vand.u32 %v2852, 4294901760
    %v2854 = vsub.f32 %v2852, %v2853
    %v2855 = vand.u32 %v2854, 4294901760
    %2856 = vmatpush1.msra.mxu0 %v2855
    %2857 = vmatprep.subr.mxu0 0.0
    %v2858 = vand.u32 %v67, 4294901760
    %v2859 = vsub.f32 %v67, %v2858
    %v2860 = vand.u32 %v2859, 4294901760
    %v2861 = vsub.f32 %v2859, %v2860
    %v2862 = vand.u32 %v2861, 4294901760
    %2863 = vmatpush1.msra.mxu0 %v2862
    %2864 = vmatprep.subr.mxu0 0.0
    %v2865 = vand.u32 %v68, 4294901760
    %v2866 = vsub.f32 %v68, %v2865
    %v2867 = vand.u32 %v2866, 4294901760
    %v2868 = vsub.f32 %v2866, %v2867
    %v2869 = vand.u32 %v2868, 4294901760
    %2870 = vmatpush1.msra.mxu0 %v2869
    %2871 = vmatprep.subr.mxu0 0.0
    %v2872 = vand.u32 %v69, 4294901760
    %v2873 = vsub.f32 %v69, %v2872
    %v2874 = vand.u32 %v2873, 4294901760
    %v2875 = vsub.f32 %v2873, %v2874
    %v2876 = vand.u32 %v2875, 4294901760
    %2877 = vmatpush1.msra.mxu0 %v2876
    %2878 = vmatprep.subr.mxu0 0.0
    %v2879 = vand.u32 %v70, 4294901760
    %v2880 = vsub.f32 %v70, %v2879
    %v2881 = vand.u32 %v2880, 4294901760
    %v2882 = vsub.f32 %v2880, %v2881
    %v2883 = vand.u32 %v2882, 4294901760
    %2884 = vmatpush1.msra.mxu0 %v2883
    %2885 = vmatprep.subr.mxu0 0.0
    %v2886 = vand.u32 %v71, 4294901760
    %v2887 = vsub.f32 %v71, %v2886
    %v2888 = vand.u32 %v2887, 4294901760
    %v2889 = vsub.f32 %v2887, %v2888
    %v2890 = vand.u32 %v2889, 4294901760
    %2891 = vmatpush1.msra.mxu0 %v2890
    %2892 = vmatprep.subr.mxu0 0.0
    %v2893 = vand.u32 %v72, 4294901760
    %v2894 = vsub.f32 %v72, %v2893
    %v2895 = vand.u32 %v2894, 4294901760
    %v2896 = vsub.f32 %v2894, %v2895
    %v2897 = vand.u32 %v2896, 4294901760
    %2898 = vmatpush1.msra.mxu0 %v2897
    %2899 = vmatprep.subr.mxu0 0.0
    %v2900 = vand.u32 %v73, 4294901760
    %v2901 = vsub.f32 %v73, %v2900
    %v2902 = vand.u32 %v2901, 4294901760
    %v2903 = vsub.f32 %v2901, %v2902
    %v2904 = vand.u32 %v2903, 4294901760
    %2905 = vmatpush1.msra.mxu0 %v2904
    %2906 = vmatprep.subr.mxu0 0.0
    %v2907 = vand.u32 %v74, 4294901760
    %v2908 = vsub.f32 %v74, %v2907
    %v2909 = vand.u32 %v2908, 4294901760
    %v2910 = vsub.f32 %v2908, %v2909
    %v2911 = vand.u32 %v2910, 4294901760
    %2912 = vmatpush1.msra.mxu0 %v2911
    %2913 = vmatprep.subr.mxu0 0.0
    %v2914 = vand.u32 %v75, 4294901760
    %v2915 = vsub.f32 %v75, %v2914
    %v2916 = vand.u32 %v2915, 4294901760
    %v2917 = vsub.f32 %v2915, %v2916
    %v2918 = vand.u32 %v2917, 4294901760
    %2919 = vmatpush1.msra.mxu0 %v2918
    %2920 = vmatprep.subr.mxu0 0.0
    %v2921 = vand.u32 %v76, 4294901760
    %v2922 = vsub.f32 %v76, %v2921
    %v2923 = vand.u32 %v2922, 4294901760
    %v2924 = vsub.f32 %v2922, %v2923
    %v2925 = vand.u32 %v2924, 4294901760
    %2926 = vmatpush1.msra.mxu0 %v2925
    %2927 = vmatprep.subr.mxu0 0.0
    %v2928 = vand.u32 %v77, 4294901760
    %v2929 = vsub.f32 %v77, %v2928
    %v2930 = vand.u32 %v2929, 4294901760
    %v2931 = vsub.f32 %v2929, %v2930
    %v2932 = vand.u32 %v2931, 4294901760
    %2933 = vmatpush1.msra.mxu0 %v2932
    %2934 = vmatprep.subr.mxu0 0.0
    %v2935 = vand.u32 %v78, 4294901760
    %v2936 = vsub.f32 %v78, %v2935
    %v2937 = vand.u32 %v2936, 4294901760
    %v2938 = vsub.f32 %v2936, %v2937
    %v2939 = vand.u32 %v2938, 4294901760
    %2940 = vmatpush1.msra.mxu0 %v2939
    %2941 = vmatprep.subr.mxu0 0.0
    %v2942 = vand.u32 %v79, 4294901760
    %v2943 = vsub.f32 %v79, %v2942
    %v2944 = vand.u32 %v2943, 4294901760
    %v2945 = vsub.f32 %v2943, %v2944
    %v2946 = vand.u32 %v2945, 4294901760
    %2947 = vmatpush1.msra.mxu0 %v2946
    %2948 = vmatprep.subr.mxu0 0.0
    %v2949 = vand.u32 %v80, 4294901760
    %v2950 = vsub.f32 %v80, %v2949
    %v2951 = vand.u32 %v2950, 4294901760
    %v2952 = vsub.f32 %v2950, %v2951
    %v2953 = vand.u32 %v2952, 4294901760
    %2954 = vmatpush1.msra.mxu0 %v2953
    %2955 = vmatprep.subr.mxu0 0.0
    %v2956 = vand.u32 %v81, 4294901760
    %v2957 = vsub.f32 %v81, %v2956
    %v2958 = vand.u32 %v2957, 4294901760
    %v2959 = vsub.f32 %v2957, %v2958
    %v2960 = vand.u32 %v2959, 4294901760
    %2961 = vmatpush1.msra.mxu0 %v2960
    %v2962 = vand.u32 %v2574, 4294901760
    %2963 = vmatprep.mubr.f32.mxu0 %v2962
    %v2964 = vand.u32 %v2573, 4294901760
    %2965 = vmatmul.mubr.f32.gmra.mrb[0].mxu0 %v2964
    %v2966 = vpop.f32.mrb[0].mxu0
    %v2967 = vadd.f32 %v2690, %v2966
    %v2968 = vpop.f32.mrb[0].mxu0
    %v2969 = vand.u32 %v2576, 4294901760
    %2970 = vmatprep.mubr.f32.mxu0 %v2969
    %v2971 = vand.u32 %v2575, 4294901760
    %2972 = vmatmul.mubr.f32.gmra.mrb[0].mxu0 %v2971
    %v2973 = vpop.f32.mrb[0].mxu0
    %v2974 = vadd.f32 %v2705, %v2973
    %v2975 = vpop.f32.mrb[0].mxu0
    %v2976 = vand.u32 %v2578, 4294901760
    %2977 = vmatprep.mubr.f32.mxu0 %v2976
    %v2978 = vand.u32 %v2577, 4294901760
    %2979 = vmatmul.mubr.f32.gmra.mrb[0].mxu0 %v2978
    %v2980 = vpop.f32.mrb[0].mxu0
    %v2981 = vadd.f32 %v2720, %v2980
    %v2982 = vpop.f32.mrb[0].mxu0
    %v2983 = vand.u32 %v2580, 4294901760
    %2984 = vmatprep.mubr.f32.mxu0 %v2983
    %v2985 = vand.u32 %v2579, 4294901760
    %2986 = vmatmul.mubr.f32.gmra.mrb[0].mxu0 %v2985
    %v2987 = vpop.f32.mrb[0].mxu0
    %v2988 = vadd.f32 %v2735, %v2987
    %v2989 = vpop.f32.mrb[0].mxu0
    %2990 = vdwg.mxu0
    %2991 = vmatprep.subr.mxu0 0.0
    %v2992 = vand.u32 %v50, 4294901760
    %v2993 = vsub.f32 %v50, %v2992
    %2994 = vmatpush1.msra.mxu0 %v2993
    %2995 = vmatprep.subr.mxu0 0.0
    %v2996 = vand.u32 %v51, 4294901760
    %v2997 = vsub.f32 %v51, %v2996
    %2998 = vmatpush1.msra.mxu0 %v2997
    %2999 = vmatprep.subr.mxu0 0.0
    %v3000 = vand.u32 %v52, 4294901760
    %v3001 = vsub.f32 %v52, %v3000
    %3002 = vmatpush1.msra.mxu0 %v3001
    %3003 = vmatprep.subr.mxu0 0.0
    %v3004 = vand.u32 %v53, 4294901760
    %v3005 = vsub.f32 %v53, %v3004
    %3006 = vmatpush1.msra.mxu0 %v3005
    %3007 = vmatprep.subr.mxu0 0.0
    %v3008 = vand.u32 %v54, 4294901760
    %v3009 = vsub.f32 %v54, %v3008
    %3010 = vmatpush1.msra.mxu0 %v3009
    %3011 = vmatprep.subr.mxu0 0.0
    %v3012 = vand.u32 %v55, 4294901760
    %v3013 = vsub.f32 %v55, %v3012
    %3014 = vmatpush1.msra.mxu0 %v3013
    %3015 = vmatprep.subr.mxu0 0.0
    %v3016 = vand.u32 %v56, 4294901760
    %v3017 = vsub.f32 %v56, %v3016
    %3018 = vmatpush1.msra.mxu0 %v3017
    %3019 = vmatprep.subr.mxu0 0.0
    %v3020 = vand.u32 %v57, 4294901760
    %v3021 = vsub.f32 %v57, %v3020
    %3022 = vmatpush1.msra.mxu0 %v3021
    %3023 = vmatprep.subr.mxu0 0.0
    %v3024 = vand.u32 %v58, 4294901760
    %v3025 = vsub.f32 %v58, %v3024
    %3026 = vmatpush1.msra.mxu0 %v3025
    %3027 = vmatprep.subr.mxu0 0.0
    %v3028 = vand.u32 %v59, 4294901760
    %v3029 = vsub.f32 %v59, %v3028
    %3030 = vmatpush1.msra.mxu0 %v3029
    %3031 = vmatprep.subr.mxu0 0.0
    %v3032 = vand.u32 %v60, 4294901760
    %v3033 = vsub.f32 %v60, %v3032
    %3034 = vmatpush1.msra.mxu0 %v3033
    %3035 = vmatprep.subr.mxu0 0.0
    %v3036 = vand.u32 %v61, 4294901760
    %v3037 = vsub.f32 %v61, %v3036
    %3038 = vmatpush1.msra.mxu0 %v3037
    %3039 = vmatprep.subr.mxu0 0.0
    %v3040 = vand.u32 %v62, 4294901760
    %v3041 = vsub.f32 %v62, %v3040
    %3042 = vmatpush1.msra.mxu0 %v3041
    %3043 = vmatprep.subr.mxu0 0.0
    %v3044 = vand.u32 %v63, 4294901760
    %v3045 = vsub.f32 %v63, %v3044
    %3046 = vmatpush1.msra.mxu0 %v3045
    %3047 = vmatprep.subr.mxu0 0.0
    %v3048 = vand.u32 %v64, 4294901760
    %v3049 = vsub.f32 %v64, %v3048
    %3050 = vmatpush1.msra.mxu0 %v3049
    %3051 = vmatprep.subr.mxu0 0.0
    %v3052 = vand.u32 %v65, 4294901760
    %v3053 = vsub.f32 %v65, %v3052
    %3054 = vmatpush1.msra.mxu0 %v3053
    %3055 = vmatprep.subr.mxu0 0.0
    %v3056 = vand.u32 %v66, 4294901760
    %v3057 = vsub.f32 %v66, %v3056
    %3058 = vmatpush1.msra.mxu0 %v3057
    %3059 = vmatprep.subr.mxu0 0.0
    %v3060 = vand.u32 %v67, 4294901760
    %v3061 = vsub.f32 %v67, %v3060
    %3062 = vmatpush1.msra.mxu0 %v3061
    %3063 = vmatprep.subr.mxu0 0.0
    %v3064 = vand.u32 %v68, 4294901760
    %v3065 = vsub.f32 %v68, %v3064
    %3066 = vmatpush1.msra.mxu0 %v3065
    %3067 = vmatprep.subr.mxu0 0.0
    %v3068 = vand.u32 %v69, 4294901760
    %v3069 = vsub.f32 %v69, %v3068
    %3070 = vmatpush1.msra.mxu0 %v3069
    %3071 = vmatprep.subr.mxu0 0.0
    %v3072 = vand.u32 %v70, 4294901760
    %v3073 = vsub.f32 %v70, %v3072
    %3074 = vmatpush1.msra.mxu0 %v3073
    %3075 = vmatprep.subr.mxu0 0.0
    %v3076 = vand.u32 %v71, 4294901760
    %v3077 = vsub.f32 %v71, %v3076
    %3078 = vmatpush1.msra.mxu0 %v3077
    %3079 = vmatprep.subr.mxu0 0.0
    %v3080 = vand.u32 %v72, 4294901760
    %v3081 = vsub.f32 %v72, %v3080
    %3082 = vmatpush1.msra.mxu0 %v3081
    %3083 = vmatprep.subr.mxu0 0.0
    %v3084 = vand.u32 %v73, 4294901760
    %v3085 = vsub.f32 %v73, %v3084
    %3086 = vmatpush1.msra.mxu0 %v3085
    %3087 = vmatprep.subr.mxu0 0.0
    %v3088 = vand.u32 %v74, 4294901760
    %v3089 = vsub.f32 %v74, %v3088
    %3090 = vmatpush1.msra.mxu0 %v3089
    %3091 = vmatprep.subr.mxu0 0.0
    %v3092 = vand.u32 %v75, 4294901760
    %v3093 = vsub.f32 %v75, %v3092
    %3094 = vmatpush1.msra.mxu0 %v3093
    %3095 = vmatprep.subr.mxu0 0.0
    %v3096 = vand.u32 %v76, 4294901760
    %v3097 = vsub.f32 %v76, %v3096
    %3098 = vmatpush1.msra.mxu0 %v3097
    %3099 = vmatprep.subr.mxu0 0.0
    %v3100 = vand.u32 %v77, 4294901760
    %v3101 = vsub.f32 %v77, %v3100
    %3102 = vmatpush1.msra.mxu0 %v3101
    %3103 = vmatprep.subr.mxu0 0.0
    %v3104 = vand.u32 %v78, 4294901760
    %v3105 = vsub.f32 %v78, %v3104
    %3106 = vmatpush1.msra.mxu0 %v3105
    %3107 = vmatprep.subr.mxu0 0.0
    %v3108 = vand.u32 %v79, 4294901760
    %v3109 = vsub.f32 %v79, %v3108
    %3110 = vmatpush1.msra.mxu0 %v3109
    %3111 = vmatprep.subr.mxu0 0.0
    %v3112 = vand.u32 %v80, 4294901760
    %v3113 = vsub.f32 %v80, %v3112
    %3114 = vmatpush1.msra.mxu0 %v3113
    %3115 = vmatprep.subr.mxu0 0.0
    %v3116 = vand.u32 %v81, 4294901760
    %v3117 = vsub.f32 %v81, %v3116
    %3118 = vmatpush1.msra.mxu0 %v3117
    %v3119 = vand.u32 %v2574, 4294901760
    %v3120 = vsub.f32 %v2574, %v3119
    %3121 = vmatprep.mubr.f32.mxu0 %v3120
    %v3122 = vand.u32 %v2573, 4294901760
    %v3123 = vsub.f32 %v2573, %v3122
    %3124 = vmatmul.mubr.f32.gmra.mrb[0].mxu0 %v3123
    %v3125 = vpop.f32.mrb[0].mxu0
    %v3126 = vadd.f32 %v2967, %v3125
    %v3127 = vpop.f32.mrb[0].mxu0
    %v3128 = vand.u32 %v2576, 4294901760
    %v3129 = vsub.f32 %v2576, %v3128
    %3130 = vmatprep.mubr.f32.mxu0 %v3129
    %v3131 = vand.u32 %v2575, 4294901760
    %v3132 = vsub.f32 %v2575, %v3131
    %3133 = vmatmul.mubr.f32.gmra.mrb[0].mxu0 %v3132
    %v3134 = vpop.f32.mrb[0].mxu0
    %v3135 = vadd.f32 %v2974, %v3134
    %v3136 = vpop.f32.mrb[0].mxu0
    %v3137 = vand.u32 %v2578, 4294901760
    %v3138 = vsub.f32 %v2578, %v3137
    %3139 = vmatprep.mubr.f32.mxu0 %v3138
    %v3140 = vand.u32 %v2577, 4294901760
    %v3141 = vsub.f32 %v2577, %v3140
    %3142 = vmatmul.mubr.f32.gmra.mrb[0].mxu0 %v3141
    %v3143 = vpop.f32.mrb[0].mxu0
    %v3144 = vadd.f32 %v2981, %v3143
    %v3145 = vpop.f32.mrb[0].mxu0
    %v3146 = vand.u32 %v2580, 4294901760
    %v3147 = vsub.f32 %v2580, %v3146
    %3148 = vmatprep.mubr.f32.mxu0 %v3147
    %v3149 = vand.u32 %v2579, 4294901760
    %v3150 = vsub.f32 %v2579, %v3149
    %3151 = vmatmul.mubr.f32.gmra.mrb[0].mxu0 %v3150
    %v3152 = vpop.f32.mrb[0].mxu0
    %v3153 = vadd.f32 %v2988, %v3152
    %v3154 = vpop.f32.mrb[0].mxu0
    %3155 = vdwg.mxu0
    %3156 = vmatprep.subr.mxu0 0.0
    %v3157 = vand.u32 %v50, 4294901760
    %3158 = vmatpush1.msra.mxu0 %v3157
    %3159 = vmatprep.subr.mxu0 0.0
    %v3160 = vand.u32 %v51, 4294901760
    %3161 = vmatpush1.msra.mxu0 %v3160
    %3162 = vmatprep.subr.mxu0 0.0
    %v3163 = vand.u32 %v52, 4294901760
    %3164 = vmatpush1.msra.mxu0 %v3163
    %3165 = vmatprep.subr.mxu0 0.0
    %v3166 = vand.u32 %v53, 4294901760
    %3167 = vmatpush1.msra.mxu0 %v3166
    %3168 = vmatprep.subr.mxu0 0.0
    %v3169 = vand.u32 %v54, 4294901760
    %3170 = vmatpush1.msra.mxu0 %v3169
    %3171 = vmatprep.subr.mxu0 0.0
    %v3172 = vand.u32 %v55, 4294901760
    %3173 = vmatpush1.msra.mxu0 %v3172
    %3174 = vmatprep.subr.mxu0 0.0
    %v3175 = vand.u32 %v56, 4294901760
    %3176 = vmatpush1.msra.mxu0 %v3175
    %3177 = vmatprep.subr.mxu0 0.0
    %v3178 = vand.u32 %v57, 4294901760
    %3179 = vmatpush1.msra.mxu0 %v3178
    %3180 = vmatprep.subr.mxu0 0.0
    %v3181 = vand.u32 %v58, 4294901760
    %3182 = vmatpush1.msra.mxu0 %v3181
    %3183 = vmatprep.subr.mxu0 0.0
    %v3184 = vand.u32 %v59, 4294901760
    %3185 = vmatpush1.msra.mxu0 %v3184
    %3186 = vmatprep.subr.mxu0 0.0
    %v3187 = vand.u32 %v60, 4294901760
    %3188 = vmatpush1.msra.mxu0 %v3187
    %3189 = vmatprep.subr.mxu0 0.0
    %v3190 = vand.u32 %v61, 4294901760
    %3191 = vmatpush1.msra.mxu0 %v3190
    %3192 = vmatprep.subr.mxu0 0.0
    %v3193 = vand.u32 %v62, 4294901760
    %3194 = vmatpush1.msra.mxu0 %v3193
    %3195 = vmatprep.subr.mxu0 0.0
    %v3196 = vand.u32 %v63, 4294901760
    %3197 = vmatpush1.msra.mxu0 %v3196
    %3198 = vmatprep.subr.mxu0 0.0
    %v3199 = vand.u32 %v64, 4294901760
    %3200 = vmatpush1.msra.mxu0 %v3199
    %3201 = vmatprep.subr.mxu0 0.0
    %v3202 = vand.u32 %v65, 4294901760
    %3203 = vmatpush1.msra.mxu0 %v3202
    %3204 = vmatprep.subr.mxu0 0.0
    %v3205 = vand.u32 %v66, 4294901760
    %3206 = vmatpush1.msra.mxu0 %v3205
    %3207 = vmatprep.subr.mxu0 0.0
    %v3208 = vand.u32 %v67, 4294901760
    %3209 = vmatpush1.msra.mxu0 %v3208
    %3210 = vmatprep.subr.mxu0 0.0
    %v3211 = vand.u32 %v68, 4294901760
    %3212 = vmatpush1.msra.mxu0 %v3211
    %3213 = vmatprep.subr.mxu0 0.0
    %v3214 = vand.u32 %v69, 4294901760
    %3215 = vmatpush1.msra.mxu0 %v3214
    %3216 = vmatprep.subr.mxu0 0.0
    %v3217 = vand.u32 %v70, 4294901760
    %3218 = vmatpush1.msra.mxu0 %v3217
    %3219 = vmatprep.subr.mxu0 0.0
    %v3220 = vand.u32 %v71, 4294901760
    %3221 = vmatpush1.msra.mxu0 %v3220
    %3222 = vmatprep.subr.mxu0 0.0
    %v3223 = vand.u32 %v72, 4294901760
    %3224 = vmatpush1.msra.mxu0 %v3223
    %3225 = vmatprep.subr.mxu0 0.0
    %v3226 = vand.u32 %v73, 4294901760
    %3227 = vmatpush1.msra.mxu0 %v3226
    %3228 = vmatprep.subr.mxu0 0.0
    %v3229 = vand.u32 %v74, 4294901760
    %3230 = vmatpush1.msra.mxu0 %v3229
    %3231 = vmatprep.subr.mxu0 0.0
    %v3232 = vand.u32 %v75, 4294901760
    %3233 = vmatpush1.msra.mxu0 %v3232
    %3234 = vmatprep.subr.mxu0 0.0
    %v3235 = vand.u32 %v76, 4294901760
    %3236 = vmatpush1.msra.mxu0 %v3235
    %3237 = vmatprep.subr.mxu0 0.0
    %v3238 = vand.u32 %v77, 4294901760
    %3239 = vmatpush1.msra.mxu0 %v3238
    %3240 = vmatprep.subr.mxu0 0.0
    %v3241 = vand.u32 %v78, 4294901760
    %3242 = vmatpush1.msra.mxu0 %v3241
    %3243 = vmatprep.subr.mxu0 0.0
    %v3244 = vand.u32 %v79, 4294901760
    %3245 = vmatpush1.msra.mxu0 %v3244
    %3246 = vmatprep.subr.mxu0 0.0
    %v3247 = vand.u32 %v80, 4294901760
    %3248 = vmatpush1.msra.mxu0 %v3247
    %3249 = vmatprep.subr.mxu0 0.0
    %v3250 = vand.u32 %v81, 4294901760
    %3251 = vmatpush1.msra.mxu0 %v3250
    %v3252 = vand.u32 %v2574, 4294901760
    %v3253 = vsub.f32 %v2574, %v3252
    %v3254 = vand.u32 %v3253, 4294901760
    %3255 = vmatprep.mubr.f32.mxu0 %v3254
    %v3256 = vand.u32 %v2573, 4294901760
    %v3257 = vsub.f32 %v2573, %v3256
    %v3258 = vand.u32 %v3257, 4294901760
    %3259 = vmatmul.mubr.f32.gmra.mrb[0].mxu0 %v3258
    %v3260 = vpop.f32.mrb[0].mxu0
    %v3261 = vadd.f32 %v3126, %v3260
    %v3262 = vpop.f32.mrb[0].mxu0
    %v3263 = vand.u32 %v2576, 4294901760
    %v3264 = vsub.f32 %v2576, %v3263
    %v3265 = vand.u32 %v3264, 4294901760
    %3266 = vmatprep.mubr.f32.mxu0 %v3265
    %v3267 = vand.u32 %v2575, 4294901760
    %v3268 = vsub.f32 %v2575, %v3267
    %v3269 = vand.u32 %v3268, 4294901760
    %3270 = vmatmul.mubr.f32.gmra.mrb[0].mxu0 %v3269
    %v3271 = vpop.f32.mrb[0].mxu0
    %v3272 = vadd.f32 %v3135, %v3271
    %v3273 = vpop.f32.mrb[0].mxu0
    %v3274 = vand.u32 %v2578, 4294901760
    %v3275 = vsub.f32 %v2578, %v3274
    %v3276 = vand.u32 %v3275, 4294901760
    %3277 = vmatprep.mubr.f32.mxu0 %v3276
    %v3278 = vand.u32 %v2577, 4294901760
    %v3279 = vsub.f32 %v2577, %v3278
    %v3280 = vand.u32 %v3279, 4294901760
    %3281 = vmatmul.mubr.f32.gmra.mrb[0].mxu0 %v3280
    %v3282 = vpop.f32.mrb[0].mxu0
    %v3283 = vadd.f32 %v3144, %v3282
    %v3284 = vpop.f32.mrb[0].mxu0
    %v3285 = vand.u32 %v2580, 4294901760
    %v3286 = vsub.f32 %v2580, %v3285
    %v3287 = vand.u32 %v3286, 4294901760
    %3288 = vmatprep.mubr.f32.mxu0 %v3287
    %v3289 = vand.u32 %v2579, 4294901760
    %v3290 = vsub.f32 %v2579, %v3289
    %v3291 = vand.u32 %v3290, 4294901760
    %3292 = vmatmul.mubr.f32.gmra.mrb[0].mxu0 %v3291
    %v3293 = vpop.f32.mrb[0].mxu0
    %v3294 = vadd.f32 %v3153, %v3293
    %v3295 = vpop.f32.mrb[0].mxu0
    %3296 = vdwg.mxu0
    %3297 = vmatprep.subr.mxu0 0.0
    %v3298 = vand.u32 %v50, 4294901760
    %v3299 = vsub.f32 %v50, %v3298
    %v3300 = vand.u32 %v3299, 4294901760
    %3301 = vmatpush1.msra.mxu0 %v3300
    %3302 = vmatprep.subr.mxu0 0.0
    %v3303 = vand.u32 %v51, 4294901760
    %v3304 = vsub.f32 %v51, %v3303
    %v3305 = vand.u32 %v3304, 4294901760
    %3306 = vmatpush1.msra.mxu0 %v3305
    %3307 = vmatprep.subr.mxu0 0.0
    %v3308 = vand.u32 %v52, 4294901760
    %v3309 = vsub.f32 %v52, %v3308
    %v3310 = vand.u32 %v3309, 4294901760
    %3311 = vmatpush1.msra.mxu0 %v3310
    %3312 = vmatprep.subr.mxu0 0.0
    %v3313 = vand.u32 %v53, 4294901760
    %v3314 = vsub.f32 %v53, %v3313
    %v3315 = vand.u32 %v3314, 4294901760
    %3316 = vmatpush1.msra.mxu0 %v3315
    %3317 = vmatprep.subr.mxu0 0.0
    %v3318 = vand.u32 %v54, 4294901760
    %v3319 = vsub.f32 %v54, %v3318
    %v3320 = vand.u32 %v3319, 4294901760
    %3321 = vmatpush1.msra.mxu0 %v3320
    %3322 = vmatprep.subr.mxu0 0.0
    %v3323 = vand.u32 %v55, 4294901760
    %v3324 = vsub.f32 %v55, %v3323
    %v3325 = vand.u32 %v3324, 4294901760
    %3326 = vmatpush1.msra.mxu0 %v3325
    %3327 = vmatprep.subr.mxu0 0.0
    %v3328 = vand.u32 %v56, 4294901760
    %v3329 = vsub.f32 %v56, %v3328
    %v3330 = vand.u32 %v3329, 4294901760
    %3331 = vmatpush1.msra.mxu0 %v3330
    %3332 = vmatprep.subr.mxu0 0.0
    %v3333 = vand.u32 %v57, 4294901760
    %v3334 = vsub.f32 %v57, %v3333
    %v3335 = vand.u32 %v3334, 4294901760
    %3336 = vmatpush1.msra.mxu0 %v3335
    %3337 = vmatprep.subr.mxu0 0.0
    %v3338 = vand.u32 %v58, 4294901760
    %v3339 = vsub.f32 %v58, %v3338
    %v3340 = vand.u32 %v3339, 4294901760
    %3341 = vmatpush1.msra.mxu0 %v3340
    %3342 = vmatprep.subr.mxu0 0.0
    %v3343 = vand.u32 %v59, 4294901760
    %v3344 = vsub.f32 %v59, %v3343
    %v3345 = vand.u32 %v3344, 4294901760
    %3346 = vmatpush1.msra.mxu0 %v3345
    %3347 = vmatprep.subr.mxu0 0.0
    %v3348 = vand.u32 %v60, 4294901760
    %v3349 = vsub.f32 %v60, %v3348
    %v3350 = vand.u32 %v3349, 4294901760
    %3351 = vmatpush1.msra.mxu0 %v3350
    %3352 = vmatprep.subr.mxu0 0.0
    %v3353 = vand.u32 %v61, 4294901760
    %v3354 = vsub.f32 %v61, %v3353
    %v3355 = vand.u32 %v3354, 4294901760
    %3356 = vmatpush1.msra.mxu0 %v3355
    %3357 = vmatprep.subr.mxu0 0.0
    %v3358 = vand.u32 %v62, 4294901760
    %v3359 = vsub.f32 %v62, %v3358
    %v3360 = vand.u32 %v3359, 4294901760
    %3361 = vmatpush1.msra.mxu0 %v3360
    %3362 = vmatprep.subr.mxu0 0.0
    %v3363 = vand.u32 %v63, 4294901760
    %v3364 = vsub.f32 %v63, %v3363
    %v3365 = vand.u32 %v3364, 4294901760
    %3366 = vmatpush1.msra.mxu0 %v3365
    %3367 = vmatprep.subr.mxu0 0.0
    %v3368 = vand.u32 %v64, 4294901760
    %v3369 = vsub.f32 %v64, %v3368
    %v3370 = vand.u32 %v3369, 4294901760
    %3371 = vmatpush1.msra.mxu0 %v3370
    %3372 = vmatprep.subr.mxu0 0.0
    %v3373 = vand.u32 %v65, 4294901760
    %v3374 = vsub.f32 %v65, %v3373
    %v3375 = vand.u32 %v3374, 4294901760
    %3376 = vmatpush1.msra.mxu0 %v3375
    %3377 = vmatprep.subr.mxu0 0.0
    %v3378 = vand.u32 %v66, 4294901760
    %v3379 = vsub.f32 %v66, %v3378
    %v3380 = vand.u32 %v3379, 4294901760
    %3381 = vmatpush1.msra.mxu0 %v3380
    %3382 = vmatprep.subr.mxu0 0.0
    %v3383 = vand.u32 %v67, 4294901760
    %v3384 = vsub.f32 %v67, %v3383
    %v3385 = vand.u32 %v3384, 4294901760
    %3386 = vmatpush1.msra.mxu0 %v3385
    %3387 = vmatprep.subr.mxu0 0.0
    %v3388 = vand.u32 %v68, 4294901760
    %v3389 = vsub.f32 %v68, %v3388
    %v3390 = vand.u32 %v3389, 4294901760
    %3391 = vmatpush1.msra.mxu0 %v3390
    %3392 = vmatprep.subr.mxu0 0.0
    %v3393 = vand.u32 %v69, 4294901760
    %v3394 = vsub.f32 %v69, %v3393
    %v3395 = vand.u32 %v3394, 4294901760
    %3396 = vmatpush1.msra.mxu0 %v3395
    %3397 = vmatprep.subr.mxu0 0.0
    %v3398 = vand.u32 %v70, 4294901760
    %v3399 = vsub.f32 %v70, %v3398
    %v3400 = vand.u32 %v3399, 4294901760
    %3401 = vmatpush1.msra.mxu0 %v3400
    %3402 = vmatprep.subr.mxu0 0.0
    %v3403 = vand.u32 %v71, 4294901760
    %v3404 = vsub.f32 %v71, %v3403
    %v3405 = vand.u32 %v3404, 4294901760
    %3406 = vmatpush1.msra.mxu0 %v3405
    %3407 = vmatprep.subr.mxu0 0.0
    %v3408 = vand.u32 %v72, 4294901760
    %v3409 = vsub.f32 %v72, %v3408
    %v3410 = vand.u32 %v3409, 4294901760
    %3411 = vmatpush1.msra.mxu0 %v3410
    %3412 = vmatprep.subr.mxu0 0.0
    %v3413 = vand.u32 %v73, 4294901760
    %v3414 = vsub.f32 %v73, %v3413
    %v3415 = vand.u32 %v3414, 4294901760
    %3416 = vmatpush1.msra.mxu0 %v3415
    %3417 = vmatprep.subr.mxu0 0.0
    %v3418 = vand.u32 %v74, 4294901760
    %v3419 = vsub.f32 %v74, %v3418
    %v3420 = vand.u32 %v3419, 4294901760
    %3421 = vmatpush1.msra.mxu0 %v3420
    %3422 = vmatprep.subr.mxu0 0.0
    %v3423 = vand.u32 %v75, 4294901760
    %v3424 = vsub.f32 %v75, %v3423
    %v3425 = vand.u32 %v3424, 4294901760
    %3426 = vmatpush1.msra.mxu0 %v3425
    %3427 = vmatprep.subr.mxu0 0.0
    %v3428 = vand.u32 %v76, 4294901760
    %v3429 = vsub.f32 %v76, %v3428
    %v3430 = vand.u32 %v3429, 4294901760
    %3431 = vmatpush1.msra.mxu0 %v3430
    %3432 = vmatprep.subr.mxu0 0.0
    %v3433 = vand.u32 %v77, 4294901760
    %v3434 = vsub.f32 %v77, %v3433
    %v3435 = vand.u32 %v3434, 4294901760
    %3436 = vmatpush1.msra.mxu0 %v3435
    %3437 = vmatprep.subr.mxu0 0.0
    %v3438 = vand.u32 %v78, 4294901760
    %v3439 = vsub.f32 %v78, %v3438
    %v3440 = vand.u32 %v3439, 4294901760
    %3441 = vmatpush1.msra.mxu0 %v3440
    %3442 = vmatprep.subr.mxu0 0.0
    %v3443 = vand.u32 %v79, 4294901760
    %v3444 = vsub.f32 %v79, %v3443
    %v3445 = vand.u32 %v3444, 4294901760
    %3446 = vmatpush1.msra.mxu0 %v3445
    %3447 = vmatprep.subr.mxu0 0.0
    %v3448 = vand.u32 %v80, 4294901760
    %v3449 = vsub.f32 %v80, %v3448
    %v3450 = vand.u32 %v3449, 4294901760
    %3451 = vmatpush1.msra.mxu0 %v3450
    %3452 = vmatprep.subr.mxu0 0.0
    %v3453 = vand.u32 %v81, 4294901760
    %v3454 = vsub.f32 %v81, %v3453
    %v3455 = vand.u32 %v3454, 4294901760
    %3456 = vmatpush1.msra.mxu0 %v3455
    %v3457 = vand.u32 %v2574, 4294901760
    %3458 = vmatprep.mubr.f32.mxu0 %v3457
    %v3459 = vand.u32 %v2573, 4294901760
    %3460 = vmatmul.mubr.f32.gmra.mrb[0].mxu0 %v3459
    %v3461 = vpop.f32.mrb[0].mxu0
    %v3462 = vadd.f32 %v3261, %v3461
    %v3463 = vpop.f32.mrb[0].mxu0
    %v3464 = vand.u32 %v2576, 4294901760
    %3465 = vmatprep.mubr.f32.mxu0 %v3464
    %v3466 = vand.u32 %v2575, 4294901760
    %3467 = vmatmul.mubr.f32.gmra.mrb[0].mxu0 %v3466
    %v3468 = vpop.f32.mrb[0].mxu0
    %v3469 = vadd.f32 %v3272, %v3468
    %v3470 = vpop.f32.mrb[0].mxu0
    %v3471 = vand.u32 %v2578, 4294901760
    %3472 = vmatprep.mubr.f32.mxu0 %v3471
    %v3473 = vand.u32 %v2577, 4294901760
    %3474 = vmatmul.mubr.f32.gmra.mrb[0].mxu0 %v3473
    %v3475 = vpop.f32.mrb[0].mxu0
    %v3476 = vadd.f32 %v3283, %v3475
    %v3477 = vpop.f32.mrb[0].mxu0
    %v3478 = vand.u32 %v2580, 4294901760
    %3479 = vmatprep.mubr.f32.mxu0 %v3478
    %v3480 = vand.u32 %v2579, 4294901760
    %3481 = vmatmul.mubr.f32.gmra.mrb[0].mxu0 %v3480
    %v3482 = vpop.f32.mrb[0].mxu0
    %v3483 = vadd.f32 %v3294, %v3482
    %v3484 = vpop.f32.mrb[0].mxu0
    %3485 = vdwg.mxu0
    %3486 = vmatprep.subr.mxu0 0.0
    %v3487 = vand.u32 %v50, 4294901760
    %3488 = vmatpush1.msra.mxu0 %v3487
    %3489 = vmatprep.subr.mxu0 0.0
    %v3490 = vand.u32 %v51, 4294901760
    %3491 = vmatpush1.msra.mxu0 %v3490
    %3492 = vmatprep.subr.mxu0 0.0
    %v3493 = vand.u32 %v52, 4294901760
    %3494 = vmatpush1.msra.mxu0 %v3493
    %3495 = vmatprep.subr.mxu0 0.0
    %v3496 = vand.u32 %v53, 4294901760
    %3497 = vmatpush1.msra.mxu0 %v3496
    %3498 = vmatprep.subr.mxu0 0.0
    %v3499 = vand.u32 %v54, 4294901760
    %3500 = vmatpush1.msra.mxu0 %v3499
    %3501 = vmatprep.subr.mxu0 0.0
    %v3502 = vand.u32 %v55, 4294901760
    %3503 = vmatpush1.msra.mxu0 %v3502
    %3504 = vmatprep.subr.mxu0 0.0
    %v3505 = vand.u32 %v56, 4294901760
    %3506 = vmatpush1.msra.mxu0 %v3505
    %3507 = vmatprep.subr.mxu0 0.0
    %v3508 = vand.u32 %v57, 4294901760
    %3509 = vmatpush1.msra.mxu0 %v3508
    %3510 = vmatprep.subr.mxu0 0.0
    %v3511 = vand.u32 %v58, 4294901760
    %3512 = vmatpush1.msra.mxu0 %v3511
    %3513 = vmatprep.subr.mxu0 0.0
    %v3514 = vand.u32 %v59, 4294901760
    %3515 = vmatpush1.msra.mxu0 %v3514
    %3516 = vmatprep.subr.mxu0 0.0
    %v3517 = vand.u32 %v60, 4294901760
    %3518 = vmatpush1.msra.mxu0 %v3517
    %3519 = vmatprep.subr.mxu0 0.0
    %v3520 = vand.u32 %v61, 4294901760
    %3521 = vmatpush1.msra.mxu0 %v3520
    %3522 = vmatprep.subr.mxu0 0.0
    %v3523 = vand.u32 %v62, 4294901760
    %3524 = vmatpush1.msra.mxu0 %v3523
    %3525 = vmatprep.subr.mxu0 0.0
    %v3526 = vand.u32 %v63, 4294901760
    %3527 = vmatpush1.msra.mxu0 %v3526
    %3528 = vmatprep.subr.mxu0 0.0
    %v3529 = vand.u32 %v64, 4294901760
    %3530 = vmatpush1.msra.mxu0 %v3529
    %3531 = vmatprep.subr.mxu0 0.0
    %v3532 = vand.u32 %v65, 4294901760
    %3533 = vmatpush1.msra.mxu0 %v3532
    %3534 = vmatprep.subr.mxu0 0.0
    %v3535 = vand.u32 %v66, 4294901760
    %3536 = vmatpush1.msra.mxu0 %v3535
    %3537 = vmatprep.subr.mxu0 0.0
    %v3538 = vand.u32 %v67, 4294901760
    %3539 = vmatpush1.msra.mxu0 %v3538
    %3540 = vmatprep.subr.mxu0 0.0
    %v3541 = vand.u32 %v68, 4294901760
    %3542 = vmatpush1.msra.mxu0 %v3541
    %3543 = vmatprep.subr.mxu0 0.0
    %v3544 = vand.u32 %v69, 4294901760
    %3545 = vmatpush1.msra.mxu0 %v3544
    %3546 = vmatprep.subr.mxu0 0.0
    %v3547 = vand.u32 %v70, 4294901760
    %3548 = vmatpush1.msra.mxu0 %v3547
    %3549 = vmatprep.subr.mxu0 0.0
    %v3550 = vand.u32 %v71, 4294901760
    %3551 = vmatpush1.msra.mxu0 %v3550
    %3552 = vmatprep.subr.mxu0 0.0
    %v3553 = vand.u32 %v72, 4294901760
    %3554 = vmatpush1.msra.mxu0 %v3553
    %3555 = vmatprep.subr.mxu0 0.0
    %v3556 = vand.u32 %v73, 4294901760
    %3557 = vmatpush1.msra.mxu0 %v3556
    %3558 = vmatprep.subr.mxu0 0.0
    %v3559 = vand.u32 %v74, 4294901760
    %3560 = vmatpush1.msra.mxu0 %v3559
    %3561 = vmatprep.subr.mxu0 0.0
    %v3562 = vand.u32 %v75, 4294901760
    %3563 = vmatpush1.msra.mxu0 %v3562
    %3564 = vmatprep.subr.mxu0 0.0
    %v3565 = vand.u32 %v76, 4294901760
    %3566 = vmatpush1.msra.mxu0 %v3565
    %3567 = vmatprep.subr.mxu0 0.0
    %v3568 = vand.u32 %v77, 4294901760
    %3569 = vmatpush1.msra.mxu0 %v3568
    %3570 = vmatprep.subr.mxu0 0.0
    %v3571 = vand.u32 %v78, 4294901760
    %3572 = vmatpush1.msra.mxu0 %v3571
    %3573 = vmatprep.subr.mxu0 0.0
    %v3574 = vand.u32 %v79, 4294901760
    %3575 = vmatpush1.msra.mxu0 %v3574
    %3576 = vmatprep.subr.mxu0 0.0
    %v3577 = vand.u32 %v80, 4294901760
    %3578 = vmatpush1.msra.mxu0 %v3577
    %3579 = vmatprep.subr.mxu0 0.0
    %v3580 = vand.u32 %v81, 4294901760
    %3581 = vmatpush1.msra.mxu0 %v3580
    %v3582 = vand.u32 %v2574, 4294901760
    %3583 = vmatprep.mubr.f32.mxu0 %v3582
    %v3584 = vand.u32 %v2573, 4294901760
    %3585 = vmatmul.mubr.f32.gmra.mrb[0].mxu0 %v3584
    %v3586 = vpop.f32.mrb[0].mxu0
    %v3587 = vadd.f32 %v3462, %v3586
    %v3588 = vpop.f32.mrb[0].mxu0
    %v3589 = vand.u32 %v2576, 4294901760
    %3590 = vmatprep.mubr.f32.mxu0 %v3589
    %v3591 = vand.u32 %v2575, 4294901760
    %3592 = vmatmul.mubr.f32.gmra.mrb[0].mxu0 %v3591
    %v3593 = vpop.f32.mrb[0].mxu0
    %v3594 = vadd.f32 %v3469, %v3593
    %v3595 = vpop.f32.mrb[0].mxu0
    %v3596 = vand.u32 %v2578, 4294901760
    %3597 = vmatprep.mubr.f32.mxu0 %v3596
    %v3598 = vand.u32 %v2577, 4294901760
    %3599 = vmatmul.mubr.f32.gmra.mrb[0].mxu0 %v3598
    %v3600 = vpop.f32.mrb[0].mxu0
    %v3601 = vadd.f32 %v3476, %v3600
    %v3602 = vpop.f32.mrb[0].mxu0
    %v3603 = vand.u32 %v2580, 4294901760
    %3604 = vmatprep.mubr.f32.mxu0 %v3603
    %v3605 = vand.u32 %v2579, 4294901760
    %3606 = vmatmul.mubr.f32.gmra.mrb[0].mxu0 %v3605
    %v3607 = vpop.f32.mrb[0].mxu0
    %v3608 = vadd.f32 %v3483, %v3607
    %v3609 = vpop.f32.mrb[0].mxu0
    %3610 = vdwg.mxu0
    %vm3611 = vcmask 130048
    %v3612 = vsel %vm3611, %v3587, 0.0
    %v3613 = vsel %vm3611, %v3594, 0.0
    %v3614 = vadd.f32 %v3612, %v3613
    %v3615 = vsel %vm3611, %v3601, 0.0
    %v3616 = vadd.f32 %v3614, %v3615
    %v3617 = vsel %vm3611, %v3608, 0.0
    %v3618 = vadd.f32 %v3616, %v3617
    %v3619 = vrot.slane %v3618, 4
    %v3620 = vadd.f32 %v3618, %v3619
    %v3621 = vrot.slane %v3620, 2
    %v3622 = vadd.f32 %v3620, %v3621
    %v3623 = vrot.slane %v3622, 1
    %v3624 = vadd.f32 %v3622, %v3623
    %v3625 = vmul.f32 %v2573, %v2573
    %v3626 = vmul.f32 %v2574, %v2574
    %v3627 = vmul.f32 %v2575, %v2575
    %v3628 = vmul.f32 %v2576, %v2576
    %v3629 = vmul.f32 %v2577, %v2577
    %v3630 = vmul.f32 %v2578, %v2578
    %v3631 = vmul.f32 %v2579, %v2579
    %v3632 = vmul.f32 %v2580, %v2580
    %3633 = vmatprep.subr.mxu0 0.0
    %v3634 = vand.u32 %v50, 4294901760
    %3635 = vmatpush1.msra.mxu0 %v3634
    %3636 = vmatprep.subr.mxu0 0.0
    %v3637 = vand.u32 %v51, 4294901760
    %3638 = vmatpush1.msra.mxu0 %v3637
    %3639 = vmatprep.subr.mxu0 0.0
    %v3640 = vand.u32 %v52, 4294901760
    %3641 = vmatpush1.msra.mxu0 %v3640
    %3642 = vmatprep.subr.mxu0 0.0
    %v3643 = vand.u32 %v53, 4294901760
    %3644 = vmatpush1.msra.mxu0 %v3643
    %3645 = vmatprep.subr.mxu0 0.0
    %v3646 = vand.u32 %v54, 4294901760
    %3647 = vmatpush1.msra.mxu0 %v3646
    %3648 = vmatprep.subr.mxu0 0.0
    %v3649 = vand.u32 %v55, 4294901760
    %3650 = vmatpush1.msra.mxu0 %v3649
    %3651 = vmatprep.subr.mxu0 0.0
    %v3652 = vand.u32 %v56, 4294901760
    %3653 = vmatpush1.msra.mxu0 %v3652
    %3654 = vmatprep.subr.mxu0 0.0
    %v3655 = vand.u32 %v57, 4294901760
    %3656 = vmatpush1.msra.mxu0 %v3655
    %3657 = vmatprep.subr.mxu0 0.0
    %v3658 = vand.u32 %v58, 4294901760
    %3659 = vmatpush1.msra.mxu0 %v3658
    %3660 = vmatprep.subr.mxu0 0.0
    %v3661 = vand.u32 %v59, 4294901760
    %3662 = vmatpush1.msra.mxu0 %v3661
    %3663 = vmatprep.subr.mxu0 0.0
    %v3664 = vand.u32 %v60, 4294901760
    %3665 = vmatpush1.msra.mxu0 %v3664
    %3666 = vmatprep.subr.mxu0 0.0
    %v3667 = vand.u32 %v61, 4294901760
    %3668 = vmatpush1.msra.mxu0 %v3667
    %3669 = vmatprep.subr.mxu0 0.0
    %v3670 = vand.u32 %v62, 4294901760
    %3671 = vmatpush1.msra.mxu0 %v3670
    %3672 = vmatprep.subr.mxu0 0.0
    %v3673 = vand.u32 %v63, 4294901760
    %3674 = vmatpush1.msra.mxu0 %v3673
    %3675 = vmatprep.subr.mxu0 0.0
    %v3676 = vand.u32 %v64, 4294901760
    %3677 = vmatpush1.msra.mxu0 %v3676
    %3678 = vmatprep.subr.mxu0 0.0
    %v3679 = vand.u32 %v65, 4294901760
    %3680 = vmatpush1.msra.mxu0 %v3679
    %3681 = vmatprep.subr.mxu0 0.0
    %v3682 = vand.u32 %v66, 4294901760
    %3683 = vmatpush1.msra.mxu0 %v3682
    %3684 = vmatprep.subr.mxu0 0.0
    %v3685 = vand.u32 %v67, 4294901760
    %3686 = vmatpush1.msra.mxu0 %v3685
    %3687 = vmatprep.subr.mxu0 0.0
    %v3688 = vand.u32 %v68, 4294901760
    %3689 = vmatpush1.msra.mxu0 %v3688
    %3690 = vmatprep.subr.mxu0 0.0
    %v3691 = vand.u32 %v69, 4294901760
    %3692 = vmatpush1.msra.mxu0 %v3691
    %3693 = vmatprep.subr.mxu0 0.0
    %v3694 = vand.u32 %v70, 4294901760
    %3695 = vmatpush1.msra.mxu0 %v3694
    %3696 = vmatprep.subr.mxu0 0.0
    %v3697 = vand.u32 %v71, 4294901760
    %3698 = vmatpush1.msra.mxu0 %v3697
    %3699 = vmatprep.subr.mxu0 0.0
    %v3700 = vand.u32 %v72, 4294901760
    %3701 = vmatpush1.msra.mxu0 %v3700
    %3702 = vmatprep.subr.mxu0 0.0
    %v3703 = vand.u32 %v73, 4294901760
    %3704 = vmatpush1.msra.mxu0 %v3703
    %3705 = vmatprep.subr.mxu0 0.0
    %v3706 = vand.u32 %v74, 4294901760
    %3707 = vmatpush1.msra.mxu0 %v3706
    %3708 = vmatprep.subr.mxu0 0.0
    %v3709 = vand.u32 %v75, 4294901760
    %3710 = vmatpush1.msra.mxu0 %v3709
    %3711 = vmatprep.subr.mxu0 0.0
    %v3712 = vand.u32 %v76, 4294901760
    %3713 = vmatpush1.msra.mxu0 %v3712
    %3714 = vmatprep.subr.mxu0 0.0
    %v3715 = vand.u32 %v77, 4294901760
    %3716 = vmatpush1.msra.mxu0 %v3715
    %3717 = vmatprep.subr.mxu0 0.0
    %v3718 = vand.u32 %v78, 4294901760
    %3719 = vmatpush1.msra.mxu0 %v3718
    %3720 = vmatprep.subr.mxu0 0.0
    %v3721 = vand.u32 %v79, 4294901760
    %3722 = vmatpush1.msra.mxu0 %v3721
    %3723 = vmatprep.subr.mxu0 0.0
    %v3724 = vand.u32 %v80, 4294901760
    %3725 = vmatpush1.msra.mxu0 %v3724
    %3726 = vmatprep.subr.mxu0 0.0
    %v3727 = vand.u32 %v81, 4294901760
    %3728 = vmatpush1.msra.mxu0 %v3727
    %v3729 = vand.u32 %v3626, 4294901760
    %v3730 = vsub.f32 %v3626, %v3729
    %v3731 = vand.u32 %v3730, 4294901760
    %v3732 = vsub.f32 %v3730, %v3731
    %v3733 = vand.u32 %v3732, 4294901760
    %3734 = vmatprep.mubr.f32.mxu0 %v3733
    %v3735 = vand.u32 %v3625, 4294901760
    %v3736 = vsub.f32 %v3625, %v3735
    %v3737 = vand.u32 %v3736, 4294901760
    %v3738 = vsub.f32 %v3736, %v3737
    %v3739 = vand.u32 %v3738, 4294901760
    %3740 = vmatmul.mubr.f32.gmra.mrb[0].mxu0 %v3739
    %v3741 = vpop.f32.mrb[0].mxu0
    %v3742 = vadd.f32 0.0, %v3741
    %v3743 = vpop.f32.mrb[0].mxu0
    %v3744 = vand.u32 %v3628, 4294901760
    %v3745 = vsub.f32 %v3628, %v3744
    %v3746 = vand.u32 %v3745, 4294901760
    %v3747 = vsub.f32 %v3745, %v3746
    %v3748 = vand.u32 %v3747, 4294901760
    %3749 = vmatprep.mubr.f32.mxu0 %v3748
    %v3750 = vand.u32 %v3627, 4294901760
    %v3751 = vsub.f32 %v3627, %v3750
    %v3752 = vand.u32 %v3751, 4294901760
    %v3753 = vsub.f32 %v3751, %v3752
    %v3754 = vand.u32 %v3753, 4294901760
    %3755 = vmatmul.mubr.f32.gmra.mrb[0].mxu0 %v3754
    %v3756 = vpop.f32.mrb[0].mxu0
    %v3757 = vadd.f32 0.0, %v3756
    %v3758 = vpop.f32.mrb[0].mxu0
    %v3759 = vand.u32 %v3630, 4294901760
    %v3760 = vsub.f32 %v3630, %v3759
    %v3761 = vand.u32 %v3760, 4294901760
    %v3762 = vsub.f32 %v3760, %v3761
    %v3763 = vand.u32 %v3762, 4294901760
    %3764 = vmatprep.mubr.f32.mxu0 %v3763
    %v3765 = vand.u32 %v3629, 4294901760
    %v3766 = vsub.f32 %v3629, %v3765
    %v3767 = vand.u32 %v3766, 4294901760
    %v3768 = vsub.f32 %v3766, %v3767
    %v3769 = vand.u32 %v3768, 4294901760
    %3770 = vmatmul.mubr.f32.gmra.mrb[0].mxu0 %v3769
    %v3771 = vpop.f32.mrb[0].mxu0
    %v3772 = vadd.f32 0.0, %v3771
    %v3773 = vpop.f32.mrb[0].mxu0
    %v3774 = vand.u32 %v3632, 4294901760
    %v3775 = vsub.f32 %v3632, %v3774
    %v3776 = vand.u32 %v3775, 4294901760
    %v3777 = vsub.f32 %v3775, %v3776
    %v3778 = vand.u32 %v3777, 4294901760
    %3779 = vmatprep.mubr.f32.mxu0 %v3778
    %v3780 = vand.u32 %v3631, 4294901760
    %v3781 = vsub.f32 %v3631, %v3780
    %v3782 = vand.u32 %v3781, 4294901760
    %v3783 = vsub.f32 %v3781, %v3782
    %v3784 = vand.u32 %v3783, 4294901760
    %3785 = vmatmul.mubr.f32.gmra.mrb[0].mxu0 %v3784
    %v3786 = vpop.f32.mrb[0].mxu0
    %v3787 = vadd.f32 0.0, %v3786
    %v3788 = vpop.f32.mrb[0].mxu0
    %3789 = vdwg.mxu0
    %3790 = vmatprep.subr.mxu0 0.0
    %v3791 = vand.u32 %v50, 4294901760
    %v3792 = vsub.f32 %v50, %v3791
    %v3793 = vand.u32 %v3792, 4294901760
    %v3794 = vsub.f32 %v3792, %v3793
    %v3795 = vand.u32 %v3794, 4294901760
    %3796 = vmatpush1.msra.mxu0 %v3795
    %3797 = vmatprep.subr.mxu0 0.0
    %v3798 = vand.u32 %v51, 4294901760
    %v3799 = vsub.f32 %v51, %v3798
    %v3800 = vand.u32 %v3799, 4294901760
    %v3801 = vsub.f32 %v3799, %v3800
    %v3802 = vand.u32 %v3801, 4294901760
    %3803 = vmatpush1.msra.mxu0 %v3802
    %3804 = vmatprep.subr.mxu0 0.0
    %v3805 = vand.u32 %v52, 4294901760
    %v3806 = vsub.f32 %v52, %v3805
    %v3807 = vand.u32 %v3806, 4294901760
    %v3808 = vsub.f32 %v3806, %v3807
    %v3809 = vand.u32 %v3808, 4294901760
    %3810 = vmatpush1.msra.mxu0 %v3809
    %3811 = vmatprep.subr.mxu0 0.0
    %v3812 = vand.u32 %v53, 4294901760
    %v3813 = vsub.f32 %v53, %v3812
    %v3814 = vand.u32 %v3813, 4294901760
    %v3815 = vsub.f32 %v3813, %v3814
    %v3816 = vand.u32 %v3815, 4294901760
    %3817 = vmatpush1.msra.mxu0 %v3816
    %3818 = vmatprep.subr.mxu0 0.0
    %v3819 = vand.u32 %v54, 4294901760
    %v3820 = vsub.f32 %v54, %v3819
    %v3821 = vand.u32 %v3820, 4294901760
    %v3822 = vsub.f32 %v3820, %v3821
    %v3823 = vand.u32 %v3822, 4294901760
    %3824 = vmatpush1.msra.mxu0 %v3823
    %3825 = vmatprep.subr.mxu0 0.0
    %v3826 = vand.u32 %v55, 4294901760
    %v3827 = vsub.f32 %v55, %v3826
    %v3828 = vand.u32 %v3827, 4294901760
    %v3829 = vsub.f32 %v3827, %v3828
    %v3830 = vand.u32 %v3829, 4294901760
    %3831 = vmatpush1.msra.mxu0 %v3830
    %3832 = vmatprep.subr.mxu0 0.0
    %v3833 = vand.u32 %v56, 4294901760
    %v3834 = vsub.f32 %v56, %v3833
    %v3835 = vand.u32 %v3834, 4294901760
    %v3836 = vsub.f32 %v3834, %v3835
    %v3837 = vand.u32 %v3836, 4294901760
    %3838 = vmatpush1.msra.mxu0 %v3837
    %3839 = vmatprep.subr.mxu0 0.0
    %v3840 = vand.u32 %v57, 4294901760
    %v3841 = vsub.f32 %v57, %v3840
    %v3842 = vand.u32 %v3841, 4294901760
    %v3843 = vsub.f32 %v3841, %v3842
    %v3844 = vand.u32 %v3843, 4294901760
    %3845 = vmatpush1.msra.mxu0 %v3844
    %3846 = vmatprep.subr.mxu0 0.0
    %v3847 = vand.u32 %v58, 4294901760
    %v3848 = vsub.f32 %v58, %v3847
    %v3849 = vand.u32 %v3848, 4294901760
    %v3850 = vsub.f32 %v3848, %v3849
    %v3851 = vand.u32 %v3850, 4294901760
    %3852 = vmatpush1.msra.mxu0 %v3851
    %3853 = vmatprep.subr.mxu0 0.0
    %v3854 = vand.u32 %v59, 4294901760
    %v3855 = vsub.f32 %v59, %v3854
    %v3856 = vand.u32 %v3855, 4294901760
    %v3857 = vsub.f32 %v3855, %v3856
    %v3858 = vand.u32 %v3857, 4294901760
    %3859 = vmatpush1.msra.mxu0 %v3858
    %3860 = vmatprep.subr.mxu0 0.0
    %v3861 = vand.u32 %v60, 4294901760
    %v3862 = vsub.f32 %v60, %v3861
    %v3863 = vand.u32 %v3862, 4294901760
    %v3864 = vsub.f32 %v3862, %v3863
    %v3865 = vand.u32 %v3864, 4294901760
    %3866 = vmatpush1.msra.mxu0 %v3865
    %3867 = vmatprep.subr.mxu0 0.0
    %v3868 = vand.u32 %v61, 4294901760
    %v3869 = vsub.f32 %v61, %v3868
    %v3870 = vand.u32 %v3869, 4294901760
    %v3871 = vsub.f32 %v3869, %v3870
    %v3872 = vand.u32 %v3871, 4294901760
    %3873 = vmatpush1.msra.mxu0 %v3872
    %3874 = vmatprep.subr.mxu0 0.0
    %v3875 = vand.u32 %v62, 4294901760
    %v3876 = vsub.f32 %v62, %v3875
    %v3877 = vand.u32 %v3876, 4294901760
    %v3878 = vsub.f32 %v3876, %v3877
    %v3879 = vand.u32 %v3878, 4294901760
    %3880 = vmatpush1.msra.mxu0 %v3879
    %3881 = vmatprep.subr.mxu0 0.0
    %v3882 = vand.u32 %v63, 4294901760
    %v3883 = vsub.f32 %v63, %v3882
    %v3884 = vand.u32 %v3883, 4294901760
    %v3885 = vsub.f32 %v3883, %v3884
    %v3886 = vand.u32 %v3885, 4294901760
    %3887 = vmatpush1.msra.mxu0 %v3886
    %3888 = vmatprep.subr.mxu0 0.0
    %v3889 = vand.u32 %v64, 4294901760
    %v3890 = vsub.f32 %v64, %v3889
    %v3891 = vand.u32 %v3890, 4294901760
    %v3892 = vsub.f32 %v3890, %v3891
    %v3893 = vand.u32 %v3892, 4294901760
    %3894 = vmatpush1.msra.mxu0 %v3893
    %3895 = vmatprep.subr.mxu0 0.0
    %v3896 = vand.u32 %v65, 4294901760
    %v3897 = vsub.f32 %v65, %v3896
    %v3898 = vand.u32 %v3897, 4294901760
    %v3899 = vsub.f32 %v3897, %v3898
    %v3900 = vand.u32 %v3899, 4294901760
    %3901 = vmatpush1.msra.mxu0 %v3900
    %3902 = vmatprep.subr.mxu0 0.0
    %v3903 = vand.u32 %v66, 4294901760
    %v3904 = vsub.f32 %v66, %v3903
    %v3905 = vand.u32 %v3904, 4294901760
    %v3906 = vsub.f32 %v3904, %v3905
    %v3907 = vand.u32 %v3906, 4294901760
    %3908 = vmatpush1.msra.mxu0 %v3907
    %3909 = vmatprep.subr.mxu0 0.0
    %v3910 = vand.u32 %v67, 4294901760
    %v3911 = vsub.f32 %v67, %v3910
    %v3912 = vand.u32 %v3911, 4294901760
    %v3913 = vsub.f32 %v3911, %v3912
    %v3914 = vand.u32 %v3913, 4294901760
    %3915 = vmatpush1.msra.mxu0 %v3914
    %3916 = vmatprep.subr.mxu0 0.0
    %v3917 = vand.u32 %v68, 4294901760
    %v3918 = vsub.f32 %v68, %v3917
    %v3919 = vand.u32 %v3918, 4294901760
    %v3920 = vsub.f32 %v3918, %v3919
    %v3921 = vand.u32 %v3920, 4294901760
    %3922 = vmatpush1.msra.mxu0 %v3921
    %3923 = vmatprep.subr.mxu0 0.0
    %v3924 = vand.u32 %v69, 4294901760
    %v3925 = vsub.f32 %v69, %v3924
    %v3926 = vand.u32 %v3925, 4294901760
    %v3927 = vsub.f32 %v3925, %v3926
    %v3928 = vand.u32 %v3927, 4294901760
    %3929 = vmatpush1.msra.mxu0 %v3928
    %3930 = vmatprep.subr.mxu0 0.0
    %v3931 = vand.u32 %v70, 4294901760
    %v3932 = vsub.f32 %v70, %v3931
    %v3933 = vand.u32 %v3932, 4294901760
    %v3934 = vsub.f32 %v3932, %v3933
    %v3935 = vand.u32 %v3934, 4294901760
    %3936 = vmatpush1.msra.mxu0 %v3935
    %3937 = vmatprep.subr.mxu0 0.0
    %v3938 = vand.u32 %v71, 4294901760
    %v3939 = vsub.f32 %v71, %v3938
    %v3940 = vand.u32 %v3939, 4294901760
    %v3941 = vsub.f32 %v3939, %v3940
    %v3942 = vand.u32 %v3941, 4294901760
    %3943 = vmatpush1.msra.mxu0 %v3942
    %3944 = vmatprep.subr.mxu0 0.0
    %v3945 = vand.u32 %v72, 4294901760
    %v3946 = vsub.f32 %v72, %v3945
    %v3947 = vand.u32 %v3946, 4294901760
    %v3948 = vsub.f32 %v3946, %v3947
    %v3949 = vand.u32 %v3948, 4294901760
    %3950 = vmatpush1.msra.mxu0 %v3949
    %3951 = vmatprep.subr.mxu0 0.0
    %v3952 = vand.u32 %v73, 4294901760
    %v3953 = vsub.f32 %v73, %v3952
    %v3954 = vand.u32 %v3953, 4294901760
    %v3955 = vsub.f32 %v3953, %v3954
    %v3956 = vand.u32 %v3955, 4294901760
    %3957 = vmatpush1.msra.mxu0 %v3956
    %3958 = vmatprep.subr.mxu0 0.0
    %v3959 = vand.u32 %v74, 4294901760
    %v3960 = vsub.f32 %v74, %v3959
    %v3961 = vand.u32 %v3960, 4294901760
    %v3962 = vsub.f32 %v3960, %v3961
    %v3963 = vand.u32 %v3962, 4294901760
    %3964 = vmatpush1.msra.mxu0 %v3963
    %3965 = vmatprep.subr.mxu0 0.0
    %v3966 = vand.u32 %v75, 4294901760
    %v3967 = vsub.f32 %v75, %v3966
    %v3968 = vand.u32 %v3967, 4294901760
    %v3969 = vsub.f32 %v3967, %v3968
    %v3970 = vand.u32 %v3969, 4294901760
    %3971 = vmatpush1.msra.mxu0 %v3970
    %3972 = vmatprep.subr.mxu0 0.0
    %v3973 = vand.u32 %v76, 4294901760
    %v3974 = vsub.f32 %v76, %v3973
    %v3975 = vand.u32 %v3974, 4294901760
    %v3976 = vsub.f32 %v3974, %v3975
    %v3977 = vand.u32 %v3976, 4294901760
    %3978 = vmatpush1.msra.mxu0 %v3977
    %3979 = vmatprep.subr.mxu0 0.0
    %v3980 = vand.u32 %v77, 4294901760
    %v3981 = vsub.f32 %v77, %v3980
    %v3982 = vand.u32 %v3981, 4294901760
    %v3983 = vsub.f32 %v3981, %v3982
    %v3984 = vand.u32 %v3983, 4294901760
    %3985 = vmatpush1.msra.mxu0 %v3984
    %3986 = vmatprep.subr.mxu0 0.0
    %v3987 = vand.u32 %v78, 4294901760
    %v3988 = vsub.f32 %v78, %v3987
    %v3989 = vand.u32 %v3988, 4294901760
    %v3990 = vsub.f32 %v3988, %v3989
    %v3991 = vand.u32 %v3990, 4294901760
    %3992 = vmatpush1.msra.mxu0 %v3991
    %3993 = vmatprep.subr.mxu0 0.0
    %v3994 = vand.u32 %v79, 4294901760
    %v3995 = vsub.f32 %v79, %v3994
    %v3996 = vand.u32 %v3995, 4294901760
    %v3997 = vsub.f32 %v3995, %v3996
    %v3998 = vand.u32 %v3997, 4294901760
    %3999 = vmatpush1.msra.mxu0 %v3998
    %4000 = vmatprep.subr.mxu0 0.0
    %v4001 = vand.u32 %v80, 4294901760
    %v4002 = vsub.f32 %v80, %v4001
    %v4003 = vand.u32 %v4002, 4294901760
    %v4004 = vsub.f32 %v4002, %v4003
    %v4005 = vand.u32 %v4004, 4294901760
    %4006 = vmatpush1.msra.mxu0 %v4005
    %4007 = vmatprep.subr.mxu0 0.0
    %v4008 = vand.u32 %v81, 4294901760
    %v4009 = vsub.f32 %v81, %v4008
    %v4010 = vand.u32 %v4009, 4294901760
    %v4011 = vsub.f32 %v4009, %v4010
    %v4012 = vand.u32 %v4011, 4294901760
    %4013 = vmatpush1.msra.mxu0 %v4012
    %v4014 = vand.u32 %v3626, 4294901760
    %4015 = vmatprep.mubr.f32.mxu0 %v4014
    %v4016 = vand.u32 %v3625, 4294901760
    %4017 = vmatmul.mubr.f32.gmra.mrb[0].mxu0 %v4016
    %v4018 = vpop.f32.mrb[0].mxu0
    %v4019 = vadd.f32 %v3742, %v4018
    %v4020 = vpop.f32.mrb[0].mxu0
    %v4021 = vand.u32 %v3628, 4294901760
    %4022 = vmatprep.mubr.f32.mxu0 %v4021
    %v4023 = vand.u32 %v3627, 4294901760
    %4024 = vmatmul.mubr.f32.gmra.mrb[0].mxu0 %v4023
    %v4025 = vpop.f32.mrb[0].mxu0
    %v4026 = vadd.f32 %v3757, %v4025
    %v4027 = vpop.f32.mrb[0].mxu0
    %v4028 = vand.u32 %v3630, 4294901760
    %4029 = vmatprep.mubr.f32.mxu0 %v4028
    %v4030 = vand.u32 %v3629, 4294901760
    %4031 = vmatmul.mubr.f32.gmra.mrb[0].mxu0 %v4030
    %v4032 = vpop.f32.mrb[0].mxu0
    %v4033 = vadd.f32 %v3772, %v4032
    %v4034 = vpop.f32.mrb[0].mxu0
    %v4035 = vand.u32 %v3632, 4294901760
    %4036 = vmatprep.mubr.f32.mxu0 %v4035
    %v4037 = vand.u32 %v3631, 4294901760
    %4038 = vmatmul.mubr.f32.gmra.mrb[0].mxu0 %v4037
    %v4039 = vpop.f32.mrb[0].mxu0
    %v4040 = vadd.f32 %v3787, %v4039
    %v4041 = vpop.f32.mrb[0].mxu0
    %4042 = vdwg.mxu0
    %4043 = vmatprep.subr.mxu0 0.0
    %v4044 = vand.u32 %v50, 4294901760
    %v4045 = vsub.f32 %v50, %v4044
    %4046 = vmatpush1.msra.mxu0 %v4045
    %4047 = vmatprep.subr.mxu0 0.0
    %v4048 = vand.u32 %v51, 4294901760
    %v4049 = vsub.f32 %v51, %v4048
    %4050 = vmatpush1.msra.mxu0 %v4049
    %4051 = vmatprep.subr.mxu0 0.0
    %v4052 = vand.u32 %v52, 4294901760
    %v4053 = vsub.f32 %v52, %v4052
    %4054 = vmatpush1.msra.mxu0 %v4053
    %4055 = vmatprep.subr.mxu0 0.0
    %v4056 = vand.u32 %v53, 4294901760
    %v4057 = vsub.f32 %v53, %v4056
    %4058 = vmatpush1.msra.mxu0 %v4057
    %4059 = vmatprep.subr.mxu0 0.0
    %v4060 = vand.u32 %v54, 4294901760
    %v4061 = vsub.f32 %v54, %v4060
    %4062 = vmatpush1.msra.mxu0 %v4061
    %4063 = vmatprep.subr.mxu0 0.0
    %v4064 = vand.u32 %v55, 4294901760
    %v4065 = vsub.f32 %v55, %v4064
    %4066 = vmatpush1.msra.mxu0 %v4065
    %4067 = vmatprep.subr.mxu0 0.0
    %v4068 = vand.u32 %v56, 4294901760
    %v4069 = vsub.f32 %v56, %v4068
    %4070 = vmatpush1.msra.mxu0 %v4069
    %4071 = vmatprep.subr.mxu0 0.0
    %v4072 = vand.u32 %v57, 4294901760
    %v4073 = vsub.f32 %v57, %v4072
    %4074 = vmatpush1.msra.mxu0 %v4073
    %4075 = vmatprep.subr.mxu0 0.0
    %v4076 = vand.u32 %v58, 4294901760
    %v4077 = vsub.f32 %v58, %v4076
    %4078 = vmatpush1.msra.mxu0 %v4077
    %4079 = vmatprep.subr.mxu0 0.0
    %v4080 = vand.u32 %v59, 4294901760
    %v4081 = vsub.f32 %v59, %v4080
    %4082 = vmatpush1.msra.mxu0 %v4081
    %4083 = vmatprep.subr.mxu0 0.0
    %v4084 = vand.u32 %v60, 4294901760
    %v4085 = vsub.f32 %v60, %v4084
    %4086 = vmatpush1.msra.mxu0 %v4085
    %4087 = vmatprep.subr.mxu0 0.0
    %v4088 = vand.u32 %v61, 4294901760
    %v4089 = vsub.f32 %v61, %v4088
    %4090 = vmatpush1.msra.mxu0 %v4089
    %4091 = vmatprep.subr.mxu0 0.0
    %v4092 = vand.u32 %v62, 4294901760
    %v4093 = vsub.f32 %v62, %v4092
    %4094 = vmatpush1.msra.mxu0 %v4093
    %4095 = vmatprep.subr.mxu0 0.0
    %v4096 = vand.u32 %v63, 4294901760
    %v4097 = vsub.f32 %v63, %v4096
    %4098 = vmatpush1.msra.mxu0 %v4097
    %4099 = vmatprep.subr.mxu0 0.0
    %v4100 = vand.u32 %v64, 4294901760
    %v4101 = vsub.f32 %v64, %v4100
    %4102 = vmatpush1.msra.mxu0 %v4101
    %4103 = vmatprep.subr.mxu0 0.0
    %v4104 = vand.u32 %v65, 4294901760
    %v4105 = vsub.f32 %v65, %v4104
    %4106 = vmatpush1.msra.mxu0 %v4105
    %4107 = vmatprep.subr.mxu0 0.0
    %v4108 = vand.u32 %v66, 4294901760
    %v4109 = vsub.f32 %v66, %v4108
    %4110 = vmatpush1.msra.mxu0 %v4109
    %4111 = vmatprep.subr.mxu0 0.0
    %v4112 = vand.u32 %v67, 4294901760
    %v4113 = vsub.f32 %v67, %v4112
    %4114 = vmatpush1.msra.mxu0 %v4113
    %4115 = vmatprep.subr.mxu0 0.0
    %v4116 = vand.u32 %v68, 4294901760
    %v4117 = vsub.f32 %v68, %v4116
    %4118 = vmatpush1.msra.mxu0 %v4117
    %4119 = vmatprep.subr.mxu0 0.0
    %v4120 = vand.u32 %v69, 4294901760
    %v4121 = vsub.f32 %v69, %v4120
    %4122 = vmatpush1.msra.mxu0 %v4121
    %4123 = vmatprep.subr.mxu0 0.0
    %v4124 = vand.u32 %v70, 4294901760
    %v4125 = vsub.f32 %v70, %v4124
    %4126 = vmatpush1.msra.mxu0 %v4125
    %4127 = vmatprep.subr.mxu0 0.0
    %v4128 = vand.u32 %v71, 4294901760
    %v4129 = vsub.f32 %v71, %v4128
    %4130 = vmatpush1.msra.mxu0 %v4129
    %4131 = vmatprep.subr.mxu0 0.0
    %v4132 = vand.u32 %v72, 4294901760
    %v4133 = vsub.f32 %v72, %v4132
    %4134 = vmatpush1.msra.mxu0 %v4133
    %4135 = vmatprep.subr.mxu0 0.0
    %v4136 = vand.u32 %v73, 4294901760
    %v4137 = vsub.f32 %v73, %v4136
    %4138 = vmatpush1.msra.mxu0 %v4137
    %4139 = vmatprep.subr.mxu0 0.0
    %v4140 = vand.u32 %v74, 4294901760
    %v4141 = vsub.f32 %v74, %v4140
    %4142 = vmatpush1.msra.mxu0 %v4141
    %4143 = vmatprep.subr.mxu0 0.0
    %v4144 = vand.u32 %v75, 4294901760
    %v4145 = vsub.f32 %v75, %v4144
    %4146 = vmatpush1.msra.mxu0 %v4145
    %4147 = vmatprep.subr.mxu0 0.0
    %v4148 = vand.u32 %v76, 4294901760
    %v4149 = vsub.f32 %v76, %v4148
    %4150 = vmatpush1.msra.mxu0 %v4149
    %4151 = vmatprep.subr.mxu0 0.0
    %v4152 = vand.u32 %v77, 4294901760
    %v4153 = vsub.f32 %v77, %v4152
    %4154 = vmatpush1.msra.mxu0 %v4153
    %4155 = vmatprep.subr.mxu0 0.0
    %v4156 = vand.u32 %v78, 4294901760
    %v4157 = vsub.f32 %v78, %v4156
    %4158 = vmatpush1.msra.mxu0 %v4157
    %4159 = vmatprep.subr.mxu0 0.0
    %v4160 = vand.u32 %v79, 4294901760
    %v4161 = vsub.f32 %v79, %v4160
    %4162 = vmatpush1.msra.mxu0 %v4161
    %4163 = vmatprep.subr.mxu0 0.0
    %v4164 = vand.u32 %v80, 4294901760
    %v4165 = vsub.f32 %v80, %v4164
    %4166 = vmatpush1.msra.mxu0 %v4165
    %4167 = vmatprep.subr.mxu0 0.0
    %v4168 = vand.u32 %v81, 4294901760
    %v4169 = vsub.f32 %v81, %v4168
    %4170 = vmatpush1.msra.mxu0 %v4169
    %v4171 = vand.u32 %v3626, 4294901760
    %v4172 = vsub.f32 %v3626, %v4171
    %4173 = vmatprep.mubr.f32.mxu0 %v4172
    %v4174 = vand.u32 %v3625, 4294901760
    %v4175 = vsub.f32 %v3625, %v4174
    %4176 = vmatmul.mubr.f32.gmra.mrb[0].mxu0 %v4175
    %v4177 = vpop.f32.mrb[0].mxu0
    %v4178 = vadd.f32 %v4019, %v4177
    %v4179 = vpop.f32.mrb[0].mxu0
    %v4180 = vand.u32 %v3628, 4294901760
    %v4181 = vsub.f32 %v3628, %v4180
    %4182 = vmatprep.mubr.f32.mxu0 %v4181
    %v4183 = vand.u32 %v3627, 4294901760
    %v4184 = vsub.f32 %v3627, %v4183
    %4185 = vmatmul.mubr.f32.gmra.mrb[0].mxu0 %v4184
    %v4186 = vpop.f32.mrb[0].mxu0
    %v4187 = vadd.f32 %v4026, %v4186
    %v4188 = vpop.f32.mrb[0].mxu0
    %v4189 = vand.u32 %v3630, 4294901760
    %v4190 = vsub.f32 %v3630, %v4189
    %4191 = vmatprep.mubr.f32.mxu0 %v4190
    %v4192 = vand.u32 %v3629, 4294901760
    %v4193 = vsub.f32 %v3629, %v4192
    %4194 = vmatmul.mubr.f32.gmra.mrb[0].mxu0 %v4193
    %v4195 = vpop.f32.mrb[0].mxu0
    %v4196 = vadd.f32 %v4033, %v4195
    %v4197 = vpop.f32.mrb[0].mxu0
    %v4198 = vand.u32 %v3632, 4294901760
    %v4199 = vsub.f32 %v3632, %v4198
    %4200 = vmatprep.mubr.f32.mxu0 %v4199
    %v4201 = vand.u32 %v3631, 4294901760
    %v4202 = vsub.f32 %v3631, %v4201
    %4203 = vmatmul.mubr.f32.gmra.mrb[0].mxu0 %v4202
    %v4204 = vpop.f32.mrb[0].mxu0
    %v4205 = vadd.f32 %v4040, %v4204
    %v4206 = vpop.f32.mrb[0].mxu0
    %4207 = vdwg.mxu0
    %4208 = vmatprep.subr.mxu0 0.0
    %v4209 = vand.u32 %v50, 4294901760
    %4210 = vmatpush1.msra.mxu0 %v4209
    %4211 = vmatprep.subr.mxu0 0.0
    %v4212 = vand.u32 %v51, 4294901760
    %4213 = vmatpush1.msra.mxu0 %v4212
    %4214 = vmatprep.subr.mxu0 0.0
    %v4215 = vand.u32 %v52, 4294901760
    %4216 = vmatpush1.msra.mxu0 %v4215
    %4217 = vmatprep.subr.mxu0 0.0
    %v4218 = vand.u32 %v53, 4294901760
    %4219 = vmatpush1.msra.mxu0 %v4218
    %4220 = vmatprep.subr.mxu0 0.0
    %v4221 = vand.u32 %v54, 4294901760
    %4222 = vmatpush1.msra.mxu0 %v4221
    %4223 = vmatprep.subr.mxu0 0.0
    %v4224 = vand.u32 %v55, 4294901760
    %4225 = vmatpush1.msra.mxu0 %v4224
    %4226 = vmatprep.subr.mxu0 0.0
    %v4227 = vand.u32 %v56, 4294901760
    %4228 = vmatpush1.msra.mxu0 %v4227
    %4229 = vmatprep.subr.mxu0 0.0
    %v4230 = vand.u32 %v57, 4294901760
    %4231 = vmatpush1.msra.mxu0 %v4230
    %4232 = vmatprep.subr.mxu0 0.0
    %v4233 = vand.u32 %v58, 4294901760
    %4234 = vmatpush1.msra.mxu0 %v4233
    %4235 = vmatprep.subr.mxu0 0.0
    %v4236 = vand.u32 %v59, 4294901760
    %4237 = vmatpush1.msra.mxu0 %v4236
    %4238 = vmatprep.subr.mxu0 0.0
    %v4239 = vand.u32 %v60, 4294901760
    %4240 = vmatpush1.msra.mxu0 %v4239
    %4241 = vmatprep.subr.mxu0 0.0
    %v4242 = vand.u32 %v61, 4294901760
    %4243 = vmatpush1.msra.mxu0 %v4242
    %4244 = vmatprep.subr.mxu0 0.0
    %v4245 = vand.u32 %v62, 4294901760
    %4246 = vmatpush1.msra.mxu0 %v4245
    %4247 = vmatprep.subr.mxu0 0.0
    %v4248 = vand.u32 %v63, 4294901760
    %4249 = vmatpush1.msra.mxu0 %v4248
    %4250 = vmatprep.subr.mxu0 0.0
    %v4251 = vand.u32 %v64, 4294901760
    %4252 = vmatpush1.msra.mxu0 %v4251
    %4253 = vmatprep.subr.mxu0 0.0
    %v4254 = vand.u32 %v65, 4294901760
    %4255 = vmatpush1.msra.mxu0 %v4254
    %4256 = vmatprep.subr.mxu0 0.0
    %v4257 = vand.u32 %v66, 4294901760
    %4258 = vmatpush1.msra.mxu0 %v4257
    %4259 = vmatprep.subr.mxu0 0.0
    %v4260 = vand.u32 %v67, 4294901760
    %4261 = vmatpush1.msra.mxu0 %v4260
    %4262 = vmatprep.subr.mxu0 0.0
    %v4263 = vand.u32 %v68, 4294901760
    %4264 = vmatpush1.msra.mxu0 %v4263
    %4265 = vmatprep.subr.mxu0 0.0
    %v4266 = vand.u32 %v69, 4294901760
    %4267 = vmatpush1.msra.mxu0 %v4266
    %4268 = vmatprep.subr.mxu0 0.0
    %v4269 = vand.u32 %v70, 4294901760
    %4270 = vmatpush1.msra.mxu0 %v4269
    %4271 = vmatprep.subr.mxu0 0.0
    %v4272 = vand.u32 %v71, 4294901760
    %4273 = vmatpush1.msra.mxu0 %v4272
    %4274 = vmatprep.subr.mxu0 0.0
    %v4275 = vand.u32 %v72, 4294901760
    %4276 = vmatpush1.msra.mxu0 %v4275
    %4277 = vmatprep.subr.mxu0 0.0
    %v4278 = vand.u32 %v73, 4294901760
    %4279 = vmatpush1.msra.mxu0 %v4278
    %4280 = vmatprep.subr.mxu0 0.0
    %v4281 = vand.u32 %v74, 4294901760
    %4282 = vmatpush1.msra.mxu0 %v4281
    %4283 = vmatprep.subr.mxu0 0.0
    %v4284 = vand.u32 %v75, 4294901760
    %4285 = vmatpush1.msra.mxu0 %v4284
    %4286 = vmatprep.subr.mxu0 0.0
    %v4287 = vand.u32 %v76, 4294901760
    %4288 = vmatpush1.msra.mxu0 %v4287
    %4289 = vmatprep.subr.mxu0 0.0
    %v4290 = vand.u32 %v77, 4294901760
    %4291 = vmatpush1.msra.mxu0 %v4290
    %4292 = vmatprep.subr.mxu0 0.0
    %v4293 = vand.u32 %v78, 4294901760
    %4294 = vmatpush1.msra.mxu0 %v4293
    %4295 = vmatprep.subr.mxu0 0.0
    %v4296 = vand.u32 %v79, 4294901760
    %4297 = vmatpush1.msra.mxu0 %v4296
    %4298 = vmatprep.subr.mxu0 0.0
    %v4299 = vand.u32 %v80, 4294901760
    %4300 = vmatpush1.msra.mxu0 %v4299
    %4301 = vmatprep.subr.mxu0 0.0
    %v4302 = vand.u32 %v81, 4294901760
    %4303 = vmatpush1.msra.mxu0 %v4302
    %v4304 = vand.u32 %v3626, 4294901760
    %v4305 = vsub.f32 %v3626, %v4304
    %v4306 = vand.u32 %v4305, 4294901760
    %4307 = vmatprep.mubr.f32.mxu0 %v4306
    %v4308 = vand.u32 %v3625, 4294901760
    %v4309 = vsub.f32 %v3625, %v4308
    %v4310 = vand.u32 %v4309, 4294901760
    %4311 = vmatmul.mubr.f32.gmra.mrb[0].mxu0 %v4310
    %v4312 = vpop.f32.mrb[0].mxu0
    %v4313 = vadd.f32 %v4178, %v4312
    %v4314 = vpop.f32.mrb[0].mxu0
    %v4315 = vand.u32 %v3628, 4294901760
    %v4316 = vsub.f32 %v3628, %v4315
    %v4317 = vand.u32 %v4316, 4294901760
    %4318 = vmatprep.mubr.f32.mxu0 %v4317
    %v4319 = vand.u32 %v3627, 4294901760
    %v4320 = vsub.f32 %v3627, %v4319
    %v4321 = vand.u32 %v4320, 4294901760
    %4322 = vmatmul.mubr.f32.gmra.mrb[0].mxu0 %v4321
    %v4323 = vpop.f32.mrb[0].mxu0
    %v4324 = vadd.f32 %v4187, %v4323
    %v4325 = vpop.f32.mrb[0].mxu0
    %v4326 = vand.u32 %v3630, 4294901760
    %v4327 = vsub.f32 %v3630, %v4326
    %v4328 = vand.u32 %v4327, 4294901760
    %4329 = vmatprep.mubr.f32.mxu0 %v4328
    %v4330 = vand.u32 %v3629, 4294901760
    %v4331 = vsub.f32 %v3629, %v4330
    %v4332 = vand.u32 %v4331, 4294901760
    %4333 = vmatmul.mubr.f32.gmra.mrb[0].mxu0 %v4332
    %v4334 = vpop.f32.mrb[0].mxu0
    %v4335 = vadd.f32 %v4196, %v4334
    %v4336 = vpop.f32.mrb[0].mxu0
    %v4337 = vand.u32 %v3632, 4294901760
    %v4338 = vsub.f32 %v3632, %v4337
    %v4339 = vand.u32 %v4338, 4294901760
    %4340 = vmatprep.mubr.f32.mxu0 %v4339
    %v4341 = vand.u32 %v3631, 4294901760
    %v4342 = vsub.f32 %v3631, %v4341
    %v4343 = vand.u32 %v4342, 4294901760
    %4344 = vmatmul.mubr.f32.gmra.mrb[0].mxu0 %v4343
    %v4345 = vpop.f32.mrb[0].mxu0
    %v4346 = vadd.f32 %v4205, %v4345
    %v4347 = vpop.f32.mrb[0].mxu0
    %4348 = vdwg.mxu0
    %4349 = vmatprep.subr.mxu0 0.0
    %v4350 = vand.u32 %v50, 4294901760
    %v4351 = vsub.f32 %v50, %v4350
    %v4352 = vand.u32 %v4351, 4294901760
    %4353 = vmatpush1.msra.mxu0 %v4352
    %4354 = vmatprep.subr.mxu0 0.0
    %v4355 = vand.u32 %v51, 4294901760
    %v4356 = vsub.f32 %v51, %v4355
    %v4357 = vand.u32 %v4356, 4294901760
    %4358 = vmatpush1.msra.mxu0 %v4357
    %4359 = vmatprep.subr.mxu0 0.0
    %v4360 = vand.u32 %v52, 4294901760
    %v4361 = vsub.f32 %v52, %v4360
    %v4362 = vand.u32 %v4361, 4294901760
    %4363 = vmatpush1.msra.mxu0 %v4362
    %4364 = vmatprep.subr.mxu0 0.0
    %v4365 = vand.u32 %v53, 4294901760
    %v4366 = vsub.f32 %v53, %v4365
    %v4367 = vand.u32 %v4366, 4294901760
    %4368 = vmatpush1.msra.mxu0 %v4367
    %4369 = vmatprep.subr.mxu0 0.0
    %v4370 = vand.u32 %v54, 4294901760
    %v4371 = vsub.f32 %v54, %v4370
    %v4372 = vand.u32 %v4371, 4294901760
    %4373 = vmatpush1.msra.mxu0 %v4372
    %4374 = vmatprep.subr.mxu0 0.0
    %v4375 = vand.u32 %v55, 4294901760
    %v4376 = vsub.f32 %v55, %v4375
    %v4377 = vand.u32 %v4376, 4294901760
    %4378 = vmatpush1.msra.mxu0 %v4377
    %4379 = vmatprep.subr.mxu0 0.0
    %v4380 = vand.u32 %v56, 4294901760
    %v4381 = vsub.f32 %v56, %v4380
    %v4382 = vand.u32 %v4381, 4294901760
    %4383 = vmatpush1.msra.mxu0 %v4382
    %4384 = vmatprep.subr.mxu0 0.0
    %v4385 = vand.u32 %v57, 4294901760
    %v4386 = vsub.f32 %v57, %v4385
    %v4387 = vand.u32 %v4386, 4294901760
    %4388 = vmatpush1.msra.mxu0 %v4387
    %4389 = vmatprep.subr.mxu0 0.0
    %v4390 = vand.u32 %v58, 4294901760
    %v4391 = vsub.f32 %v58, %v4390
    %v4392 = vand.u32 %v4391, 4294901760
    %4393 = vmatpush1.msra.mxu0 %v4392
    %4394 = vmatprep.subr.mxu0 0.0
    %v4395 = vand.u32 %v59, 4294901760
    %v4396 = vsub.f32 %v59, %v4395
    %v4397 = vand.u32 %v4396, 4294901760
    %4398 = vmatpush1.msra.mxu0 %v4397
    %4399 = vmatprep.subr.mxu0 0.0
    %v4400 = vand.u32 %v60, 4294901760
    %v4401 = vsub.f32 %v60, %v4400
    %v4402 = vand.u32 %v4401, 4294901760
    %4403 = vmatpush1.msra.mxu0 %v4402
    %4404 = vmatprep.subr.mxu0 0.0
    %v4405 = vand.u32 %v61, 4294901760
    %v4406 = vsub.f32 %v61, %v4405
    %v4407 = vand.u32 %v4406, 4294901760
    %4408 = vmatpush1.msra.mxu0 %v4407
    %4409 = vmatprep.subr.mxu0 0.0
    %v4410 = vand.u32 %v62, 4294901760
    %v4411 = vsub.f32 %v62, %v4410
    %v4412 = vand.u32 %v4411, 4294901760
    %4413 = vmatpush1.msra.mxu0 %v4412
    %4414 = vmatprep.subr.mxu0 0.0
    %v4415 = vand.u32 %v63, 4294901760
    %v4416 = vsub.f32 %v63, %v4415
    %v4417 = vand.u32 %v4416, 4294901760
    %4418 = vmatpush1.msra.mxu0 %v4417
    %4419 = vmatprep.subr.mxu0 0.0
    %v4420 = vand.u32 %v64, 4294901760
    %v4421 = vsub.f32 %v64, %v4420
    %v4422 = vand.u32 %v4421, 4294901760
    %4423 = vmatpush1.msra.mxu0 %v4422
    %4424 = vmatprep.subr.mxu0 0.0
    %v4425 = vand.u32 %v65, 4294901760
    %v4426 = vsub.f32 %v65, %v4425
    %v4427 = vand.u32 %v4426, 4294901760
    %4428 = vmatpush1.msra.mxu0 %v4427
    %4429 = vmatprep.subr.mxu0 0.0
    %v4430 = vand.u32 %v66, 4294901760
    %v4431 = vsub.f32 %v66, %v4430
    %v4432 = vand.u32 %v4431, 4294901760
    %4433 = vmatpush1.msra.mxu0 %v4432
    %4434 = vmatprep.subr.mxu0 0.0
    %v4435 = vand.u32 %v67, 4294901760
    %v4436 = vsub.f32 %v67, %v4435
    %v4437 = vand.u32 %v4436, 4294901760
    %4438 = vmatpush1.msra.mxu0 %v4437
    %4439 = vmatprep.subr.mxu0 0.0
    %v4440 = vand.u32 %v68, 4294901760
    %v4441 = vsub.f32 %v68, %v4440
    %v4442 = vand.u32 %v4441, 4294901760
    %4443 = vmatpush1.msra.mxu0 %v4442
    %4444 = vmatprep.subr.mxu0 0.0
    %v4445 = vand.u32 %v69, 4294901760
    %v4446 = vsub.f32 %v69, %v4445
    %v4447 = vand.u32 %v4446, 4294901760
    %4448 = vmatpush1.msra.mxu0 %v4447
    %4449 = vmatprep.subr.mxu0 0.0
    %v4450 = vand.u32 %v70, 4294901760
    %v4451 = vsub.f32 %v70, %v4450
    %v4452 = vand.u32 %v4451, 4294901760
    %4453 = vmatpush1.msra.mxu0 %v4452
    %4454 = vmatprep.subr.mxu0 0.0
    %v4455 = vand.u32 %v71, 4294901760
    %v4456 = vsub.f32 %v71, %v4455
    %v4457 = vand.u32 %v4456, 4294901760
    %4458 = vmatpush1.msra.mxu0 %v4457
    %4459 = vmatprep.subr.mxu0 0.0
    %v4460 = vand.u32 %v72, 4294901760
    %v4461 = vsub.f32 %v72, %v4460
    %v4462 = vand.u32 %v4461, 4294901760
    %4463 = vmatpush1.msra.mxu0 %v4462
    %4464 = vmatprep.subr.mxu0 0.0
    %v4465 = vand.u32 %v73, 4294901760
    %v4466 = vsub.f32 %v73, %v4465
    %v4467 = vand.u32 %v4466, 4294901760
    %4468 = vmatpush1.msra.mxu0 %v4467
    %4469 = vmatprep.subr.mxu0 0.0
    %v4470 = vand.u32 %v74, 4294901760
    %v4471 = vsub.f32 %v74, %v4470
    %v4472 = vand.u32 %v4471, 4294901760
    %4473 = vmatpush1.msra.mxu0 %v4472
    %4474 = vmatprep.subr.mxu0 0.0
    %v4475 = vand.u32 %v75, 4294901760
    %v4476 = vsub.f32 %v75, %v4475
    %v4477 = vand.u32 %v4476, 4294901760
    %4478 = vmatpush1.msra.mxu0 %v4477
    %4479 = vmatprep.subr.mxu0 0.0
    %v4480 = vand.u32 %v76, 4294901760
    %v4481 = vsub.f32 %v76, %v4480
    %v4482 = vand.u32 %v4481, 4294901760
    %4483 = vmatpush1.msra.mxu0 %v4482
    %4484 = vmatprep.subr.mxu0 0.0
    %v4485 = vand.u32 %v77, 4294901760
    %v4486 = vsub.f32 %v77, %v4485
    %v4487 = vand.u32 %v4486, 4294901760
    %4488 = vmatpush1.msra.mxu0 %v4487
    %4489 = vmatprep.subr.mxu0 0.0
    %v4490 = vand.u32 %v78, 4294901760
    %v4491 = vsub.f32 %v78, %v4490
    %v4492 = vand.u32 %v4491, 4294901760
    %4493 = vmatpush1.msra.mxu0 %v4492
    %4494 = vmatprep.subr.mxu0 0.0
    %v4495 = vand.u32 %v79, 4294901760
    %v4496 = vsub.f32 %v79, %v4495
    %v4497 = vand.u32 %v4496, 4294901760
    %4498 = vmatpush1.msra.mxu0 %v4497
    %4499 = vmatprep.subr.mxu0 0.0
    %v4500 = vand.u32 %v80, 4294901760
    %v4501 = vsub.f32 %v80, %v4500
    %v4502 = vand.u32 %v4501, 4294901760
    %4503 = vmatpush1.msra.mxu0 %v4502
    %4504 = vmatprep.subr.mxu0 0.0
    %v4505 = vand.u32 %v81, 4294901760
    %v4506 = vsub.f32 %v81, %v4505
    %v4507 = vand.u32 %v4506, 4294901760
    %4508 = vmatpush1.msra.mxu0 %v4507
    %v4509 = vand.u32 %v3626, 4294901760
    %4510 = vmatprep.mubr.f32.mxu0 %v4509
    %v4511 = vand.u32 %v3625, 4294901760
    %4512 = vmatmul.mubr.f32.gmra.mrb[0].mxu0 %v4511
    %v4513 = vpop.f32.mrb[0].mxu0
    %v4514 = vadd.f32 %v4313, %v4513
    %v4515 = vpop.f32.mrb[0].mxu0
    %v4516 = vand.u32 %v3628, 4294901760
    %4517 = vmatprep.mubr.f32.mxu0 %v4516
    %v4518 = vand.u32 %v3627, 4294901760
    %4519 = vmatmul.mubr.f32.gmra.mrb[0].mxu0 %v4518
    %v4520 = vpop.f32.mrb[0].mxu0
    %v4521 = vadd.f32 %v4324, %v4520
    %v4522 = vpop.f32.mrb[0].mxu0
    %v4523 = vand.u32 %v3630, 4294901760
    %4524 = vmatprep.mubr.f32.mxu0 %v4523
    %v4525 = vand.u32 %v3629, 4294901760
    %4526 = vmatmul.mubr.f32.gmra.mrb[0].mxu0 %v4525
    %v4527 = vpop.f32.mrb[0].mxu0
    %v4528 = vadd.f32 %v4335, %v4527
    %v4529 = vpop.f32.mrb[0].mxu0
    %v4530 = vand.u32 %v3632, 4294901760
    %4531 = vmatprep.mubr.f32.mxu0 %v4530
    %v4532 = vand.u32 %v3631, 4294901760
    %4533 = vmatmul.mubr.f32.gmra.mrb[0].mxu0 %v4532
    %v4534 = vpop.f32.mrb[0].mxu0
    %v4535 = vadd.f32 %v4346, %v4534
    %v4536 = vpop.f32.mrb[0].mxu0
    %4537 = vdwg.mxu0
    %4538 = vmatprep.subr.mxu0 0.0
    %v4539 = vand.u32 %v50, 4294901760
    %4540 = vmatpush1.msra.mxu0 %v4539
    %4541 = vmatprep.subr.mxu0 0.0
    %v4542 = vand.u32 %v51, 4294901760
    %4543 = vmatpush1.msra.mxu0 %v4542
    %4544 = vmatprep.subr.mxu0 0.0
    %v4545 = vand.u32 %v52, 4294901760
    %4546 = vmatpush1.msra.mxu0 %v4545
    %4547 = vmatprep.subr.mxu0 0.0
    %v4548 = vand.u32 %v53, 4294901760
    %4549 = vmatpush1.msra.mxu0 %v4548
    %4550 = vmatprep.subr.mxu0 0.0
    %v4551 = vand.u32 %v54, 4294901760
    %4552 = vmatpush1.msra.mxu0 %v4551
    %4553 = vmatprep.subr.mxu0 0.0
    %v4554 = vand.u32 %v55, 4294901760
    %4555 = vmatpush1.msra.mxu0 %v4554
    %4556 = vmatprep.subr.mxu0 0.0
    %v4557 = vand.u32 %v56, 4294901760
    %4558 = vmatpush1.msra.mxu0 %v4557
    %4559 = vmatprep.subr.mxu0 0.0
    %v4560 = vand.u32 %v57, 4294901760
    %4561 = vmatpush1.msra.mxu0 %v4560
    %4562 = vmatprep.subr.mxu0 0.0
    %v4563 = vand.u32 %v58, 4294901760
    %4564 = vmatpush1.msra.mxu0 %v4563
    %4565 = vmatprep.subr.mxu0 0.0
    %v4566 = vand.u32 %v59, 4294901760
    %4567 = vmatpush1.msra.mxu0 %v4566
    %4568 = vmatprep.subr.mxu0 0.0
    %v4569 = vand.u32 %v60, 4294901760
    %4570 = vmatpush1.msra.mxu0 %v4569
    %4571 = vmatprep.subr.mxu0 0.0
    %v4572 = vand.u32 %v61, 4294901760
    %4573 = vmatpush1.msra.mxu0 %v4572
    %4574 = vmatprep.subr.mxu0 0.0
    %v4575 = vand.u32 %v62, 4294901760
    %4576 = vmatpush1.msra.mxu0 %v4575
    %4577 = vmatprep.subr.mxu0 0.0
    %v4578 = vand.u32 %v63, 4294901760
    %4579 = vmatpush1.msra.mxu0 %v4578
    %4580 = vmatprep.subr.mxu0 0.0
    %v4581 = vand.u32 %v64, 4294901760
    %4582 = vmatpush1.msra.mxu0 %v4581
    %4583 = vmatprep.subr.mxu0 0.0
    %v4584 = vand.u32 %v65, 4294901760
    %4585 = vmatpush1.msra.mxu0 %v4584
    %4586 = vmatprep.subr.mxu0 0.0
    %v4587 = vand.u32 %v66, 4294901760
    %4588 = vmatpush1.msra.mxu0 %v4587
    %4589 = vmatprep.subr.mxu0 0.0
    %v4590 = vand.u32 %v67, 4294901760
    %4591 = vmatpush1.msra.mxu0 %v4590
    %4592 = vmatprep.subr.mxu0 0.0
    %v4593 = vand.u32 %v68, 4294901760
    %4594 = vmatpush1.msra.mxu0 %v4593
    %4595 = vmatprep.subr.mxu0 0.0
    %v4596 = vand.u32 %v69, 4294901760
    %4597 = vmatpush1.msra.mxu0 %v4596
    %4598 = vmatprep.subr.mxu0 0.0
    %v4599 = vand.u32 %v70, 4294901760
    %4600 = vmatpush1.msra.mxu0 %v4599
    %4601 = vmatprep.subr.mxu0 0.0
    %v4602 = vand.u32 %v71, 4294901760
    %4603 = vmatpush1.msra.mxu0 %v4602
    %4604 = vmatprep.subr.mxu0 0.0
    %v4605 = vand.u32 %v72, 4294901760
    %4606 = vmatpush1.msra.mxu0 %v4605
    %4607 = vmatprep.subr.mxu0 0.0
    %v4608 = vand.u32 %v73, 4294901760
    %4609 = vmatpush1.msra.mxu0 %v4608
    %4610 = vmatprep.subr.mxu0 0.0
    %v4611 = vand.u32 %v74, 4294901760
    %4612 = vmatpush1.msra.mxu0 %v4611
    %4613 = vmatprep.subr.mxu0 0.0
    %v4614 = vand.u32 %v75, 4294901760
    %4615 = vmatpush1.msra.mxu0 %v4614
    %4616 = vmatprep.subr.mxu0 0.0
    %v4617 = vand.u32 %v76, 4294901760
    %4618 = vmatpush1.msra.mxu0 %v4617
    %4619 = vmatprep.subr.mxu0 0.0
    %v4620 = vand.u32 %v77, 4294901760
    %4621 = vmatpush1.msra.mxu0 %v4620
    %4622 = vmatprep.subr.mxu0 0.0
    %v4623 = vand.u32 %v78, 4294901760
    %4624 = vmatpush1.msra.mxu0 %v4623
    %4625 = vmatprep.subr.mxu0 0.0
    %v4626 = vand.u32 %v79, 4294901760
    %4627 = vmatpush1.msra.mxu0 %v4626
    %4628 = vmatprep.subr.mxu0 0.0
    %v4629 = vand.u32 %v80, 4294901760
    %4630 = vmatpush1.msra.mxu0 %v4629
    %4631 = vmatprep.subr.mxu0 0.0
    %v4632 = vand.u32 %v81, 4294901760
    %4633 = vmatpush1.msra.mxu0 %v4632
    %v4634 = vand.u32 %v3626, 4294901760
    %4635 = vmatprep.mubr.f32.mxu0 %v4634
    %v4636 = vand.u32 %v3625, 4294901760
    %4637 = vmatmul.mubr.f32.gmra.mrb[0].mxu0 %v4636
    %v4638 = vpop.f32.mrb[0].mxu0
    %v4639 = vadd.f32 %v4514, %v4638
    %v4640 = vpop.f32.mrb[0].mxu0
    %v4641 = vand.u32 %v3628, 4294901760
    %4642 = vmatprep.mubr.f32.mxu0 %v4641
    %v4643 = vand.u32 %v3627, 4294901760
    %4644 = vmatmul.mubr.f32.gmra.mrb[0].mxu0 %v4643
    %v4645 = vpop.f32.mrb[0].mxu0
    %v4646 = vadd.f32 %v4521, %v4645
    %v4647 = vpop.f32.mrb[0].mxu0
    %v4648 = vand.u32 %v3630, 4294901760
    %4649 = vmatprep.mubr.f32.mxu0 %v4648
    %v4650 = vand.u32 %v3629, 4294901760
    %4651 = vmatmul.mubr.f32.gmra.mrb[0].mxu0 %v4650
    %v4652 = vpop.f32.mrb[0].mxu0
    %v4653 = vadd.f32 %v4528, %v4652
    %v4654 = vpop.f32.mrb[0].mxu0
    %v4655 = vand.u32 %v3632, 4294901760
    %4656 = vmatprep.mubr.f32.mxu0 %v4655
    %v4657 = vand.u32 %v3631, 4294901760
    %4658 = vmatmul.mubr.f32.gmra.mrb[0].mxu0 %v4657
    %v4659 = vpop.f32.mrb[0].mxu0
    %v4660 = vadd.f32 %v4535, %v4659
    %v4661 = vpop.f32.mrb[0].mxu0
    %4662 = vdwg.mxu0
    %v4663 = vsel %vm3611, %v4639, 0.0
    %v4664 = vsel %vm3611, %v4646, 0.0
    %v4665 = vadd.f32 %v4663, %v4664
    %v4666 = vsel %vm3611, %v4653, 0.0
    %v4667 = vadd.f32 %v4665, %v4666
    %v4668 = vsel %vm3611, %v4660, 0.0
    %v4669 = vadd.f32 %v4667, %v4668
    %v4670 = vrot.slane %v4669, 4
    %v4671 = vadd.f32 %v4669, %v4670
    %v4672 = vrot.slane %v4671, 2
    %v4673 = vadd.f32 %v4671, %v4672
    %v4674 = vrot.slane %v4673, 1
    %v4675 = vadd.f32 %v4673, %v4674
    %v4676 = vmul.f32 %v3624, 0.001953125
    %v4677 = vmul.f32 %v4675, 0.001953125
    %v4678 = vmul.f32 %v4676, %v4676
    %v4679 = vsub.f32 %v4677, %v4678
    %v4680 = vadd.f32 %v4679, 1e-05
    %v4681 = vrsqrt.pop %v4680
    %v4682 = vmul.f32 %v49, %v4681
    %v4683 = vmul.f32 %v4676, %v4682
    %v4685 = vrot.slane %v4683, 7
    %v4687 = vsub.f32 %v49, %v4685
    %4689 = vrot.lane.b32.xlu0 %v4682, 8
    %v4690 = vpop.permute.xlu0 %4689
    %4692 = vrot.lane.b32.xlu0 %v4682, 16
    %v4693 = vpop.permute.xlu0 %4692
    %4695 = vrot.lane.b32.xlu0 %v4682, 24
    %v4696 = vpop.permute.xlu0 %4695
    %4698 = vrot.lane.b32.xlu0 %v4682, 32
    %v4699 = vpop.permute.xlu0 %4698
    %4701 = vrot.lane.b32.xlu0 %v4682, 40
    %v4702 = vpop.permute.xlu0 %4701
    %4704 = vrot.lane.b32.xlu0 %v4682, 48
    %v4705 = vpop.permute.xlu0 %4704
    %4707 = vrot.lane.b32.xlu0 %v4682, 56
    %v4708 = vpop.permute.xlu0 %4707
    %4710 = vrot.lane.b32.xlu0 %v4682, 64
    %v4711 = vpop.permute.xlu0 %4710
    %4713 = vrot.lane.b32.xlu0 %v4682, 72
    %v4714 = vpop.permute.xlu0 %4713
    %4716 = vrot.lane.b32.xlu0 %v4682, 80
    %v4717 = vpop.permute.xlu0 %4716
    %4719 = vrot.lane.b32.xlu0 %v4682, 88
    %v4720 = vpop.permute.xlu0 %4719
    %4722 = vrot.lane.b32.xlu0 %v4682, 96
    %v4723 = vpop.permute.xlu0 %4722
    %4725 = vrot.lane.b32.xlu0 %v4682, 104
    %v4726 = vpop.permute.xlu0 %4725
    %4728 = vrot.lane.b32.xlu0 %v4682, 112
    %v4729 = vpop.permute.xlu0 %4728
    %4731 = vrot.lane.b32.xlu0 %v4682, 120
    %v4732 = vpop.permute.xlu0 %4731
    %vm4734 = vcmask 64512
    %v4735 = vsel %vm4734, %v4682, %v4690
    %v4736 = vsel %vm3611, %v4735, %v4693
    %vm4737 = vcmask 195584
    %v4738 = vsel %vm4737, %v4736, %v4696
    %vm4739 = vcmask 261120
    %v4740 = vsel %vm4739, %v4738, %v4699
    %vm4741 = vcmask 326656
    %v4742 = vsel %vm4741, %v4740, %v4702
    %vm4743 = vcmask 392192
    %v4744 = vsel %vm4743, %v4742, %v4705
    %vm4745 = vcmask 457728
    %v4746 = vsel %vm4745, %v4744, %v4708
    %v4747 = vsel %vm145, %v4746, %v4711
    %vm4748 = vcmask 588800
    %v4749 = vsel %vm4748, %v4747, %v4714
    %vm4750 = vcmask 654336
    %v4751 = vsel %vm4750, %v4749, %v4717
    %vm4752 = vcmask 719872
    %v4753 = vsel %vm4752, %v4751, %v4720
    %vm4754 = vcmask 785408
    %v4755 = vsel %vm4754, %v4753, %v4723
    %vm4756 = vcmask 850944
    %v4757 = vsel %vm4756, %v4755, %v4726
    %vm4758 = vcmask 916480
    %v4759 = vsel %vm4758, %v4757, %v4729
    %vm4760 = vcmask 982016
    %v4761 = vsel %vm4760, %v4759, %v4732
    %v4762 = vsel %vm4734, %v4732, %v4682
    %v4763 = vsel %vm3611, %v4762, %v4690
    %v4764 = vsel %vm4737, %v4763, %v4693
    %v4765 = vsel %vm4739, %v4764, %v4696
    %v4766 = vsel %vm4741, %v4765, %v4699
    %v4767 = vsel %vm4743, %v4766, %v4702
    %v4768 = vsel %vm4745, %v4767, %v4705
    %v4769 = vsel %vm145, %v4768, %v4708
    %v4770 = vsel %vm4748, %v4769, %v4711
    %v4771 = vsel %vm4750, %v4770, %v4714
    %v4772 = vsel %vm4752, %v4771, %v4717
    %v4773 = vsel %vm4754, %v4772, %v4720
    %v4774 = vsel %vm4756, %v4773, %v4723
    %v4775 = vsel %vm4758, %v4774, %v4726
    %v4776 = vsel %vm4760, %v4775, %v4729
    %v4777 = vlaneseq
    %v4778 = vshrl.u32 %v4777, 7
    %v4779 = vsub.s32 0, %v4778
    %v4780 = vrot.slane %v4761, %v4779
    %v4781 = vlaneseq
    %v4782 = vshrl.u32 %v4781, 7
    %v4783 = vsub.s32 0, %v4782
    %v4784 = vrot.slane %v4776, %v4783
    %v4785 = vmul.f32 %v2573, %v4780
    %v4786 = vmul.f32 %v2574, %v4784
    %v4787 = vmul.f32 %v2575, %v4780
    %v4788 = vmul.f32 %v2576, %v4784
    %v4789 = vmul.f32 %v2577, %v4780
    %v4790 = vmul.f32 %v2578, %v4784
    %v4791 = vmul.f32 %v2579, %v4780
    %v4792 = vmul.f32 %v2580, %v4784
    %4794 = vrot.lane.b32.xlu0 %v4687, 8
    %v4795 = vpop.permute.xlu0 %4794
    %4797 = vrot.lane.b32.xlu0 %v4687, 16
    %v4798 = vpop.permute.xlu0 %4797
    %4800 = vrot.lane.b32.xlu0 %v4687, 24
    %v4801 = vpop.permute.xlu0 %4800
    %4803 = vrot.lane.b32.xlu0 %v4687, 32
    %v4804 = vpop.permute.xlu0 %4803
    %4806 = vrot.lane.b32.xlu0 %v4687, 40
    %v4807 = vpop.permute.xlu0 %4806
    %4809 = vrot.lane.b32.xlu0 %v4687, 48
    %v4810 = vpop.permute.xlu0 %4809
    %4812 = vrot.lane.b32.xlu0 %v4687, 56
    %v4813 = vpop.permute.xlu0 %4812
    %4815 = vrot.lane.b32.xlu0 %v4687, 64
    %v4816 = vpop.permute.xlu0 %4815
    %4818 = vrot.lane.b32.xlu0 %v4687, 72
    %v4819 = vpop.permute.xlu0 %4818
    %4821 = vrot.lane.b32.xlu0 %v4687, 80
    %v4822 = vpop.permute.xlu0 %4821
    %4824 = vrot.lane.b32.xlu0 %v4687, 88
    %v4825 = vpop.permute.xlu0 %4824
    %4827 = vrot.lane.b32.xlu0 %v4687, 96
    %v4828 = vpop.permute.xlu0 %4827
    %4830 = vrot.lane.b32.xlu0 %v4687, 104
    %v4831 = vpop.permute.xlu0 %4830
    %4833 = vrot.lane.b32.xlu0 %v4687, 112
    %v4834 = vpop.permute.xlu0 %4833
    %4836 = vrot.lane.b32.xlu0 %v4687, 120
    %v4837 = vpop.permute.xlu0 %4836
    %v4839 = vsel %vm4734, %v4687, %v4795
    %v4840 = vsel %vm3611, %v4839, %v4798
    %v4841 = vsel %vm4737, %v4840, %v4801
    %v4842 = vsel %vm4739, %v4841, %v4804
    %v4843 = vsel %vm4741, %v4842, %v4807
    %v4844 = vsel %vm4743, %v4843, %v4810
    %v4845 = vsel %vm4745, %v4844, %v4813
    %v4846 = vsel %vm145, %v4845, %v4816
    %v4847 = vsel %vm4748, %v4846, %v4819
    %v4848 = vsel %vm4750, %v4847, %v4822
    %v4849 = vsel %vm4752, %v4848, %v4825
    %v4850 = vsel %vm4754, %v4849, %v4828
    %v4851 = vsel %vm4756, %v4850, %v4831
    %v4852 = vsel %vm4758, %v4851, %v4834
    %v4853 = vsel %vm4760, %v4852, %v4837
    %v4854 = vsel %vm4734, %v4837, %v4687
    %v4855 = vsel %vm3611, %v4854, %v4795
    %v4856 = vsel %vm4737, %v4855, %v4798
    %v4857 = vsel %vm4739, %v4856, %v4801
    %v4858 = vsel %vm4741, %v4857, %v4804
    %v4859 = vsel %vm4743, %v4858, %v4807
    %v4860 = vsel %vm4745, %v4859, %v4810
    %v4861 = vsel %vm145, %v4860, %v4813
    %v4862 = vsel %vm4748, %v4861, %v4816
    %v4863 = vsel %vm4750, %v4862, %v4819
    %v4864 = vsel %vm4752, %v4863, %v4822
    %v4865 = vsel %vm4754, %v4864, %v4825
    %v4866 = vsel %vm4756, %v4865, %v4828
    %v4867 = vsel %vm4758, %v4866, %v4831
    %v4868 = vsel %vm4760, %v4867, %v4834
    %v4869 = vlaneseq
    %v4870 = vshrl.u32 %v4869, 7
    %v4871 = vsub.s32 1, %v4870
    %v4872 = vrot.slane %v4853, %v4871
    %v4873 = vlaneseq
    %v4874 = vshrl.u32 %v4873, 7
    %v4875 = vsub.s32 1, %v4874
    %v4876 = vrot.slane %v4868, %v4875
    %v4877 = vadd.f32 %v4785, %v4872
    %v4878 = vadd.f32 %v4786, %v4876
    %v4879 = vadd.f32 %v4787, %v4872
    %v4880 = vadd.f32 %v4788, %v4876
    %v4881 = vadd.f32 %v4789, %v4872
    %v4882 = vadd.f32 %v4790, %v4876
    %v4883 = vadd.f32 %v4791, %v4872
    %v4884 = vadd.f32 %v4792, %v4876
    %v4885 = vmul.f32 %v4877, 0.2
    %v4886 = vmul.f32 %v4879, 0.2
    %v4887 = vmul.f32 %v4881, 0.2
    %v4888 = vmul.f32 %v4883, 0.2
    %v4889 = vmax.f32 %v4877, %v4885
    %v4890 = vmax.f32 %v4879, %v4886
    %v4891 = vmax.f32 %v4881, %v4887
    %v4892 = vmax.f32 %v4883, %v4888
    %s4893 = scalar_lea.vmem [#allocation5], 128
    %v4894 = vld [vmem:[%s4893] sm:$0xff]
    %v4895 = vld [vmem:[%s4893 + $0x8] sm:$0xff]
    %v4896 = vld [vmem:[%s4893 + $0x10] sm:$0xff]
    %v4897 = vld [vmem:[%s4893 + $0x18] sm:$0xff]
    %v4898 = vld [vmem:[%s4893 + $0x20] sm:$0xff]
    %v4899 = vld [vmem:[%s4893 + $0x28] sm:$0xff]
    %v4900 = vld [vmem:[%s4893 + $0x30] sm:$0xff]
    %v4901 = vld [vmem:[%s4893 + $0x38] sm:$0xff]
    %v4902 = vld [vmem:[%s4893 + $0x40] sm:$0xff]
    %v4903 = vld [vmem:[%s4893 + $0x48] sm:$0xff]
    %v4904 = vld [vmem:[%s4893 + $0x50] sm:$0xff]
    %v4905 = vld [vmem:[%s4893 + $0x58] sm:$0xff]
    %v4906 = vld [vmem:[%s4893 + $0x60] sm:$0xff]
    %v4907 = vld [vmem:[%s4893 + $0x68] sm:$0xff]
    %v4908 = vld [vmem:[%s4893 + $0x70] sm:$0xff]
    %v4909 = vld [vmem:[%s4893 + $0x78] sm:$0xff]
    %v4914 = vrot.slane %v4889, 7
    %v4915 = vrot.slane %v4890, 7
    %v4916 = vsel %vm107, %v4914, %v4915
    %v4917 = vrot.slane %v4891, 7
    %v4918 = vrot.slane %v4892, 7
    %v4919 = vsel %vm107, %v4917, %v4918
    %v4924 = vsel %vm107, 0.0, %v4914
    %v4925 = vsel %vm107, 0.0, %v4917
    %v4926 = vrot.slane %v4889, 1
    %v4927 = vrot.slane %v4890, 1
    %v4928 = vsel %vm118, %v4926, %v4927
    %v4929 = vrot.slane %v4891, 1
    %v4930 = vrot.slane %v4892, 1
    %v4931 = vsel %vm118, %v4929, %v4930
    %v4936 = vsel %vm118, %v4927, 0.0
    %v4937 = vsel %vm118, %v4930, 0.0
    %v4938 = vld [vmem:[#allocation5] sm:$0xff]
    %v4939 = vld [vmem:[#allocation5 + $0x8] sm:$0xff]
    %v4940 = vld [vmem:[#allocation5 + $0x10] sm:$0xff]
    %v4941 = vld [vmem:[#allocation5 + $0x18] sm:$0xff]
    %v4942 = vld [vmem:[#allocation5 + $0x20] sm:$0xff]
    %v4943 = vld [vmem:[#allocation5 + $0x28] sm:$0xff]
    %v4944 = vld [vmem:[#allocation5 + $0x30] sm:$0xff]
    %v4945 = vld [vmem:[#allocation5 + $0x38] sm:$0xff]
    %v4946 = vld [vmem:[#allocation5 + $0x40] sm:$0xff]
    %v4947 = vld [vmem:[#allocation5 + $0x48] sm:$0xff]
    %v4948 = vld [vmem:[#allocation5 + $0x50] sm:$0xff]
    %v4949 = vld [vmem:[#allocation5 + $0x58] sm:$0xff]
    %v4950 = vld [vmem:[#allocation5 + $0x60] sm:$0xff]
    %v4951 = vld [vmem:[#allocation5 + $0x68] sm:$0xff]
    %v4952 = vld [vmem:[#allocation5 + $0x70] sm:$0xff]
    %v4953 = vld [vmem:[#allocation5 + $0x78] sm:$0xff]
    %4954 = vmatprep.subr.mxu0 0.0
    %v4955 = vand.u32 %v4938, 4294901760
    %4956 = vmatpush1.msra.mxu0 %v4955
    %4957 = vmatprep.subr.mxu0 0.0
    %v4958 = vand.u32 %v4939, 4294901760
    %4959 = vmatpush1.msra.mxu0 %v4958
    %4960 = vmatprep.subr.mxu0 0.0
    %v4961 = vand.u32 %v4940, 4294901760
    %4962 = vmatpush1.msra.mxu0 %v4961
    %4963 = vmatprep.subr.mxu0 0.0
    %v4964 = vand.u32 %v4941, 4294901760
    %4965 = vmatpush1.msra.mxu0 %v4964
    %4966 = vmatprep.subr.mxu0 0.0
    %v4967 = vand.u32 %v4942, 4294901760
    %4968 = vmatpush1.msra.mxu0 %v4967
    %4969 = vmatprep.subr.mxu0 0.0
    %v4970 = vand.u32 %v4943, 4294901760
    %4971 = vmatpush1.msra.mxu0 %v4970
    %4972 = vmatprep.subr.mxu0 0.0
    %v4973 = vand.u32 %v4944, 4294901760
    %4974 = vmatpush1.msra.mxu0 %v4973
    %4975 = vmatprep.subr.mxu0 0.0
    %v4976 = vand.u32 %v4945, 4294901760
    %4977 = vmatpush1.msra.mxu0 %v4976
    %4978 = vmatprep.subr.mxu0 0.0
    %v4979 = vand.u32 %v4946, 4294901760
    %4980 = vmatpush1.msra.mxu0 %v4979
    %4981 = vmatprep.subr.mxu0 0.0
    %v4982 = vand.u32 %v4947, 4294901760
    %4983 = vmatpush1.msra.mxu0 %v4982
    %4984 = vmatprep.subr.mxu0 0.0
    %v4985 = vand.u32 %v4948, 4294901760
    %4986 = vmatpush1.msra.mxu0 %v4985
    %4987 = vmatprep.subr.mxu0 0.0
    %v4988 = vand.u32 %v4949, 4294901760
    %4989 = vmatpush1.msra.mxu0 %v4988
    %4990 = vmatprep.subr.mxu0 0.0
    %v4991 = vand.u32 %v4950, 4294901760
    %4992 = vmatpush1.msra.mxu0 %v4991
    %4993 = vmatprep.subr.mxu0 0.0
    %v4994 = vand.u32 %v4951, 4294901760
    %4995 = vmatpush1.msra.mxu0 %v4994
    %4996 = vmatprep.subr.mxu0 0.0
    %v4997 = vand.u32 %v4952, 4294901760
    %4998 = vmatpush1.msra.mxu0 %v4997
    %4999 = vmatprep.subr.mxu0 0.0
    %v5000 = vand.u32 %v4953, 4294901760
    %5001 = vmatpush1.msra.mxu0 %v5000
    %5002 = vmatprep.subr.mxu0 0.0
    %5003 = vmatpush1.msra.mxu0 0.0
    %5004 = vmatprep.subr.mxu0 0.0
    %5005 = vmatpush1.msra.mxu0 0.0
    %5006 = vmatprep.subr.mxu0 0.0
    %5007 = vmatpush1.msra.mxu0 0.0
    %5008 = vmatprep.subr.mxu0 0.0
    %5009 = vmatpush1.msra.mxu0 0.0
    %5010 = vmatprep.subr.mxu0 0.0
    %5011 = vmatpush1.msra.mxu0 0.0
    %5012 = vmatprep.subr.mxu0 0.0
    %5013 = vmatpush1.msra.mxu0 0.0
    %5014 = vmatprep.subr.mxu0 0.0
    %5015 = vmatpush1.msra.mxu0 0.0
    %5016 = vmatprep.subr.mxu0 0.0
    %5017 = vmatpush1.msra.mxu0 0.0
    %5018 = vmatprep.subr.mxu0 0.0
    %5019 = vmatpush1.msra.mxu0 0.0
    %5020 = vmatprep.subr.mxu0 0.0
    %5021 = vmatpush1.msra.mxu0 0.0
    %5022 = vmatprep.subr.mxu0 0.0
    %5023 = vmatpush1.msra.mxu0 0.0
    %5024 = vmatprep.subr.mxu0 0.0
    %5025 = vmatpush1.msra.mxu0 0.0
    %5026 = vmatprep.subr.mxu0 0.0
    %5027 = vmatpush1.msra.mxu0 0.0
    %5028 = vmatprep.subr.mxu0 0.0
    %5029 = vmatpush1.msra.mxu0 0.0
    %5030 = vmatprep.subr.mxu0 0.0
    %5031 = vmatpush1.msra.mxu0 0.0
    %5032 = vmatprep.subr.mxu0 0.0
    %5033 = vmatpush1.msra.mxu0 0.0
    %5034 = vmatprep.mubr.f32.mxu0 0.0
    %v5035 = vand.u32 %v4924, 4294901760
    %v5036 = vsub.f32 %v4924, %v5035
    %v5037 = vand.u32 %v5036, 4294901760
    %v5038 = vsub.f32 %v5036, %v5037
    %v5039 = vand.u32 %v5038, 4294901760
    %5040 = vmatmul.mubr.f32.gmra.mrb[0].mxu0 %v5039
    %v5041 = vpop.f32.mrb[0].mxu0
    %v5042 = vadd.f32 0.0, %v5041
    %v5043 = vpop.f32.mrb[0].mxu0
    %5044 = vmatprep.mubr.f32.mxu0 0.0
    %v5045 = vand.u32 %v4916, 4294901760
    %v5046 = vsub.f32 %v4916, %v5045
    %v5047 = vand.u32 %v5046, 4294901760
    %v5048 = vsub.f32 %v5046, %v5047
    %v5049 = vand.u32 %v5048, 4294901760
    %5050 = vmatmul.mubr.f32.gmra.mrb[0].mxu0 %v5049
    %v5051 = vpop.f32.mrb[0].mxu0
    %v5052 = vadd.f32 0.0, %v5051
    %v5053 = vpop.f32.mrb[0].mxu0
    %5054 = vmatprep.mubr.f32.mxu0 0.0
    %v5055 = vand.u32 %v4925, 4294901760
    %v5056 = vsub.f32 %v4925, %v5055
    %v5057 = vand.u32 %v5056, 4294901760
    %v5058 = vsub.f32 %v5056, %v5057
    %v5059 = vand.u32 %v5058, 4294901760
    %5060 = vmatmul.mubr.f32.gmra.mrb[0].mxu0 %v5059
    %v5061 = vpop.f32.mrb[0].mxu0
    %v5062 = vadd.f32 0.0, %v5061
    %v5063 = vpop.f32.mrb[0].mxu0
    %5064 = vmatprep.mubr.f32.mxu0 0.0
    %v5065 = vand.u32 %v4919, 4294901760
    %v5066 = vsub.f32 %v4919, %v5065
    %v5067 = vand.u32 %v5066, 4294901760
    %v5068 = vsub.f32 %v5066, %v5067
    %v5069 = vand.u32 %v5068, 4294901760
    %5070 = vmatmul.mubr.f32.gmra.mrb[0].mxu0 %v5069
    %v5071 = vpop.f32.mrb[0].mxu0
    %v5072 = vadd.f32 0.0, %v5071
    %v5073 = vpop.f32.mrb[0].mxu0
    %5074 = vdwg.mxu0
    %5075 = vmatprep.subr.mxu0 0.0
    %v5076 = vand.u32 %v4938, 4294901760
    %v5077 = vsub.f32 %v4938, %v5076
    %v5078 = vand.u32 %v5077, 4294901760
    %v5079 = vsub.f32 %v5077, %v5078
    %v5080 = vand.u32 %v5079, 4294901760
    %5081 = vmatpush1.msra.mxu0 %v5080
    %5082 = vmatprep.subr.mxu0 0.0
    %v5083 = vand.u32 %v4939, 4294901760
    %v5084 = vsub.f32 %v4939, %v5083
    %v5085 = vand.u32 %v5084, 4294901760
    %v5086 = vsub.f32 %v5084, %v5085
    %v5087 = vand.u32 %v5086, 4294901760
    %5088 = vmatpush1.msra.mxu0 %v5087
    %5089 = vmatprep.subr.mxu0 0.0
    %v5090 = vand.u32 %v4940, 4294901760
    %v5091 = vsub.f32 %v4940, %v5090
    %v5092 = vand.u32 %v5091, 4294901760
    %v5093 = vsub.f32 %v5091, %v5092
    %v5094 = vand.u32 %v5093, 4294901760
    %5095 = vmatpush1.msra.mxu0 %v5094
    %5096 = vmatprep.subr.mxu0 0.0
    %v5097 = vand.u32 %v4941, 4294901760
    %v5098 = vsub.f32 %v4941, %v5097
    %v5099 = vand.u32 %v5098, 4294901760
    %v5100 = vsub.f32 %v5098, %v5099
    %v5101 = vand.u32 %v5100, 4294901760
    %5102 = vmatpush1.msra.mxu0 %v5101
    %5103 = vmatprep.subr.mxu0 0.0
    %v5104 = vand.u32 %v4942, 4294901760
    %v5105 = vsub.f32 %v4942, %v5104
    %v5106 = vand.u32 %v5105, 4294901760
    %v5107 = vsub.f32 %v5105, %v5106
    %v5108 = vand.u32 %v5107, 4294901760
    %5109 = vmatpush1.msra.mxu0 %v5108
    %5110 = vmatprep.subr.mxu0 0.0
    %v5111 = vand.u32 %v4943, 4294901760
    %v5112 = vsub.f32 %v4943, %v5111
    %v5113 = vand.u32 %v5112, 4294901760
    %v5114 = vsub.f32 %v5112, %v5113
    %v5115 = vand.u32 %v5114, 4294901760
    %5116 = vmatpush1.msra.mxu0 %v5115
    %5117 = vmatprep.subr.mxu0 0.0
    %v5118 = vand.u32 %v4944, 4294901760
    %v5119 = vsub.f32 %v4944, %v5118
    %v5120 = vand.u32 %v5119, 4294901760
    %v5121 = vsub.f32 %v5119, %v5120
    %v5122 = vand.u32 %v5121, 4294901760
    %5123 = vmatpush1.msra.mxu0 %v5122
    %5124 = vmatprep.subr.mxu0 0.0
    %v5125 = vand.u32 %v4945, 4294901760
    %v5126 = vsub.f32 %v4945, %v5125
    %v5127 = vand.u32 %v5126, 4294901760
    %v5128 = vsub.f32 %v5126, %v5127
    %v5129 = vand.u32 %v5128, 4294901760
    %5130 = vmatpush1.msra.mxu0 %v5129
    %5131 = vmatprep.subr.mxu0 0.0
    %v5132 = vand.u32 %v4946, 4294901760
    %v5133 = vsub.f32 %v4946, %v5132
    %v5134 = vand.u32 %v5133, 4294901760
    %v5135 = vsub.f32 %v5133, %v5134
    %v5136 = vand.u32 %v5135, 4294901760
    %5137 = vmatpush1.msra.mxu0 %v5136
    %5138 = vmatprep.subr.mxu0 0.0
    %v5139 = vand.u32 %v4947, 4294901760
    %v5140 = vsub.f32 %v4947, %v5139
    %v5141 = vand.u32 %v5140, 4294901760
    %v5142 = vsub.f32 %v5140, %v5141
    %v5143 = vand.u32 %v5142, 4294901760
    %5144 = vmatpush1.msra.mxu0 %v5143
    %5145 = vmatprep.subr.mxu0 0.0
    %v5146 = vand.u32 %v4948, 4294901760
    %v5147 = vsub.f32 %v4948, %v5146
    %v5148 = vand.u32 %v5147, 4294901760
    %v5149 = vsub.f32 %v5147, %v5148
    %v5150 = vand.u32 %v5149, 4294901760
    %5151 = vmatpush1.msra.mxu0 %v5150
    %5152 = vmatprep.subr.mxu0 0.0
    %v5153 = vand.u32 %v4949, 4294901760
    %v5154 = vsub.f32 %v4949, %v5153
    %v5155 = vand.u32 %v5154, 4294901760
    %v5156 = vsub.f32 %v5154, %v5155
    %v5157 = vand.u32 %v5156, 4294901760
    %5158 = vmatpush1.msra.mxu0 %v5157
    %5159 = vmatprep.subr.mxu0 0.0
    %v5160 = vand.u32 %v4950, 4294901760
    %v5161 = vsub.f32 %v4950, %v5160
    %v5162 = vand.u32 %v5161, 4294901760
    %v5163 = vsub.f32 %v5161, %v5162
    %v5164 = vand.u32 %v5163, 4294901760
    %5165 = vmatpush1.msra.mxu0 %v5164
    %5166 = vmatprep.subr.mxu0 0.0
    %v5167 = vand.u32 %v4951, 4294901760
    %v5168 = vsub.f32 %v4951, %v5167
    %v5169 = vand.u32 %v5168, 4294901760
    %v5170 = vsub.f32 %v5168, %v5169
    %v5171 = vand.u32 %v5170, 4294901760
    %5172 = vmatpush1.msra.mxu0 %v5171
    %5173 = vmatprep.subr.mxu0 0.0
    %v5174 = vand.u32 %v4952, 4294901760
    %v5175 = vsub.f32 %v4952, %v5174
    %v5176 = vand.u32 %v5175, 4294901760
    %v5177 = vsub.f32 %v5175, %v5176
    %v5178 = vand.u32 %v5177, 4294901760
    %5179 = vmatpush1.msra.mxu0 %v5178
    %5180 = vmatprep.subr.mxu0 0.0
    %v5181 = vand.u32 %v4953, 4294901760
    %v5182 = vsub.f32 %v4953, %v5181
    %v5183 = vand.u32 %v5182, 4294901760
    %v5184 = vsub.f32 %v5182, %v5183
    %v5185 = vand.u32 %v5184, 4294901760
    %5186 = vmatpush1.msra.mxu0 %v5185
    %5187 = vmatprep.subr.mxu0 0.0
    %5188 = vmatpush1.msra.mxu0 0.0
    %5189 = vmatprep.subr.mxu0 0.0
    %5190 = vmatpush1.msra.mxu0 0.0
    %5191 = vmatprep.subr.mxu0 0.0
    %5192 = vmatpush1.msra.mxu0 0.0
    %5193 = vmatprep.subr.mxu0 0.0
    %5194 = vmatpush1.msra.mxu0 0.0
    %5195 = vmatprep.subr.mxu0 0.0
    %5196 = vmatpush1.msra.mxu0 0.0
    %5197 = vmatprep.subr.mxu0 0.0
    %5198 = vmatpush1.msra.mxu0 0.0
    %5199 = vmatprep.subr.mxu0 0.0
    %5200 = vmatpush1.msra.mxu0 0.0
    %5201 = vmatprep.subr.mxu0 0.0
    %5202 = vmatpush1.msra.mxu0 0.0
    %5203 = vmatprep.subr.mxu0 0.0
    %5204 = vmatpush1.msra.mxu0 0.0
    %5205 = vmatprep.subr.mxu0 0.0
    %5206 = vmatpush1.msra.mxu0 0.0
    %5207 = vmatprep.subr.mxu0 0.0
    %5208 = vmatpush1.msra.mxu0 0.0
    %5209 = vmatprep.subr.mxu0 0.0
    %5210 = vmatpush1.msra.mxu0 0.0
    %5211 = vmatprep.subr.mxu0 0.0
    %5212 = vmatpush1.msra.mxu0 0.0
    %5213 = vmatprep.subr.mxu0 0.0
    %5214 = vmatpush1.msra.mxu0 0.0
    %5215 = vmatprep.subr.mxu0 0.0
    %5216 = vmatpush1.msra.mxu0 0.0
    %5217 = vmatprep.subr.mxu0 0.0
    %5218 = vmatpush1.msra.mxu0 0.0
    %5219 = vmatprep.mubr.f32.mxu0 0.0
    %v5220 = vand.u32 %v4924, 4294901760
    %5221 = vmatmul.mubr.f32.gmra.mrb[0].mxu0 %v5220
    %v5222 = vpop.f32.mrb[0].mxu0
    %v5223 = vadd.f32 %v5042, %v5222
    %v5224 = vpop.f32.mrb[0].mxu0
    %5225 = vmatprep.mubr.f32.mxu0 0.0
    %v5226 = vand.u32 %v4916, 4294901760
    %5227 = vmatmul.mubr.f32.gmra.mrb[0].mxu0 %v5226
    %v5228 = vpop.f32.mrb[0].mxu0
    %v5229 = vadd.f32 %v5052, %v5228
    %v5230 = vpop.f32.mrb[0].mxu0
    %5231 = vmatprep.mubr.f32.mxu0 0.0
    %v5232 = vand.u32 %v4925, 4294901760
    %5233 = vmatmul.mubr.f32.gmra.mrb[0].mxu0 %v5232
    %v5234 = vpop.f32.mrb[0].mxu0
    %v5235 = vadd.f32 %v5062, %v5234
    %v5236 = vpop.f32.mrb[0].mxu0
    %5237 = vmatprep.mubr.f32.mxu0 0.0
    %v5238 = vand.u32 %v4919, 4294901760
    %5239 = vmatmul.mubr.f32.gmra.mrb[0].mxu0 %v5238
    %v5240 = vpop.f32.mrb[0].mxu0
    %v5241 = vadd.f32 %v5072, %v5240
    %v5242 = vpop.f32.mrb[0].mxu0
    %5243 = vdwg.mxu0
    %5244 = vmatprep.subr.mxu0 0.0
    %v5245 = vand.u32 %v4938, 4294901760
    %v5246 = vsub.f32 %v4938, %v5245
    %5247 = vmatpush1.msra.mxu0 %v5246
    %5248 = vmatprep.subr.mxu0 0.0
    %v5249 = vand.u32 %v4939, 4294901760
    %v5250 = vsub.f32 %v4939, %v5249
    %5251 = vmatpush1.msra.mxu0 %v5250
    %5252 = vmatprep.subr.mxu0 0.0
    %v5253 = vand.u32 %v4940, 4294901760
    %v5254 = vsub.f32 %v4940, %v5253
    %5255 = vmatpush1.msra.mxu0 %v5254
    %5256 = vmatprep.subr.mxu0 0.0
    %v5257 = vand.u32 %v4941, 4294901760
    %v5258 = vsub.f32 %v4941, %v5257
    %5259 = vmatpush1.msra.mxu0 %v5258
    %5260 = vmatprep.subr.mxu0 0.0
    %v5261 = vand.u32 %v4942, 4294901760
    %v5262 = vsub.f32 %v4942, %v5261
    %5263 = vmatpush1.msra.mxu0 %v5262
    %5264 = vmatprep.subr.mxu0 0.0
    %v5265 = vand.u32 %v4943, 4294901760
    %v5266 = vsub.f32 %v4943, %v5265
    %5267 = vmatpush1.msra.mxu0 %v5266
    %5268 = vmatprep.subr.mxu0 0.0
    %v5269 = vand.u32 %v4944, 4294901760
    %v5270 = vsub.f32 %v4944, %v5269
    %5271 = vmatpush1.msra.mxu0 %v5270
    %5272 = vmatprep.subr.mxu0 0.0
    %v5273 = vand.u32 %v4945, 4294901760
    %v5274 = vsub.f32 %v4945, %v5273
    %5275 = vmatpush1.msra.mxu0 %v5274
    %5276 = vmatprep.subr.mxu0 0.0
    %v5277 = vand.u32 %v4946, 4294901760
    %v5278 = vsub.f32 %v4946, %v5277
    %5279 = vmatpush1.msra.mxu0 %v5278
    %5280 = vmatprep.subr.mxu0 0.0
    %v5281 = vand.u32 %v4947, 4294901760
    %v5282 = vsub.f32 %v4947, %v5281
    %5283 = vmatpush1.msra.mxu0 %v5282
    %5284 = vmatprep.subr.mxu0 0.0
    %v5285 = vand.u32 %v4948, 4294901760
    %v5286 = vsub.f32 %v4948, %v5285
    %5287 = vmatpush1.msra.mxu0 %v5286
    %5288 = vmatprep.subr.mxu0 0.0
    %v5289 = vand.u32 %v4949, 4294901760
    %v5290 = vsub.f32 %v4949, %v5289
    %5291 = vmatpush1.msra.mxu0 %v5290
    %5292 = vmatprep.subr.mxu0 0.0
    %v5293 = vand.u32 %v4950, 4294901760
    %v5294 = vsub.f32 %v4950, %v5293
    %5295 = vmatpush1.msra.mxu0 %v5294
    %5296 = vmatprep.subr.mxu0 0.0
    %v5297 = vand.u32 %v4951, 4294901760
    %v5298 = vsub.f32 %v4951, %v5297
    %5299 = vmatpush1.msra.mxu0 %v5298
    %5300 = vmatprep.subr.mxu0 0.0
    %v5301 = vand.u32 %v4952, 4294901760
    %v5302 = vsub.f32 %v4952, %v5301
    %5303 = vmatpush1.msra.mxu0 %v5302
    %5304 = vmatprep.subr.mxu0 0.0
    %v5305 = vand.u32 %v4953, 4294901760
    %v5306 = vsub.f32 %v4953, %v5305
    %5307 = vmatpush1.msra.mxu0 %v5306
    %5308 = vmatprep.subr.mxu0 0.0
    %5309 = vmatpush1.msra.mxu0 0.0
    %5310 = vmatprep.subr.mxu0 0.0
    %5311 = vmatpush1.msra.mxu0 0.0
    %5312 = vmatprep.subr.mxu0 0.0
    %5313 = vmatpush1.msra.mxu0 0.0
    %5314 = vmatprep.subr.mxu0 0.0
    %5315 = vmatpush1.msra.mxu0 0.0
    %5316 = vmatprep.subr.mxu0 0.0
    %5317 = vmatpush1.msra.mxu0 0.0
    %5318 = vmatprep.subr.mxu0 0.0
    %5319 = vmatpush1.msra.mxu0 0.0
    %5320 = vmatprep.subr.mxu0 0.0
    %5321 = vmatpush1.msra.mxu0 0.0
    %5322 = vmatprep.subr.mxu0 0.0
    %5323 = vmatpush1.msra.mxu0 0.0
    %5324 = vmatprep.subr.mxu0 0.0
    %5325 = vmatpush1.msra.mxu0 0.0
    %5326 = vmatprep.subr.mxu0 0.0
    %5327 = vmatpush1.msra.mxu0 0.0
    %5328 = vmatprep.subr.mxu0 0.0
    %5329 = vmatpush1.msra.mxu0 0.0
    %5330 = vmatprep.subr.mxu0 0.0
    %5331 = vmatpush1.msra.mxu0 0.0
    %5332 = vmatprep.subr.mxu0 0.0
    %5333 = vmatpush1.msra.mxu0 0.0
    %5334 = vmatprep.subr.mxu0 0.0
    %5335 = vmatpush1.msra.mxu0 0.0
    %5336 = vmatprep.subr.mxu0 0.0
    %5337 = vmatpush1.msra.mxu0 0.0
    %5338 = vmatprep.subr.mxu0 0.0
    %5339 = vmatpush1.msra.mxu0 0.0
    %5340 = vmatprep.mubr.f32.mxu0 0.0
    %v5341 = vand.u32 %v4924, 4294901760
    %v5342 = vsub.f32 %v4924, %v5341
    %5343 = vmatmul.mubr.f32.gmra.mrb[0].mxu0 %v5342
    %v5344 = vpop.f32.mrb[0].mxu0
    %v5345 = vadd.f32 %v5223, %v5344
    %v5346 = vpop.f32.mrb[0].mxu0
    %5347 = vmatprep.mubr.f32.mxu0 0.0
    %v5348 = vand.u32 %v4916, 4294901760
    %v5349 = vsub.f32 %v4916, %v5348
    %5350 = vmatmul.mubr.f32.gmra.mrb[0].mxu0 %v5349
    %v5351 = vpop.f32.mrb[0].mxu0
    %v5352 = vadd.f32 %v5229, %v5351
    %v5353 = vpop.f32.mrb[0].mxu0
    %5354 = vmatprep.mubr.f32.mxu0 0.0
    %v5355 = vand.u32 %v4925, 4294901760
    %v5356 = vsub.f32 %v4925, %v5355
    %5357 = vmatmul.mubr.f32.gmra.mrb[0].mxu0 %v5356
    %v5358 = vpop.f32.mrb[0].mxu0
    %v5359 = vadd.f32 %v5235, %v5358
    %v5360 = vpop.f32.mrb[0].mxu0
    %5361 = vmatprep.mubr.f32.mxu0 0.0
    %v5362 = vand.u32 %v4919, 4294901760
    %v5363 = vsub.f32 %v4919, %v5362
    %5364 = vmatmul.mubr.f32.gmra.mrb[0].mxu0 %v5363
    %v5365 = vpop.f32.mrb[0].mxu0
    %v5366 = vadd.f32 %v5241, %v5365
    %v5367 = vpop.f32.mrb[0].mxu0
    %5368 = vdwg.mxu0
    %5369 = vmatprep.subr.mxu0 0.0
    %v5370 = vand.u32 %v4938, 4294901760
    %5371 = vmatpush1.msra.mxu0 %v5370
    %5372 = vmatprep.subr.mxu0 0.0
    %v5373 = vand.u32 %v4939, 4294901760
    %5374 = vmatpush1.msra.mxu0 %v5373
    %5375 = vmatprep.subr.mxu0 0.0
    %v5376 = vand.u32 %v4940, 4294901760
    %5377 = vmatpush1.msra.mxu0 %v5376
    %5378 = vmatprep.subr.mxu0 0.0
    %v5379 = vand.u32 %v4941, 4294901760
    %5380 = vmatpush1.msra.mxu0 %v5379
    %5381 = vmatprep.subr.mxu0 0.0
    %v5382 = vand.u32 %v4942, 4294901760
    %5383 = vmatpush1.msra.mxu0 %v5382
    %5384 = vmatprep.subr.mxu0 0.0
    %v5385 = vand.u32 %v4943, 4294901760
    %5386 = vmatpush1.msra.mxu0 %v5385
    %5387 = vmatprep.subr.mxu0 0.0
    %v5388 = vand.u32 %v4944, 4294901760
    %5389 = vmatpush1.msra.mxu0 %v5388
    %5390 = vmatprep.subr.mxu0 0.0
    %v5391 = vand.u32 %v4945, 4294901760
    %5392 = vmatpush1.msra.mxu0 %v5391
    %5393 = vmatprep.subr.mxu0 0.0
    %v5394 = vand.u32 %v4946, 4294901760
    %5395 = vmatpush1.msra.mxu0 %v5394
    %5396 = vmatprep.subr.mxu0 0.0
    %v5397 = vand.u32 %v4947, 4294901760
    %5398 = vmatpush1.msra.mxu0 %v5397
    %5399 = vmatprep.subr.mxu0 0.0
    %v5400 = vand.u32 %v4948, 4294901760
    %5401 = vmatpush1.msra.mxu0 %v5400
    %5402 = vmatprep.subr.mxu0 0.0
    %v5403 = vand.u32 %v4949, 4294901760
    %5404 = vmatpush1.msra.mxu0 %v5403
    %5405 = vmatprep.subr.mxu0 0.0
    %v5406 = vand.u32 %v4950, 4294901760
    %5407 = vmatpush1.msra.mxu0 %v5406
    %5408 = vmatprep.subr.mxu0 0.0
    %v5409 = vand.u32 %v4951, 4294901760
    %5410 = vmatpush1.msra.mxu0 %v5409
    %5411 = vmatprep.subr.mxu0 0.0
    %v5412 = vand.u32 %v4952, 4294901760
    %5413 = vmatpush1.msra.mxu0 %v5412
    %5414 = vmatprep.subr.mxu0 0.0
    %v5415 = vand.u32 %v4953, 4294901760
    %5416 = vmatpush1.msra.mxu0 %v5415
    %5417 = vmatprep.subr.mxu0 0.0
    %5418 = vmatpush1.msra.mxu0 0.0
    %5419 = vmatprep.subr.mxu0 0.0
    %5420 = vmatpush1.msra.mxu0 0.0
    %5421 = vmatprep.subr.mxu0 0.0
    %5422 = vmatpush1.msra.mxu0 0.0
    %5423 = vmatprep.subr.mxu0 0.0
    %5424 = vmatpush1.msra.mxu0 0.0
    %5425 = vmatprep.subr.mxu0 0.0
    %5426 = vmatpush1.msra.mxu0 0.0
    %5427 = vmatprep.subr.mxu0 0.0
    %5428 = vmatpush1.msra.mxu0 0.0
    %5429 = vmatprep.subr.mxu0 0.0
    %5430 = vmatpush1.msra.mxu0 0.0
    %5431 = vmatprep.subr.mxu0 0.0
    %5432 = vmatpush1.msra.mxu0 0.0
    %5433 = vmatprep.subr.mxu0 0.0
    %5434 = vmatpush1.msra.mxu0 0.0
    %5435 = vmatprep.subr.mxu0 0.0
    %5436 = vmatpush1.msra.mxu0 0.0
    %5437 = vmatprep.subr.mxu0 0.0
    %5438 = vmatpush1.msra.mxu0 0.0
    %5439 = vmatprep.subr.mxu0 0.0
    %5440 = vmatpush1.msra.mxu0 0.0
    %5441 = vmatprep.subr.mxu0 0.0
    %5442 = vmatpush1.msra.mxu0 0.0
    %5443 = vmatprep.subr.mxu0 0.0
    %5444 = vmatpush1.msra.mxu0 0.0
    %5445 = vmatprep.subr.mxu0 0.0
    %5446 = vmatpush1.msra.mxu0 0.0
    %5447 = vmatprep.subr.mxu0 0.0
    %5448 = vmatpush1.msra.mxu0 0.0
    %5449 = vmatprep.mubr.f32.mxu0 0.0
    %v5450 = vand.u32 %v4924, 4294901760
    %v5451 = vsub.f32 %v4924, %v5450
    %v5452 = vand.u32 %v5451, 4294901760
    %5453 = vmatmul.mubr.f32.gmra.mrb[0].mxu0 %v5452
    %v5454 = vpop.f32.mrb[0].mxu0
    %v5455 = vadd.f32 %v5345, %v5454
    %v5456 = vpop.f32.mrb[0].mxu0
    %5457 = vmatprep.mubr.f32.mxu0 0.0
    %v5458 = vand.u32 %v4916, 4294901760
    %v5459 = vsub.f32 %v4916, %v5458
    %v5460 = vand.u32 %v5459, 4294901760
    %5461 = vmatmul.mubr.f32.gmra.mrb[0].mxu0 %v5460
    %v5462 = vpop.f32.mrb[0].mxu0
    %v5463 = vadd.f32 %v5352, %v5462
    %v5464 = vpop.f32.mrb[0].mxu0
    %5465 = vmatprep.mubr.f32.mxu0 0.0
    %v5466 = vand.u32 %v4925, 4294901760
    %v5467 = vsub.f32 %v4925, %v5466
    %v5468 = vand.u32 %v5467, 4294901760
    %5469 = vmatmul.mubr.f32.gmra.mrb[0].mxu0 %v5468
    %v5470 = vpop.f32.mrb[0].mxu0
    %v5471 = vadd.f32 %v5359, %v5470
    %v5472 = vpop.f32.mrb[0].mxu0
    %5473 = vmatprep.mubr.f32.mxu0 0.0
    %v5474 = vand.u32 %v4919, 4294901760
    %v5475 = vsub.f32 %v4919, %v5474
    %v5476 = vand.u32 %v5475, 4294901760
    %5477 = vmatmul.mubr.f32.gmra.mrb[0].mxu0 %v5476
    %v5478 = vpop.f32.mrb[0].mxu0
    %v5479 = vadd.f32 %v5366, %v5478
    %v5480 = vpop.f32.mrb[0].mxu0
    %5481 = vdwg.mxu0
    %5482 = vmatprep.subr.mxu0 0.0
    %v5483 = vand.u32 %v4938, 4294901760
    %v5484 = vsub.f32 %v4938, %v5483
    %v5485 = vand.u32 %v5484, 4294901760
    %5486 = vmatpush1.msra.mxu0 %v5485
    %5487 = vmatprep.subr.mxu0 0.0
    %v5488 = vand.u32 %v4939, 4294901760
    %v5489 = vsub.f32 %v4939, %v5488
    %v5490 = vand.u32 %v5489, 4294901760
    %5491 = vmatpush1.msra.mxu0 %v5490
    %5492 = vmatprep.subr.mxu0 0.0
    %v5493 = vand.u32 %v4940, 4294901760
    %v5494 = vsub.f32 %v4940, %v5493
    %v5495 = vand.u32 %v5494, 4294901760
    %5496 = vmatpush1.msra.mxu0 %v5495
    %5497 = vmatprep.subr.mxu0 0.0
    %v5498 = vand.u32 %v4941, 4294901760
    %v5499 = vsub.f32 %v4941, %v5498
    %v5500 = vand.u32 %v5499, 4294901760
    %5501 = vmatpush1.msra.mxu0 %v5500
    %5502 = vmatprep.subr.mxu0 0.0
    %v5503 = vand.u32 %v4942, 4294901760
    %v5504 = vsub.f32 %v4942, %v5503
    %v5505 = vand.u32 %v5504, 4294901760
    %5506 = vmatpush1.msra.mxu0 %v5505
    %5507 = vmatprep.subr.mxu0 0.0
    %v5508 = vand.u32 %v4943, 4294901760
    %v5509 = vsub.f32 %v4943, %v5508
    %v5510 = vand.u32 %v5509, 4294901760
    %5511 = vmatpush1.msra.mxu0 %v5510
    %5512 = vmatprep.subr.mxu0 0.0
    %v5513 = vand.u32 %v4944, 4294901760
    %v5514 = vsub.f32 %v4944, %v5513
    %v5515 = vand.u32 %v5514, 4294901760
    %5516 = vmatpush1.msra.mxu0 %v5515
    %5517 = vmatprep.subr.mxu0 0.0
    %v5518 = vand.u32 %v4945, 4294901760
    %v5519 = vsub.f32 %v4945, %v5518
    %v5520 = vand.u32 %v5519, 4294901760
    %5521 = vmatpush1.msra.mxu0 %v5520
    %5522 = vmatprep.subr.mxu0 0.0
    %v5523 = vand.u32 %v4946, 4294901760
    %v5524 = vsub.f32 %v4946, %v5523
    %v5525 = vand.u32 %v5524, 4294901760
    %5526 = vmatpush1.msra.mxu0 %v5525
    %5527 = vmatprep.subr.mxu0 0.0
    %v5528 = vand.u32 %v4947, 4294901760
    %v5529 = vsub.f32 %v4947, %v5528
    %v5530 = vand.u32 %v5529, 4294901760
    %5531 = vmatpush1.msra.mxu0 %v5530
    %5532 = vmatprep.subr.mxu0 0.0
    %v5533 = vand.u32 %v4948, 4294901760
    %v5534 = vsub.f32 %v4948, %v5533
    %v5535 = vand.u32 %v5534, 4294901760
    %5536 = vmatpush1.msra.mxu0 %v5535
    %5537 = vmatprep.subr.mxu0 0.0
    %v5538 = vand.u32 %v4949, 4294901760
    %v5539 = vsub.f32 %v4949, %v5538
    %v5540 = vand.u32 %v5539, 4294901760
    %5541 = vmatpush1.msra.mxu0 %v5540
    %5542 = vmatprep.subr.mxu0 0.0
    %v5543 = vand.u32 %v4950, 4294901760
    %v5544 = vsub.f32 %v4950, %v5543
    %v5545 = vand.u32 %v5544, 4294901760
    %5546 = vmatpush1.msra.mxu0 %v5545
    %5547 = vmatprep.subr.mxu0 0.0
    %v5548 = vand.u32 %v4951, 4294901760
    %v5549 = vsub.f32 %v4951, %v5548
    %v5550 = vand.u32 %v5549, 4294901760
    %5551 = vmatpush1.msra.mxu0 %v5550
    %5552 = vmatprep.subr.mxu0 0.0
    %v5553 = vand.u32 %v4952, 4294901760
    %v5554 = vsub.f32 %v4952, %v5553
    %v5555 = vand.u32 %v5554, 4294901760
    %5556 = vmatpush1.msra.mxu0 %v5555
    %5557 = vmatprep.subr.mxu0 0.0
    %v5558 = vand.u32 %v4953, 4294901760
    %v5559 = vsub.f32 %v4953, %v5558
    %v5560 = vand.u32 %v5559, 4294901760
    %5561 = vmatpush1.msra.mxu0 %v5560
    %5562 = vmatprep.subr.mxu0 0.0
    %5563 = vmatpush1.msra.mxu0 0.0
    %5564 = vmatprep.subr.mxu0 0.0
    %5565 = vmatpush1.msra.mxu0 0.0
    %5566 = vmatprep.subr.mxu0 0.0
    %5567 = vmatpush1.msra.mxu0 0.0
    %5568 = vmatprep.subr.mxu0 0.0
    %5569 = vmatpush1.msra.mxu0 0.0
    %5570 = vmatprep.subr.mxu0 0.0
    %5571 = vmatpush1.msra.mxu0 0.0
    %5572 = vmatprep.subr.mxu0 0.0
    %5573 = vmatpush1.msra.mxu0 0.0
    %5574 = vmatprep.subr.mxu0 0.0
    %5575 = vmatpush1.msra.mxu0 0.0
    %5576 = vmatprep.subr.mxu0 0.0
    %5577 = vmatpush1.msra.mxu0 0.0
    %5578 = vmatprep.subr.mxu0 0.0
    %5579 = vmatpush1.msra.mxu0 0.0
    %5580 = vmatprep.subr.mxu0 0.0
    %5581 = vmatpush1.msra.mxu0 0.0
    %5582 = vmatprep.subr.mxu0 0.0
    %5583 = vmatpush1.msra.mxu0 0.0
    %5584 = vmatprep.subr.mxu0 0.0
    %5585 = vmatpush1.msra.mxu0 0.0
    %5586 = vmatprep.subr.mxu0 0.0
    %5587 = vmatpush1.msra.mxu0 0.0
    %5588 = vmatprep.subr.mxu0 0.0
    %5589 = vmatpush1.msra.mxu0 0.0
    %5590 = vmatprep.subr.mxu0 0.0
    %5591 = vmatpush1.msra.mxu0 0.0
    %5592 = vmatprep.subr.mxu0 0.0
    %5593 = vmatpush1.msra.mxu0 0.0
    %5594 = vmatprep.mubr.f32.mxu0 0.0
    %v5595 = vand.u32 %v4924, 4294901760
    %5596 = vmatmul.mubr.f32.gmra.mrb[0].mxu0 %v5595
    %v5597 = vpop.f32.mrb[0].mxu0
    %v5598 = vadd.f32 %v5455, %v5597
    %v5599 = vpop.f32.mrb[0].mxu0
    %5600 = vmatprep.mubr.f32.mxu0 0.0
    %v5601 = vand.u32 %v4916, 4294901760
    %5602 = vmatmul.mubr.f32.gmra.mrb[0].mxu0 %v5601
    %v5603 = vpop.f32.mrb[0].mxu0
    %v5604 = vadd.f32 %v5463, %v5603
    %v5605 = vpop.f32.mrb[0].mxu0
    %5606 = vmatprep.mubr.f32.mxu0 0.0
    %v5607 = vand.u32 %v4925, 4294901760
    %5608 = vmatmul.mubr.f32.gmra.mrb[0].mxu0 %v5607
    %v5609 = vpop.f32.mrb[0].mxu0
    %v5610 = vadd.f32 %v5471, %v5609
    %v5611 = vpop.f32.mrb[0].mxu0
    %5612 = vmatprep.mubr.f32.mxu0 0.0
    %v5613 = vand.u32 %v4919, 4294901760
    %5614 = vmatmul.mubr.f32.gmra.mrb[0].mxu0 %v5613
    %v5615 = vpop.f32.mrb[0].mxu0
    %v5616 = vadd.f32 %v5479, %v5615
    %v5617 = vpop.f32.mrb[0].mxu0
    %5618 = vdwg.mxu0
    %5619 = vmatprep.subr.mxu0 0.0
    %v5620 = vand.u32 %v4938, 4294901760
    %5621 = vmatpush1.msra.mxu0 %v5620
    %5622 = vmatprep.subr.mxu0 0.0
    %v5623 = vand.u32 %v4939, 4294901760
    %5624 = vmatpush1.msra.mxu0 %v5623
    %5625 = vmatprep.subr.mxu0 0.0
    %v5626 = vand.u32 %v4940, 4294901760
    %5627 = vmatpush1.msra.mxu0 %v5626
    %5628 = vmatprep.subr.mxu0 0.0
    %v5629 = vand.u32 %v4941, 4294901760
    %5630 = vmatpush1.msra.mxu0 %v5629
    %5631 = vmatprep.subr.mxu0 0.0
    %v5632 = vand.u32 %v4942, 4294901760
    %5633 = vmatpush1.msra.mxu0 %v5632
    %5634 = vmatprep.subr.mxu0 0.0
    %v5635 = vand.u32 %v4943, 4294901760
    %5636 = vmatpush1.msra.mxu0 %v5635
    %5637 = vmatprep.subr.mxu0 0.0
    %v5638 = vand.u32 %v4944, 4294901760
    %5639 = vmatpush1.msra.mxu0 %v5638
    %5640 = vmatprep.subr.mxu0 0.0
    %v5641 = vand.u32 %v4945, 4294901760
    %5642 = vmatpush1.msra.mxu0 %v5641
    %5643 = vmatprep.subr.mxu0 0.0
    %v5644 = vand.u32 %v4946, 4294901760
    %5645 = vmatpush1.msra.mxu0 %v5644
    %5646 = vmatprep.subr.mxu0 0.0
    %v5647 = vand.u32 %v4947, 4294901760
    %5648 = vmatpush1.msra.mxu0 %v5647
    %5649 = vmatprep.subr.mxu0 0.0
    %v5650 = vand.u32 %v4948, 4294901760
    %5651 = vmatpush1.msra.mxu0 %v5650
    %5652 = vmatprep.subr.mxu0 0.0
    %v5653 = vand.u32 %v4949, 4294901760
    %5654 = vmatpush1.msra.mxu0 %v5653
    %5655 = vmatprep.subr.mxu0 0.0
    %v5656 = vand.u32 %v4950, 4294901760
    %5657 = vmatpush1.msra.mxu0 %v5656
    %5658 = vmatprep.subr.mxu0 0.0
    %v5659 = vand.u32 %v4951, 4294901760
    %5660 = vmatpush1.msra.mxu0 %v5659
    %5661 = vmatprep.subr.mxu0 0.0
    %v5662 = vand.u32 %v4952, 4294901760
    %5663 = vmatpush1.msra.mxu0 %v5662
    %5664 = vmatprep.subr.mxu0 0.0
    %v5665 = vand.u32 %v4953, 4294901760
    %5666 = vmatpush1.msra.mxu0 %v5665
    %5667 = vmatprep.subr.mxu0 0.0
    %5668 = vmatpush1.msra.mxu0 0.0
    %5669 = vmatprep.subr.mxu0 0.0
    %5670 = vmatpush1.msra.mxu0 0.0
    %5671 = vmatprep.subr.mxu0 0.0
    %5672 = vmatpush1.msra.mxu0 0.0
    %5673 = vmatprep.subr.mxu0 0.0
    %5674 = vmatpush1.msra.mxu0 0.0
    %5675 = vmatprep.subr.mxu0 0.0
    %5676 = vmatpush1.msra.mxu0 0.0
    %5677 = vmatprep.subr.mxu0 0.0
    %5678 = vmatpush1.msra.mxu0 0.0
    %5679 = vmatprep.subr.mxu0 0.0
    %5680 = vmatpush1.msra.mxu0 0.0
    %5681 = vmatprep.subr.mxu0 0.0
    %5682 = vmatpush1.msra.mxu0 0.0
    %5683 = vmatprep.subr.mxu0 0.0
    %5684 = vmatpush1.msra.mxu0 0.0
    %5685 = vmatprep.subr.mxu0 0.0
    %5686 = vmatpush1.msra.mxu0 0.0
    %5687 = vmatprep.subr.mxu0 0.0
    %5688 = vmatpush1.msra.mxu0 0.0
    %5689 = vmatprep.subr.mxu0 0.0
    %5690 = vmatpush1.msra.mxu0 0.0
    %5691 = vmatprep.subr.mxu0 0.0
    %5692 = vmatpush1.msra.mxu0 0.0
    %5693 = vmatprep.subr.mxu0 0.0
    %5694 = vmatpush1.msra.mxu0 0.0
    %5695 = vmatprep.subr.mxu0 0.0
    %5696 = vmatpush1.msra.mxu0 0.0
    %5697 = vmatprep.subr.mxu0 0.0
    %5698 = vmatpush1.msra.mxu0 0.0
    %5699 = vmatprep.mubr.f32.mxu0 0.0
    %v5700 = vand.u32 %v4924, 4294901760
    %5701 = vmatmul.mubr.f32.gmra.mrb[0].mxu0 %v5700
    %v5702 = vpop.f32.mrb[0].mxu0
    %v5703 = vadd.f32 %v5598, %v5702
    %v5704 = vpop.f32.mrb[0].mxu0
    %5705 = vmatprep.mubr.f32.mxu0 0.0
    %v5706 = vand.u32 %v4916, 4294901760
    %5707 = vmatmul.mubr.f32.gmra.mrb[0].mxu0 %v5706
    %v5708 = vpop.f32.mrb[0].mxu0
    %v5709 = vadd.f32 %v5604, %v5708
    %v5710 = vpop.f32.mrb[0].mxu0
    %5711 = vmatprep.mubr.f32.mxu0 0.0
    %v5712 = vand.u32 %v4925, 4294901760
    %5713 = vmatmul.mubr.f32.gmra.mrb[0].mxu0 %v5712
    %v5714 = vpop.f32.mrb[0].mxu0
    %v5715 = vadd.f32 %v5610, %v5714
    %v5716 = vpop.f32.mrb[0].mxu0
    %5717 = vmatprep.mubr.f32.mxu0 0.0
    %v5718 = vand.u32 %v4919, 4294901760
    %5719 = vmatmul.mubr.f32.gmra.mrb[0].mxu0 %v5718
    %v5720 = vpop.f32.mrb[0].mxu0
    %v5721 = vadd.f32 %v5616, %v5720
    %v5722 = vpop.f32.mrb[0].mxu0
    %5723 = vdwg.mxu0
    %5724 = vmatprep.subr.mxu0 0.0
    %v5725 = vand.u32 %v4894, 4294901760
    %5726 = vmatpush1.msra.mxu0 %v5725
    %5727 = vmatprep.subr.mxu0 0.0
    %v5728 = vand.u32 %v4895, 4294901760
    %5729 = vmatpush1.msra.mxu0 %v5728
    %5730 = vmatprep.subr.mxu0 0.0
    %v5731 = vand.u32 %v4896, 4294901760
    %5732 = vmatpush1.msra.mxu0 %v5731
    %5733 = vmatprep.subr.mxu0 0.0
    %v5734 = vand.u32 %v4897, 4294901760
    %5735 = vmatpush1.msra.mxu0 %v5734
    %5736 = vmatprep.subr.mxu0 0.0
    %v5737 = vand.u32 %v4898, 4294901760
    %5738 = vmatpush1.msra.mxu0 %v5737
    %5739 = vmatprep.subr.mxu0 0.0
    %v5740 = vand.u32 %v4899, 4294901760
    %5741 = vmatpush1.msra.mxu0 %v5740
    %5742 = vmatprep.subr.mxu0 0.0
    %v5743 = vand.u32 %v4900, 4294901760
    %5744 = vmatpush1.msra.mxu0 %v5743
    %5745 = vmatprep.subr.mxu0 0.0
    %v5746 = vand.u32 %v4901, 4294901760
    %5747 = vmatpush1.msra.mxu0 %v5746
    %5748 = vmatprep.subr.mxu0 0.0
    %v5749 = vand.u32 %v4902, 4294901760
    %5750 = vmatpush1.msra.mxu0 %v5749
    %5751 = vmatprep.subr.mxu0 0.0
    %v5752 = vand.u32 %v4903, 4294901760
    %5753 = vmatpush1.msra.mxu0 %v5752
    %5754 = vmatprep.subr.mxu0 0.0
    %v5755 = vand.u32 %v4904, 4294901760
    %5756 = vmatpush1.msra.mxu0 %v5755
    %5757 = vmatprep.subr.mxu0 0.0
    %v5758 = vand.u32 %v4905, 4294901760
    %5759 = vmatpush1.msra.mxu0 %v5758
    %5760 = vmatprep.subr.mxu0 0.0
    %v5761 = vand.u32 %v4906, 4294901760
    %5762 = vmatpush1.msra.mxu0 %v5761
    %5763 = vmatprep.subr.mxu0 0.0
    %v5764 = vand.u32 %v4907, 4294901760
    %5765 = vmatpush1.msra.mxu0 %v5764
    %5766 = vmatprep.subr.mxu0 0.0
    %v5767 = vand.u32 %v4908, 4294901760
    %5768 = vmatpush1.msra.mxu0 %v5767
    %5769 = vmatprep.subr.mxu0 0.0
    %v5770 = vand.u32 %v4909, 4294901760
    %5771 = vmatpush1.msra.mxu0 %v5770
    %5772 = vmatprep.subr.mxu0 0.0
    %5773 = vmatpush1.msra.mxu0 0.0
    %5774 = vmatprep.subr.mxu0 0.0
    %5775 = vmatpush1.msra.mxu0 0.0
    %5776 = vmatprep.subr.mxu0 0.0
    %5777 = vmatpush1.msra.mxu0 0.0
    %5778 = vmatprep.subr.mxu0 0.0
    %5779 = vmatpush1.msra.mxu0 0.0
    %5780 = vmatprep.subr.mxu0 0.0
    %5781 = vmatpush1.msra.mxu0 0.0
    %5782 = vmatprep.subr.mxu0 0.0
    %5783 = vmatpush1.msra.mxu0 0.0
    %5784 = vmatprep.subr.mxu0 0.0
    %5785 = vmatpush1.msra.mxu0 0.0
    %5786 = vmatprep.subr.mxu0 0.0
    %5787 = vmatpush1.msra.mxu0 0.0
    %5788 = vmatprep.subr.mxu0 0.0
    %5789 = vmatpush1.msra.mxu0 0.0
    %5790 = vmatprep.subr.mxu0 0.0
    %5791 = vmatpush1.msra.mxu0 0.0
    %5792 = vmatprep.subr.mxu0 0.0
    %5793 = vmatpush1.msra.mxu0 0.0
    %5794 = vmatprep.subr.mxu0 0.0
    %5795 = vmatpush1.msra.mxu0 0.0
    %5796 = vmatprep.subr.mxu0 0.0
    %5797 = vmatpush1.msra.mxu0 0.0
    %5798 = vmatprep.subr.mxu0 0.0
    %5799 = vmatpush1.msra.mxu0 0.0
    %5800 = vmatprep.subr.mxu0 0.0
    %5801 = vmatpush1.msra.mxu0 0.0
    %5802 = vmatprep.subr.mxu0 0.0
    %5803 = vmatpush1.msra.mxu0 0.0
    %5804 = vmatprep.mubr.f32.mxu0 0.0
    %v5805 = vand.u32 %v4889, 4294901760
    %v5806 = vsub.f32 %v4889, %v5805
    %v5807 = vand.u32 %v5806, 4294901760
    %v5808 = vsub.f32 %v5806, %v5807
    %v5809 = vand.u32 %v5808, 4294901760
    %5810 = vmatmul.mubr.f32.gmra.mrb[0].mxu0 %v5809
    %v5811 = vpop.f32.mrb[0].mxu0
    %v5812 = vadd.f32 %v5703, %v5811
    %v5813 = vpop.f32.mrb[0].mxu0
    %5814 = vmatprep.mubr.f32.mxu0 0.0
    %v5815 = vand.u32 %v4890, 4294901760
    %v5816 = vsub.f32 %v4890, %v5815
    %v5817 = vand.u32 %v5816, 4294901760
    %v5818 = vsub.f32 %v5816, %v5817
    %v5819 = vand.u32 %v5818, 4294901760
    %5820 = vmatmul.mubr.f32.gmra.mrb[0].mxu0 %v5819
    %v5821 = vpop.f32.mrb[0].mxu0
    %v5822 = vadd.f32 %v5709, %v5821
    %v5823 = vpop.f32.mrb[0].mxu0
    %5824 = vmatprep.mubr.f32.mxu0 0.0
    %v5825 = vand.u32 %v4891, 4294901760
    %v5826 = vsub.f32 %v4891, %v5825
    %v5827 = vand.u32 %v5826, 4294901760
    %v5828 = vsub.f32 %v5826, %v5827
    %v5829 = vand.u32 %v5828, 4294901760
    %5830 = vmatmul.mubr.f32.gmra.mrb[0].mxu0 %v5829
    %v5831 = vpop.f32.mrb[0].mxu0
    %v5832 = vadd.f32 %v5715, %v5831
    %v5833 = vpop.f32.mrb[0].mxu0
    %5834 = vmatprep.mubr.f32.mxu0 0.0
    %v5835 = vand.u32 %v4892, 4294901760
    %v5836 = vsub.f32 %v4892, %v5835
    %v5837 = vand.u32 %v5836, 4294901760
    %v5838 = vsub.f32 %v5836, %v5837
    %v5839 = vand.u32 %v5838, 4294901760
    %5840 = vmatmul.mubr.f32.gmra.mrb[0].mxu0 %v5839
    %v5841 = vpop.f32.mrb[0].mxu0
    %v5842 = vadd.f32 %v5721, %v5841
    %v5843 = vpop.f32.mrb[0].mxu0
    %5844 = vdwg.mxu0
    %5845 = vmatprep.subr.mxu0 0.0
    %v5846 = vand.u32 %v4894, 4294901760
    %v5847 = vsub.f32 %v4894, %v5846
    %v5848 = vand.u32 %v5847, 4294901760
    %v5849 = vsub.f32 %v5847, %v5848
    %v5850 = vand.u32 %v5849, 4294901760
    %5851 = vmatpush1.msra.mxu0 %v5850
    %5852 = vmatprep.subr.mxu0 0.0
    %v5853 = vand.u32 %v4895, 4294901760
    %v5854 = vsub.f32 %v4895, %v5853
    %v5855 = vand.u32 %v5854, 4294901760
    %v5856 = vsub.f32 %v5854, %v5855
    %v5857 = vand.u32 %v5856, 4294901760
    %5858 = vmatpush1.msra.mxu0 %v5857
    %5859 = vmatprep.subr.mxu0 0.0
    %v5860 = vand.u32 %v4896, 4294901760
    %v5861 = vsub.f32 %v4896, %v5860
    %v5862 = vand.u32 %v5861, 4294901760
    %v5863 = vsub.f32 %v5861, %v5862
    %v5864 = vand.u32 %v5863, 4294901760
    %5865 = vmatpush1.msra.mxu0 %v5864
    %5866 = vmatprep.subr.mxu0 0.0
    %v5867 = vand.u32 %v4897, 4294901760
    %v5868 = vsub.f32 %v4897, %v5867
    %v5869 = vand.u32 %v5868, 4294901760
    %v5870 = vsub.f32 %v5868, %v5869
    %v5871 = vand.u32 %v5870, 4294901760
    %5872 = vmatpush1.msra.mxu0 %v5871
    %5873 = vmatprep.subr.mxu0 0.0
    %v5874 = vand.u32 %v4898, 4294901760
    %v5875 = vsub.f32 %v4898, %v5874
    %v5876 = vand.u32 %v5875, 4294901760
    %v5877 = vsub.f32 %v5875, %v5876
    %v5878 = vand.u32 %v5877, 4294901760
    %5879 = vmatpush1.msra.mxu0 %v5878
    %5880 = vmatprep.subr.mxu0 0.0
    %v5881 = vand.u32 %v4899, 4294901760
    %v5882 = vsub.f32 %v4899, %v5881
    %v5883 = vand.u32 %v5882, 4294901760
    %v5884 = vsub.f32 %v5882, %v5883
    %v5885 = vand.u32 %v5884, 4294901760
    %5886 = vmatpush1.msra.mxu0 %v5885
    %5887 = vmatprep.subr.mxu0 0.0
    %v5888 = vand.u32 %v4900, 4294901760
    %v5889 = vsub.f32 %v4900, %v5888
    %v5890 = vand.u32 %v5889, 4294901760
    %v5891 = vsub.f32 %v5889, %v5890
    %v5892 = vand.u32 %v5891, 4294901760
    %5893 = vmatpush1.msra.mxu0 %v5892
    %5894 = vmatprep.subr.mxu0 0.0
    %v5895 = vand.u32 %v4901, 4294901760
    %v5896 = vsub.f32 %v4901, %v5895
    %v5897 = vand.u32 %v5896, 4294901760
    %v5898 = vsub.f32 %v5896, %v5897
    %v5899 = vand.u32 %v5898, 4294901760
    %5900 = vmatpush1.msra.mxu0 %v5899
    %5901 = vmatprep.subr.mxu0 0.0
    %v5902 = vand.u32 %v4902, 4294901760
    %v5903 = vsub.f32 %v4902, %v5902
    %v5904 = vand.u32 %v5903, 4294901760
    %v5905 = vsub.f32 %v5903, %v5904
    %v5906 = vand.u32 %v5905, 4294901760
    %5907 = vmatpush1.msra.mxu0 %v5906
    %5908 = vmatprep.subr.mxu0 0.0
    %v5909 = vand.u32 %v4903, 4294901760
    %v5910 = vsub.f32 %v4903, %v5909
    %v5911 = vand.u32 %v5910, 4294901760
    %v5912 = vsub.f32 %v5910, %v5911
    %v5913 = vand.u32 %v5912, 4294901760
    %5914 = vmatpush1.msra.mxu0 %v5913
    %5915 = vmatprep.subr.mxu0 0.0
    %v5916 = vand.u32 %v4904, 4294901760
    %v5917 = vsub.f32 %v4904, %v5916
    %v5918 = vand.u32 %v5917, 4294901760
    %v5919 = vsub.f32 %v5917, %v5918
    %v5920 = vand.u32 %v5919, 4294901760
    %5921 = vmatpush1.msra.mxu0 %v5920
    %5922 = vmatprep.subr.mxu0 0.0
    %v5923 = vand.u32 %v4905, 4294901760
    %v5924 = vsub.f32 %v4905, %v5923
    %v5925 = vand.u32 %v5924, 4294901760
    %v5926 = vsub.f32 %v5924, %v5925
    %v5927 = vand.u32 %v5926, 4294901760
    %5928 = vmatpush1.msra.mxu0 %v5927
    %5929 = vmatprep.subr.mxu0 0.0
    %v5930 = vand.u32 %v4906, 4294901760
    %v5931 = vsub.f32 %v4906, %v5930
    %v5932 = vand.u32 %v5931, 4294901760
    %v5933 = vsub.f32 %v5931, %v5932
    %v5934 = vand.u32 %v5933, 4294901760
    %5935 = vmatpush1.msra.mxu0 %v5934
    %5936 = vmatprep.subr.mxu0 0.0
    %v5937 = vand.u32 %v4907, 4294901760
    %v5938 = vsub.f32 %v4907, %v5937
    %v5939 = vand.u32 %v5938, 4294901760
    %v5940 = vsub.f32 %v5938, %v5939
    %v5941 = vand.u32 %v5940, 4294901760
    %5942 = vmatpush1.msra.mxu0 %v5941
    %5943 = vmatprep.subr.mxu0 0.0
    %v5944 = vand.u32 %v4908, 4294901760
    %v5945 = vsub.f32 %v4908, %v5944
    %v5946 = vand.u32 %v5945, 4294901760
    %v5947 = vsub.f32 %v5945, %v5946
    %v5948 = vand.u32 %v5947, 4294901760
    %5949 = vmatpush1.msra.mxu0 %v5948
    %5950 = vmatprep.subr.mxu0 0.0
    %v5951 = vand.u32 %v4909, 4294901760
    %v5952 = vsub.f32 %v4909, %v5951
    %v5953 = vand.u32 %v5952, 4294901760
    %v5954 = vsub.f32 %v5952, %v5953
    %v5955 = vand.u32 %v5954, 4294901760
    %5956 = vmatpush1.msra.mxu0 %v5955
    %5957 = vmatprep.subr.mxu0 0.0
    %5958 = vmatpush1.msra.mxu0 0.0
    %5959 = vmatprep.subr.mxu0 0.0
    %5960 = vmatpush1.msra.mxu0 0.0
    %5961 = vmatprep.subr.mxu0 0.0
    %5962 = vmatpush1.msra.mxu0 0.0
    %5963 = vmatprep.subr.mxu0 0.0
    %5964 = vmatpush1.msra.mxu0 0.0
    %5965 = vmatprep.subr.mxu0 0.0
    %5966 = vmatpush1.msra.mxu0 0.0
    %5967 = vmatprep.subr.mxu0 0.0
    %5968 = vmatpush1.msra.mxu0 0.0
    %5969 = vmatprep.subr.mxu0 0.0
    %5970 = vmatpush1.msra.mxu0 0.0
    %5971 = vmatprep.subr.mxu0 0.0
    %5972 = vmatpush1.msra.mxu0 0.0
    %5973 = vmatprep.subr.mxu0 0.0
    %5974 = vmatpush1.msra.mxu0 0.0
    %5975 = vmatprep.subr.mxu0 0.0
    %5976 = vmatpush1.msra.mxu0 0.0
    %5977 = vmatprep.subr.mxu0 0.0
    %5978 = vmatpush1.msra.mxu0 0.0
    %5979 = vmatprep.subr.mxu0 0.0
    %5980 = vmatpush1.msra.mxu0 0.0
    %5981 = vmatprep.subr.mxu0 0.0
    %5982 = vmatpush1.msra.mxu0 0.0
    %5983 = vmatprep.subr.mxu0 0.0
    %5984 = vmatpush1.msra.mxu0 0.0
    %5985 = vmatprep.subr.mxu0 0.0
    %5986 = vmatpush1.msra.mxu0 0.0
    %5987 = vmatprep.subr.mxu0 0.0
    %5988 = vmatpush1.msra.mxu0 0.0
    %5989 = vmatprep.mubr.f32.mxu0 0.0
    %v5990 = vand.u32 %v4889, 4294901760
    %5991 = vmatmul.mubr.f32.gmra.mrb[0].mxu0 %v5990
    %v5992 = vpop.f32.mrb[0].mxu0
    %v5993 = vadd.f32 %v5812, %v5992
    %v5994 = vpop.f32.mrb[0].mxu0
    %5995 = vmatprep.mubr.f32.mxu0 0.0
    %v5996 = vand.u32 %v4890, 4294901760
    %5997 = vmatmul.mubr.f32.gmra.mrb[0].mxu0 %v5996
    %v5998 = vpop.f32.mrb[0].mxu0
    %v5999 = vadd.f32 %v5822, %v5998
    %v6000 = vpop.f32.mrb[0].mxu0
    %6001 = vmatprep.mubr.f32.mxu0 0.0
    %v6002 = vand.u32 %v4891, 4294901760
    %6003 = vmatmul.mubr.f32.gmra.mrb[0].mxu0 %v6002
    %v6004 = vpop.f32.mrb[0].mxu0
    %v6005 = vadd.f32 %v5832, %v6004
    %v6006 = vpop.f32.mrb[0].mxu0
    %6007 = vmatprep.mubr.f32.mxu0 0.0
    %v6008 = vand.u32 %v4892, 4294901760
    %6009 = vmatmul.mubr.f32.gmra.mrb[0].mxu0 %v6008
    %v6010 = vpop.f32.mrb[0].mxu0
    %v6011 = vadd.f32 %v5842, %v6010
    %v6012 = vpop.f32.mrb[0].mxu0
    %6013 = vdwg.mxu0
    %6014 = vmatprep.subr.mxu0 0.0
    %v6015 = vand.u32 %v4894, 4294901760
    %v6016 = vsub.f32 %v4894, %v6015
    %6017 = vmatpush1.msra.mxu0 %v6016
    %6018 = vmatprep.subr.mxu0 0.0
    %v6019 = vand.u32 %v4895, 4294901760
    %v6020 = vsub.f32 %v4895, %v6019
    %6021 = vmatpush1.msra.mxu0 %v6020
    %6022 = vmatprep.subr.mxu0 0.0
    %v6023 = vand.u32 %v4896, 4294901760
    %v6024 = vsub.f32 %v4896, %v6023
    %6025 = vmatpush1.msra.mxu0 %v6024
    %6026 = vmatprep.subr.mxu0 0.0
    %v6027 = vand.u32 %v4897, 4294901760
    %v6028 = vsub.f32 %v4897, %v6027
    %6029 = vmatpush1.msra.mxu0 %v6028
    %6030 = vmatprep.subr.mxu0 0.0
    %v6031 = vand.u32 %v4898, 4294901760
    %v6032 = vsub.f32 %v4898, %v6031
    %6033 = vmatpush1.msra.mxu0 %v6032
    %6034 = vmatprep.subr.mxu0 0.0
    %v6035 = vand.u32 %v4899, 4294901760
    %v6036 = vsub.f32 %v4899, %v6035
    %6037 = vmatpush1.msra.mxu0 %v6036
    %6038 = vmatprep.subr.mxu0 0.0
    %v6039 = vand.u32 %v4900, 4294901760
    %v6040 = vsub.f32 %v4900, %v6039
    %6041 = vmatpush1.msra.mxu0 %v6040
    %6042 = vmatprep.subr.mxu0 0.0
    %v6043 = vand.u32 %v4901, 4294901760
    %v6044 = vsub.f32 %v4901, %v6043
    %6045 = vmatpush1.msra.mxu0 %v6044
    %6046 = vmatprep.subr.mxu0 0.0
    %v6047 = vand.u32 %v4902, 4294901760
    %v6048 = vsub.f32 %v4902, %v6047
    %6049 = vmatpush1.msra.mxu0 %v6048
    %6050 = vmatprep.subr.mxu0 0.0
    %v6051 = vand.u32 %v4903, 4294901760
    %v6052 = vsub.f32 %v4903, %v6051
    %6053 = vmatpush1.msra.mxu0 %v6052
    %6054 = vmatprep.subr.mxu0 0.0
    %v6055 = vand.u32 %v4904, 4294901760
    %v6056 = vsub.f32 %v4904, %v6055
    %6057 = vmatpush1.msra.mxu0 %v6056
    %6058 = vmatprep.subr.mxu0 0.0
    %v6059 = vand.u32 %v4905, 4294901760
    %v6060 = vsub.f32 %v4905, %v6059
    %6061 = vmatpush1.msra.mxu0 %v6060
    %6062 = vmatprep.subr.mxu0 0.0
    %v6063 = vand.u32 %v4906, 4294901760
    %v6064 = vsub.f32 %v4906, %v6063
    %6065 = vmatpush1.msra.mxu0 %v6064
    %6066 = vmatprep.subr.mxu0 0.0
    %v6067 = vand.u32 %v4907, 4294901760
    %v6068 = vsub.f32 %v4907, %v6067
    %6069 = vmatpush1.msra.mxu0 %v6068
    %6070 = vmatprep.subr.mxu0 0.0
    %v6071 = vand.u32 %v4908, 4294901760
    %v6072 = vsub.f32 %v4908, %v6071
    %6073 = vmatpush1.msra.mxu0 %v6072
    %6074 = vmatprep.subr.mxu0 0.0
    %v6075 = vand.u32 %v4909, 4294901760
    %v6076 = vsub.f32 %v4909, %v6075
    %6077 = vmatpush1.msra.mxu0 %v6076
    %6078 = vmatprep.subr.mxu0 0.0
    %6079 = vmatpush1.msra.mxu0 0.0
    %6080 = vmatprep.subr.mxu0 0.0
    %6081 = vmatpush1.msra.mxu0 0.0
    %6082 = vmatprep.subr.mxu0 0.0
    %6083 = vmatpush1.msra.mxu0 0.0
    %6084 = vmatprep.subr.mxu0 0.0
    %6085 = vmatpush1.msra.mxu0 0.0
    %6086 = vmatprep.subr.mxu0 0.0
    %6087 = vmatpush1.msra.mxu0 0.0
    %6088 = vmatprep.subr.mxu0 0.0
    %6089 = vmatpush1.msra.mxu0 0.0
    %6090 = vmatprep.subr.mxu0 0.0
    %6091 = vmatpush1.msra.mxu0 0.0
    %6092 = vmatprep.subr.mxu0 0.0
    %6093 = vmatpush1.msra.mxu0 0.0
    %6094 = vmatprep.subr.mxu0 0.0
    %6095 = vmatpush1.msra.mxu0 0.0
    %6096 = vmatprep.subr.mxu0 0.0
    %6097 = vmatpush1.msra.mxu0 0.0
    %6098 = vmatprep.subr.mxu0 0.0
    %6099 = vmatpush1.msra.mxu0 0.0
    %6100 = vmatprep.subr.mxu0 0.0
    %6101 = vmatpush1.msra.mxu0 0.0
    %6102 = vmatprep.subr.mxu0 0.0
    %6103 = vmatpush1.msra.mxu0 0.0
    %6104 = vmatprep.subr.mxu0 0.0
    %6105 = vmatpush1.msra.mxu0 0.0
    %6106 = vmatprep.subr.mxu0 0.0
    %6107 = vmatpush1.msra.mxu0 0.0
    %6108 = vmatprep.subr.mxu0 0.0
    %6109 = vmatpush1.msra.mxu0 0.0
    %6110 = vmatprep.mubr.f32.mxu0 0.0
    %v6111 = vand.u32 %v4889, 4294901760
    %v6112 = vsub.f32 %v4889, %v6111
    %6113 = vmatmul.mubr.f32.gmra.mrb[0].mxu0 %v6112
    %v6114 = vpop.f32.mrb[0].mxu0
    %v6115 = vadd.f32 %v5993, %v6114
    %v6116 = vpop.f32.mrb[0].mxu0
    %6117 = vmatprep.mubr.f32.mxu0 0.0
    %v6118 = vand.u32 %v4890, 4294901760
    %v6119 = vsub.f32 %v4890, %v6118
    %6120 = vmatmul.mubr.f32.gmra.mrb[0].mxu0 %v6119
    %v6121 = vpop.f32.mrb[0].mxu0
    %v6122 = vadd.f32 %v5999, %v6121
    %v6123 = vpop.f32.mrb[0].mxu0
    %6124 = vmatprep.mubr.f32.mxu0 0.0
    %v6125 = vand.u32 %v4891, 4294901760
    %v6126 = vsub.f32 %v4891, %v6125
    %6127 = vmatmul.mubr.f32.gmra.mrb[0].mxu0 %v6126
    %v6128 = vpop.f32.mrb[0].mxu0
    %v6129 = vadd.f32 %v6005, %v6128
    %v6130 = vpop.f32.mrb[0].mxu0
    %6131 = vmatprep.mubr.f32.mxu0 0.0
    %v6132 = vand.u32 %v4892, 4294901760
    %v6133 = vsub.f32 %v4892, %v6132
    %6134 = vmatmul.mubr.f32.gmra.mrb[0].mxu0 %v6133
    %v6135 = vpop.f32.mrb[0].mxu0
    %v6136 = vadd.f32 %v6011, %v6135
    %v6137 = vpop.f32.mrb[0].mxu0
    %6138 = vdwg.mxu0
    %6139 = vmatprep.subr.mxu0 0.0
    %v6140 = vand.u32 %v4894, 4294901760
    %6141 = vmatpush1.msra.mxu0 %v6140
    %6142 = vmatprep.subr.mxu0 0.0
    %v6143 = vand.u32 %v4895, 4294901760
    %6144 = vmatpush1.msra.mxu0 %v6143
    %6145 = vmatprep.subr.mxu0 0.0
    %v6146 = vand.u32 %v4896, 4294901760
    %6147 = vmatpush1.msra.mxu0 %v6146
    %6148 = vmatprep.subr.mxu0 0.0
    %v6149 = vand.u32 %v4897, 4294901760
    %6150 = vmatpush1.msra.mxu0 %v6149
    %6151 = vmatprep.subr.mxu0 0.0
    %v6152 = vand.u32 %v4898, 4294901760
    %6153 = vmatpush1.msra.mxu0 %v6152
    %6154 = vmatprep.subr.mxu0 0.0
    %v6155 = vand.u32 %v4899, 4294901760
    %6156 = vmatpush1.msra.mxu0 %v6155
    %6157 = vmatprep.subr.mxu0 0.0
    %v6158 = vand.u32 %v4900, 4294901760
    %6159 = vmatpush1.msra.mxu0 %v6158
    %6160 = vmatprep.subr.mxu0 0.0
    %v6161 = vand.u32 %v4901, 4294901760
    %6162 = vmatpush1.msra.mxu0 %v6161
    %6163 = vmatprep.subr.mxu0 0.0
    %v6164 = vand.u32 %v4902, 4294901760
    %6165 = vmatpush1.msra.mxu0 %v6164
    %6166 = vmatprep.subr.mxu0 0.0
    %v6167 = vand.u32 %v4903, 4294901760
    %6168 = vmatpush1.msra.mxu0 %v6167
    %6169 = vmatprep.subr.mxu0 0.0
    %v6170 = vand.u32 %v4904, 4294901760
    %6171 = vmatpush1.msra.mxu0 %v6170
    %6172 = vmatprep.subr.mxu0 0.0
    %v6173 = vand.u32 %v4905, 4294901760
    %6174 = vmatpush1.msra.mxu0 %v6173
    %6175 = vmatprep.subr.mxu0 0.0
    %v6176 = vand.u32 %v4906, 4294901760
    %6177 = vmatpush1.msra.mxu0 %v6176
    %6178 = vmatprep.subr.mxu0 0.0
    %v6179 = vand.u32 %v4907, 4294901760
    %6180 = vmatpush1.msra.mxu0 %v6179
    %6181 = vmatprep.subr.mxu0 0.0
    %v6182 = vand.u32 %v4908, 4294901760
    %6183 = vmatpush1.msra.mxu0 %v6182
    %6184 = vmatprep.subr.mxu0 0.0
    %v6185 = vand.u32 %v4909, 4294901760
    %6186 = vmatpush1.msra.mxu0 %v6185
    %6187 = vmatprep.subr.mxu0 0.0
    %6188 = vmatpush1.msra.mxu0 0.0
    %6189 = vmatprep.subr.mxu0 0.0
    %6190 = vmatpush1.msra.mxu0 0.0
    %6191 = vmatprep.subr.mxu0 0.0
    %6192 = vmatpush1.msra.mxu0 0.0
    %6193 = vmatprep.subr.mxu0 0.0
    %6194 = vmatpush1.msra.mxu0 0.0
    %6195 = vmatprep.subr.mxu0 0.0
    %6196 = vmatpush1.msra.mxu0 0.0
    %6197 = vmatprep.subr.mxu0 0.0
    %6198 = vmatpush1.msra.mxu0 0.0
    %6199 = vmatprep.subr.mxu0 0.0
    %6200 = vmatpush1.msra.mxu0 0.0
    %6201 = vmatprep.subr.mxu0 0.0
    %6202 = vmatpush1.msra.mxu0 0.0
    %6203 = vmatprep.subr.mxu0 0.0
    %6204 = vmatpush1.msra.mxu0 0.0
    %6205 = vmatprep.subr.mxu0 0.0
    %6206 = vmatpush1.msra.mxu0 0.0
    %6207 = vmatprep.subr.mxu0 0.0
    %6208 = vmatpush1.msra.mxu0 0.0
    %6209 = vmatprep.subr.mxu0 0.0
    %6210 = vmatpush1.msra.mxu0 0.0
    %6211 = vmatprep.subr.mxu0 0.0
    %6212 = vmatpush1.msra.mxu0 0.0
    %6213 = vmatprep.subr.mxu0 0.0
    %6214 = vmatpush1.msra.mxu0 0.0
    %6215 = vmatprep.subr.mxu0 0.0
    %6216 = vmatpush1.msra.mxu0 0.0
    %6217 = vmatprep.subr.mxu0 0.0
    %6218 = vmatpush1.msra.mxu0 0.0
    %6219 = vmatprep.mubr.f32.mxu0 0.0
    %v6220 = vand.u32 %v4889, 4294901760
    %v6221 = vsub.f32 %v4889, %v6220
    %v6222 = vand.u32 %v6221, 4294901760
    %6223 = vmatmul.mubr.f32.gmra.mrb[0].mxu0 %v6222
    %v6224 = vpop.f32.mrb[0].mxu0
    %v6225 = vadd.f32 %v6115, %v6224
    %v6226 = vpop.f32.mrb[0].mxu0
    %6227 = vmatprep.mubr.f32.mxu0 0.0
    %v6228 = vand.u32 %v4890, 4294901760
    %v6229 = vsub.f32 %v4890, %v6228
    %v6230 = vand.u32 %v6229, 4294901760
    %6231 = vmatmul.mubr.f32.gmra.mrb[0].mxu0 %v6230
    %v6232 = vpop.f32.mrb[0].mxu0
    %v6233 = vadd.f32 %v6122, %v6232
    %v6234 = vpop.f32.mrb[0].mxu0
    %6235 = vmatprep.mubr.f32.mxu0 0.0
    %v6236 = vand.u32 %v4891, 4294901760
    %v6237 = vsub.f32 %v4891, %v6236
    %v6238 = vand.u32 %v6237, 4294901760
    %6239 = vmatmul.mubr.f32.gmra.mrb[0].mxu0 %v6238
    %v6240 = vpop.f32.mrb[0].mxu0
    %v6241 = vadd.f32 %v6129, %v6240
    %v6242 = vpop.f32.mrb[0].mxu0
    %6243 = vmatprep.mubr.f32.mxu0 0.0
    %v6244 = vand.u32 %v4892, 4294901760
    %v6245 = vsub.f32 %v4892, %v6244
    %v6246 = vand.u32 %v6245, 4294901760
    %6247 = vmatmul.mubr.f32.gmra.mrb[0].mxu0 %v6246
    %v6248 = vpop.f32.mrb[0].mxu0
    %v6249 = vadd.f32 %v6136, %v6248
    %v6250 = vpop.f32.mrb[0].mxu0
    %6251 = vdwg.mxu0
    %6252 = vmatprep.subr.mxu0 0.0
    %v6253 = vand.u32 %v4894, 4294901760
    %v6254 = vsub.f32 %v4894, %v6253
    %v6255 = vand.u32 %v6254, 4294901760
    %6256 = vmatpush1.msra.mxu0 %v6255
    %6257 = vmatprep.subr.mxu0 0.0
    %v6258 = vand.u32 %v4895, 4294901760
    %v6259 = vsub.f32 %v4895, %v6258
    %v6260 = vand.u32 %v6259, 4294901760
    %6261 = vmatpush1.msra.mxu0 %v6260
    %6262 = vmatprep.subr.mxu0 0.0
    %v6263 = vand.u32 %v4896, 4294901760
    %v6264 = vsub.f32 %v4896, %v6263
    %v6265 = vand.u32 %v6264, 4294901760
    %6266 = vmatpush1.msra.mxu0 %v6265
    %6267 = vmatprep.subr.mxu0 0.0
    %v6268 = vand.u32 %v4897, 4294901760
    %v6269 = vsub.f32 %v4897, %v6268
    %v6270 = vand.u32 %v6269, 4294901760
    %6271 = vmatpush1.msra.mxu0 %v6270
    %6272 = vmatprep.subr.mxu0 0.0
    %v6273 = vand.u32 %v4898, 4294901760
    %v6274 = vsub.f32 %v4898, %v6273
    %v6275 = vand.u32 %v6274, 4294901760
    %6276 = vmatpush1.msra.mxu0 %v6275
    %6277 = vmatprep.subr.mxu0 0.0
    %v6278 = vand.u32 %v4899, 4294901760
    %v6279 = vsub.f32 %v4899, %v6278
    %v6280 = vand.u32 %v6279, 4294901760
    %6281 = vmatpush1.msra.mxu0 %v6280
    %6282 = vmatprep.subr.mxu0 0.0
    %v6283 = vand.u32 %v4900, 4294901760
    %v6284 = vsub.f32 %v4900, %v6283
    %v6285 = vand.u32 %v6284, 4294901760
    %6286 = vmatpush1.msra.mxu0 %v6285
    %6287 = vmatprep.subr.mxu0 0.0
    %v6288 = vand.u32 %v4901, 4294901760
    %v6289 = vsub.f32 %v4901, %v6288
    %v6290 = vand.u32 %v6289, 4294901760
    %6291 = vmatpush1.msra.mxu0 %v6290
    %6292 = vmatprep.subr.mxu0 0.0
    %v6293 = vand.u32 %v4902, 4294901760
    %v6294 = vsub.f32 %v4902, %v6293
    %v6295 = vand.u32 %v6294, 4294901760
    %6296 = vmatpush1.msra.mxu0 %v6295
    %6297 = vmatprep.subr.mxu0 0.0
    %v6298 = vand.u32 %v4903, 4294901760
    %v6299 = vsub.f32 %v4903, %v6298
    %v6300 = vand.u32 %v6299, 4294901760
    %6301 = vmatpush1.msra.mxu0 %v6300
    %6302 = vmatprep.subr.mxu0 0.0
    %v6303 = vand.u32 %v4904, 4294901760
    %v6304 = vsub.f32 %v4904, %v6303
    %v6305 = vand.u32 %v6304, 4294901760
    %6306 = vmatpush1.msra.mxu0 %v6305
    %6307 = vmatprep.subr.mxu0 0.0
    %v6308 = vand.u32 %v4905, 4294901760
    %v6309 = vsub.f32 %v4905, %v6308
    %v6310 = vand.u32 %v6309, 4294901760
    %6311 = vmatpush1.msra.mxu0 %v6310
    %6312 = vmatprep.subr.mxu0 0.0
    %v6313 = vand.u32 %v4906, 4294901760
    %v6314 = vsub.f32 %v4906, %v6313
    %v6315 = vand.u32 %v6314, 4294901760
    %6316 = vmatpush1.msra.mxu0 %v6315
    %6317 = vmatprep.subr.mxu0 0.0
    %v6318 = vand.u32 %v4907, 4294901760
    %v6319 = vsub.f32 %v4907, %v6318
    %v6320 = vand.u32 %v6319, 4294901760
    %6321 = vmatpush1.msra.mxu0 %v6320
    %6322 = vmatprep.subr.mxu0 0.0
    %v6323 = vand.u32 %v4908, 4294901760
    %v6324 = vsub.f32 %v4908, %v6323
    %v6325 = vand.u32 %v6324, 4294901760
    %6326 = vmatpush1.msra.mxu0 %v6325
    %6327 = vmatprep.subr.mxu0 0.0
    %v6328 = vand.u32 %v4909, 4294901760
    %v6329 = vsub.f32 %v4909, %v6328
    %v6330 = vand.u32 %v6329, 4294901760
    %6331 = vmatpush1.msra.mxu0 %v6330
    %6332 = vmatprep.subr.mxu0 0.0
    %6333 = vmatpush1.msra.mxu0 0.0
    %6334 = vmatprep.subr.mxu0 0.0
    %6335 = vmatpush1.msra.mxu0 0.0
    %6336 = vmatprep.subr.mxu0 0.0
    %6337 = vmatpush1.msra.mxu0 0.0
    %6338 = vmatprep.subr.mxu0 0.0
    %6339 = vmatpush1.msra.mxu0 0.0
    %6340 = vmatprep.subr.mxu0 0.0
    %6341 = vmatpush1.msra.mxu0 0.0
    %6342 = vmatprep.subr.mxu0 0.0
    %6343 = vmatpush1.msra.mxu0 0.0
    %6344 = vmatprep.subr.mxu0 0.0
    %6345 = vmatpush1.msra.mxu0 0.0
    %6346 = vmatprep.subr.mxu0 0.0
    %6347 = vmatpush1.msra.mxu0 0.0
    %6348 = vmatprep.subr.mxu0 0.0
    %6349 = vmatpush1.msra.mxu0 0.0
    %6350 = vmatprep.subr.mxu0 0.0
    %6351 = vmatpush1.msra.mxu0 0.0
    %6352 = vmatprep.subr.mxu0 0.0
    %6353 = vmatpush1.msra.mxu0 0.0
    %6354 = vmatprep.subr.mxu0 0.0
    %6355 = vmatpush1.msra.mxu0 0.0
    %6356 = vmatprep.subr.mxu0 0.0
    %6357 = vmatpush1.msra.mxu0 0.0
    %6358 = vmatprep.subr.mxu0 0.0
    %6359 = vmatpush1.msra.mxu0 0.0
    %6360 = vmatprep.subr.mxu0 0.0
    %6361 = vmatpush1.msra.mxu0 0.0
    %6362 = vmatprep.subr.mxu0 0.0
    %6363 = vmatpush1.msra.mxu0 0.0
    %6364 = vmatprep.mubr.f32.mxu0 0.0
    %v6365 = vand.u32 %v4889, 4294901760
    %6366 = vmatmul.mubr.f32.gmra.mrb[0].mxu0 %v6365
    %v6367 = vpop.f32.mrb[0].mxu0
    %v6368 = vadd.f32 %v6225, %v6367
    %v6369 = vpop.f32.mrb[0].mxu0
    %6370 = vmatprep.mubr.f32.mxu0 0.0
    %v6371 = vand.u32 %v4890, 4294901760
    %6372 = vmatmul.mubr.f32.gmra.mrb[0].mxu0 %v6371
    %v6373 = vpop.f32.mrb[0].mxu0
    %v6374 = vadd.f32 %v6233, %v6373
    %v6375 = vpop.f32.mrb[0].mxu0
    %6376 = vmatprep.mubr.f32.mxu0 0.0
    %v6377 = vand.u32 %v4891, 4294901760
    %6378 = vmatmul.mubr.f32.gmra.mrb[0].mxu0 %v6377
    %v6379 = vpop.f32.mrb[0].mxu0
    %v6380 = vadd.f32 %v6241, %v6379
    %v6381 = vpop.f32.mrb[0].mxu0
    %6382 = vmatprep.mubr.f32.mxu0 0.0
    %v6383 = vand.u32 %v4892, 4294901760
    %6384 = vmatmul.mubr.f32.gmra.mrb[0].mxu0 %v6383
    %v6385 = vpop.f32.mrb[0].mxu0
    %v6386 = vadd.f32 %v6249, %v6385
    %v6387 = vpop.f32.mrb[0].mxu0
    %6388 = vdwg.mxu0
    %6389 = vmatprep.subr.mxu0 0.0
    %v6390 = vand.u32 %v4894, 4294901760
    %6391 = vmatpush1.msra.mxu0 %v6390
    %6392 = vmatprep.subr.mxu0 0.0
    %v6393 = vand.u32 %v4895, 4294901760
    %6394 = vmatpush1.msra.mxu0 %v6393
    %6395 = vmatprep.subr.mxu0 0.0
    %v6396 = vand.u32 %v4896, 4294901760
    %6397 = vmatpush1.msra.mxu0 %v6396
    %6398 = vmatprep.subr.mxu0 0.0
    %v6399 = vand.u32 %v4897, 4294901760
    %6400 = vmatpush1.msra.mxu0 %v6399
    %6401 = vmatprep.subr.mxu0 0.0
    %v6402 = vand.u32 %v4898, 4294901760
    %6403 = vmatpush1.msra.mxu0 %v6402
    %6404 = vmatprep.subr.mxu0 0.0
    %v6405 = vand.u32 %v4899, 4294901760
    %6406 = vmatpush1.msra.mxu0 %v6405
    %6407 = vmatprep.subr.mxu0 0.0
    %v6408 = vand.u32 %v4900, 4294901760
    %6409 = vmatpush1.msra.mxu0 %v6408
    %6410 = vmatprep.subr.mxu0 0.0
    %v6411 = vand.u32 %v4901, 4294901760
    %6412 = vmatpush1.msra.mxu0 %v6411
    %6413 = vmatprep.subr.mxu0 0.0
    %v6414 = vand.u32 %v4902, 4294901760
    %6415 = vmatpush1.msra.mxu0 %v6414
    %6416 = vmatprep.subr.mxu0 0.0
    %v6417 = vand.u32 %v4903, 4294901760
    %6418 = vmatpush1.msra.mxu0 %v6417
    %6419 = vmatprep.subr.mxu0 0.0
    %v6420 = vand.u32 %v4904, 4294901760
    %6421 = vmatpush1.msra.mxu0 %v6420
    %6422 = vmatprep.subr.mxu0 0.0
    %v6423 = vand.u32 %v4905, 4294901760
    %6424 = vmatpush1.msra.mxu0 %v6423
    %6425 = vmatprep.subr.mxu0 0.0
    %v6426 = vand.u32 %v4906, 4294901760
    %6427 = vmatpush1.msra.mxu0 %v6426
    %6428 = vmatprep.subr.mxu0 0.0
    %v6429 = vand.u32 %v4907, 4294901760
    %6430 = vmatpush1.msra.mxu0 %v6429
    %6431 = vmatprep.subr.mxu0 0.0
    %v6432 = vand.u32 %v4908, 4294901760
    %6433 = vmatpush1.msra.mxu0 %v6432
    %6434 = vmatprep.subr.mxu0 0.0
    %v6435 = vand.u32 %v4909, 4294901760
    %6436 = vmatpush1.msra.mxu0 %v6435
    %6437 = vmatprep.subr.mxu0 0.0
    %6438 = vmatpush1.msra.mxu0 0.0
    %6439 = vmatprep.subr.mxu0 0.0
    %6440 = vmatpush1.msra.mxu0 0.0
    %6441 = vmatprep.subr.mxu0 0.0
    %6442 = vmatpush1.msra.mxu0 0.0
    %6443 = vmatprep.subr.mxu0 0.0
    %6444 = vmatpush1.msra.mxu0 0.0
    %6445 = vmatprep.subr.mxu0 0.0
    %6446 = vmatpush1.msra.mxu0 0.0
    %6447 = vmatprep.subr.mxu0 0.0
    %6448 = vmatpush1.msra.mxu0 0.0
    %6449 = vmatprep.subr.mxu0 0.0
    %6450 = vmatpush1.msra.mxu0 0.0
    %6451 = vmatprep.subr.mxu0 0.0
    %6452 = vmatpush1.msra.mxu0 0.0
    %6453 = vmatprep.subr.mxu0 0.0
    %6454 = vmatpush1.msra.mxu0 0.0
    %6455 = vmatprep.subr.mxu0 0.0
    %6456 = vmatpush1.msra.mxu0 0.0
    %6457 = vmatprep.subr.mxu0 0.0
    %6458 = vmatpush1.msra.mxu0 0.0
    %6459 = vmatprep.subr.mxu0 0.0
    %6460 = vmatpush1.msra.mxu0 0.0
    %6461 = vmatprep.subr.mxu0 0.0
    %6462 = vmatpush1.msra.mxu0 0.0
    %6463 = vmatprep.subr.mxu0 0.0
    %6464 = vmatpush1.msra.mxu0 0.0
    %6465 = vmatprep.subr.mxu0 0.0
    %6466 = vmatpush1.msra.mxu0 0.0
    %6467 = vmatprep.subr.mxu0 0.0
    %6468 = vmatpush1.msra.mxu0 0.0
    %6469 = vmatprep.mubr.f32.mxu0 0.0
    %v6470 = vand.u32 %v4889, 4294901760
    %6471 = vmatmul.mubr.f32.gmra.mrb[0].mxu0 %v6470
    %v6472 = vpop.f32.mrb[0].mxu0
    %v6473 = vadd.f32 %v6368, %v6472
    %v6474 = vpop.f32.mrb[0].mxu0
    %6475 = vmatprep.mubr.f32.mxu0 0.0
    %v6476 = vand.u32 %v4890, 4294901760
    %6477 = vmatmul.mubr.f32.gmra.mrb[0].mxu0 %v6476
    %v6478 = vpop.f32.mrb[0].mxu0
    %v6479 = vadd.f32 %v6374, %v6478
    %v6480 = vpop.f32.mrb[0].mxu0
    %6481 = vmatprep.mubr.f32.mxu0 0.0
    %v6482 = vand.u32 %v4891, 4294901760
    %6483 = vmatmul.mubr.f32.gmra.mrb[0].mxu0 %v6482
    %v6484 = vpop.f32.mrb[0].mxu0
    %v6485 = vadd.f32 %v6380, %v6484
    %v6486 = vpop.f32.mrb[0].mxu0
    %6487 = vmatprep.mubr.f32.mxu0 0.0
    %v6488 = vand.u32 %v4892, 4294901760
    %6489 = vmatmul.mubr.f32.gmra.mrb[0].mxu0 %v6488
    %v6490 = vpop.f32.mrb[0].mxu0
    %v6491 = vadd.f32 %v6386, %v6490
    %v6492 = vpop.f32.mrb[0].mxu0
    %6493 = vdwg.mxu0
    %s6494 = scalar_lea.vmem [#allocation5], 256
    %v6495 = vld [vmem:[%s6494] sm:$0xff]
    %v6496 = vld [vmem:[%s6494 + $0x8] sm:$0xff]
    %v6497 = vld [vmem:[%s6494 + $0x10] sm:$0xff]
    %v6498 = vld [vmem:[%s6494 + $0x18] sm:$0xff]
    %v6499 = vld [vmem:[%s6494 + $0x20] sm:$0xff]
    %v6500 = vld [vmem:[%s6494 + $0x28] sm:$0xff]
    %v6501 = vld [vmem:[%s6494 + $0x30] sm:$0xff]
    %v6502 = vld [vmem:[%s6494 + $0x38] sm:$0xff]
    %v6503 = vld [vmem:[%s6494 + $0x40] sm:$0xff]
    %v6504 = vld [vmem:[%s6494 + $0x48] sm:$0xff]
    %v6505 = vld [vmem:[%s6494 + $0x50] sm:$0xff]
    %v6506 = vld [vmem:[%s6494 + $0x58] sm:$0xff]
    %v6507 = vld [vmem:[%s6494 + $0x60] sm:$0xff]
    %v6508 = vld [vmem:[%s6494 + $0x68] sm:$0xff]
    %v6509 = vld [vmem:[%s6494 + $0x70] sm:$0xff]
    %v6510 = vld [vmem:[%s6494 + $0x78] sm:$0xff]
    %6511 = vmatprep.subr.mxu0 0.0
    %v6512 = vand.u32 %v6495, 4294901760
    %6513 = vmatpush1.msra.mxu0 %v6512
    %6514 = vmatprep.subr.mxu0 0.0
    %v6515 = vand.u32 %v6496, 4294901760
    %6516 = vmatpush1.msra.mxu0 %v6515
    %6517 = vmatprep.subr.mxu0 0.0
    %v6518 = vand.u32 %v6497, 4294901760
    %6519 = vmatpush1.msra.mxu0 %v6518
    %6520 = vmatprep.subr.mxu0 0.0
    %v6521 = vand.u32 %v6498, 4294901760
    %6522 = vmatpush1.msra.mxu0 %v6521
    %6523 = vmatprep.subr.mxu0 0.0
    %v6524 = vand.u32 %v6499, 4294901760
    %6525 = vmatpush1.msra.mxu0 %v6524
    %6526 = vmatprep.subr.mxu0 0.0
    %v6527 = vand.u32 %v6500, 4294901760
    %6528 = vmatpush1.msra.mxu0 %v6527
    %6529 = vmatprep.subr.mxu0 0.0
    %v6530 = vand.u32 %v6501, 4294901760
    %6531 = vmatpush1.msra.mxu0 %v6530
    %6532 = vmatprep.subr.mxu0 0.0
    %v6533 = vand.u32 %v6502, 4294901760
    %6534 = vmatpush1.msra.mxu0 %v6533
    %6535 = vmatprep.subr.mxu0 0.0
    %v6536 = vand.u32 %v6503, 4294901760
    %6537 = vmatpush1.msra.mxu0 %v6536
    %6538 = vmatprep.subr.mxu0 0.0
    %v6539 = vand.u32 %v6504, 4294901760
    %6540 = vmatpush1.msra.mxu0 %v6539
    %6541 = vmatprep.subr.mxu0 0.0
    %v6542 = vand.u32 %v6505, 4294901760
    %6543 = vmatpush1.msra.mxu0 %v6542
    %6544 = vmatprep.subr.mxu0 0.0
    %v6545 = vand.u32 %v6506, 4294901760
    %6546 = vmatpush1.msra.mxu0 %v6545
    %6547 = vmatprep.subr.mxu0 0.0
    %v6548 = vand.u32 %v6507, 4294901760
    %6549 = vmatpush1.msra.mxu0 %v6548
    %6550 = vmatprep.subr.mxu0 0.0
    %v6551 = vand.u32 %v6508, 4294901760
    %6552 = vmatpush1.msra.mxu0 %v6551
    %6553 = vmatprep.subr.mxu0 0.0
    %v6554 = vand.u32 %v6509, 4294901760
    %6555 = vmatpush1.msra.mxu0 %v6554
    %6556 = vmatprep.subr.mxu0 0.0
    %v6557 = vand.u32 %v6510, 4294901760
    %6558 = vmatpush1.msra.mxu0 %v6557
    %6559 = vmatprep.subr.mxu0 0.0
    %6560 = vmatpush1.msra.mxu0 0.0
    %6561 = vmatprep.subr.mxu0 0.0
    %6562 = vmatpush1.msra.mxu0 0.0
    %6563 = vmatprep.subr.mxu0 0.0
    %6564 = vmatpush1.msra.mxu0 0.0
    %6565 = vmatprep.subr.mxu0 0.0
    %6566 = vmatpush1.msra.mxu0 0.0
    %6567 = vmatprep.subr.mxu0 0.0
    %6568 = vmatpush1.msra.mxu0 0.0
    %6569 = vmatprep.subr.mxu0 0.0
    %6570 = vmatpush1.msra.mxu0 0.0
    %6571 = vmatprep.subr.mxu0 0.0
    %6572 = vmatpush1.msra.mxu0 0.0
    %6573 = vmatprep.subr.mxu0 0.0
    %6574 = vmatpush1.msra.mxu0 0.0
    %6575 = vmatprep.subr.mxu0 0.0
    %6576 = vmatpush1.msra.mxu0 0.0
    %6577 = vmatprep.subr.mxu0 0.0
    %6578 = vmatpush1.msra.mxu0 0.0
    %6579 = vmatprep.subr.mxu0 0.0
    %6580 = vmatpush1.msra.mxu0 0.0
    %6581 = vmatprep.subr.mxu0 0.0
    %6582 = vmatpush1.msra.mxu0 0.0
    %6583 = vmatprep.subr.mxu0 0.0
    %6584 = vmatpush1.msra.mxu0 0.0
    %6585 = vmatprep.subr.mxu0 0.0
    %6586 = vmatpush1.msra.mxu0 0.0
    %6587 = vmatprep.subr.mxu0 0.0
    %6588 = vmatpush1.msra.mxu0 0.0
    %6589 = vmatprep.subr.mxu0 0.0
    %6590 = vmatpush1.msra.mxu0 0.0
    %6591 = vmatprep.mubr.f32.mxu0 0.0
    %v6592 = vand.u32 %v4928, 4294901760
    %v6593 = vsub.f32 %v4928, %v6592
    %v6594 = vand.u32 %v6593, 4294901760
    %v6595 = vsub.f32 %v6593, %v6594
    %v6596 = vand.u32 %v6595, 4294901760
    %6597 = vmatmul.mubr.f32.gmra.mrb[0].mxu0 %v6596
    %v6598 = vpop.f32.mrb[0].mxu0
    %v6599 = vadd.f32 0.0, %v6598
    %v6600 = vpop.f32.mrb[0].mxu0
    %6601 = vmatprep.mubr.f32.mxu0 0.0
    %v6602 = vand.u32 %v4936, 4294901760
    %v6603 = vsub.f32 %v4936, %v6602
    %v6604 = vand.u32 %v6603, 4294901760
    %v6605 = vsub.f32 %v6603, %v6604
    %v6606 = vand.u32 %v6605, 4294901760
    %6607 = vmatmul.mubr.f32.gmra.mrb[0].mxu0 %v6606
    %v6608 = vpop.f32.mrb[0].mxu0
    %v6609 = vadd.f32 0.0, %v6608
    %v6610 = vpop.f32.mrb[0].mxu0
    %6611 = vmatprep.mubr.f32.mxu0 0.0
    %v6612 = vand.u32 %v4931, 4294901760
    %v6613 = vsub.f32 %v4931, %v6612
    %v6614 = vand.u32 %v6613, 4294901760
    %v6615 = vsub.f32 %v6613, %v6614
    %v6616 = vand.u32 %v6615, 4294901760
    %6617 = vmatmul.mubr.f32.gmra.mrb[0].mxu0 %v6616
    %v6618 = vpop.f32.mrb[0].mxu0
    %v6619 = vadd.f32 0.0, %v6618
    %v6620 = vpop.f32.mrb[0].mxu0
    %6621 = vmatprep.mubr.f32.mxu0 0.0
    %v6622 = vand.u32 %v4937, 4294901760
    %v6623 = vsub.f32 %v4937, %v6622
    %v6624 = vand.u32 %v6623, 4294901760
    %v6625 = vsub.f32 %v6623, %v6624
    %v6626 = vand.u32 %v6625, 4294901760
    %6627 = vmatmul.mubr.f32.gmra.mrb[0].mxu0 %v6626
    %v6628 = vpop.f32.mrb[0].mxu0
    %v6629 = vadd.f32 0.0, %v6628
    %v6630 = vpop.f32.mrb[0].mxu0
    %6631 = vdwg.mxu0
    %6632 = vmatprep.subr.mxu0 0.0
    %v6633 = vand.u32 %v6495, 4294901760
    %v6634 = vsub.f32 %v6495, %v6633
    %v6635 = vand.u32 %v6634, 4294901760
    %v6636 = vsub.f32 %v6634, %v6635
    %v6637 = vand.u32 %v6636, 4294901760
    %6638 = vmatpush1.msra.mxu0 %v6637
    %6639 = vmatprep.subr.mxu0 0.0
    %v6640 = vand.u32 %v6496, 4294901760
    %v6641 = vsub.f32 %v6496, %v6640
    %v6642 = vand.u32 %v6641, 4294901760
    %v6643 = vsub.f32 %v6641, %v6642
    %v6644 = vand.u32 %v6643, 4294901760
    %6645 = vmatpush1.msra.mxu0 %v6644
    %6646 = vmatprep.subr.mxu0 0.0
    %v6647 = vand.u32 %v6497, 4294901760
    %v6648 = vsub.f32 %v6497, %v6647
    %v6649 = vand.u32 %v6648, 4294901760
    %v6650 = vsub.f32 %v6648, %v6649
    %v6651 = vand.u32 %v6650, 4294901760
    %6652 = vmatpush1.msra.mxu0 %v6651
    %6653 = vmatprep.subr.mxu0 0.0
    %v6654 = vand.u32 %v6498, 4294901760
    %v6655 = vsub.f32 %v6498, %v6654
    %v6656 = vand.u32 %v6655, 4294901760
    %v6657 = vsub.f32 %v6655, %v6656
    %v6658 = vand.u32 %v6657, 4294901760
    %6659 = vmatpush1.msra.mxu0 %v6658
    %6660 = vmatprep.subr.mxu0 0.0
    %v6661 = vand.u32 %v6499, 4294901760
    %v6662 = vsub.f32 %v6499, %v6661
    %v6663 = vand.u32 %v6662, 4294901760
    %v6664 = vsub.f32 %v6662, %v6663
    %v6665 = vand.u32 %v6664, 4294901760
    %6666 = vmatpush1.msra.mxu0 %v6665
    %6667 = vmatprep.subr.mxu0 0.0
    %v6668 = vand.u32 %v6500, 4294901760
    %v6669 = vsub.f32 %v6500, %v6668
    %v6670 = vand.u32 %v6669, 4294901760
    %v6671 = vsub.f32 %v6669, %v6670
    %v6672 = vand.u32 %v6671, 4294901760
    %6673 = vmatpush1.msra.mxu0 %v6672
    %6674 = vmatprep.subr.mxu0 0.0
    %v6675 = vand.u32 %v6501, 4294901760
    %v6676 = vsub.f32 %v6501, %v6675
    %v6677 = vand.u32 %v6676, 4294901760
    %v6678 = vsub.f32 %v6676, %v6677
    %v6679 = vand.u32 %v6678, 4294901760
    %6680 = vmatpush1.msra.mxu0 %v6679
    %6681 = vmatprep.subr.mxu0 0.0
    %v6682 = vand.u32 %v6502, 4294901760
    %v6683 = vsub.f32 %v6502, %v6682
    %v6684 = vand.u32 %v6683, 4294901760
    %v6685 = vsub.f32 %v6683, %v6684
    %v6686 = vand.u32 %v6685, 4294901760
    %6687 = vmatpush1.msra.mxu0 %v6686
    %6688 = vmatprep.subr.mxu0 0.0
    %v6689 = vand.u32 %v6503, 4294901760
    %v6690 = vsub.f32 %v6503, %v6689
    %v6691 = vand.u32 %v6690, 4294901760
    %v6692 = vsub.f32 %v6690, %v6691
    %v6693 = vand.u32 %v6692, 4294901760
    %6694 = vmatpush1.msra.mxu0 %v6693
    %6695 = vmatprep.subr.mxu0 0.0
    %v6696 = vand.u32 %v6504, 4294901760
    %v6697 = vsub.f32 %v6504, %v6696
    %v6698 = vand.u32 %v6697, 4294901760
    %v6699 = vsub.f32 %v6697, %v6698
    %v6700 = vand.u32 %v6699, 4294901760
    %6701 = vmatpush1.msra.mxu0 %v6700
    %6702 = vmatprep.subr.mxu0 0.0
    %v6703 = vand.u32 %v6505, 4294901760
    %v6704 = vsub.f32 %v6505, %v6703
    %v6705 = vand.u32 %v6704, 4294901760
    %v6706 = vsub.f32 %v6704, %v6705
    %v6707 = vand.u32 %v6706, 4294901760
    %6708 = vmatpush1.msra.mxu0 %v6707
    %6709 = vmatprep.subr.mxu0 0.0
    %v6710 = vand.u32 %v6506, 4294901760
    %v6711 = vsub.f32 %v6506, %v6710
    %v6712 = vand.u32 %v6711, 4294901760
    %v6713 = vsub.f32 %v6711, %v6712
    %v6714 = vand.u32 %v6713, 4294901760
    %6715 = vmatpush1.msra.mxu0 %v6714
    %6716 = vmatprep.subr.mxu0 0.0
    %v6717 = vand.u32 %v6507, 4294901760
    %v6718 = vsub.f32 %v6507, %v6717
    %v6719 = vand.u32 %v6718, 4294901760
    %v6720 = vsub.f32 %v6718, %v6719
    %v6721 = vand.u32 %v6720, 4294901760
    %6722 = vmatpush1.msra.mxu0 %v6721
    %6723 = vmatprep.subr.mxu0 0.0
    %v6724 = vand.u32 %v6508, 4294901760
    %v6725 = vsub.f32 %v6508, %v6724
    %v6726 = vand.u32 %v6725, 4294901760
    %v6727 = vsub.f32 %v6725, %v6726
    %v6728 = vand.u32 %v6727, 4294901760
    %6729 = vmatpush1.msra.mxu0 %v6728
    %6730 = vmatprep.subr.mxu0 0.0
    %v6731 = vand.u32 %v6509, 4294901760
    %v6732 = vsub.f32 %v6509, %v6731
    %v6733 = vand.u32 %v6732, 4294901760
    %v6734 = vsub.f32 %v6732, %v6733
    %v6735 = vand.u32 %v6734, 4294901760
    %6736 = vmatpush1.msra.mxu0 %v6735
    %6737 = vmatprep.subr.mxu0 0.0
    %v6738 = vand.u32 %v6510, 4294901760
    %v6739 = vsub.f32 %v6510, %v6738
    %v6740 = vand.u32 %v6739, 4294901760
    %v6741 = vsub.f32 %v6739, %v6740
    %v6742 = vand.u32 %v6741, 4294901760
    %6743 = vmatpush1.msra.mxu0 %v6742
    %6744 = vmatprep.subr.mxu0 0.0
    %6745 = vmatpush1.msra.mxu0 0.0
    %6746 = vmatprep.subr.mxu0 0.0
    %6747 = vmatpush1.msra.mxu0 0.0
    %6748 = vmatprep.subr.mxu0 0.0
    %6749 = vmatpush1.msra.mxu0 0.0
    %6750 = vmatprep.subr.mxu0 0.0
    %6751 = vmatpush1.msra.mxu0 0.0
    %6752 = vmatprep.subr.mxu0 0.0
    %6753 = vmatpush1.msra.mxu0 0.0
    %6754 = vmatprep.subr.mxu0 0.0
    %6755 = vmatpush1.msra.mxu0 0.0
    %6756 = vmatprep.subr.mxu0 0.0
    %6757 = vmatpush1.msra.mxu0 0.0
    %6758 = vmatprep.subr.mxu0 0.0
    %6759 = vmatpush1.msra.mxu0 0.0
    %6760 = vmatprep.subr.mxu0 0.0
    %6761 = vmatpush1.msra.mxu0 0.0
    %6762 = vmatprep.subr.mxu0 0.0
    %6763 = vmatpush1.msra.mxu0 0.0
    %6764 = vmatprep.subr.mxu0 0.0
    %6765 = vmatpush1.msra.mxu0 0.0
    %6766 = vmatprep.subr.mxu0 0.0
    %6767 = vmatpush1.msra.mxu0 0.0
    %6768 = vmatprep.subr.mxu0 0.0
    %6769 = vmatpush1.msra.mxu0 0.0
    %6770 = vmatprep.subr.mxu0 0.0
    %6771 = vmatpush1.msra.mxu0 0.0
    %6772 = vmatprep.subr.mxu0 0.0
    %6773 = vmatpush1.msra.mxu0 0.0
    %6774 = vmatprep.subr.mxu0 0.0
    %6775 = vmatpush1.msra.mxu0 0.0
    %6776 = vmatprep.mubr.f32.mxu0 0.0
    %v6777 = vand.u32 %v4928, 4294901760
    %6778 = vmatmul.mubr.f32.gmra.mrb[0].mxu0 %v6777
    %v6779 = vpop.f32.mrb[0].mxu0
    %v6780 = vadd.f32 %v6599, %v6779
    %v6781 = vpop.f32.mrb[0].mxu0
    %6782 = vmatprep.mubr.f32.mxu0 0.0
    %v6783 = vand.u32 %v4936, 4294901760
    %6784 = vmatmul.mubr.f32.gmra.mrb[0].mxu0 %v6783
    %v6785 = vpop.f32.mrb[0].mxu0
    %v6786 = vadd.f32 %v6609, %v6785
    %v6787 = vpop.f32.mrb[0].mxu0
    %6788 = vmatprep.mubr.f32.mxu0 0.0
    %v6789 = vand.u32 %v4931, 4294901760
    %6790 = vmatmul.mubr.f32.gmra.mrb[0].mxu0 %v6789
    %v6791 = vpop.f32.mrb[0].mxu0
    %v6792 = vadd.f32 %v6619, %v6791
    %v6793 = vpop.f32.mrb[0].mxu0
    %6794 = vmatprep.mubr.f32.mxu0 0.0
    %v6795 = vand.u32 %v4937, 4294901760
    %6796 = vmatmul.mubr.f32.gmra.mrb[0].mxu0 %v6795
    %v6797 = vpop.f32.mrb[0].mxu0
    %v6798 = vadd.f32 %v6629, %v6797
    %v6799 = vpop.f32.mrb[0].mxu0
    %6800 = vdwg.mxu0
    %6801 = vmatprep.subr.mxu0 0.0
    %v6802 = vand.u32 %v6495, 4294901760
    %v6803 = vsub.f32 %v6495, %v6802
    %6804 = vmatpush1.msra.mxu0 %v6803
    %6805 = vmatprep.subr.mxu0 0.0
    %v6806 = vand.u32 %v6496, 4294901760
    %v6807 = vsub.f32 %v6496, %v6806
    %6808 = vmatpush1.msra.mxu0 %v6807
    %6809 = vmatprep.subr.mxu0 0.0
    %v6810 = vand.u32 %v6497, 4294901760
    %v6811 = vsub.f32 %v6497, %v6810
    %6812 = vmatpush1.msra.mxu0 %v6811
    %6813 = vmatprep.subr.mxu0 0.0
    %v6814 = vand.u32 %v6498, 4294901760
    %v6815 = vsub.f32 %v6498, %v6814
    %6816 = vmatpush1.msra.mxu0 %v6815
    %6817 = vmatprep.subr.mxu0 0.0
    %v6818 = vand.u32 %v6499, 4294901760
    %v6819 = vsub.f32 %v6499, %v6818
    %6820 = vmatpush1.msra.mxu0 %v6819
    %6821 = vmatprep.subr.mxu0 0.0
    %v6822 = vand.u32 %v6500, 4294901760
    %v6823 = vsub.f32 %v6500, %v6822
    %6824 = vmatpush1.msra.mxu0 %v6823
    %6825 = vmatprep.subr.mxu0 0.0
    %v6826 = vand.u32 %v6501, 4294901760
    %v6827 = vsub.f32 %v6501, %v6826
    %6828 = vmatpush1.msra.mxu0 %v6827
    %6829 = vmatprep.subr.mxu0 0.0
    %v6830 = vand.u32 %v6502, 4294901760
    %v6831 = vsub.f32 %v6502, %v6830
    %6832 = vmatpush1.msra.mxu0 %v6831
    %6833 = vmatprep.subr.mxu0 0.0
    %v6834 = vand.u32 %v6503, 4294901760
    %v6835 = vsub.f32 %v6503, %v6834
    %6836 = vmatpush1.msra.mxu0 %v6835
    %6837 = vmatprep.subr.mxu0 0.0
    %v6838 = vand.u32 %v6504, 4294901760
    %v6839 = vsub.f32 %v6504, %v6838
    %6840 = vmatpush1.msra.mxu0 %v6839
    %6841 = vmatprep.subr.mxu0 0.0
    %v6842 = vand.u32 %v6505, 4294901760
    %v6843 = vsub.f32 %v6505, %v6842
    %6844 = vmatpush1.msra.mxu0 %v6843
    %6845 = vmatprep.subr.mxu0 0.0
    %v6846 = vand.u32 %v6506, 4294901760
    %v6847 = vsub.f32 %v6506, %v6846
    %6848 = vmatpush1.msra.mxu0 %v6847
    %6849 = vmatprep.subr.mxu0 0.0
    %v6850 = vand.u32 %v6507, 4294901760
    %v6851 = vsub.f32 %v6507, %v6850
    %6852 = vmatpush1.msra.mxu0 %v6851
    %6853 = vmatprep.subr.mxu0 0.0
    %v6854 = vand.u32 %v6508, 4294901760
    %v6855 = vsub.f32 %v6508, %v6854
    %6856 = vmatpush1.msra.mxu0 %v6855
    %6857 = vmatprep.subr.mxu0 0.0
    %v6858 = vand.u32 %v6509, 4294901760
    %v6859 = vsub.f32 %v6509, %v6858
    %6860 = vmatpush1.msra.mxu0 %v6859
    %6861 = vmatprep.subr.mxu0 0.0
    %v6862 = vand.u32 %v6510, 4294901760
    %v6863 = vsub.f32 %v6510, %v6862
    %6864 = vmatpush1.msra.mxu0 %v6863
    %6865 = vmatprep.subr.mxu0 0.0
    %6866 = vmatpush1.msra.mxu0 0.0
    %6867 = vmatprep.subr.mxu0 0.0
    %6868 = vmatpush1.msra.mxu0 0.0
    %6869 = vmatprep.subr.mxu0 0.0
    %6870 = vmatpush1.msra.mxu0 0.0
    %6871 = vmatprep.subr.mxu0 0.0
    %6872 = vmatpush1.msra.mxu0 0.0
    %6873 = vmatprep.subr.mxu0 0.0
    %6874 = vmatpush1.msra.mxu0 0.0
    %6875 = vmatprep.subr.mxu0 0.0
    %6876 = vmatpush1.msra.mxu0 0.0
    %6877 = vmatprep.subr.mxu0 0.0
    %6878 = vmatpush1.msra.mxu0 0.0
    %6879 = vmatprep.subr.mxu0 0.0
    %6880 = vmatpush1.msra.mxu0 0.0
    %6881 = vmatprep.subr.mxu0 0.0
    %6882 = vmatpush1.msra.mxu0 0.0
    %6883 = vmatprep.subr.mxu0 0.0
    %6884 = vmatpush1.msra.mxu0 0.0
    %6885 = vmatprep.subr.mxu0 0.0
    %6886 = vmatpush1.msra.mxu0 0.0
    %6887 = vmatprep.subr.mxu0 0.0
    %6888 = vmatpush1.msra.mxu0 0.0
    %6889 = vmatprep.subr.mxu0 0.0
    %6890 = vmatpush1.msra.mxu0 0.0
    %6891 = vmatprep.subr.mxu0 0.0
    %6892 = vmatpush1.msra.mxu0 0.0
    %6893 = vmatprep.subr.mxu0 0.0
    %6894 = vmatpush1.msra.mxu0 0.0
    %6895 = vmatprep.subr.mxu0 0.0
    %6896 = vmatpush1.msra.mxu0 0.0
    %6897 = vmatprep.mubr.f32.mxu0 0.0
    %v6898 = vand.u32 %v4928, 4294901760
    %v6899 = vsub.f32 %v4928, %v6898
    %6900 = vmatmul.mubr.f32.gmra.mrb[0].mxu0 %v6899
    %v6901 = vpop.f32.mrb[0].mxu0
    %v6902 = vadd.f32 %v6780, %v6901
    %v6903 = vpop.f32.mrb[0].mxu0
    %6904 = vmatprep.mubr.f32.mxu0 0.0
    %v6905 = vand.u32 %v4936, 4294901760
    %v6906 = vsub.f32 %v4936, %v6905
    %6907 = vmatmul.mubr.f32.gmra.mrb[0].mxu0 %v6906
    %v6908 = vpop.f32.mrb[0].mxu0
    %v6909 = vadd.f32 %v6786, %v6908
    %v6910 = vpop.f32.mrb[0].mxu0
    %6911 = vmatprep.mubr.f32.mxu0 0.0
    %v6912 = vand.u32 %v4931, 4294901760
    %v6913 = vsub.f32 %v4931, %v6912
    %6914 = vmatmul.mubr.f32.gmra.mrb[0].mxu0 %v6913
    %v6915 = vpop.f32.mrb[0].mxu0
    %v6916 = vadd.f32 %v6792, %v6915
    %v6917 = vpop.f32.mrb[0].mxu0
    %6918 = vmatprep.mubr.f32.mxu0 0.0
    %v6919 = vand.u32 %v4937, 4294901760
    %v6920 = vsub.f32 %v4937, %v6919
    %6921 = vmatmul.mubr.f32.gmra.mrb[0].mxu0 %v6920
    %v6922 = vpop.f32.mrb[0].mxu0
    %v6923 = vadd.f32 %v6798, %v6922
    %v6924 = vpop.f32.mrb[0].mxu0
    %6925 = vdwg.mxu0
    %6926 = vmatprep.subr.mxu0 0.0
    %v6927 = vand.u32 %v6495, 4294901760
    %6928 = vmatpush1.msra.mxu0 %v6927
    %6929 = vmatprep.subr.mxu0 0.0
    %v6930 = vand.u32 %v6496, 4294901760
    %6931 = vmatpush1.msra.mxu0 %v6930
    %6932 = vmatprep.subr.mxu0 0.0
    %v6933 = vand.u32 %v6497, 4294901760
    %6934 = vmatpush1.msra.mxu0 %v6933
    %6935 = vmatprep.subr.mxu0 0.0
    %v6936 = vand.u32 %v6498, 4294901760
    %6937 = vmatpush1.msra.mxu0 %v6936
    %6938 = vmatprep.subr.mxu0 0.0
    %v6939 = vand.u32 %v6499, 4294901760
    %6940 = vmatpush1.msra.mxu0 %v6939
    %6941 = vmatprep.subr.mxu0 0.0
    %v6942 = vand.u32 %v6500, 4294901760
    %6943 = vmatpush1.msra.mxu0 %v6942
    %6944 = vmatprep.subr.mxu0 0.0
    %v6945 = vand.u32 %v6501, 4294901760
    %6946 = vmatpush1.msra.mxu0 %v6945
    %6947 = vmatprep.subr.mxu0 0.0
    %v6948 = vand.u32 %v6502, 4294901760
    %6949 = vmatpush1.msra.mxu0 %v6948
    %6950 = vmatprep.subr.mxu0 0.0
    %v6951 = vand.u32 %v6503, 4294901760
    %6952 = vmatpush1.msra.mxu0 %v6951
    %6953 = vmatprep.subr.mxu0 0.0
    %v6954 = vand.u32 %v6504, 4294901760
    %6955 = vmatpush1.msra.mxu0 %v6954
    %6956 = vmatprep.subr.mxu0 0.0
    %v6957 = vand.u32 %v6505, 4294901760
    %6958 = vmatpush1.msra.mxu0 %v6957
    %6959 = vmatprep.subr.mxu0 0.0
    %v6960 = vand.u32 %v6506, 4294901760
    %6961 = vmatpush1.msra.mxu0 %v6960
    %6962 = vmatprep.subr.mxu0 0.0
    %v6963 = vand.u32 %v6507, 4294901760
    %6964 = vmatpush1.msra.mxu0 %v6963
    %6965 = vmatprep.subr.mxu0 0.0
    %v6966 = vand.u32 %v6508, 4294901760
    %6967 = vmatpush1.msra.mxu0 %v6966
    %6968 = vmatprep.subr.mxu0 0.0
    %v6969 = vand.u32 %v6509, 4294901760
    %6970 = vmatpush1.msra.mxu0 %v6969
    %6971 = vmatprep.subr.mxu0 0.0
    %v6972 = vand.u32 %v6510, 4294901760
    %6973 = vmatpush1.msra.mxu0 %v6972
    %6974 = vmatprep.subr.mxu0 0.0
    %6975 = vmatpush1.msra.mxu0 0.0
    %6976 = vmatprep.subr.mxu0 0.0
    %6977 = vmatpush1.msra.mxu0 0.0
    %6978 = vmatprep.subr.mxu0 0.0
    %6979 = vmatpush1.msra.mxu0 0.0
    %6980 = vmatprep.subr.mxu0 0.0
    %6981 = vmatpush1.msra.mxu0 0.0
    %6982 = vmatprep.subr.mxu0 0.0
    %6983 = vmatpush1.msra.mxu0 0.0
    %6984 = vmatprep.subr.mxu0 0.0
    %6985 = vmatpush1.msra.mxu0 0.0
    %6986 = vmatprep.subr.mxu0 0.0
    %6987 = vmatpush1.msra.mxu0 0.0
    %6988 = vmatprep.subr.mxu0 0.0
    %6989 = vmatpush1.msra.mxu0 0.0
    %6990 = vmatprep.subr.mxu0 0.0
    %6991 = vmatpush1.msra.mxu0 0.0
    %6992 = vmatprep.subr.mxu0 0.0
    %6993 = vmatpush1.msra.mxu0 0.0
    %6994 = vmatprep.subr.mxu0 0.0
    %6995 = vmatpush1.msra.mxu0 0.0
    %6996 = vmatprep.subr.mxu0 0.0
    %6997 = vmatpush1.msra.mxu0 0.0
    %6998 = vmatprep.subr.mxu0 0.0
    %6999 = vmatpush1.msra.mxu0 0.0
    %7000 = vmatprep.subr.mxu0 0.0
    %7001 = vmatpush1.msra.mxu0 0.0
    %7002 = vmatprep.subr.mxu0 0.0
    %7003 = vmatpush1.msra.mxu0 0.0
    %7004 = vmatprep.subr.mxu0 0.0
    %7005 = vmatpush1.msra.mxu0 0.0
    %7006 = vmatprep.mubr.f32.mxu0 0.0
    %v7007 = vand.u32 %v4928, 4294901760
    %v7008 = vsub.f32 %v4928, %v7007
    %v7009 = vand.u32 %v7008, 4294901760
    %7010 = vmatmul.mubr.f32.gmra.mrb[0].mxu0 %v7009
    %v7011 = vpop.f32.mrb[0].mxu0
    %v7012 = vadd.f32 %v6902, %v7011
    %v7013 = vpop.f32.mrb[0].mxu0
    %7014 = vmatprep.mubr.f32.mxu0 0.0
    %v7015 = vand.u32 %v4936, 4294901760
    %v7016 = vsub.f32 %v4936, %v7015
    %v7017 = vand.u32 %v7016, 4294901760
    %7018 = vmatmul.mubr.f32.gmra.mrb[0].mxu0 %v7017
    %v7019 = vpop.f32.mrb[0].mxu0
    %v7020 = vadd.f32 %v6909, %v7019
    %v7021 = vpop.f32.mrb[0].mxu0
    %7022 = vmatprep.mubr.f32.mxu0 0.0
    %v7023 = vand.u32 %v4931, 4294901760
    %v7024 = vsub.f32 %v4931, %v7023
    %v7025 = vand.u32 %v7024, 4294901760
    %7026 = vmatmul.mubr.f32.gmra.mrb[0].mxu0 %v7025
    %v7027 = vpop.f32.mrb[0].mxu0
    %v7028 = vadd.f32 %v6916, %v7027
    %v7029 = vpop.f32.mrb[0].mxu0
    %7030 = vmatprep.mubr.f32.mxu0 0.0
    %v7031 = vand.u32 %v4937, 4294901760
    %v7032 = vsub.f32 %v4937, %v7031
    %v7033 = vand.u32 %v7032, 4294901760
    %7034 = vmatmul.mubr.f32.gmra.mrb[0].mxu0 %v7033
    %v7035 = vpop.f32.mrb[0].mxu0
    %v7036 = vadd.f32 %v6923, %v7035
    %v7037 = vpop.f32.mrb[0].mxu0
    %7038 = vdwg.mxu0
    %7039 = vmatprep.subr.mxu0 0.0
    %v7040 = vand.u32 %v6495, 4294901760
    %v7041 = vsub.f32 %v6495, %v7040
    %v7042 = vand.u32 %v7041, 4294901760
    %7043 = vmatpush1.msra.mxu0 %v7042
    %7044 = vmatprep.subr.mxu0 0.0
    %v7045 = vand.u32 %v6496, 4294901760
    %v7046 = vsub.f32 %v6496, %v7045
    %v7047 = vand.u32 %v7046, 4294901760
    %7048 = vmatpush1.msra.mxu0 %v7047
    %7049 = vmatprep.subr.mxu0 0.0
    %v7050 = vand.u32 %v6497, 4294901760
    %v7051 = vsub.f32 %v6497, %v7050
    %v7052 = vand.u32 %v7051, 4294901760
    %7053 = vmatpush1.msra.mxu0 %v7052
    %7054 = vmatprep.subr.mxu0 0.0
    %v7055 = vand.u32 %v6498, 4294901760
    %v7056 = vsub.f32 %v6498, %v7055
    %v7057 = vand.u32 %v7056, 4294901760
    %7058 = vmatpush1.msra.mxu0 %v7057
    %7059 = vmatprep.subr.mxu0 0.0
    %v7060 = vand.u32 %v6499, 4294901760
    %v7061 = vsub.f32 %v6499, %v7060
    %v7062 = vand.u32 %v7061, 4294901760
    %7063 = vmatpush1.msra.mxu0 %v7062
    %7064 = vmatprep.subr.mxu0 0.0
    %v7065 = vand.u32 %v6500, 4294901760
    %v7066 = vsub.f32 %v6500, %v7065
    %v7067 = vand.u32 %v7066, 4294901760
    %7068 = vmatpush1.msra.mxu0 %v7067
    %7069 = vmatprep.subr.mxu0 0.0
    %v7070 = vand.u32 %v6501, 4294901760
    %v7071 = vsub.f32 %v6501, %v7070
    %v7072 = vand.u32 %v7071, 4294901760
    %7073 = vmatpush1.msra.mxu0 %v7072
    %7074 = vmatprep.subr.mxu0 0.0
    %v7075 = vand.u32 %v6502, 4294901760
    %v7076 = vsub.f32 %v6502, %v7075
    %v7077 = vand.u32 %v7076, 4294901760
    %7078 = vmatpush1.msra.mxu0 %v7077
    %7079 = vmatprep.subr.mxu0 0.0
    %v7080 = vand.u32 %v6503, 4294901760
    %v7081 = vsub.f32 %v6503, %v7080
    %v7082 = vand.u32 %v7081, 4294901760
    %7083 = vmatpush1.msra.mxu0 %v7082
    %7084 = vmatprep.subr.mxu0 0.0
    %v7085 = vand.u32 %v6504, 4294901760
    %v7086 = vsub.f32 %v6504, %v7085
    %v7087 = vand.u32 %v7086, 4294901760
    %7088 = vmatpush1.msra.mxu0 %v7087
    %7089 = vmatprep.subr.mxu0 0.0
    %v7090 = vand.u32 %v6505, 4294901760
    %v7091 = vsub.f32 %v6505, %v7090
    %v7092 = vand.u32 %v7091, 4294901760
    %7093 = vmatpush1.msra.mxu0 %v7092
    %7094 = vmatprep.subr.mxu0 0.0
    %v7095 = vand.u32 %v6506, 4294901760
    %v7096 = vsub.f32 %v6506, %v7095
    %v7097 = vand.u32 %v7096, 4294901760
    %7098 = vmatpush1.msra.mxu0 %v7097
    %7099 = vmatprep.subr.mxu0 0.0
    %v7100 = vand.u32 %v6507, 4294901760
    %v7101 = vsub.f32 %v6507, %v7100
    %v7102 = vand.u32 %v7101, 4294901760
    %7103 = vmatpush1.msra.mxu0 %v7102
    %7104 = vmatprep.subr.mxu0 0.0
    %v7105 = vand.u32 %v6508, 4294901760
    %v7106 = vsub.f32 %v6508, %v7105
    %v7107 = vand.u32 %v7106, 4294901760
    %7108 = vmatpush1.msra.mxu0 %v7107
    %7109 = vmatprep.subr.mxu0 0.0
    %v7110 = vand.u32 %v6509, 4294901760
    %v7111 = vsub.f32 %v6509, %v7110
    %v7112 = vand.u32 %v7111, 4294901760
    %7113 = vmatpush1.msra.mxu0 %v7112
    %7114 = vmatprep.subr.mxu0 0.0
    %v7115 = vand.u32 %v6510, 4294901760
    %v7116 = vsub.f32 %v6510, %v7115
    %v7117 = vand.u32 %v7116, 4294901760
    %7118 = vmatpush1.msra.mxu0 %v7117
    %7119 = vmatprep.subr.mxu0 0.0
    %7120 = vmatpush1.msra.mxu0 0.0
    %7121 = vmatprep.subr.mxu0 0.0
    %7122 = vmatpush1.msra.mxu0 0.0
    %7123 = vmatprep.subr.mxu0 0.0
    %7124 = vmatpush1.msra.mxu0 0.0
    %7125 = vmatprep.subr.mxu0 0.0
    %7126 = vmatpush1.msra.mxu0 0.0
    %7127 = vmatprep.subr.mxu0 0.0
    %7128 = vmatpush1.msra.mxu0 0.0
    %7129 = vmatprep.subr.mxu0 0.0
    %7130 = vmatpush1.msra.mxu0 0.0
    %7131 = vmatprep.subr.mxu0 0.0
    %7132 = vmatpush1.msra.mxu0 0.0
    %7133 = vmatprep.subr.mxu0 0.0
    %7134 = vmatpush1.msra.mxu0 0.0
    %7135 = vmatprep.subr.mxu0 0.0
    %7136 = vmatpush1.msra.mxu0 0.0
    %7137 = vmatprep.subr.mxu0 0.0
    %7138 = vmatpush1.msra.mxu0 0.0
    %7139 = vmatprep.subr.mxu0 0.0
    %7140 = vmatpush1.msra.mxu0 0.0
    %7141 = vmatprep.subr.mxu0 0.0
    %7142 = vmatpush1.msra.mxu0 0.0
    %7143 = vmatprep.subr.mxu0 0.0
    %7144 = vmatpush1.msra.mxu0 0.0
    %7145 = vmatprep.subr.mxu0 0.0
    %7146 = vmatpush1.msra.mxu0 0.0
    %7147 = vmatprep.subr.mxu0 0.0
    %7148 = vmatpush1.msra.mxu0 0.0
    %7149 = vmatprep.subr.mxu0 0.0
    %7150 = vmatpush1.msra.mxu0 0.0
    %7151 = vmatprep.mubr.f32.mxu0 0.0
    %v7152 = vand.u32 %v4928, 4294901760
    %7153 = vmatmul.mubr.f32.gmra.mrb[0].mxu0 %v7152
    %v7154 = vpop.f32.mrb[0].mxu0
    %v7155 = vadd.f32 %v7012, %v7154
    %v7156 = vpop.f32.mrb[0].mxu0
    %7157 = vmatprep.mubr.f32.mxu0 0.0
    %v7158 = vand.u32 %v4936, 4294901760
    %7159 = vmatmul.mubr.f32.gmra.mrb[0].mxu0 %v7158
    %v7160 = vpop.f32.mrb[0].mxu0
    %v7161 = vadd.f32 %v7020, %v7160
    %v7162 = vpop.f32.mrb[0].mxu0
    %7163 = vmatprep.mubr.f32.mxu0 0.0
    %v7164 = vand.u32 %v4931, 4294901760
    %7165 = vmatmul.mubr.f32.gmra.mrb[0].mxu0 %v7164
    %v7166 = vpop.f32.mrb[0].mxu0
    %v7167 = vadd.f32 %v7028, %v7166
    %v7168 = vpop.f32.mrb[0].mxu0
    %7169 = vmatprep.mubr.f32.mxu0 0.0
    %v7170 = vand.u32 %v4937, 4294901760
    %7171 = vmatmul.mubr.f32.gmra.mrb[0].mxu0 %v7170
    %v7172 = vpop.f32.mrb[0].mxu0
    %v7173 = vadd.f32 %v7036, %v7172
    %v7174 = vpop.f32.mrb[0].mxu0
    %7175 = vdwg.mxu0
    %7176 = vmatprep.subr.mxu0 0.0
    %v7177 = vand.u32 %v6495, 4294901760
    %7178 = vmatpush1.msra.mxu0 %v7177
    %7179 = vmatprep.subr.mxu0 0.0
    %v7180 = vand.u32 %v6496, 4294901760
    %7181 = vmatpush1.msra.mxu0 %v7180
    %7182 = vmatprep.subr.mxu0 0.0
    %v7183 = vand.u32 %v6497, 4294901760
    %7184 = vmatpush1.msra.mxu0 %v7183
    %7185 = vmatprep.subr.mxu0 0.0
    %v7186 = vand.u32 %v6498, 4294901760
    %7187 = vmatpush1.msra.mxu0 %v7186
    %7188 = vmatprep.subr.mxu0 0.0
    %v7189 = vand.u32 %v6499, 4294901760
    %7190 = vmatpush1.msra.mxu0 %v7189
    %7191 = vmatprep.subr.mxu0 0.0
    %v7192 = vand.u32 %v6500, 4294901760
    %7193 = vmatpush1.msra.mxu0 %v7192
    %7194 = vmatprep.subr.mxu0 0.0
    %v7195 = vand.u32 %v6501, 4294901760
    %7196 = vmatpush1.msra.mxu0 %v7195
    %7197 = vmatprep.subr.mxu0 0.0
    %v7198 = vand.u32 %v6502, 4294901760
    %7199 = vmatpush1.msra.mxu0 %v7198
    %7200 = vmatprep.subr.mxu0 0.0
    %v7201 = vand.u32 %v6503, 4294901760
    %7202 = vmatpush1.msra.mxu0 %v7201
    %7203 = vmatprep.subr.mxu0 0.0
    %v7204 = vand.u32 %v6504, 4294901760
    %7205 = vmatpush1.msra.mxu0 %v7204
    %7206 = vmatprep.subr.mxu0 0.0
    %v7207 = vand.u32 %v6505, 4294901760
    %7208 = vmatpush1.msra.mxu0 %v7207
    %7209 = vmatprep.subr.mxu0 0.0
    %v7210 = vand.u32 %v6506, 4294901760
    %7211 = vmatpush1.msra.mxu0 %v7210
    %7212 = vmatprep.subr.mxu0 0.0
    %v7213 = vand.u32 %v6507, 4294901760
    %7214 = vmatpush1.msra.mxu0 %v7213
    %7215 = vmatprep.subr.mxu0 0.0
    %v7216 = vand.u32 %v6508, 4294901760
    %7217 = vmatpush1.msra.mxu0 %v7216
    %7218 = vmatprep.subr.mxu0 0.0
    %v7219 = vand.u32 %v6509, 4294901760
    %7220 = vmatpush1.msra.mxu0 %v7219
    %7221 = vmatprep.subr.mxu0 0.0
    %v7222 = vand.u32 %v6510, 4294901760
    %7223 = vmatpush1.msra.mxu0 %v7222
    %7224 = vmatprep.subr.mxu0 0.0
    %7225 = vmatpush1.msra.mxu0 0.0
    %7226 = vmatprep.subr.mxu0 0.0
    %7227 = vmatpush1.msra.mxu0 0.0
    %7228 = vmatprep.subr.mxu0 0.0
    %7229 = vmatpush1.msra.mxu0 0.0
    %7230 = vmatprep.subr.mxu0 0.0
    %7231 = vmatpush1.msra.mxu0 0.0
    %7232 = vmatprep.subr.mxu0 0.0
    %7233 = vmatpush1.msra.mxu0 0.0
    %7234 = vmatprep.subr.mxu0 0.0
    %7235 = vmatpush1.msra.mxu0 0.0
    %7236 = vmatprep.subr.mxu0 0.0
    %7237 = vmatpush1.msra.mxu0 0.0
    %7238 = vmatprep.subr.mxu0 0.0
    %7239 = vmatpush1.msra.mxu0 0.0
    %7240 = vmatprep.subr.mxu0 0.0
    %7241 = vmatpush1.msra.mxu0 0.0
    %7242 = vmatprep.subr.mxu0 0.0
    %7243 = vmatpush1.msra.mxu0 0.0
    %7244 = vmatprep.subr.mxu0 0.0
    %7245 = vmatpush1.msra.mxu0 0.0
    %7246 = vmatprep.subr.mxu0 0.0
    %7247 = vmatpush1.msra.mxu0 0.0
    %7248 = vmatprep.subr.mxu0 0.0
    %7249 = vmatpush1.msra.mxu0 0.0
    %7250 = vmatprep.subr.mxu0 0.0
    %7251 = vmatpush1.msra.mxu0 0.0
    %7252 = vmatprep.subr.mxu0 0.0
    %7253 = vmatpush1.msra.mxu0 0.0
    %7254 = vmatprep.subr.mxu0 0.0
    %7255 = vmatpush1.msra.mxu0 0.0
    %7256 = vmatprep.mubr.f32.mxu0 0.0
    %v7257 = vand.u32 %v4928, 4294901760
    %7258 = vmatmul.mubr.f32.gmra.mrb[0].mxu0 %v7257
    %v7259 = vpop.f32.mrb[0].mxu0
    %v7260 = vadd.f32 %v7155, %v7259
    %v7261 = vpop.f32.mrb[0].mxu0
    %7262 = vmatprep.mubr.f32.mxu0 0.0
    %v7263 = vand.u32 %v4936, 4294901760
    %7264 = vmatmul.mubr.f32.gmra.mrb[0].mxu0 %v7263
    %v7265 = vpop.f32.mrb[0].mxu0
    %v7266 = vadd.f32 %v7161, %v7265
    %v7267 = vpop.f32.mrb[0].mxu0
    %7268 = vmatprep.mubr.f32.mxu0 0.0
    %v7269 = vand.u32 %v4931, 4294901760
    %7270 = vmatmul.mubr.f32.gmra.mrb[0].mxu0 %v7269
    %v7271 = vpop.f32.mrb[0].mxu0
    %v7272 = vadd.f32 %v7167, %v7271
    %v7273 = vpop.f32.mrb[0].mxu0
    %7274 = vmatprep.mubr.f32.mxu0 0.0
    %v7275 = vand.u32 %v4937, 4294901760
    %7276 = vmatmul.mubr.f32.gmra.mrb[0].mxu0 %v7275
    %v7277 = vpop.f32.mrb[0].mxu0
    %v7278 = vadd.f32 %v7173, %v7277
    %v7279 = vpop.f32.mrb[0].mxu0
    %7280 = vdwg.mxu0
    %v7281 = vadd.f32 %v6473, %v7260
    %v7282 = vadd.f32 %v6479, %v7266
    %v7283 = vadd.f32 %v6485, %v7272
    %v7284 = vadd.f32 %v6491, %v7278
    %7285 = vmatprep.subr.mxu0 0.0
    %v7286 = vand.u32 %v50, 4294901760
    %7287 = vmatpush1.msra.mxu0 %v7286
    %7288 = vmatprep.subr.mxu0 0.0
    %v7289 = vand.u32 %v51, 4294901760
    %7290 = vmatpush1.msra.mxu0 %v7289
    %7291 = vmatprep.subr.mxu0 0.0
    %v7292 = vand.u32 %v52, 4294901760
    %7293 = vmatpush1.msra.mxu0 %v7292
    %7294 = vmatprep.subr.mxu0 0.0
    %v7295 = vand.u32 %v53, 4294901760
    %7296 = vmatpush1.msra.mxu0 %v7295
    %7297 = vmatprep.subr.mxu0 0.0
    %v7298 = vand.u32 %v54, 4294901760
    %7299 = vmatpush1.msra.mxu0 %v7298
    %7300 = vmatprep.subr.mxu0 0.0
    %v7301 = vand.u32 %v55, 4294901760
    %7302 = vmatpush1.msra.mxu0 %v7301
    %7303 = vmatprep.subr.mxu0 0.0
    %v7304 = vand.u32 %v56, 4294901760
    %7305 = vmatpush1.msra.mxu0 %v7304
    %7306 = vmatprep.subr.mxu0 0.0
    %v7307 = vand.u32 %v57, 4294901760
    %7308 = vmatpush1.msra.mxu0 %v7307
    %7309 = vmatprep.subr.mxu0 0.0
    %v7310 = vand.u32 %v58, 4294901760
    %7311 = vmatpush1.msra.mxu0 %v7310
    %7312 = vmatprep.subr.mxu0 0.0
    %v7313 = vand.u32 %v59, 4294901760
    %7314 = vmatpush1.msra.mxu0 %v7313
    %7315 = vmatprep.subr.mxu0 0.0
    %v7316 = vand.u32 %v60, 4294901760
    %7317 = vmatpush1.msra.mxu0 %v7316
    %7318 = vmatprep.subr.mxu0 0.0
    %v7319 = vand.u32 %v61, 4294901760
    %7320 = vmatpush1.msra.mxu0 %v7319
    %7321 = vmatprep.subr.mxu0 0.0
    %v7322 = vand.u32 %v62, 4294901760
    %7323 = vmatpush1.msra.mxu0 %v7322
    %7324 = vmatprep.subr.mxu0 0.0
    %v7325 = vand.u32 %v63, 4294901760
    %7326 = vmatpush1.msra.mxu0 %v7325
    %7327 = vmatprep.subr.mxu0 0.0
    %v7328 = vand.u32 %v64, 4294901760
    %7329 = vmatpush1.msra.mxu0 %v7328
    %7330 = vmatprep.subr.mxu0 0.0
    %v7331 = vand.u32 %v65, 4294901760
    %7332 = vmatpush1.msra.mxu0 %v7331
    %7333 = vmatprep.subr.mxu0 0.0
    %7334 = vmatpush1.msra.mxu0 0.0
    %7335 = vmatprep.subr.mxu0 0.0
    %7336 = vmatpush1.msra.mxu0 0.0
    %7337 = vmatprep.subr.mxu0 0.0
    %7338 = vmatpush1.msra.mxu0 0.0
    %7339 = vmatprep.subr.mxu0 0.0
    %7340 = vmatpush1.msra.mxu0 0.0
    %7341 = vmatprep.subr.mxu0 0.0
    %7342 = vmatpush1.msra.mxu0 0.0
    %7343 = vmatprep.subr.mxu0 0.0
    %7344 = vmatpush1.msra.mxu0 0.0
    %7345 = vmatprep.subr.mxu0 0.0
    %7346 = vmatpush1.msra.mxu0 0.0
    %7347 = vmatprep.subr.mxu0 0.0
    %7348 = vmatpush1.msra.mxu0 0.0
    %7349 = vmatprep.subr.mxu0 0.0
    %7350 = vmatpush1.msra.mxu0 0.0
    %7351 = vmatprep.subr.mxu0 0.0
    %7352 = vmatpush1.msra.mxu0 0.0
    %7353 = vmatprep.subr.mxu0 0.0
    %7354 = vmatpush1.msra.mxu0 0.0
    %7355 = vmatprep.subr.mxu0 0.0
    %7356 = vmatpush1.msra.mxu0 0.0
    %7357 = vmatprep.subr.mxu0 0.0
    %7358 = vmatpush1.msra.mxu0 0.0
    %7359 = vmatprep.subr.mxu0 0.0
    %7360 = vmatpush1.msra.mxu0 0.0
    %7361 = vmatprep.subr.mxu0 0.0
    %7362 = vmatpush1.msra.mxu0 0.0
    %7363 = vmatprep.subr.mxu0 0.0
    %7364 = vmatpush1.msra.mxu0 0.0
    %7365 = vmatprep.mubr.f32.mxu0 0.0
    %v7366 = vand.u32 %v7281, 4294901760
    %v7367 = vsub.f32 %v7281, %v7366
    %v7368 = vand.u32 %v7367, 4294901760
    %v7369 = vsub.f32 %v7367, %v7368
    %v7370 = vand.u32 %v7369, 4294901760
    %7371 = vmatmul.mubr.f32.gmra.mrb[0].mxu0 %v7370
    %v7372 = vpop.f32.mrb[0].mxu0
    %v7373 = vadd.f32 0.0, %v7372
    %v7374 = vpop.f32.mrb[0].mxu0
    %7375 = vmatprep.mubr.f32.mxu0 0.0
    %v7376 = vand.u32 %v7282, 4294901760
    %v7377 = vsub.f32 %v7282, %v7376
    %v7378 = vand.u32 %v7377, 4294901760
    %v7379 = vsub.f32 %v7377, %v7378
    %v7380 = vand.u32 %v7379, 4294901760
    %7381 = vmatmul.mubr.f32.gmra.mrb[0].mxu0 %v7380
    %v7382 = vpop.f32.mrb[0].mxu0
    %v7383 = vadd.f32 0.0, %v7382
    %v7384 = vpop.f32.mrb[0].mxu0
    %7385 = vmatprep.mubr.f32.mxu0 0.0
    %v7386 = vand.u32 %v7283, 4294901760
    %v7387 = vsub.f32 %v7283, %v7386
    %v7388 = vand.u32 %v7387, 4294901760
    %v7389 = vsub.f32 %v7387, %v7388
    %v7390 = vand.u32 %v7389, 4294901760
    %7391 = vmatmul.mubr.f32.gmra.mrb[0].mxu0 %v7390
    %v7392 = vpop.f32.mrb[0].mxu0
    %v7393 = vadd.f32 0.0, %v7392
    %v7394 = vpop.f32.mrb[0].mxu0
    %7395 = vmatprep.mubr.f32.mxu0 0.0
    %v7396 = vand.u32 %v7284, 4294901760
    %v7397 = vsub.f32 %v7284, %v7396
    %v7398 = vand.u32 %v7397, 4294901760
    %v7399 = vsub.f32 %v7397, %v7398
    %v7400 = vand.u32 %v7399, 4294901760
    %7401 = vmatmul.mubr.f32.gmra.mrb[0].mxu0 %v7400
    %v7402 = vpop.f32.mrb[0].mxu0
    %v7403 = vadd.f32 0.0, %v7402
    %v7404 = vpop.f32.mrb[0].mxu0
    %7405 = vdwg.mxu0
    %7406 = vmatprep.subr.mxu0 0.0
    %v7407 = vand.u32 %v50, 4294901760
    %v7408 = vsub.f32 %v50, %v7407
    %v7409 = vand.u32 %v7408, 4294901760
    %v7410 = vsub.f32 %v7408, %v7409
    %v7411 = vand.u32 %v7410, 4294901760
    %7412 = vmatpush1.msra.mxu0 %v7411
    %7413 = vmatprep.subr.mxu0 0.0
    %v7414 = vand.u32 %v51, 4294901760
    %v7415 = vsub.f32 %v51, %v7414
    %v7416 = vand.u32 %v7415, 4294901760
    %v7417 = vsub.f32 %v7415, %v7416
    %v7418 = vand.u32 %v7417, 4294901760
    %7419 = vmatpush1.msra.mxu0 %v7418
    %7420 = vmatprep.subr.mxu0 0.0
    %v7421 = vand.u32 %v52, 4294901760
    %v7422 = vsub.f32 %v52, %v7421
    %v7423 = vand.u32 %v7422, 4294901760
    %v7424 = vsub.f32 %v7422, %v7423
    %v7425 = vand.u32 %v7424, 4294901760
    %7426 = vmatpush1.msra.mxu0 %v7425
    %7427 = vmatprep.subr.mxu0 0.0
    %v7428 = vand.u32 %v53, 4294901760
    %v7429 = vsub.f32 %v53, %v7428
    %v7430 = vand.u32 %v7429, 4294901760
    %v7431 = vsub.f32 %v7429, %v7430
    %v7432 = vand.u32 %v7431, 4294901760
    %7433 = vmatpush1.msra.mxu0 %v7432
    %7434 = vmatprep.subr.mxu0 0.0
    %v7435 = vand.u32 %v54, 4294901760
    %v7436 = vsub.f32 %v54, %v7435
    %v7437 = vand.u32 %v7436, 4294901760
    %v7438 = vsub.f32 %v7436, %v7437
    %v7439 = vand.u32 %v7438, 4294901760
    %7440 = vmatpush1.msra.mxu0 %v7439
    %7441 = vmatprep.subr.mxu0 0.0
    %v7442 = vand.u32 %v55, 4294901760
    %v7443 = vsub.f32 %v55, %v7442
    %v7444 = vand.u32 %v7443, 4294901760
    %v7445 = vsub.f32 %v7443, %v7444
    %v7446 = vand.u32 %v7445, 4294901760
    %7447 = vmatpush1.msra.mxu0 %v7446
    %7448 = vmatprep.subr.mxu0 0.0
    %v7449 = vand.u32 %v56, 4294901760
    %v7450 = vsub.f32 %v56, %v7449
    %v7451 = vand.u32 %v7450, 4294901760
    %v7452 = vsub.f32 %v7450, %v7451
    %v7453 = vand.u32 %v7452, 4294901760
    %7454 = vmatpush1.msra.mxu0 %v7453
    %7455 = vmatprep.subr.mxu0 0.0
    %v7456 = vand.u32 %v57, 4294901760
    %v7457 = vsub.f32 %v57, %v7456
    %v7458 = vand.u32 %v7457, 4294901760
    %v7459 = vsub.f32 %v7457, %v7458
    %v7460 = vand.u32 %v7459, 4294901760
    %7461 = vmatpush1.msra.mxu0 %v7460
    %7462 = vmatprep.subr.mxu0 0.0
    %v7463 = vand.u32 %v58, 4294901760
    %v7464 = vsub.f32 %v58, %v7463
    %v7465 = vand.u32 %v7464, 4294901760
    %v7466 = vsub.f32 %v7464, %v7465
    %v7467 = vand.u32 %v7466, 4294901760
    %7468 = vmatpush1.msra.mxu0 %v7467
    %7469 = vmatprep.subr.mxu0 0.0
    %v7470 = vand.u32 %v59, 4294901760
    %v7471 = vsub.f32 %v59, %v7470
    %v7472 = vand.u32 %v7471, 4294901760
    %v7473 = vsub.f32 %v7471, %v7472
    %v7474 = vand.u32 %v7473, 4294901760
    %7475 = vmatpush1.msra.mxu0 %v7474
    %7476 = vmatprep.subr.mxu0 0.0
    %v7477 = vand.u32 %v60, 4294901760
    %v7478 = vsub.f32 %v60, %v7477
    %v7479 = vand.u32 %v7478, 4294901760
    %v7480 = vsub.f32 %v7478, %v7479
    %v7481 = vand.u32 %v7480, 4294901760
    %7482 = vmatpush1.msra.mxu0 %v7481
    %7483 = vmatprep.subr.mxu0 0.0
    %v7484 = vand.u32 %v61, 4294901760
    %v7485 = vsub.f32 %v61, %v7484
    %v7486 = vand.u32 %v7485, 4294901760
    %v7487 = vsub.f32 %v7485, %v7486
    %v7488 = vand.u32 %v7487, 4294901760
    %7489 = vmatpush1.msra.mxu0 %v7488
    %7490 = vmatprep.subr.mxu0 0.0
    %v7491 = vand.u32 %v62, 4294901760
    %v7492 = vsub.f32 %v62, %v7491
    %v7493 = vand.u32 %v7492, 4294901760
    %v7494 = vsub.f32 %v7492, %v7493
    %v7495 = vand.u32 %v7494, 4294901760
    %7496 = vmatpush1.msra.mxu0 %v7495
    %7497 = vmatprep.subr.mxu0 0.0
    %v7498 = vand.u32 %v63, 4294901760
    %v7499 = vsub.f32 %v63, %v7498
    %v7500 = vand.u32 %v7499, 4294901760
    %v7501 = vsub.f32 %v7499, %v7500
    %v7502 = vand.u32 %v7501, 4294901760
    %7503 = vmatpush1.msra.mxu0 %v7502
    %7504 = vmatprep.subr.mxu0 0.0
    %v7505 = vand.u32 %v64, 4294901760
    %v7506 = vsub.f32 %v64, %v7505
    %v7507 = vand.u32 %v7506, 4294901760
    %v7508 = vsub.f32 %v7506, %v7507
    %v7509 = vand.u32 %v7508, 4294901760
    %7510 = vmatpush1.msra.mxu0 %v7509
    %7511 = vmatprep.subr.mxu0 0.0
    %v7512 = vand.u32 %v65, 4294901760
    %v7513 = vsub.f32 %v65, %v7512
    %v7514 = vand.u32 %v7513, 4294901760
    %v7515 = vsub.f32 %v7513, %v7514
    %v7516 = vand.u32 %v7515, 4294901760
    %7517 = vmatpush1.msra.mxu0 %v7516
    %7518 = vmatprep.subr.mxu0 0.0
    %7519 = vmatpush1.msra.mxu0 0.0
    %7520 = vmatprep.subr.mxu0 0.0
    %7521 = vmatpush1.msra.mxu0 0.0
    %7522 = vmatprep.subr.mxu0 0.0
    %7523 = vmatpush1.msra.mxu0 0.0
    %7524 = vmatprep.subr.mxu0 0.0
    %7525 = vmatpush1.msra.mxu0 0.0
    %7526 = vmatprep.subr.mxu0 0.0
    %7527 = vmatpush1.msra.mxu0 0.0
    %7528 = vmatprep.subr.mxu0 0.0
    %7529 = vmatpush1.msra.mxu0 0.0
    %7530 = vmatprep.subr.mxu0 0.0
    %7531 = vmatpush1.msra.mxu0 0.0
    %7532 = vmatprep.subr.mxu0 0.0
    %7533 = vmatpush1.msra.mxu0 0.0
    %7534 = vmatprep.subr.mxu0 0.0
    %7535 = vmatpush1.msra.mxu0 0.0
    %7536 = vmatprep.subr.mxu0 0.0
    %7537 = vmatpush1.msra.mxu0 0.0
    %7538 = vmatprep.subr.mxu0 0.0
    %7539 = vmatpush1.msra.mxu0 0.0
    %7540 = vmatprep.subr.mxu0 0.0
    %7541 = vmatpush1.msra.mxu0 0.0
    %7542 = vmatprep.subr.mxu0 0.0
    %7543 = vmatpush1.msra.mxu0 0.0
    %7544 = vmatprep.subr.mxu0 0.0
    %7545 = vmatpush1.msra.mxu0 0.0
    %7546 = vmatprep.subr.mxu0 0.0
    %7547 = vmatpush1.msra.mxu0 0.0
    %7548 = vmatprep.subr.mxu0 0.0
    %7549 = vmatpush1.msra.mxu0 0.0
    %7550 = vmatprep.mubr.f32.mxu0 0.0
    %v7551 = vand.u32 %v7281, 4294901760
    %7552 = vmatmul.mubr.f32.gmra.mrb[0].mxu0 %v7551
    %v7553 = vpop.f32.mrb[0].mxu0
    %v7554 = vadd.f32 %v7373, %v7553
    %v7555 = vpop.f32.mrb[0].mxu0
    %7556 = vmatprep.mubr.f32.mxu0 0.0
    %v7557 = vand.u32 %v7282, 4294901760
    %7558 = vmatmul.mubr.f32.gmra.mrb[0].mxu0 %v7557
    %v7559 = vpop.f32.mrb[0].mxu0
    %v7560 = vadd.f32 %v7383, %v7559
    %v7561 = vpop.f32.mrb[0].mxu0
    %7562 = vmatprep.mubr.f32.mxu0 0.0
    %v7563 = vand.u32 %v7283, 4294901760
    %7564 = vmatmul.mubr.f32.gmra.mrb[0].mxu0 %v7563
    %v7565 = vpop.f32.mrb[0].mxu0
    %v7566 = vadd.f32 %v7393, %v7565
    %v7567 = vpop.f32.mrb[0].mxu0
    %7568 = vmatprep.mubr.f32.mxu0 0.0
    %v7569 = vand.u32 %v7284, 4294901760
    %7570 = vmatmul.mubr.f32.gmra.mrb[0].mxu0 %v7569
    %v7571 = vpop.f32.mrb[0].mxu0
    %v7572 = vadd.f32 %v7403, %v7571
    %v7573 = vpop.f32.mrb[0].mxu0
    %7574 = vdwg.mxu0
    %7575 = vmatprep.subr.mxu0 0.0
    %v7576 = vand.u32 %v50, 4294901760
    %v7577 = vsub.f32 %v50, %v7576
    %7578 = vmatpush1.msra.mxu0 %v7577
    %7579 = vmatprep.subr.mxu0 0.0
    %v7580 = vand.u32 %v51, 4294901760
    %v7581 = vsub.f32 %v51, %v7580
    %7582 = vmatpush1.msra.mxu0 %v7581
    %7583 = vmatprep.subr.mxu0 0.0
    %v7584 = vand.u32 %v52, 4294901760
    %v7585 = vsub.f32 %v52, %v7584
    %7586 = vmatpush1.msra.mxu0 %v7585
    %7587 = vmatprep.subr.mxu0 0.0
    %v7588 = vand.u32 %v53, 4294901760
    %v7589 = vsub.f32 %v53, %v7588
    %7590 = vmatpush1.msra.mxu0 %v7589
    %7591 = vmatprep.subr.mxu0 0.0
    %v7592 = vand.u32 %v54, 4294901760
    %v7593 = vsub.f32 %v54, %v7592
    %7594 = vmatpush1.msra.mxu0 %v7593
    %7595 = vmatprep.subr.mxu0 0.0
    %v7596 = vand.u32 %v55, 4294901760
    %v7597 = vsub.f32 %v55, %v7596
    %7598 = vmatpush1.msra.mxu0 %v7597
    %7599 = vmatprep.subr.mxu0 0.0
    %v7600 = vand.u32 %v56, 4294901760
    %v7601 = vsub.f32 %v56, %v7600
    %7602 = vmatpush1.msra.mxu0 %v7601
    %7603 = vmatprep.subr.mxu0 0.0
    %v7604 = vand.u32 %v57, 4294901760
    %v7605 = vsub.f32 %v57, %v7604
    %7606 = vmatpush1.msra.mxu0 %v7605
    %7607 = vmatprep.subr.mxu0 0.0
    %v7608 = vand.u32 %v58, 4294901760
    %v7609 = vsub.f32 %v58, %v7608
    %7610 = vmatpush1.msra.mxu0 %v7609
    %7611 = vmatprep.subr.mxu0 0.0
    %v7612 = vand.u32 %v59, 4294901760
    %v7613 = vsub.f32 %v59, %v7612
    %7614 = vmatpush1.msra.mxu0 %v7613
    %7615 = vmatprep.subr.mxu0 0.0
    %v7616 = vand.u32 %v60, 4294901760
    %v7617 = vsub.f32 %v60, %v7616
    %7618 = vmatpush1.msra.mxu0 %v7617
    %7619 = vmatprep.subr.mxu0 0.0
    %v7620 = vand.u32 %v61, 4294901760
    %v7621 = vsub.f32 %v61, %v7620
    %7622 = vmatpush1.msra.mxu0 %v7621
    %7623 = vmatprep.subr.mxu0 0.0
    %v7624 = vand.u32 %v62, 4294901760
    %v7625 = vsub.f32 %v62, %v7624
    %7626 = vmatpush1.msra.mxu0 %v7625
    %7627 = vmatprep.subr.mxu0 0.0
    %v7628 = vand.u32 %v63, 4294901760
    %v7629 = vsub.f32 %v63, %v7628
    %7630 = vmatpush1.msra.mxu0 %v7629
    %7631 = vmatprep.subr.mxu0 0.0
    %v7632 = vand.u32 %v64, 4294901760
    %v7633 = vsub.f32 %v64, %v7632
    %7634 = vmatpush1.msra.mxu0 %v7633
    %7635 = vmatprep.subr.mxu0 0.0
    %v7636 = vand.u32 %v65, 4294901760
    %v7637 = vsub.f32 %v65, %v7636
    %7638 = vmatpush1.msra.mxu0 %v7637
    %7639 = vmatprep.subr.mxu0 0.0
    %7640 = vmatpush1.msra.mxu0 0.0
    %7641 = vmatprep.subr.mxu0 0.0
    %7642 = vmatpush1.msra.mxu0 0.0
    %7643 = vmatprep.subr.mxu0 0.0
    %7644 = vmatpush1.msra.mxu0 0.0
    %7645 = vmatprep.subr.mxu0 0.0
    %7646 = vmatpush1.msra.mxu0 0.0
    %7647 = vmatprep.subr.mxu0 0.0
    %7648 = vmatpush1.msra.mxu0 0.0
    %7649 = vmatprep.subr.mxu0 0.0
    %7650 = vmatpush1.msra.mxu0 0.0
    %7651 = vmatprep.subr.mxu0 0.0
    %7652 = vmatpush1.msra.mxu0 0.0
    %7653 = vmatprep.subr.mxu0 0.0
    %7654 = vmatpush1.msra.mxu0 0.0
    %7655 = vmatprep.subr.mxu0 0.0
    %7656 = vmatpush1.msra.mxu0 0.0
    %7657 = vmatprep.subr.mxu0 0.0
    %7658 = vmatpush1.msra.mxu0 0.0
    %7659 = vmatprep.subr.mxu0 0.0
    %7660 = vmatpush1.msra.mxu0 0.0
    %7661 = vmatprep.subr.mxu0 0.0
    %7662 = vmatpush1.msra.mxu0 0.0
    %7663 = vmatprep.subr.mxu0 0.0
    %7664 = vmatpush1.msra.mxu0 0.0
    %7665 = vmatprep.subr.mxu0 0.0
    %7666 = vmatpush1.msra.mxu0 0.0
    %7667 = vmatprep.subr.mxu0 0.0
    %7668 = vmatpush1.msra.mxu0 0.0
    %7669 = vmatprep.subr.mxu0 0.0
    %7670 = vmatpush1.msra.mxu0 0.0
    %7671 = vmatprep.mubr.f32.mxu0 0.0
    %v7672 = vand.u32 %v7281, 4294901760
    %v7673 = vsub.f32 %v7281, %v7672
    %7674 = vmatmul.mubr.f32.gmra.mrb[0].mxu0 %v7673
    %v7675 = vpop.f32.mrb[0].mxu0
    %v7676 = vadd.f32 %v7554, %v7675
    %v7677 = vpop.f32.mrb[0].mxu0
    %7678 = vmatprep.mubr.f32.mxu0 0.0
    %v7679 = vand.u32 %v7282, 4294901760
    %v7680 = vsub.f32 %v7282, %v7679
    %7681 = vmatmul.mubr.f32.gmra.mrb[0].mxu0 %v7680
    %v7682 = vpop.f32.mrb[0].mxu0
    %v7683 = vadd.f32 %v7560, %v7682
    %v7684 = vpop.f32.mrb[0].mxu0
    %7685 = vmatprep.mubr.f32.mxu0 0.0
    %v7686 = vand.u32 %v7283, 4294901760
    %v7687 = vsub.f32 %v7283, %v7686
    %7688 = vmatmul.mubr.f32.gmra.mrb[0].mxu0 %v7687
    %v7689 = vpop.f32.mrb[0].mxu0
    %v7690 = vadd.f32 %v7566, %v7689
    %v7691 = vpop.f32.mrb[0].mxu0
    %7692 = vmatprep.mubr.f32.mxu0 0.0
    %v7693 = vand.u32 %v7284, 4294901760
    %v7694 = vsub.f32 %v7284, %v7693
    %7695 = vmatmul.mubr.f32.gmra.mrb[0].mxu0 %v7694
    %v7696 = vpop.f32.mrb[0].mxu0
    %v7697 = vadd.f32 %v7572, %v7696
    %v7698 = vpop.f32.mrb[0].mxu0
    %7699 = vdwg.mxu0
    %7700 = vmatprep.subr.mxu0 0.0
    %v7701 = vand.u32 %v50, 4294901760
    %7702 = vmatpush1.msra.mxu0 %v7701
    %7703 = vmatprep.subr.mxu0 0.0
    %v7704 = vand.u32 %v51, 4294901760
    %7705 = vmatpush1.msra.mxu0 %v7704
    %7706 = vmatprep.subr.mxu0 0.0
    %v7707 = vand.u32 %v52, 4294901760
    %7708 = vmatpush1.msra.mxu0 %v7707
    %7709 = vmatprep.subr.mxu0 0.0
    %v7710 = vand.u32 %v53, 4294901760
    %7711 = vmatpush1.msra.mxu0 %v7710
    %7712 = vmatprep.subr.mxu0 0.0
    %v7713 = vand.u32 %v54, 4294901760
    %7714 = vmatpush1.msra.mxu0 %v7713
    %7715 = vmatprep.subr.mxu0 0.0
    %v7716 = vand.u32 %v55, 4294901760
    %7717 = vmatpush1.msra.mxu0 %v7716
    %7718 = vmatprep.subr.mxu0 0.0
    %v7719 = vand.u32 %v56, 4294901760
    %7720 = vmatpush1.msra.mxu0 %v7719
    %7721 = vmatprep.subr.mxu0 0.0
    %v7722 = vand.u32 %v57, 4294901760
    %7723 = vmatpush1.msra.mxu0 %v7722
    %7724 = vmatprep.subr.mxu0 0.0
    %v7725 = vand.u32 %v58, 4294901760
    %7726 = vmatpush1.msra.mxu0 %v7725
    %7727 = vmatprep.subr.mxu0 0.0
    %v7728 = vand.u32 %v59, 4294901760
    %7729 = vmatpush1.msra.mxu0 %v7728
    %7730 = vmatprep.subr.mxu0 0.0
    %v7731 = vand.u32 %v60, 4294901760
    %7732 = vmatpush1.msra.mxu0 %v7731
    %7733 = vmatprep.subr.mxu0 0.0
    %v7734 = vand.u32 %v61, 4294901760
    %7735 = vmatpush1.msra.mxu0 %v7734
    %7736 = vmatprep.subr.mxu0 0.0
    %v7737 = vand.u32 %v62, 4294901760
    %7738 = vmatpush1.msra.mxu0 %v7737
    %7739 = vmatprep.subr.mxu0 0.0
    %v7740 = vand.u32 %v63, 4294901760
    %7741 = vmatpush1.msra.mxu0 %v7740
    %7742 = vmatprep.subr.mxu0 0.0
    %v7743 = vand.u32 %v64, 4294901760
    %7744 = vmatpush1.msra.mxu0 %v7743
    %7745 = vmatprep.subr.mxu0 0.0
    %v7746 = vand.u32 %v65, 4294901760
    %7747 = vmatpush1.msra.mxu0 %v7746
    %7748 = vmatprep.subr.mxu0 0.0
    %7749 = vmatpush1.msra.mxu0 0.0
    %7750 = vmatprep.subr.mxu0 0.0
    %7751 = vmatpush1.msra.mxu0 0.0
    %7752 = vmatprep.subr.mxu0 0.0
    %7753 = vmatpush1.msra.mxu0 0.0
    %7754 = vmatprep.subr.mxu0 0.0
    %7755 = vmatpush1.msra.mxu0 0.0
    %7756 = vmatprep.subr.mxu0 0.0
    %7757 = vmatpush1.msra.mxu0 0.0
    %7758 = vmatprep.subr.mxu0 0.0
    %7759 = vmatpush1.msra.mxu0 0.0
    %7760 = vmatprep.subr.mxu0 0.0
    %7761 = vmatpush1.msra.mxu0 0.0
    %7762 = vmatprep.subr.mxu0 0.0
    %7763 = vmatpush1.msra.mxu0 0.0
    %7764 = vmatprep.subr.mxu0 0.0
    %7765 = vmatpush1.msra.mxu0 0.0
    %7766 = vmatprep.subr.mxu0 0.0
    %7767 = vmatpush1.msra.mxu0 0.0
    %7768 = vmatprep.subr.mxu0 0.0
    %7769 = vmatpush1.msra.mxu0 0.0
    %7770 = vmatprep.subr.mxu0 0.0
    %7771 = vmatpush1.msra.mxu0 0.0
    %7772 = vmatprep.subr.mxu0 0.0
    %7773 = vmatpush1.msra.mxu0 0.0
    %7774 = vmatprep.subr.mxu0 0.0
    %7775 = vmatpush1.msra.mxu0 0.0
    %7776 = vmatprep.subr.mxu0 0.0
    %7777 = vmatpush1.msra.mxu0 0.0
    %7778 = vmatprep.subr.mxu0 0.0
    %7779 = vmatpush1.msra.mxu0 0.0
    %7780 = vmatprep.mubr.f32.mxu0 0.0
    %v7781 = vand.u32 %v7281, 4294901760
    %v7782 = vsub.f32 %v7281, %v7781
    %v7783 = vand.u32 %v7782, 4294901760
    %7784 = vmatmul.mubr.f32.gmra.mrb[0].mxu0 %v7783
    %v7785 = vpop.f32.mrb[0].mxu0
    %v7786 = vadd.f32 %v7676, %v7785
    %v7787 = vpop.f32.mrb[0].mxu0
    %7788 = vmatprep.mubr.f32.mxu0 0.0
    %v7789 = vand.u32 %v7282, 4294901760
    %v7790 = vsub.f32 %v7282, %v7789
    %v7791 = vand.u32 %v7790, 4294901760
    %7792 = vmatmul.mubr.f32.gmra.mrb[0].mxu0 %v7791
    %v7793 = vpop.f32.mrb[0].mxu0
    %v7794 = vadd.f32 %v7683, %v7793
    %v7795 = vpop.f32.mrb[0].mxu0
    %7796 = vmatprep.mubr.f32.mxu0 0.0
    %v7797 = vand.u32 %v7283, 4294901760
    %v7798 = vsub.f32 %v7283, %v7797
    %v7799 = vand.u32 %v7798, 4294901760
    %7800 = vmatmul.mubr.f32.gmra.mrb[0].mxu0 %v7799
    %v7801 = vpop.f32.mrb[0].mxu0
    %v7802 = vadd.f32 %v7690, %v7801
    %v7803 = vpop.f32.mrb[0].mxu0
    %7804 = vmatprep.mubr.f32.mxu0 0.0
    %v7805 = vand.u32 %v7284, 4294901760
    %v7806 = vsub.f32 %v7284, %v7805
    %v7807 = vand.u32 %v7806, 4294901760
    %7808 = vmatmul.mubr.f32.gmra.mrb[0].mxu0 %v7807
    %v7809 = vpop.f32.mrb[0].mxu0
    %v7810 = vadd.f32 %v7697, %v7809
    %v7811 = vpop.f32.mrb[0].mxu0
    %7812 = vdwg.mxu0
    %7813 = vmatprep.subr.mxu0 0.0
    %v7814 = vand.u32 %v50, 4294901760
    %v7815 = vsub.f32 %v50, %v7814
    %v7816 = vand.u32 %v7815, 4294901760
    %7817 = vmatpush1.msra.mxu0 %v7816
    %7818 = vmatprep.subr.mxu0 0.0
    %v7819 = vand.u32 %v51, 4294901760
    %v7820 = vsub.f32 %v51, %v7819
    %v7821 = vand.u32 %v7820, 4294901760
    %7822 = vmatpush1.msra.mxu0 %v7821
    %7823 = vmatprep.subr.mxu0 0.0
    %v7824 = vand.u32 %v52, 4294901760
    %v7825 = vsub.f32 %v52, %v7824
    %v7826 = vand.u32 %v7825, 4294901760
    %7827 = vmatpush1.msra.mxu0 %v7826
    %7828 = vmatprep.subr.mxu0 0.0
    %v7829 = vand.u32 %v53, 4294901760
    %v7830 = vsub.f32 %v53, %v7829
    %v7831 = vand.u32 %v7830, 4294901760
    %7832 = vmatpush1.msra.mxu0 %v7831
    %7833 = vmatprep.subr.mxu0 0.0
    %v7834 = vand.u32 %v54, 4294901760
    %v7835 = vsub.f32 %v54, %v7834
    %v7836 = vand.u32 %v7835, 4294901760
    %7837 = vmatpush1.msra.mxu0 %v7836
    %7838 = vmatprep.subr.mxu0 0.0
    %v7839 = vand.u32 %v55, 4294901760
    %v7840 = vsub.f32 %v55, %v7839
    %v7841 = vand.u32 %v7840, 4294901760
    %7842 = vmatpush1.msra.mxu0 %v7841
    %7843 = vmatprep.subr.mxu0 0.0
    %v7844 = vand.u32 %v56, 4294901760
    %v7845 = vsub.f32 %v56, %v7844
    %v7846 = vand.u32 %v7845, 4294901760
    %7847 = vmatpush1.msra.mxu0 %v7846
    %7848 = vmatprep.subr.mxu0 0.0
    %v7849 = vand.u32 %v57, 4294901760
    %v7850 = vsub.f32 %v57, %v7849
    %v7851 = vand.u32 %v7850, 4294901760
    %7852 = vmatpush1.msra.mxu0 %v7851
    %7853 = vmatprep.subr.mxu0 0.0
    %v7854 = vand.u32 %v58, 4294901760
    %v7855 = vsub.f32 %v58, %v7854
    %v7856 = vand.u32 %v7855, 4294901760
    %7857 = vmatpush1.msra.mxu0 %v7856
    %7858 = vmatprep.subr.mxu0 0.0
    %v7859 = vand.u32 %v59, 4294901760
    %v7860 = vsub.f32 %v59, %v7859
    %v7861 = vand.u32 %v7860, 4294901760
    %7862 = vmatpush1.msra.mxu0 %v7861
    %7863 = vmatprep.subr.mxu0 0.0
    %v7864 = vand.u32 %v60, 4294901760
    %v7865 = vsub.f32 %v60, %v7864
    %v7866 = vand.u32 %v7865, 4294901760
    %7867 = vmatpush1.msra.mxu0 %v7866
    %7868 = vmatprep.subr.mxu0 0.0
    %v7869 = vand.u32 %v61, 4294901760
    %v7870 = vsub.f32 %v61, %v7869
    %v7871 = vand.u32 %v7870, 4294901760
    %7872 = vmatpush1.msra.mxu0 %v7871
    %7873 = vmatprep.subr.mxu0 0.0
    %v7874 = vand.u32 %v62, 4294901760
    %v7875 = vsub.f32 %v62, %v7874
    %v7876 = vand.u32 %v7875, 4294901760
    %7877 = vmatpush1.msra.mxu0 %v7876
    %7878 = vmatprep.subr.mxu0 0.0
    %v7879 = vand.u32 %v63, 4294901760
    %v7880 = vsub.f32 %v63, %v7879
    %v7881 = vand.u32 %v7880, 4294901760
    %7882 = vmatpush1.msra.mxu0 %v7881
    %7883 = vmatprep.subr.mxu0 0.0
    %v7884 = vand.u32 %v64, 4294901760
    %v7885 = vsub.f32 %v64, %v7884
    %v7886 = vand.u32 %v7885, 4294901760
    %7887 = vmatpush1.msra.mxu0 %v7886
    %7888 = vmatprep.subr.mxu0 0.0
    %v7889 = vand.u32 %v65, 4294901760
    %v7890 = vsub.f32 %v65, %v7889
    %v7891 = vand.u32 %v7890, 4294901760
    %7892 = vmatpush1.msra.mxu0 %v7891
    %7893 = vmatprep.subr.mxu0 0.0
    %7894 = vmatpush1.msra.mxu0 0.0
    %7895 = vmatprep.subr.mxu0 0.0
    %7896 = vmatpush1.msra.mxu0 0.0
    %7897 = vmatprep.subr.mxu0 0.0
    %7898 = vmatpush1.msra.mxu0 0.0
    %7899 = vmatprep.subr.mxu0 0.0
    %7900 = vmatpush1.msra.mxu0 0.0
    %7901 = vmatprep.subr.mxu0 0.0
    %7902 = vmatpush1.msra.mxu0 0.0
    %7903 = vmatprep.subr.mxu0 0.0
    %7904 = vmatpush1.msra.mxu0 0.0
    %7905 = vmatprep.subr.mxu0 0.0
    %7906 = vmatpush1.msra.mxu0 0.0
    %7907 = vmatprep.subr.mxu0 0.0
    %7908 = vmatpush1.msra.mxu0 0.0
    %7909 = vmatprep.subr.mxu0 0.0
    %7910 = vmatpush1.msra.mxu0 0.0
    %7911 = vmatprep.subr.mxu0 0.0
    %7912 = vmatpush1.msra.mxu0 0.0
    %7913 = vmatprep.subr.mxu0 0.0
    %7914 = vmatpush1.msra.mxu0 0.0
    %7915 = vmatprep.subr.mxu0 0.0
    %7916 = vmatpush1.msra.mxu0 0.0
    %7917 = vmatprep.subr.mxu0 0.0
    %7918 = vmatpush1.msra.mxu0 0.0
    %7919 = vmatprep.subr.mxu0 0.0
    %7920 = vmatpush1.msra.mxu0 0.0
    %7921 = vmatprep.subr.mxu0 0.0
    %7922 = vmatpush1.msra.mxu0 0.0
    %7923 = vmatprep.subr.mxu0 0.0
    %7924 = vmatpush1.msra.mxu0 0.0
    %7925 = vmatprep.mubr.f32.mxu0 0.0
    %v7926 = vand.u32 %v7281, 4294901760
    %7927 = vmatmul.mubr.f32.gmra.mrb[0].mxu0 %v7926
    %v7928 = vpop.f32.mrb[0].mxu0
    %v7929 = vadd.f32 %v7786, %v7928
    %v7930 = vpop.f32.mrb[0].mxu0
    %7931 = vmatprep.mubr.f32.mxu0 0.0
    %v7932 = vand.u32 %v7282, 4294901760
    %7933 = vmatmul.mubr.f32.gmra.mrb[0].mxu0 %v7932
    %v7934 = vpop.f32.mrb[0].mxu0
    %v7935 = vadd.f32 %v7794, %v7934
    %v7936 = vpop.f32.mrb[0].mxu0
    %7937 = vmatprep.mubr.f32.mxu0 0.0
    %v7938 = vand.u32 %v7283, 4294901760
    %7939 = vmatmul.mubr.f32.gmra.mrb[0].mxu0 %v7938
    %v7940 = vpop.f32.mrb[0].mxu0
    %v7941 = vadd.f32 %v7802, %v7940
    %v7942 = vpop.f32.mrb[0].mxu0
    %7943 = vmatprep.mubr.f32.mxu0 0.0
    %v7944 = vand.u32 %v7284, 4294901760
    %7945 = vmatmul.mubr.f32.gmra.mrb[0].mxu0 %v7944
    %v7946 = vpop.f32.mrb[0].mxu0
    %v7947 = vadd.f32 %v7810, %v7946
    %v7948 = vpop.f32.mrb[0].mxu0
    %7949 = vdwg.mxu0
    %7950 = vmatprep.subr.mxu0 0.0
    %v7951 = vand.u32 %v50, 4294901760
    %7952 = vmatpush1.msra.mxu0 %v7951
    %7953 = vmatprep.subr.mxu0 0.0
    %v7954 = vand.u32 %v51, 4294901760
    %7955 = vmatpush1.msra.mxu0 %v7954
    %7956 = vmatprep.subr.mxu0 0.0
    %v7957 = vand.u32 %v52, 4294901760
    %7958 = vmatpush1.msra.mxu0 %v7957
    %7959 = vmatprep.subr.mxu0 0.0
    %v7960 = vand.u32 %v53, 4294901760
    %7961 = vmatpush1.msra.mxu0 %v7960
    %7962 = vmatprep.subr.mxu0 0.0
    %v7963 = vand.u32 %v54, 4294901760
    %7964 = vmatpush1.msra.mxu0 %v7963
    %7965 = vmatprep.subr.mxu0 0.0
    %v7966 = vand.u32 %v55, 4294901760
    %7967 = vmatpush1.msra.mxu0 %v7966
    %7968 = vmatprep.subr.mxu0 0.0
    %v7969 = vand.u32 %v56, 4294901760
    %7970 = vmatpush1.msra.mxu0 %v7969
    %7971 = vmatprep.subr.mxu0 0.0
    %v7972 = vand.u32 %v57, 4294901760
    %7973 = vmatpush1.msra.mxu0 %v7972
    %7974 = vmatprep.subr.mxu0 0.0
    %v7975 = vand.u32 %v58, 4294901760
    %7976 = vmatpush1.msra.mxu0 %v7975
    %7977 = vmatprep.subr.mxu0 0.0
    %v7978 = vand.u32 %v59, 4294901760
    %7979 = vmatpush1.msra.mxu0 %v7978
    %7980 = vmatprep.subr.mxu0 0.0
    %v7981 = vand.u32 %v60, 4294901760
    %7982 = vmatpush1.msra.mxu0 %v7981
    %7983 = vmatprep.subr.mxu0 0.0
    %v7984 = vand.u32 %v61, 4294901760
    %7985 = vmatpush1.msra.mxu0 %v7984
    %7986 = vmatprep.subr.mxu0 0.0
    %v7987 = vand.u32 %v62, 4294901760
    %7988 = vmatpush1.msra.mxu0 %v7987
    %7989 = vmatprep.subr.mxu0 0.0
    %v7990 = vand.u32 %v63, 4294901760
    %7991 = vmatpush1.msra.mxu0 %v7990
    %7992 = vmatprep.subr.mxu0 0.0
    %v7993 = vand.u32 %v64, 4294901760
    %7994 = vmatpush1.msra.mxu0 %v7993
    %7995 = vmatprep.subr.mxu0 0.0
    %v7996 = vand.u32 %v65, 4294901760
    %7997 = vmatpush1.msra.mxu0 %v7996
    %7998 = vmatprep.subr.mxu0 0.0
    %7999 = vmatpush1.msra.mxu0 0.0
    %8000 = vmatprep.subr.mxu0 0.0
    %8001 = vmatpush1.msra.mxu0 0.0
    %8002 = vmatprep.subr.mxu0 0.0
    %8003 = vmatpush1.msra.mxu0 0.0
    %8004 = vmatprep.subr.mxu0 0.0
    %8005 = vmatpush1.msra.mxu0 0.0
    %8006 = vmatprep.subr.mxu0 0.0
    %8007 = vmatpush1.msra.mxu0 0.0
    %8008 = vmatprep.subr.mxu0 0.0
    %8009 = vmatpush1.msra.mxu0 0.0
    %8010 = vmatprep.subr.mxu0 0.0
    %8011 = vmatpush1.msra.mxu0 0.0
    %8012 = vmatprep.subr.mxu0 0.0
    %8013 = vmatpush1.msra.mxu0 0.0
    %8014 = vmatprep.subr.mxu0 0.0
    %8015 = vmatpush1.msra.mxu0 0.0
    %8016 = vmatprep.subr.mxu0 0.0
    %8017 = vmatpush1.msra.mxu0 0.0
    %8018 = vmatprep.subr.mxu0 0.0
    %8019 = vmatpush1.msra.mxu0 0.0
    %8020 = vmatprep.subr.mxu0 0.0
    %8021 = vmatpush1.msra.mxu0 0.0
    %8022 = vmatprep.subr.mxu0 0.0
    %8023 = vmatpush1.msra.mxu0 0.0
    %8024 = vmatprep.subr.mxu0 0.0
    %8025 = vmatpush1.msra.mxu0 0.0
    %8026 = vmatprep.subr.mxu0 0.0
    %8027 = vmatpush1.msra.mxu0 0.0
    %8028 = vmatprep.subr.mxu0 0.0
    %8029 = vmatpush1.msra.mxu0 0.0
    %8030 = vmatprep.mubr.f32.mxu0 0.0
    %v8031 = vand.u32 %v7281, 4294901760
    %8032 = vmatmul.mubr.f32.gmra.mrb[0].mxu0 %v8031
    %v8033 = vpop.f32.mrb[0].mxu0
    %v8034 = vadd.f32 %v7929, %v8033
    %v8035 = vpop.f32.mrb[0].mxu0
    %8036 = vmatprep.mubr.f32.mxu0 0.0
    %v8037 = vand.u32 %v7282, 4294901760
    %8038 = vmatmul.mubr.f32.gmra.mrb[0].mxu0 %v8037
    %v8039 = vpop.f32.mrb[0].mxu0
    %v8040 = vadd.f32 %v7935, %v8039
    %v8041 = vpop.f32.mrb[0].mxu0
    %8042 = vmatprep.mubr.f32.mxu0 0.0
    %v8043 = vand.u32 %v7283, 4294901760
    %8044 = vmatmul.mubr.f32.gmra.mrb[0].mxu0 %v8043
    %v8045 = vpop.f32.mrb[0].mxu0
    %v8046 = vadd.f32 %v7941, %v8045
    %v8047 = vpop.f32.mrb[0].mxu0
    %8048 = vmatprep.mubr.f32.mxu0 0.0
    %v8049 = vand.u32 %v7284, 4294901760
    %8050 = vmatmul.mubr.f32.gmra.mrb[0].mxu0 %v8049
    %v8051 = vpop.f32.mrb[0].mxu0
    %v8052 = vadd.f32 %v7947, %v8051
    %v8053 = vpop.f32.mrb[0].mxu0
    %8054 = vdwg.mxu0
    %v8055 = vsel %vm4734, %v8034, 0.0
    %v8056 = vsel %vm4734, %v8040, 0.0
    %v8057 = vadd.f32 %v8055, %v8056
    %v8058 = vsel %vm4734, %v8046, 0.0
    %v8059 = vadd.f32 %v8057, %v8058
    %v8060 = vsel %vm4734, %v8052, 0.0
    %v8061 = vadd.f32 %v8059, %v8060
    %v8062 = vrot.slane %v8061, 4
    %v8063 = vadd.f32 %v8061, %v8062
    %v8064 = vrot.slane %v8063, 2
    %v8065 = vadd.f32 %v8063, %v8064
    %v8066 = vrot.slane %v8065, 1
    %v8067 = vadd.f32 %v8065, %v8066
    %v8068 = vmul.f32 %v7281, %v7281
    %v8069 = vmul.f32 %v7282, %v7282
    %v8070 = vmul.f32 %v7283, %v7283
    %v8071 = vmul.f32 %v7284, %v7284
    %8072 = vmatprep.subr.mxu0 0.0
    %v8073 = vand.u32 %v50, 4294901760
    %8074 = vmatpush1.msra.mxu0 %v8073
    %8075 = vmatprep.subr.mxu0 0.0
    %v8076 = vand.u32 %v51, 4294901760
    %8077 = vmatpush1.msra.mxu0 %v8076
    %8078 = vmatprep.subr.mxu0 0.0
    %v8079 = vand.u32 %v52, 4294901760
    %8080 = vmatpush1.msra.mxu0 %v8079
    %8081 = vmatprep.subr.mxu0 0.0
    %v8082 = vand.u32 %v53, 4294901760
    %8083 = vmatpush1.msra.mxu0 %v8082
    %8084 = vmatprep.subr.mxu0 0.0
    %v8085 = vand.u32 %v54, 4294901760
    %8086 = vmatpush1.msra.mxu0 %v8085
    %8087 = vmatprep.subr.mxu0 0.0
    %v8088 = vand.u32 %v55, 4294901760
    %8089 = vmatpush1.msra.mxu0 %v8088
    %8090 = vmatprep.subr.mxu0 0.0
    %v8091 = vand.u32 %v56, 4294901760
    %8092 = vmatpush1.msra.mxu0 %v8091
    %8093 = vmatprep.subr.mxu0 0.0
    %v8094 = vand.u32 %v57, 4294901760
    %8095 = vmatpush1.msra.mxu0 %v8094
    %8096 = vmatprep.subr.mxu0 0.0
    %v8097 = vand.u32 %v58, 4294901760
    %8098 = vmatpush1.msra.mxu0 %v8097
    %8099 = vmatprep.subr.mxu0 0.0
    %v8100 = vand.u32 %v59, 4294901760
    %8101 = vmatpush1.msra.mxu0 %v8100
    %8102 = vmatprep.subr.mxu0 0.0
    %v8103 = vand.u32 %v60, 4294901760
    %8104 = vmatpush1.msra.mxu0 %v8103
    %8105 = vmatprep.subr.mxu0 0.0
    %v8106 = vand.u32 %v61, 4294901760
    %8107 = vmatpush1.msra.mxu0 %v8106
    %8108 = vmatprep.subr.mxu0 0.0
    %v8109 = vand.u32 %v62, 4294901760
    %8110 = vmatpush1.msra.mxu0 %v8109
    %8111 = vmatprep.subr.mxu0 0.0
    %v8112 = vand.u32 %v63, 4294901760
    %8113 = vmatpush1.msra.mxu0 %v8112
    %8114 = vmatprep.subr.mxu0 0.0
    %v8115 = vand.u32 %v64, 4294901760
    %8116 = vmatpush1.msra.mxu0 %v8115
    %8117 = vmatprep.subr.mxu0 0.0
    %v8118 = vand.u32 %v65, 4294901760
    %8119 = vmatpush1.msra.mxu0 %v8118
    %8120 = vmatprep.subr.mxu0 0.0
    %8121 = vmatpush1.msra.mxu0 0.0
    %8122 = vmatprep.subr.mxu0 0.0
    %8123 = vmatpush1.msra.mxu0 0.0
    %8124 = vmatprep.subr.mxu0 0.0
    %8125 = vmatpush1.msra.mxu0 0.0
    %8126 = vmatprep.subr.mxu0 0.0
    %8127 = vmatpush1.msra.mxu0 0.0
    %8128 = vmatprep.subr.mxu0 0.0
    %8129 = vmatpush1.msra.mxu0 0.0
    %8130 = vmatprep.subr.mxu0 0.0
    %8131 = vmatpush1.msra.mxu0 0.0
    %8132 = vmatprep.subr.mxu0 0.0
    %8133 = vmatpush1.msra.mxu0 0.0
    %8134 = vmatprep.subr.mxu0 0.0
    %8135 = vmatpush1.msra.mxu0 0.0
    %8136 = vmatprep.subr.mxu0 0.0
    %8137 = vmatpush1.msra.mxu0 0.0
    %8138 = vmatprep.subr.mxu0 0.0
    %8139 = vmatpush1.msra.mxu0 0.0
    %8140 = vmatprep.subr.mxu0 0.0
    %8141 = vmatpush1.msra.mxu0 0.0
    %8142 = vmatprep.subr.mxu0 0.0
    %8143 = vmatpush1.msra.mxu0 0.0
    %8144 = vmatprep.subr.mxu0 0.0
    %8145 = vmatpush1.msra.mxu0 0.0
    %8146 = vmatprep.subr.mxu0 0.0
    %8147 = vmatpush1.msra.mxu0 0.0
    %8148 = vmatprep.subr.mxu0 0.0
    %8149 = vmatpush1.msra.mxu0 0.0
    %8150 = vmatprep.subr.mxu0 0.0
    %8151 = vmatpush1.msra.mxu0 0.0
    %8152 = vmatprep.mubr.f32.mxu0 0.0
    %v8153 = vand.u32 %v8068, 4294901760
    %v8154 = vsub.f32 %v8068, %v8153
    %v8155 = vand.u32 %v8154, 4294901760
    %v8156 = vsub.f32 %v8154, %v8155
    %v8157 = vand.u32 %v8156, 4294901760
    %8158 = vmatmul.mubr.f32.gmra.mrb[0].mxu0 %v8157
    %v8159 = vpop.f32.mrb[0].mxu0
    %v8160 = vadd.f32 0.0, %v8159
    %v8161 = vpop.f32.mrb[0].mxu0
    %8162 = vmatprep.mubr.f32.mxu0 0.0
    %v8163 = vand.u32 %v8069, 4294901760
    %v8164 = vsub.f32 %v8069, %v8163
    %v8165 = vand.u32 %v8164, 4294901760
    %v8166 = vsub.f32 %v8164, %v8165
    %v8167 = vand.u32 %v8166, 4294901760
    %8168 = vmatmul.mubr.f32.gmra.mrb[0].mxu0 %v8167
    %v8169 = vpop.f32.mrb[0].mxu0
    %v8170 = vadd.f32 0.0, %v8169
    %v8171 = vpop.f32.mrb[0].mxu0
    %8172 = vmatprep.mubr.f32.mxu0 0.0
    %v8173 = vand.u32 %v8070, 4294901760
    %v8174 = vsub.f32 %v8070, %v8173
    %v8175 = vand.u32 %v8174, 4294901760
    %v8176 = vsub.f32 %v8174, %v8175
    %v8177 = vand.u32 %v8176, 4294901760
    %8178 = vmatmul.mubr.f32.gmra.mrb[0].mxu0 %v8177
    %v8179 = vpop.f32.mrb[0].mxu0
    %v8180 = vadd.f32 0.0, %v8179
    %v8181 = vpop.f32.mrb[0].mxu0
    %8182 = vmatprep.mubr.f32.mxu0 0.0
    %v8183 = vand.u32 %v8071, 4294901760
    %v8184 = vsub.f32 %v8071, %v8183
    %v8185 = vand.u32 %v8184, 4294901760
    %v8186 = vsub.f32 %v8184, %v8185
    %v8187 = vand.u32 %v8186, 4294901760
    %8188 = vmatmul.mubr.f32.gmra.mrb[0].mxu0 %v8187
    %v8189 = vpop.f32.mrb[0].mxu0
    %v8190 = vadd.f32 0.0, %v8189
    %v8191 = vpop.f32.mrb[0].mxu0
    %8192 = vdwg.mxu0
    %8193 = vmatprep.subr.mxu0 0.0
    %v8194 = vand.u32 %v50, 4294901760
    %v8195 = vsub.f32 %v50, %v8194
    %v8196 = vand.u32 %v8195, 4294901760
    %v8197 = vsub.f32 %v8195, %v8196
    %v8198 = vand.u32 %v8197, 4294901760
    %8199 = vmatpush1.msra.mxu0 %v8198
    %8200 = vmatprep.subr.mxu0 0.0
    %v8201 = vand.u32 %v51, 4294901760
    %v8202 = vsub.f32 %v51, %v8201
    %v8203 = vand.u32 %v8202, 4294901760
    %v8204 = vsub.f32 %v8202, %v8203
    %v8205 = vand.u32 %v8204, 4294901760
    %8206 = vmatpush1.msra.mxu0 %v8205
    %8207 = vmatprep.subr.mxu0 0.0
    %v8208 = vand.u32 %v52, 4294901760
    %v8209 = vsub.f32 %v52, %v8208
    %v8210 = vand.u32 %v8209, 4294901760
    %v8211 = vsub.f32 %v8209, %v8210
    %v8212 = vand.u32 %v8211, 4294901760
    %8213 = vmatpush1.msra.mxu0 %v8212
    %8214 = vmatprep.subr.mxu0 0.0
    %v8215 = vand.u32 %v53, 4294901760
    %v8216 = vsub.f32 %v53, %v8215
    %v8217 = vand.u32 %v8216, 4294901760
    %v8218 = vsub.f32 %v8216, %v8217
    %v8219 = vand.u32 %v8218, 4294901760
    %8220 = vmatpush1.msra.mxu0 %v8219
    %8221 = vmatprep.subr.mxu0 0.0
    %v8222 = vand.u32 %v54, 4294901760
    %v8223 = vsub.f32 %v54, %v8222
    %v8224 = vand.u32 %v8223, 4294901760
    %v8225 = vsub.f32 %v8223, %v8224
    %v8226 = vand.u32 %v8225, 4294901760
    %8227 = vmatpush1.msra.mxu0 %v8226
    %8228 = vmatprep.subr.mxu0 0.0
    %v8229 = vand.u32 %v55, 4294901760
    %v8230 = vsub.f32 %v55, %v8229
    %v8231 = vand.u32 %v8230, 4294901760
    %v8232 = vsub.f32 %v8230, %v8231
    %v8233 = vand.u32 %v8232, 4294901760
    %8234 = vmatpush1.msra.mxu0 %v8233
    %8235 = vmatprep.subr.mxu0 0.0
    %v8236 = vand.u32 %v56, 4294901760
    %v8237 = vsub.f32 %v56, %v8236
    %v8238 = vand.u32 %v8237, 4294901760
    %v8239 = vsub.f32 %v8237, %v8238
    %v8240 = vand.u32 %v8239, 4294901760
    %8241 = vmatpush1.msra.mxu0 %v8240
    %8242 = vmatprep.subr.mxu0 0.0
    %v8243 = vand.u32 %v57, 4294901760
    %v8244 = vsub.f32 %v57, %v8243
    %v8245 = vand.u32 %v8244, 4294901760
    %v8246 = vsub.f32 %v8244, %v8245
    %v8247 = vand.u32 %v8246, 4294901760
    %8248 = vmatpush1.msra.mxu0 %v8247
    %8249 = vmatprep.subr.mxu0 0.0
    %v8250 = vand.u32 %v58, 4294901760
    %v8251 = vsub.f32 %v58, %v8250
    %v8252 = vand.u32 %v8251, 4294901760
    %v8253 = vsub.f32 %v8251, %v8252
    %v8254 = vand.u32 %v8253, 4294901760
    %8255 = vmatpush1.msra.mxu0 %v8254
    %8256 = vmatprep.subr.mxu0 0.0
    %v8257 = vand.u32 %v59, 4294901760
    %v8258 = vsub.f32 %v59, %v8257
    %v8259 = vand.u32 %v8258, 4294901760
    %v8260 = vsub.f32 %v8258, %v8259
    %v8261 = vand.u32 %v8260, 4294901760
    %8262 = vmatpush1.msra.mxu0 %v8261
    %8263 = vmatprep.subr.mxu0 0.0
    %v8264 = vand.u32 %v60, 4294901760
    %v8265 = vsub.f32 %v60, %v8264
    %v8266 = vand.u32 %v8265, 4294901760
    %v8267 = vsub.f32 %v8265, %v8266
    %v8268 = vand.u32 %v8267, 4294901760
    %8269 = vmatpush1.msra.mxu0 %v8268
    %8270 = vmatprep.subr.mxu0 0.0
    %v8271 = vand.u32 %v61, 4294901760
    %v8272 = vsub.f32 %v61, %v8271
    %v8273 = vand.u32 %v8272, 4294901760
    %v8274 = vsub.f32 %v8272, %v8273
    %v8275 = vand.u32 %v8274, 4294901760
    %8276 = vmatpush1.msra.mxu0 %v8275
    %8277 = vmatprep.subr.mxu0 0.0
    %v8278 = vand.u32 %v62, 4294901760
    %v8279 = vsub.f32 %v62, %v8278
    %v8280 = vand.u32 %v8279, 4294901760
    %v8281 = vsub.f32 %v8279, %v8280
    %v8282 = vand.u32 %v8281, 4294901760
    %8283 = vmatpush1.msra.mxu0 %v8282
    %8284 = vmatprep.subr.mxu0 0.0
    %v8285 = vand.u32 %v63, 4294901760
    %v8286 = vsub.f32 %v63, %v8285
    %v8287 = vand.u32 %v8286, 4294901760
    %v8288 = vsub.f32 %v8286, %v8287
    %v8289 = vand.u32 %v8288, 4294901760
    %8290 = vmatpush1.msra.mxu0 %v8289
    %8291 = vmatprep.subr.mxu0 0.0
    %v8292 = vand.u32 %v64, 4294901760
    %v8293 = vsub.f32 %v64, %v8292
    %v8294 = vand.u32 %v8293, 4294901760
    %v8295 = vsub.f32 %v8293, %v8294
    %v8296 = vand.u32 %v8295, 4294901760
    %8297 = vmatpush1.msra.mxu0 %v8296
    %8298 = vmatprep.subr.mxu0 0.0
    %v8299 = vand.u32 %v65, 4294901760
    %v8300 = vsub.f32 %v65, %v8299
    %v8301 = vand.u32 %v8300, 4294901760
    %v8302 = vsub.f32 %v8300, %v8301
    %v8303 = vand.u32 %v8302, 4294901760
    %8304 = vmatpush1.msra.mxu0 %v8303
    %8305 = vmatprep.subr.mxu0 0.0
    %8306 = vmatpush1.msra.mxu0 0.0
    %8307 = vmatprep.subr.mxu0 0.0
    %8308 = vmatpush1.msra.mxu0 0.0
    %8309 = vmatprep.subr.mxu0 0.0
    %8310 = vmatpush1.msra.mxu0 0.0
    %8311 = vmatprep.subr.mxu0 0.0
    %8312 = vmatpush1.msra.mxu0 0.0
    %8313 = vmatprep.subr.mxu0 0.0
    %8314 = vmatpush1.msra.mxu0 0.0
    %8315 = vmatprep.subr.mxu0 0.0
    %8316 = vmatpush1.msra.mxu0 0.0
    %8317 = vmatprep.subr.mxu0 0.0
    %8318 = vmatpush1.msra.mxu0 0.0
    %8319 = vmatprep.subr.mxu0 0.0
    %8320 = vmatpush1.msra.mxu0 0.0
    %8321 = vmatprep.subr.mxu0 0.0
    %8322 = vmatpush1.msra.mxu0 0.0
    %8323 = vmatprep.subr.mxu0 0.0
    %8324 = vmatpush1.msra.mxu0 0.0
    %8325 = vmatprep.subr.mxu0 0.0
    %8326 = vmatpush1.msra.mxu0 0.0
    %8327 = vmatprep.subr.mxu0 0.0
    %8328 = vmatpush1.msra.mxu0 0.0
    %8329 = vmatprep.subr.mxu0 0.0
    %8330 = vmatpush1.msra.mxu0 0.0
    %8331 = vmatprep.subr.mxu0 0.0
    %8332 = vmatpush1.msra.mxu0 0.0
    %8333 = vmatprep.subr.mxu0 0.0
    %8334 = vmatpush1.msra.mxu0 0.0
    %8335 = vmatprep.subr.mxu0 0.0
    %8336 = vmatpush1.msra.mxu0 0.0
    %8337 = vmatprep.mubr.f32.mxu0 0.0
    %v8338 = vand.u32 %v8068, 4294901760
    %8339 = vmatmul.mubr.f32.gmra.mrb[0].mxu0 %v8338
    %v8340 = vpop.f32.mrb[0].mxu0
    %v8341 = vadd.f32 %v8160, %v8340
    %v8342 = vpop.f32.mrb[0].mxu0
    %8343 = vmatprep.mubr.f32.mxu0 0.0
    %v8344 = vand.u32 %v8069, 4294901760
    %8345 = vmatmul.mubr.f32.gmra.mrb[0].mxu0 %v8344
    %v8346 = vpop.f32.mrb[0].mxu0
    %v8347 = vadd.f32 %v8170, %v8346
    %v8348 = vpop.f32.mrb[0].mxu0
    %8349 = vmatprep.mubr.f32.mxu0 0.0
    %v8350 = vand.u32 %v8070, 4294901760
    %8351 = vmatmul.mubr.f32.gmra.mrb[0].mxu0 %v8350
    %v8352 = vpop.f32.mrb[0].mxu0
    %v8353 = vadd.f32 %v8180, %v8352
    %v8354 = vpop.f32.mrb[0].mxu0
    %8355 = vmatprep.mubr.f32.mxu0 0.0
    %v8356 = vand.u32 %v8071, 4294901760
    %8357 = vmatmul.mubr.f32.gmra.mrb[0].mxu0 %v8356
    %v8358 = vpop.f32.mrb[0].mxu0
    %v8359 = vadd.f32 %v8190, %v8358
    %v8360 = vpop.f32.mrb[0].mxu0
    %8361 = vdwg.mxu0
    %8362 = vmatprep.subr.mxu0 0.0
    %v8363 = vand.u32 %v50, 4294901760
    %v8364 = vsub.f32 %v50, %v8363
    %8365 = vmatpush1.msra.mxu0 %v8364
    %8366 = vmatprep.subr.mxu0 0.0
    %v8367 = vand.u32 %v51, 4294901760
    %v8368 = vsub.f32 %v51, %v8367
    %8369 = vmatpush1.msra.mxu0 %v8368
    %8370 = vmatprep.subr.mxu0 0.0
    %v8371 = vand.u32 %v52, 4294901760
    %v8372 = vsub.f32 %v52, %v8371
    %8373 = vmatpush1.msra.mxu0 %v8372
    %8374 = vmatprep.subr.mxu0 0.0
    %v8375 = vand.u32 %v53, 4294901760
    %v8376 = vsub.f32 %v53, %v8375
    %8377 = vmatpush1.msra.mxu0 %v8376
    %8378 = vmatprep.subr.mxu0 0.0
    %v8379 = vand.u32 %v54, 4294901760
    %v8380 = vsub.f32 %v54, %v8379
    %8381 = vmatpush1.msra.mxu0 %v8380
    %8382 = vmatprep.subr.mxu0 0.0
    %v8383 = vand.u32 %v55, 4294901760
    %v8384 = vsub.f32 %v55, %v8383
    %8385 = vmatpush1.msra.mxu0 %v8384
    %8386 = vmatprep.subr.mxu0 0.0
    %v8387 = vand.u32 %v56, 4294901760
    %v8388 = vsub.f32 %v56, %v8387
    %8389 = vmatpush1.msra.mxu0 %v8388
    %8390 = vmatprep.subr.mxu0 0.0
    %v8391 = vand.u32 %v57, 4294901760
    %v8392 = vsub.f32 %v57, %v8391
    %8393 = vmatpush1.msra.mxu0 %v8392
    %8394 = vmatprep.subr.mxu0 0.0
    %v8395 = vand.u32 %v58, 4294901760
    %v8396 = vsub.f32 %v58, %v8395
    %8397 = vmatpush1.msra.mxu0 %v8396
    %8398 = vmatprep.subr.mxu0 0.0
    %v8399 = vand.u32 %v59, 4294901760
    %v8400 = vsub.f32 %v59, %v8399
    %8401 = vmatpush1.msra.mxu0 %v8400
    %8402 = vmatprep.subr.mxu0 0.0
    %v8403 = vand.u32 %v60, 4294901760
    %v8404 = vsub.f32 %v60, %v8403
    %8405 = vmatpush1.msra.mxu0 %v8404
    %8406 = vmatprep.subr.mxu0 0.0
    %v8407 = vand.u32 %v61, 4294901760
    %v8408 = vsub.f32 %v61, %v8407
    %8409 = vmatpush1.msra.mxu0 %v8408
    %8410 = vmatprep.subr.mxu0 0.0
    %v8411 = vand.u32 %v62, 4294901760
    %v8412 = vsub.f32 %v62, %v8411
    %8413 = vmatpush1.msra.mxu0 %v8412
    %8414 = vmatprep.subr.mxu0 0.0
    %v8415 = vand.u32 %v63, 4294901760
    %v8416 = vsub.f32 %v63, %v8415
    %8417 = vmatpush1.msra.mxu0 %v8416
    %8418 = vmatprep.subr.mxu0 0.0
    %v8419 = vand.u32 %v64, 4294901760
    %v8420 = vsub.f32 %v64, %v8419
    %8421 = vmatpush1.msra.mxu0 %v8420
    %8422 = vmatprep.subr.mxu0 0.0
    %v8423 = vand.u32 %v65, 4294901760
    %v8424 = vsub.f32 %v65, %v8423
    %8425 = vmatpush1.msra.mxu0 %v8424
    %8426 = vmatprep.subr.mxu0 0.0
    %8427 = vmatpush1.msra.mxu0 0.0
    %8428 = vmatprep.subr.mxu0 0.0
    %8429 = vmatpush1.msra.mxu0 0.0
    %8430 = vmatprep.subr.mxu0 0.0
    %8431 = vmatpush1.msra.mxu0 0.0
    %8432 = vmatprep.subr.mxu0 0.0
    %8433 = vmatpush1.msra.mxu0 0.0
    %8434 = vmatprep.subr.mxu0 0.0
    %8435 = vmatpush1.msra.mxu0 0.0
    %8436 = vmatprep.subr.mxu0 0.0
    %8437 = vmatpush1.msra.mxu0 0.0
    %8438 = vmatprep.subr.mxu0 0.0
    %8439 = vmatpush1.msra.mxu0 0.0
    %8440 = vmatprep.subr.mxu0 0.0
    %8441 = vmatpush1.msra.mxu0 0.0
    %8442 = vmatprep.subr.mxu0 0.0
    %8443 = vmatpush1.msra.mxu0 0.0
    %8444 = vmatprep.subr.mxu0 0.0
    %8445 = vmatpush1.msra.mxu0 0.0
    %8446 = vmatprep.subr.mxu0 0.0
    %8447 = vmatpush1.msra.mxu0 0.0
    %8448 = vmatprep.subr.mxu0 0.0
    %8449 = vmatpush1.msra.mxu0 0.0
    %8450 = vmatprep.subr.mxu0 0.0
    %8451 = vmatpush1.msra.mxu0 0.0
    %8452 = vmatprep.subr.mxu0 0.0
    %8453 = vmatpush1.msra.mxu0 0.0
    %8454 = vmatprep.subr.mxu0 0.0
    %8455 = vmatpush1.msra.mxu0 0.0
    %8456 = vmatprep.subr.mxu0 0.0
    %8457 = vmatpush1.msra.mxu0 0.0
    %8458 = vmatprep.mubr.f32.mxu0 0.0
    %v8459 = vand.u32 %v8068, 4294901760
    %v8460 = vsub.f32 %v8068, %v8459
    %8461 = vmatmul.mubr.f32.gmra.mrb[0].mxu0 %v8460
    %v8462 = vpop.f32.mrb[0].mxu0
    %v8463 = vadd.f32 %v8341, %v8462
    %v8464 = vpop.f32.mrb[0].mxu0
    %8465 = vmatprep.mubr.f32.mxu0 0.0
    %v8466 = vand.u32 %v8069, 4294901760
    %v8467 = vsub.f32 %v8069, %v8466
    %8468 = vmatmul.mubr.f32.gmra.mrb[0].mxu0 %v8467
    %v8469 = vpop.f32.mrb[0].mxu0
    %v8470 = vadd.f32 %v8347, %v8469
    %v8471 = vpop.f32.mrb[0].mxu0
    %8472 = vmatprep.mubr.f32.mxu0 0.0
    %v8473 = vand.u32 %v8070, 4294901760
    %v8474 = vsub.f32 %v8070, %v8473
    %8475 = vmatmul.mubr.f32.gmra.mrb[0].mxu0 %v8474
    %v8476 = vpop.f32.mrb[0].mxu0
    %v8477 = vadd.f32 %v8353, %v8476
    %v8478 = vpop.f32.mrb[0].mxu0
    %8479 = vmatprep.mubr.f32.mxu0 0.0
    %v8480 = vand.u32 %v8071, 4294901760
    %v8481 = vsub.f32 %v8071, %v8480
    %8482 = vmatmul.mubr.f32.gmra.mrb[0].mxu0 %v8481
    %v8483 = vpop.f32.mrb[0].mxu0
    %v8484 = vadd.f32 %v8359, %v8483
    %v8485 = vpop.f32.mrb[0].mxu0
    %8486 = vdwg.mxu0
    %8487 = vmatprep.subr.mxu0 0.0
    %v8488 = vand.u32 %v50, 4294901760
    %8489 = vmatpush1.msra.mxu0 %v8488
    %8490 = vmatprep.subr.mxu0 0.0
    %v8491 = vand.u32 %v51, 4294901760
    %8492 = vmatpush1.msra.mxu0 %v8491
    %8493 = vmatprep.subr.mxu0 0.0
    %v8494 = vand.u32 %v52, 4294901760
    %8495 = vmatpush1.msra.mxu0 %v8494
    %8496 = vmatprep.subr.mxu0 0.0
    %v8497 = vand.u32 %v53, 4294901760
    %8498 = vmatpush1.msra.mxu0 %v8497
    %8499 = vmatprep.subr.mxu0 0.0
    %v8500 = vand.u32 %v54, 4294901760
    %8501 = vmatpush1.msra.mxu0 %v8500
    %8502 = vmatprep.subr.mxu0 0.0
    %v8503 = vand.u32 %v55, 4294901760
    %8504 = vmatpush1.msra.mxu0 %v8503
    %8505 = vmatprep.subr.mxu0 0.0
    %v8506 = vand.u32 %v56, 4294901760
    %8507 = vmatpush1.msra.mxu0 %v8506
    %8508 = vmatprep.subr.mxu0 0.0
    %v8509 = vand.u32 %v57, 4294901760
    %8510 = vmatpush1.msra.mxu0 %v8509
    %8511 = vmatprep.subr.mxu0 0.0
    %v8512 = vand.u32 %v58, 4294901760
    %8513 = vmatpush1.msra.mxu0 %v8512
    %8514 = vmatprep.subr.mxu0 0.0
    %v8515 = vand.u32 %v59, 4294901760
    %8516 = vmatpush1.msra.mxu0 %v8515
    %8517 = vmatprep.subr.mxu0 0.0
    %v8518 = vand.u32 %v60, 4294901760
    %8519 = vmatpush1.msra.mxu0 %v8518
    %8520 = vmatprep.subr.mxu0 0.0
    %v8521 = vand.u32 %v61, 4294901760
    %8522 = vmatpush1.msra.mxu0 %v8521
    %8523 = vmatprep.subr.mxu0 0.0
    %v8524 = vand.u32 %v62, 4294901760
    %8525 = vmatpush1.msra.mxu0 %v8524
    %8526 = vmatprep.subr.mxu0 0.0
    %v8527 = vand.u32 %v63, 4294901760
    %8528 = vmatpush1.msra.mxu0 %v8527
    %8529 = vmatprep.subr.mxu0 0.0
    %v8530 = vand.u32 %v64, 4294901760
    %8531 = vmatpush1.msra.mxu0 %v8530
    %8532 = vmatprep.subr.mxu0 0.0
    %v8533 = vand.u32 %v65, 4294901760
    %8534 = vmatpush1.msra.mxu0 %v8533
    %8535 = vmatprep.subr.mxu0 0.0
    %8536 = vmatpush1.msra.mxu0 0.0
    %8537 = vmatprep.subr.mxu0 0.0
    %8538 = vmatpush1.msra.mxu0 0.0
    %8539 = vmatprep.subr.mxu0 0.0
    %8540 = vmatpush1.msra.mxu0 0.0
    %8541 = vmatprep.subr.mxu0 0.0
    %8542 = vmatpush1.msra.mxu0 0.0
    %8543 = vmatprep.subr.mxu0 0.0
    %8544 = vmatpush1.msra.mxu0 0.0
    %8545 = vmatprep.subr.mxu0 0.0
    %8546 = vmatpush1.msra.mxu0 0.0
    %8547 = vmatprep.subr.mxu0 0.0
    %8548 = vmatpush1.msra.mxu0 0.0
    %8549 = vmatprep.subr.mxu0 0.0
    %8550 = vmatpush1.msra.mxu0 0.0
    %8551 = vmatprep.subr.mxu0 0.0
    %8552 = vmatpush1.msra.mxu0 0.0
    %8553 = vmatprep.subr.mxu0 0.0
    %8554 = vmatpush1.msra.mxu0 0.0
    %8555 = vmatprep.subr.mxu0 0.0
    %8556 = vmatpush1.msra.mxu0 0.0
    %8557 = vmatprep.subr.mxu0 0.0
    %8558 = vmatpush1.msra.mxu0 0.0
    %8559 = vmatprep.subr.mxu0 0.0
    %8560 = vmatpush1.msra.mxu0 0.0
    %8561 = vmatprep.subr.mxu0 0.0
    %8562 = vmatpush1.msra.mxu0 0.0
    %8563 = vmatprep.subr.mxu0 0.0
    %8564 = vmatpush1.msra.mxu0 0.0
    %8565 = vmatprep.subr.mxu0 0.0
    %8566 = vmatpush1.msra.mxu0 0.0
    %8567 = vmatprep.mubr.f32.mxu0 0.0
    %v8568 = vand.u32 %v8068, 4294901760
    %v8569 = vsub.f32 %v8068, %v8568
    %v8570 = vand.u32 %v8569, 4294901760
    %8571 = vmatmul.mubr.f32.gmra.mrb[0].mxu0 %v8570
    %v8572 = vpop.f32.mrb[0].mxu0
    %v8573 = vadd.f32 %v8463, %v8572
    %v8574 = vpop.f32.mrb[0].mxu0
    %8575 = vmatprep.mubr.f32.mxu0 0.0
    %v8576 = vand.u32 %v8069, 4294901760
    %v8577 = vsub.f32 %v8069, %v8576
    %v8578 = vand.u32 %v8577, 4294901760
    %8579 = vmatmul.mubr.f32.gmra.mrb[0].mxu0 %v8578
    %v8580 = vpop.f32.mrb[0].mxu0
    %v8581 = vadd.f32 %v8470, %v8580
    %v8582 = vpop.f32.mrb[0].mxu0
    %8583 = vmatprep.mubr.f32.mxu0 0.0
    %v8584 = vand.u32 %v8070, 4294901760
    %v8585 = vsub.f32 %v8070, %v8584
    %v8586 = vand.u32 %v8585, 4294901760
    %8587 = vmatmul.mubr.f32.gmra.mrb[0].mxu0 %v8586
    %v8588 = vpop.f32.mrb[0].mxu0
    %v8589 = vadd.f32 %v8477, %v8588
    %v8590 = vpop.f32.mrb[0].mxu0
    %8591 = vmatprep.mubr.f32.mxu0 0.0
    %v8592 = vand.u32 %v8071, 4294901760
    %v8593 = vsub.f32 %v8071, %v8592
    %v8594 = vand.u32 %v8593, 4294901760
    %8595 = vmatmul.mubr.f32.gmra.mrb[0].mxu0 %v8594
    %v8596 = vpop.f32.mrb[0].mxu0
    %v8597 = vadd.f32 %v8484, %v8596
    %v8598 = vpop.f32.mrb[0].mxu0
    %8599 = vdwg.mxu0
    %8600 = vmatprep.subr.mxu0 0.0
    %v8601 = vand.u32 %v50, 4294901760
    %v8602 = vsub.f32 %v50, %v8601
    %v8603 = vand.u32 %v8602, 4294901760
    %8604 = vmatpush1.msra.mxu0 %v8603
    %8605 = vmatprep.subr.mxu0 0.0
    %v8606 = vand.u32 %v51, 4294901760
    %v8607 = vsub.f32 %v51, %v8606
    %v8608 = vand.u32 %v8607, 4294901760
    %8609 = vmatpush1.msra.mxu0 %v8608
    %8610 = vmatprep.subr.mxu0 0.0
    %v8611 = vand.u32 %v52, 4294901760
    %v8612 = vsub.f32 %v52, %v8611
    %v8613 = vand.u32 %v8612, 4294901760
    %8614 = vmatpush1.msra.mxu0 %v8613
    %8615 = vmatprep.subr.mxu0 0.0
    %v8616 = vand.u32 %v53, 4294901760
    %v8617 = vsub.f32 %v53, %v8616
    %v8618 = vand.u32 %v8617, 4294901760
    %8619 = vmatpush1.msra.mxu0 %v8618
    %8620 = vmatprep.subr.mxu0 0.0
    %v8621 = vand.u32 %v54, 4294901760
    %v8622 = vsub.f32 %v54, %v8621
    %v8623 = vand.u32 %v8622, 4294901760
    %8624 = vmatpush1.msra.mxu0 %v8623
    %8625 = vmatprep.subr.mxu0 0.0
    %v8626 = vand.u32 %v55, 4294901760
    %v8627 = vsub.f32 %v55, %v8626
    %v8628 = vand.u32 %v8627, 4294901760
    %8629 = vmatpush1.msra.mxu0 %v8628
    %8630 = vmatprep.subr.mxu0 0.0
    %v8631 = vand.u32 %v56, 4294901760
    %v8632 = vsub.f32 %v56, %v8631
    %v8633 = vand.u32 %v8632, 4294901760
    %8634 = vmatpush1.msra.mxu0 %v8633
    %8635 = vmatprep.subr.mxu0 0.0
    %v8636 = vand.u32 %v57, 4294901760
    %v8637 = vsub.f32 %v57, %v8636
    %v8638 = vand.u32 %v8637, 4294901760
    %8639 = vmatpush1.msra.mxu0 %v8638
    %8640 = vmatprep.subr.mxu0 0.0
    %v8641 = vand.u32 %v58, 4294901760
    %v8642 = vsub.f32 %v58, %v8641
    %v8643 = vand.u32 %v8642, 4294901760
    %8644 = vmatpush1.msra.mxu0 %v8643
    %8645 = vmatprep.subr.mxu0 0.0
    %v8646 = vand.u32 %v59, 4294901760
    %v8647 = vsub.f32 %v59, %v8646
    %v8648 = vand.u32 %v8647, 4294901760
    %8649 = vmatpush1.msra.mxu0 %v8648
    %8650 = vmatprep.subr.mxu0 0.0
    %v8651 = vand.u32 %v60, 4294901760
    %v8652 = vsub.f32 %v60, %v8651
    %v8653 = vand.u32 %v8652, 4294901760
    %8654 = vmatpush1.msra.mxu0 %v8653
    %8655 = vmatprep.subr.mxu0 0.0
    %v8656 = vand.u32 %v61, 4294901760
    %v8657 = vsub.f32 %v61, %v8656
    %v8658 = vand.u32 %v8657, 4294901760
    %8659 = vmatpush1.msra.mxu0 %v8658
    %8660 = vmatprep.subr.mxu0 0.0
    %v8661 = vand.u32 %v62, 4294901760
    %v8662 = vsub.f32 %v62, %v8661
    %v8663 = vand.u32 %v8662, 4294901760
    %8664 = vmatpush1.msra.mxu0 %v8663
    %8665 = vmatprep.subr.mxu0 0.0
    %v8666 = vand.u32 %v63, 4294901760
    %v8667 = vsub.f32 %v63, %v8666
    %v8668 = vand.u32 %v8667, 4294901760
    %8669 = vmatpush1.msra.mxu0 %v8668
    %8670 = vmatprep.subr.mxu0 0.0
    %v8671 = vand.u32 %v64, 4294901760
    %v8672 = vsub.f32 %v64, %v8671
    %v8673 = vand.u32 %v8672, 4294901760
    %8674 = vmatpush1.msra.mxu0 %v8673
    %8675 = vmatprep.subr.mxu0 0.0
    %v8676 = vand.u32 %v65, 4294901760
    %v8677 = vsub.f32 %v65, %v8676
    %v8678 = vand.u32 %v8677, 4294901760
    %8679 = vmatpush1.msra.mxu0 %v8678
    %8680 = vmatprep.subr.mxu0 0.0
    %8681 = vmatpush1.msra.mxu0 0.0
    %8682 = vmatprep.subr.mxu0 0.0
    %8683 = vmatpush1.msra.mxu0 0.0
    %8684 = vmatprep.subr.mxu0 0.0
    %8685 = vmatpush1.msra.mxu0 0.0
    %8686 = vmatprep.subr.mxu0 0.0
    %8687 = vmatpush1.msra.mxu0 0.0
    %8688 = vmatprep.subr.mxu0 0.0
    %8689 = vmatpush1.msra.mxu0 0.0
    %8690 = vmatprep.subr.mxu0 0.0
    %8691 = vmatpush1.msra.mxu0 0.0
    %8692 = vmatprep.subr.mxu0 0.0
    %8693 = vmatpush1.msra.mxu0 0.0
    %8694 = vmatprep.subr.mxu0 0.0
    %8695 = vmatpush1.msra.mxu0 0.0
    %8696 = vmatprep.subr.mxu0 0.0
    %8697 = vmatpush1.msra.mxu0 0.0
    %8698 = vmatprep.subr.mxu0 0.0
    %8699 = vmatpush1.msra.mxu0 0.0
    %8700 = vmatprep.subr.mxu0 0.0
    %8701 = vmatpush1.msra.mxu0 0.0
    %8702 = vmatprep.subr.mxu0 0.0
    %8703 = vmatpush1.msra.mxu0 0.0
    %8704 = vmatprep.subr.mxu0 0.0
    %8705 = vmatpush1.msra.mxu0 0.0
    %8706 = vmatprep.subr.mxu0 0.0
    %8707 = vmatpush1.msra.mxu0 0.0
    %8708 = vmatprep.subr.mxu0 0.0
    %8709 = vmatpush1.msra.mxu0 0.0
    %8710 = vmatprep.subr.mxu0 0.0
    %8711 = vmatpush1.msra.mxu0 0.0
    %8712 = vmatprep.mubr.f32.mxu0 0.0
    %v8713 = vand.u32 %v8068, 4294901760
    %8714 = vmatmul.mubr.f32.gmra.mrb[0].mxu0 %v8713
    %v8715 = vpop.f32.mrb[0].mxu0
    %v8716 = vadd.f32 %v8573, %v8715
    %v8717 = vpop.f32.mrb[0].mxu0
    %8718 = vmatprep.mubr.f32.mxu0 0.0
    %v8719 = vand.u32 %v8069, 4294901760
    %8720 = vmatmul.mubr.f32.gmra.mrb[0].mxu0 %v8719
    %v8721 = vpop.f32.mrb[0].mxu0
    %v8722 = vadd.f32 %v8581, %v8721
    %v8723 = vpop.f32.mrb[0].mxu0
    %8724 = vmatprep.mubr.f32.mxu0 0.0
    %v8725 = vand.u32 %v8070, 4294901760
    %8726 = vmatmul.mubr.f32.gmra.mrb[0].mxu0 %v8725
    %v8727 = vpop.f32.mrb[0].mxu0
    %v8728 = vadd.f32 %v8589, %v8727
    %v8729 = vpop.f32.mrb[0].mxu0
    %8730 = vmatprep.mubr.f32.mxu0 0.0
    %v8731 = vand.u32 %v8071, 4294901760
    %8732 = vmatmul.mubr.f32.gmra.mrb[0].mxu0 %v8731
    %v8733 = vpop.f32.mrb[0].mxu0
    %v8734 = vadd.f32 %v8597, %v8733
    %v8735 = vpop.f32.mrb[0].mxu0
    %8736 = vdwg.mxu0
    %8737 = vmatprep.subr.mxu0 0.0
    %v8738 = vand.u32 %v50, 4294901760
    %8739 = vmatpush1.msra.mxu0 %v8738
    %8740 = vmatprep.subr.mxu0 0.0
    %v8741 = vand.u32 %v51, 4294901760
    %8742 = vmatpush1.msra.mxu0 %v8741
    %8743 = vmatprep.subr.mxu0 0.0
    %v8744 = vand.u32 %v52, 4294901760
    %8745 = vmatpush1.msra.mxu0 %v8744
    %8746 = vmatprep.subr.mxu0 0.0
    %v8747 = vand.u32 %v53, 4294901760
    %8748 = vmatpush1.msra.mxu0 %v8747
    %8749 = vmatprep.subr.mxu0 0.0
    %v8750 = vand.u32 %v54, 4294901760
    %8751 = vmatpush1.msra.mxu0 %v8750
    %8752 = vmatprep.subr.mxu0 0.0
    %v8753 = vand.u32 %v55, 4294901760
    %8754 = vmatpush1.msra.mxu0 %v8753
    %8755 = vmatprep.subr.mxu0 0.0
    %v8756 = vand.u32 %v56, 4294901760
    %8757 = vmatpush1.msra.mxu0 %v8756
    %8758 = vmatprep.subr.mxu0 0.0
    %v8759 = vand.u32 %v57, 4294901760
    %8760 = vmatpush1.msra.mxu0 %v8759
    %8761 = vmatprep.subr.mxu0 0.0
    %v8762 = vand.u32 %v58, 4294901760
    %8763 = vmatpush1.msra.mxu0 %v8762
    %8764 = vmatprep.subr.mxu0 0.0
    %v8765 = vand.u32 %v59, 4294901760
    %8766 = vmatpush1.msra.mxu0 %v8765
    %8767 = vmatprep.subr.mxu0 0.0
    %v8768 = vand.u32 %v60, 4294901760
    %8769 = vmatpush1.msra.mxu0 %v8768
    %8770 = vmatprep.subr.mxu0 0.0
    %v8771 = vand.u32 %v61, 4294901760
    %8772 = vmatpush1.msra.mxu0 %v8771
    %8773 = vmatprep.subr.mxu0 0.0
    %v8774 = vand.u32 %v62, 4294901760
    %8775 = vmatpush1.msra.mxu0 %v8774
    %8776 = vmatprep.subr.mxu0 0.0
    %v8777 = vand.u32 %v63, 4294901760
    %8778 = vmatpush1.msra.mxu0 %v8777
    %8779 = vmatprep.subr.mxu0 0.0
    %v8780 = vand.u32 %v64, 4294901760
    %8781 = vmatpush1.msra.mxu0 %v8780
    %8782 = vmatprep.subr.mxu0 0.0
    %v8783 = vand.u32 %v65, 4294901760
    %8784 = vmatpush1.msra.mxu0 %v8783
    %8785 = vmatprep.subr.mxu0 0.0
    %8786 = vmatpush1.msra.mxu0 0.0
    %8787 = vmatprep.subr.mxu0 0.0
    %8788 = vmatpush1.msra.mxu0 0.0
    %8789 = vmatprep.subr.mxu0 0.0
    %8790 = vmatpush1.msra.mxu0 0.0
    %8791 = vmatprep.subr.mxu0 0.0
    %8792 = vmatpush1.msra.mxu0 0.0
    %8793 = vmatprep.subr.mxu0 0.0
    %8794 = vmatpush1.msra.mxu0 0.0
    %8795 = vmatprep.subr.mxu0 0.0
    %8796 = vmatpush1.msra.mxu0 0.0
    %8797 = vmatprep.subr.mxu0 0.0
    %8798 = vmatpush1.msra.mxu0 0.0
    %8799 = vmatprep.subr.mxu0 0.0
    %8800 = vmatpush1.msra.mxu0 0.0
    %8801 = vmatprep.subr.mxu0 0.0
    %8802 = vmatpush1.msra.mxu0 0.0
    %8803 = vmatprep.subr.mxu0 0.0
    %8804 = vmatpush1.msra.mxu0 0.0
    %8805 = vmatprep.subr.mxu0 0.0
    %8806 = vmatpush1.msra.mxu0 0.0
    %8807 = vmatprep.subr.mxu0 0.0
    %8808 = vmatpush1.msra.mxu0 0.0
    %8809 = vmatprep.subr.mxu0 0.0
    %8810 = vmatpush1.msra.mxu0 0.0
    %8811 = vmatprep.subr.mxu0 0.0
    %8812 = vmatpush1.msra.mxu0 0.0
    %8813 = vmatprep.subr.mxu0 0.0
    %8814 = vmatpush1.msra.mxu0 0.0
    %8815 = vmatprep.subr.mxu0 0.0
    %8816 = vmatpush1.msra.mxu0 0.0
    %8817 = vmatprep.mubr.f32.mxu0 0.0
    %v8818 = vand.u32 %v8068, 4294901760
    %8819 = vmatmul.mubr.f32.gmra.mrb[0].mxu0 %v8818
    %v8820 = vpop.f32.mrb[0].mxu0
    %v8821 = vadd.f32 %v8716, %v8820
    %v8822 = vpop.f32.mrb[0].mxu0
    %8823 = vmatprep.mubr.f32.mxu0 0.0
    %v8824 = vand.u32 %v8069, 4294901760
    %8825 = vmatmul.mubr.f32.gmra.mrb[0].mxu0 %v8824
    %v8826 = vpop.f32.mrb[0].mxu0
    %v8827 = vadd.f32 %v8722, %v8826
    %v8828 = vpop.f32.mrb[0].mxu0
    %8829 = vmatprep.mubr.f32.mxu0 0.0
    %v8830 = vand.u32 %v8070, 4294901760
    %8831 = vmatmul.mubr.f32.gmra.mrb[0].mxu0 %v8830
    %v8832 = vpop.f32.mrb[0].mxu0
    %v8833 = vadd.f32 %v8728, %v8832
    %v8834 = vpop.f32.mrb[0].mxu0
    %8835 = vmatprep.mubr.f32.mxu0 0.0
    %v8836 = vand.u32 %v8071, 4294901760
    %8837 = vmatmul.mubr.f32.gmra.mrb[0].mxu0 %v8836
    %v8838 = vpop.f32.mrb[0].mxu0
    %v8839 = vadd.f32 %v8734, %v8838
    %v8840 = vpop.f32.mrb[0].mxu0
    %8841 = vdwg.mxu0
    %v8842 = vsel %vm4734, %v8821, 0.0
    %v8843 = vsel %vm4734, %v8827, 0.0
    %v8844 = vadd.f32 %v8842, %v8843
    %v8845 = vsel %vm4734, %v8833, 0.0
    %v8846 = vadd.f32 %v8844, %v8845
    %v8847 = vsel %vm4734, %v8839, 0.0
    %v8848 = vadd.f32 %v8846, %v8847
    %v8849 = vrot.slane %v8848, 4
    %v8850 = vadd.f32 %v8848, %v8849
    %v8851 = vrot.slane %v8850, 2
    %v8852 = vadd.f32 %v8850, %v8851
    %v8853 = vrot.slane %v8852, 1
    %v8854 = vadd.f32 %v8852, %v8853
    %v8855 = vmul.f32 %v8067, 0.001953125
    %v8856 = vmul.f32 %v8854, 0.001953125
    %v8857 = vmul.f32 %v8855, %v8855
    %v8858 = vsub.f32 %v8856, %v8857
    %v8859 = vadd.f32 %v8858, 1e-05
    %v8860 = vrsqrt.pop %v8859
    %v8861 = vmul.f32 %v49, %v8860
    %v8862 = vmul.f32 %v8855, %v8861
    %v8864 = vrot.slane %v8862, 7
    %v8866 = vsub.f32 %v49, %v8864
    %8868 = vrot.lane.b32.xlu0 %v8861, 8
    %v8869 = vpop.permute.xlu0 %8868
    %8871 = vrot.lane.b32.xlu0 %v8861, 16
    %v8872 = vpop.permute.xlu0 %8871
    %8874 = vrot.lane.b32.xlu0 %v8861, 24
    %v8875 = vpop.permute.xlu0 %8874
    %8877 = vrot.lane.b32.xlu0 %v8861, 32
    %v8878 = vpop.permute.xlu0 %8877
    %8880 = vrot.lane.b32.xlu0 %v8861, 40
    %v8881 = vpop.permute.xlu0 %8880
    %8883 = vrot.lane.b32.xlu0 %v8861, 48
    %v8884 = vpop.permute.xlu0 %8883
    %8886 = vrot.lane.b32.xlu0 %v8861, 56
    %v8887 = vpop.permute.xlu0 %8886
    %8889 = vrot.lane.b32.xlu0 %v8861, 64
    %v8890 = vpop.permute.xlu0 %8889
    %8892 = vrot.lane.b32.xlu0 %v8861, 72
    %v8893 = vpop.permute.xlu0 %8892
    %8895 = vrot.lane.b32.xlu0 %v8861, 80
    %v8896 = vpop.permute.xlu0 %8895
    %8898 = vrot.lane.b32.xlu0 %v8861, 88
    %v8899 = vpop.permute.xlu0 %8898
    %8901 = vrot.lane.b32.xlu0 %v8861, 96
    %v8902 = vpop.permute.xlu0 %8901
    %8904 = vrot.lane.b32.xlu0 %v8861, 104
    %v8905 = vpop.permute.xlu0 %8904
    %8907 = vrot.lane.b32.xlu0 %v8861, 112
    %v8908 = vpop.permute.xlu0 %8907
    %8910 = vrot.lane.b32.xlu0 %v8861, 120
    %v8911 = vpop.permute.xlu0 %8910
    %v8913 = vsel %vm4734, %v8861, %v8869
    %v8914 = vsel %vm3611, %v8913, %v8872
    %v8915 = vsel %vm4737, %v8914, %v8875
    %v8916 = vsel %vm4739, %v8915, %v8878
    %v8917 = vsel %vm4741, %v8916, %v8881
    %v8918 = vsel %vm4743, %v8917, %v8884
    %v8919 = vsel %vm4745, %v8918, %v8887
    %v8920 = vsel %vm145, %v8919, %v8890
    %v8921 = vsel %vm4748, %v8920, %v8893
    %v8922 = vsel %vm4750, %v8921, %v8896
    %v8923 = vsel %vm4752, %v8922, %v8899
    %v8924 = vsel %vm4754, %v8923, %v8902
    %v8925 = vsel %vm4756, %v8924, %v8905
    %v8926 = vsel %vm4758, %v8925, %v8908
    %v8927 = vsel %vm4760, %v8926, %v8911
    %v8928 = vlaneseq
    %v8929 = vshrl.u32 %v8928, 7
    %v8930 = vsub.s32 2, %v8929
    %v8931 = vrot.slane %v8927, %v8930
    %v8932 = vmul.f32 %v7281, %v8931
    %v8933 = vmul.f32 %v7282, %v8931
    %v8934 = vmul.f32 %v7283, %v8931
    %v8935 = vmul.f32 %v7284, %v8931
    %8937 = vrot.lane.b32.xlu0 %v8866, 8
    %v8938 = vpop.permute.xlu0 %8937
    %8940 = vrot.lane.b32.xlu0 %v8866, 16
    %v8941 = vpop.permute.xlu0 %8940
    %8943 = vrot.lane.b32.xlu0 %v8866, 24
    %v8944 = vpop.permute.xlu0 %8943
    %8946 = vrot.lane.b32.xlu0 %v8866, 32
    %v8947 = vpop.permute.xlu0 %8946
    %8949 = vrot.lane.b32.xlu0 %v8866, 40
    %v8950 = vpop.permute.xlu0 %8949
    %8952 = vrot.lane.b32.xlu0 %v8866, 48
    %v8953 = vpop.permute.xlu0 %8952
    %8955 = vrot.lane.b32.xlu0 %v8866, 56
    %v8956 = vpop.permute.xlu0 %8955
    %8958 = vrot.lane.b32.xlu0 %v8866, 64
    %v8959 = vpop.permute.xlu0 %8958
    %8961 = vrot.lane.b32.xlu0 %v8866, 72
    %v8962 = vpop.permute.xlu0 %8961
    %8964 = vrot.lane.b32.xlu0 %v8866, 80
    %v8965 = vpop.permute.xlu0 %8964
    %8967 = vrot.lane.b32.xlu0 %v8866, 88
    %v8968 = vpop.permute.xlu0 %8967
    %8970 = vrot.lane.b32.xlu0 %v8866, 96
    %v8971 = vpop.permute.xlu0 %8970
    %8973 = vrot.lane.b32.xlu0 %v8866, 104
    %v8974 = vpop.permute.xlu0 %8973
    %8976 = vrot.lane.b32.xlu0 %v8866, 112
    %v8977 = vpop.permute.xlu0 %8976
    %8979 = vrot.lane.b32.xlu0 %v8866, 120
    %v8980 = vpop.permute.xlu0 %8979
    %v8982 = vsel %vm4734, %v8866, %v8938
    %v8983 = vsel %vm3611, %v8982, %v8941
    %v8984 = vsel %vm4737, %v8983, %v8944
    %v8985 = vsel %vm4739, %v8984, %v8947
    %v8986 = vsel %vm4741, %v8985, %v8950
    %v8987 = vsel %vm4743, %v8986, %v8953
    %v8988 = vsel %vm4745, %v8987, %v8956
    %v8989 = vsel %vm145, %v8988, %v8959
    %v8990 = vsel %vm4748, %v8989, %v8962
    %v8991 = vsel %vm4750, %v8990, %v8965
    %v8992 = vsel %vm4752, %v8991, %v8968
    %v8993 = vsel %vm4754, %v8992, %v8971
    %v8994 = vsel %vm4756, %v8993, %v8974
    %v8995 = vsel %vm4758, %v8994, %v8977
    %v8996 = vsel %vm4760, %v8995, %v8980
    %v8997 = vlaneseq
    %v8998 = vshrl.u32 %v8997, 7
    %v8999 = vsub.s32 3, %v8998
    %v9000 = vrot.slane %v8996, %v8999
    %v9001 = vadd.f32 %v8932, %v9000
    %v9002 = vadd.f32 %v8933, %v9000
    %v9003 = vadd.f32 %v8934, %v9000
    %v9004 = vadd.f32 %v8935, %v9000
    %v9005 = vadd.f32 %v9001, %v4878
    %v9006 = vadd.f32 %v9002, %v4880
    %v9007 = vadd.f32 %v9003, %v4882
    %v9008 = vadd.f32 %v9004, %v4884
    %v9009 = vmul.f32 %v9005, 0.2
    %v9010 = vmul.f32 %v9006, 0.2
    %v9011 = vmul.f32 %v9007, 0.2
    %v9012 = vmul.f32 %v9008, 0.2
    %v9013 = vmax.f32 %v9005, %v9009
    %v9014 = vmax.f32 %v9006, %v9010
    %v9015 = vmax.f32 %v9007, %v9011
    %v9016 = vmax.f32 %v9008, %v9012
    %9017 = vst [vmem:[#allocation7] sm:$0xff] %v9013
    %9018 = vst [vmem:[#allocation7 + $0x8] sm:$0xff] %v9014
    %9019 = vst [vmem:[#allocation7 + $0x10] sm:$0xff] %v9015
    %9020 = vst [vmem:[#allocation7 + $0x18] sm:$0xff] %v9016
    // Predicated region
    $region30: #{tpu_custom_call.1} parent=1 // pred_check
      _
    $region31: #{tpu_custom_call.1} parent=1 // pred_check_branch
      %9022 = sbr.rel (0) target = $region33
    $region32: #{tpu_custom_call.1} parent=1 // pred_region
      %s9024 = ssub.s32 512, 512
      %9025 = vsyncadd [#allocation4], %s9024
      %s9026 = sshll.u32 [#allocation7], 4
      %s9027 = int_to_ptr.vmem [resolvable:$true] %s9026
      %9032 = dma.vmem_to_hbm [thread:$0]  %s9027, 512, %s5, [#allocation4], 128, 128, 8
    $region33: #{tpu_custom_call.1} parent=1 // pred_fallthru
      _
    // Predicated region
    $region34: #{tpu_custom_call.1} parent=1 // pred_check
      _
    $region35: #{tpu_custom_call.1} parent=1 // pred_check_branch
      %9034 = sbr.rel (0) target = $region37
    $region36: #{tpu_custom_call.1} parent=1 // pred_region
      %9035 = dma.done [#allocation4], 512
    $region37: #{tpu_custom_call.1} parent=1 // pred_fallthru
      _
    %9036 = vsyncpa [#allocation3], 1
    %9037 = vsyncpa [#allocation6], 1
    %9038 = vsyncpa [#allocation4], 1

</llo_original>
